<compile_context>
chip_gen: v6e
topology: v6e:2x2x1
jax: 0.10.0
libtpu: 0.0.40
codegen_flags: <defaults>
</compile_context>

<pallas_src>
import functools

import numpy as np
import jax
import jax.numpy as jnp
from jax import lax
from jax.experimental import pallas as pl
from jax.experimental.pallas import tpu as pltpu


# ---------------------------------------------------------------------------
# Kernel: everything is (features, N) with N on lanes.  bf16 MXU, f32 accum.
# ---------------------------------------------------------------------------
def charcnn_kernel(x_ref,
                   w1a_ref, w1b_ref, w1c_ref, w1d_ref, b1_ref,
                   w2a_ref, w2b_ref, w2c_ref, w2d_ref, b2_ref,
                   f1w_ref, f1b_ref, f2w_ref, f2b_ref,
                   f3w_ref, f3b_ref, f4w_ref, f4b_ref,
                   out_ref):
    f32 = jnp.float32
    bf16 = jnp.bfloat16

    xb = x_ref[...]                                                  # (400, N) bf16

    # conv1 (1->8, 3x3, valid) + 2x2/2 maxpool.
    # Each quarter weight matrix has rows ordered (h//2, w//2, c_out) for one
    # (h%2, w%2) parity, so the pool is a running max over the 4 quarter
    # matmuls -- the full (2592, N) pre-pool tensor is never materialized.
    def q1(wref):
        return jnp.dot(wref[...], xb, preferred_element_type=f32)    # (648, N)

    p1 = q1(w1a_ref)
    p1 = jnp.maximum(p1, q1(w1b_ref))
    p1 = jnp.maximum(p1, q1(w1c_ref))
    p1 = jnp.maximum(p1, q1(w1d_ref))
    # bias constant across the 4 pooled candidates + relu monotone, so
    # relu(maxpool(conv)+b) == maxpool(relu(conv+b)).
    p1 = jnp.maximum(p1 + b1_ref[...], 0.0).astype(bf16)             # (648, N)

    # conv2 (8->16, 2x2, valid) + 2x2/2 maxpool, same quarter running-max.
    def q2(wref):
        return jnp.dot(wref[...], p1, preferred_element_type=f32)    # (256, N)

    p2 = q2(w2a_ref)
    p2 = jnp.maximum(p2, q2(w2b_ref))
    p2 = jnp.maximum(p2, q2(w2c_ref))
    p2 = jnp.maximum(p2, q2(w2d_ref))
    p2 = jnp.maximum(p2 + b2_ref[...], 0.0).astype(bf16)             # (256, N)

    # fc stack: bf16 MXU matmuls, f32 bias/relu, N stays on lanes.
    z1 = jnp.maximum(jnp.dot(f1w_ref[...], p2,
                             preferred_element_type=f32) + f1b_ref[...], 0.0)
    z2 = jnp.maximum(jnp.dot(f2w_ref[...], z1.astype(bf16),
                             preferred_element_type=f32) + f2b_ref[...], 0.0)
    z3 = jnp.maximum(jnp.dot(f3w_ref[...], z2.astype(bf16),
                             preferred_element_type=f32) + f3b_ref[...], 0.0)
    out_ref[...] = jnp.dot(f4w_ref[...], z3.astype(bf16),
                           preferred_element_type=f32) + f4b_ref[...]


# ---------------------------------------------------------------------------
# Host-side weight preparation.
# ---------------------------------------------------------------------------
def _pool_fused_selector(in_h, in_w, cin, kh, kw):
    """Static 0/1 tensor S[p, q, k] encoding a VALID conv whose output rows are
    ordered (h%2, w%2, h//2, w//2) so a following 2x2/2 maxpool is a max over
    the 4 contiguous row-quarters.
      p: output spatial index in pool-fused order
      q: input feature index, input flattened as (ih, iw, cin)
      k: kernel tap index matching torch weight.reshape(cout, cin*kh*kw)
    """
    out_h, out_w = in_h - kh + 1, in_w - kw + 1
    ph, pw = out_h // 2, out_w // 2
    S = np.zeros((out_h * out_w, in_h * in_w * cin, cin * kh * kw), np.float32)
    for h in range(out_h):
        for w in range(out_w):
            p = ((h % 2) * 2 + (w % 2)) * (ph * pw) + (h // 2) * pw + (w // 2)
            for ci in range(cin):
                for ky in range(kh):
                    for kx in range(kw):
                        q = ((h + ky) * in_w + (w + kx)) * cin + ci
                        k = (ci * kh + ky) * kw + kx
                        S[p, q, k] = 1.0
    return S


def prepare_params(params):
    """Torch-layout params -> kernel-layout params (dense bf16 conv quarter
    matrices, f32 biases, bf16 fc weights)."""
    (c1w, c1b, c2w, c2b, f1w, f1b, f2w, f2b, f3w, f3b, f4w, f4b) = params
    bf16 = jnp.bfloat16

    s1 = jnp.asarray(_pool_fused_selector(20, 20, 1, 3, 3))   # (324, 400, 9)
    s2 = jnp.asarray(_pool_fused_selector(9, 9, 8, 2, 2))     # (64, 648, 32)

    # Dense conv matrices, rows = (quarter, h//2, w//2, c_out); split into
    # the 4 pool quarters so the kernel can do a running max without ever
    # materializing the full pre-pool result.
    w1d = jnp.einsum('pqk,ok->poq', s1, c1w.reshape(8, 9)).reshape(2592, 400)
    w2d = jnp.einsum('pqk,ok->poq', s2, c2w.reshape(16, 32)).reshape(1024, 648)
    w1q = tuple(w1d[i * 648:(i + 1) * 648].astype(bf16) for i in range(4))
    w2q = tuple(w2d[i * 256:(i + 1) * 256].astype(bf16) for i in range(4))

    # Biases tiled per pooled spatial position (row order (h2, w2, c)), f32.
    b1 = jnp.tile(c1b, 81).reshape(648, 1)
    b2 = jnp.tile(c2b, 16).reshape(256, 1)

    # fc1 columns: torch flatten order (c, h, w) -> kernel order (h, w, c).
    f1wk = f1w.reshape(110, 16, 4, 4).transpose(0, 2, 3, 1).reshape(110, 256)

    return (*w1q, b1,
            *w2q, b2,
            f1wk.astype(bf16), f1b.reshape(110, 1),
            f2w.astype(bf16), f2b.reshape(150, 1),
            f3w.astype(bf16), f3b.reshape(130, 1),
            f4w.astype(bf16), f4b.reshape(35, 1))


# ---------------------------------------------------------------------------
# Forward wrapper: batch-tiled grid, weights VMEM-resident.
# ---------------------------------------------------------------------------
@functools.partial(jax.jit, static_argnames=("block_n",))
def charcnn_forward(x_nchw, kparams, *, block_n=512):
    """x_nchw: (N, 1, 20, 20) float32 -> (N, 35) float32."""
    n = x_nchw.shape[0]

    # v7x: keep >= 2 grid steps whenever the batch allows it so
    # dimension_semantics=("parallel",) spreads work over both TensorCores.
    half_pad = ((max(n, 1) + 1) // 2 + 127) // 128 * 128   # cdiv(n,2) -> mult of 128
    bn = max(128, min(block_n, half_pad))
    n_pad = (n + bn - 1) // bn * bn

    # (N,1,20,20) -> bf16 (400, N_pad): features (h*20+w) on sublanes, batch
    # on lanes.  bf16 here halves the activation HBM traffic into the kernel;
    # all matmul accumulation stays in f32 inside the kernel.
    xf = x_nchw.astype(jnp.bfloat16).reshape(n, 400).T
    xf = jnp.pad(xf, ((0, 0), (0, n_pad - n)))

    grid = (n_pad // bn,)
    const = lambda i: (0, 0)                       # weights: resident across steps
    in_specs = [pl.BlockSpec((400, bn), lambda i: (0, i))]
    in_specs += [pl.BlockSpec(a.shape, const) for a in kparams]
    out_specs = pl.BlockSpec((35, bn), lambda i: (0, i))

    flops = 2 * n_pad * (2592 * 400 + 1024 * 648 +
                         110 * 256 + 150 * 110 + 130 * 150 + 35 * 130)
    weight_bytes = sum(int(a.size) * a.dtype.itemsize for a in kparams)
    cost = pl.CostEstimate(
        flops=flops, transcendentals=0,
        bytes_accessed=int(xf.size) * 2 + 35 * n_pad * 4 + weight_bytes)

    out = pl.pallas_call(
        charcnn_kernel,
        out_shape=jax.ShapeDtypeStruct((35, n_pad), jnp.float32),
        grid=grid,
        in_specs=in_specs,
        out_specs=out_specs,
        compiler_params=pltpu.CompilerParams(
            dimension_semantics=("parallel",),
            vmem_limit_bytes=40 * 1024 * 1024),
        cost_estimate=cost,
    )(xf, *kparams)

    return out[:, :n].T                             # (N, 35)


# ---------------------------------------------------------------------------
# Pure-JAX reference (mirrors the PyTorch forward) + param init.
# ---------------------------------------------------------------------------
def ref_forward(x, params):
    (c1w, c1b, c2w, c2b, f1w, f1b, f2w, f2b, f3w, f3b, f4w, f4b) = params
    dn1 = lax.conv_dimension_numbers(x.shape, c1w.shape, ('NCHW', 'OIHW', 'NCHW'))
    h = lax.conv_general_dilated(x, c1w, (1, 1), 'VALID', dimension_numbers=dn1)
    h = jnp.maximum(h + c1b[None, :, None, None], 0.0)
    h = lax.reduce_window(h, -jnp.inf, lax.max, (1, 1, 2, 2), (1, 1, 2, 2), 'VALID')
    dn2 = lax.conv_dimension_numbers(h.shape, c2w.shape, ('NCHW', 'OIHW', 'NCHW'))
    h = lax.conv_general_dilated(h, c2w, (1, 1), 'VALID', dimension_numbers=dn2)
    h = jnp.maximum(h + c2b[None, :, None, None], 0.0)
    h = lax.reduce_window(h, -jnp.inf, lax.max, (1, 1, 2, 2), (1, 1, 2, 2), 'VALID')
    h = h.reshape(h.shape[0], 16 * 4 * 4)           # (C,H,W) flatten, like torch
    h = jnp.maximum(h @ f1w.T + f1b, 0.0)
    h = jnp.maximum(h @ f2w.T + f2b, 0.0)
    h = jnp.maximum(h @ f3w.T + f3b, 0.0)
    return h @ f4w.T + f4b


def init_params(key):
    ks = jax.random.split(key, 12)

    def mk(k, shape, fan_in):
        return jax.random.normal(k, shape, jnp.float32) / jnp.sqrt(fan_in)

    c1w = mk(ks[0], (8, 1, 3, 3), 9.0);      c1b = mk(ks[1], (8,), 9.0)
    c2w = mk(ks[2], (16, 8, 2, 2), 32.0);    c2b = mk(ks[3], (16,), 32.0)
    f1w = mk(ks[4], (110, 256), 256.0);      f1b = mk(ks[5], (110,), 256.0)
    f2w = mk(ks[6], (150, 110), 110.0);      f2b = mk(ks[7], (150,), 110.0)
    f3w = mk(ks[8], (130, 150), 150.0);      f3b = mk(ks[9], (130,), 150.0)
    f4w = mk(ks[10], (35, 130), 130.0);      f4b = mk(ks[11], (35,), 130.0)
    return (c1w, c1b, c2w, c2b, f1w, f1b, f2w, f2b, f3w, f3b, f4w, f4b)


if __name__ == "__main__":
    key = jax.random.PRNGKey(0)
    pkey, xkey = jax.random.split(key)
    params = init_params(pkey)
    kparams = prepare_params(params)

    # Small deterministic example (20x20 single-channel, as the fc1 size implies).
    N = 2
    x = jax.random.normal(xkey, (N, 1, 20, 20), jnp.float32)

    out = jax.block_until_ready(charcnn_forward(x, kparams))
    ref = jax.block_until_ready(ref_forward(x, params))
    assert out.shape == (N, 35), out.shape
    err = float(jnp.max(jnp.abs(out - ref)))
    # bf16 MXU operands (f32 accumulate) -> loosened tolerance vs f32 reference.
    assert jnp.allclose(out, ref, atol=1e-1, rtol=1e-1), f"max_err={err}"

    # Also exercise the multi-step batch grid (padding + tiled lanes + >=2
    # grid steps for the v7x megacore split).
    x2 = jax.random.normal(jax.random.PRNGKey(1), (300, 1, 20, 20), jnp.float32)
    out2 = jax.block_until_ready(charcnn_forward(x2, kparams))
    ref2 = jax.block_until_ready(ref_forward(x2, params))
    err2 = float(jnp.max(jnp.abs(out2 - ref2)))
    assert jnp.allclose(out2, ref2, atol=1e-1, rtol=1e-1), f"max_err={err2}"

    print("KERNEL_OK")
</pallas_src>

<mosaic_0001>
module attributes {stable_mosaic.version = 11 : i64} {
  func.func @charcnn_kernel(%arg0: i32, %arg1: memref<400x128xbf16, #tpu.memory_space<vmem>>, %arg2: memref<648x400xbf16, #tpu.memory_space<vmem>>, %arg3: memref<648x400xbf16, #tpu.memory_space<vmem>>, %arg4: memref<648x400xbf16, #tpu.memory_space<vmem>>, %arg5: memref<648x400xbf16, #tpu.memory_space<vmem>>, %arg6: memref<648x1xf32, #tpu.memory_space<vmem>>, %arg7: memref<256x648xbf16, #tpu.memory_space<vmem>>, %arg8: memref<256x648xbf16, #tpu.memory_space<vmem>>, %arg9: memref<256x648xbf16, #tpu.memory_space<vmem>>, %arg10: memref<256x648xbf16, #tpu.memory_space<vmem>>, %arg11: memref<256x1xf32, #tpu.memory_space<vmem>>, %arg12: memref<110x256xbf16, #tpu.memory_space<vmem>>, %arg13: memref<110x1xf32, #tpu.memory_space<vmem>>, %arg14: memref<150x110xbf16, #tpu.memory_space<vmem>>, %arg15: memref<150x1xf32, #tpu.memory_space<vmem>>, %arg16: memref<130x150xbf16, #tpu.memory_space<vmem>>, %arg17: memref<130x1xf32, #tpu.memory_space<vmem>>, %arg18: memref<35x130xbf16, #tpu.memory_space<vmem>>, %arg19: memref<35x1xf32, #tpu.memory_space<vmem>>, %arg20: memref<35x128xf32, #tpu.memory_space<vmem>>) attributes {dimension_semantics = [#tpu.dimension_semantics<parallel>], iteration_bounds = array<i64: 1>, scalar_prefetch = 0 : i64, scratch_operands = 0 : i64, tpu.core_type = #tpu.core_type<tc>, window_params = [{transform_indices = @transform_0, window_bounds = array<i64: 400, 128>}, {pipeline_mode = #tpu.pipeline_mode<synchronous>, transform_indices = @transform_1, window_bounds = array<i64: 648, 400>}, {pipeline_mode = #tpu.pipeline_mode<synchronous>, transform_indices = @transform_2, window_bounds = array<i64: 648, 400>}, {pipeline_mode = #tpu.pipeline_mode<synchronous>, transform_indices = @transform_3, window_bounds = array<i64: 648, 400>}, {pipeline_mode = #tpu.pipeline_mode<synchronous>, transform_indices = @transform_4, window_bounds = array<i64: 648, 400>}, {pipeline_mode = #tpu.pipeline_mode<synchronous>, transform_indices = @transform_5, window_bounds = array<i64: 648, 1>}, {pipeline_mode = #tpu.pipeline_mode<synchronous>, transform_indices = @transform_6, window_bounds = array<i64: 256, 648>}, {pipeline_mode = #tpu.pipeline_mode<synchronous>, transform_indices = @transform_7, window_bounds = array<i64: 256, 648>}, {pipeline_mode = #tpu.pipeline_mode<synchronous>, transform_indices = @transform_8, window_bounds = array<i64: 256, 648>}, {pipeline_mode = #tpu.pipeline_mode<synchronous>, transform_indices = @transform_9, window_bounds = array<i64: 256, 648>}, {pipeline_mode = #tpu.pipeline_mode<synchronous>, transform_indices = @transform_10, window_bounds = array<i64: 256, 1>}, {pipeline_mode = #tpu.pipeline_mode<synchronous>, transform_indices = @transform_11, window_bounds = array<i64: 110, 256>}, {pipeline_mode = #tpu.pipeline_mode<synchronous>, transform_indices = @transform_12, window_bounds = array<i64: 110, 1>}, {pipeline_mode = #tpu.pipeline_mode<synchronous>, transform_indices = @transform_13, window_bounds = array<i64: 150, 110>}, {pipeline_mode = #tpu.pipeline_mode<synchronous>, transform_indices = @transform_14, window_bounds = array<i64: 150, 1>}, {pipeline_mode = #tpu.pipeline_mode<synchronous>, transform_indices = @transform_15, window_bounds = array<i64: 130, 150>}, {pipeline_mode = #tpu.pipeline_mode<synchronous>, transform_indices = @transform_16, window_bounds = array<i64: 130, 1>}, {pipeline_mode = #tpu.pipeline_mode<synchronous>, transform_indices = @transform_17, window_bounds = array<i64: 35, 130>}, {pipeline_mode = #tpu.pipeline_mode<synchronous>, transform_indices = @transform_18, window_bounds = array<i64: 35, 1>}, {transform_indices = @transform_19, window_bounds = array<i64: 35, 128>}]} {
    %c0 = arith.constant 0 : index
    %c0_0 = arith.constant 0 : index
    %0 = vector.load %arg1[%c0, %c0_0] : memref<400x128xbf16, #tpu.memory_space<vmem>>, vector<400x128xbf16>
    %c0_1 = arith.constant 0 : index
    %c0_2 = arith.constant 0 : index
    %1 = vector.load %arg2[%c0_1, %c0_2] : memref<648x400xbf16, #tpu.memory_space<vmem>>, vector<648x400xbf16>
    %cst = arith.constant dense<0.000000e+00> : vector<648x128xf32>
    %2 = tpu.matmul %1, %0, %cst {dimension_numbers = #tpu.dot_dimension_numbers<[1], [0], [0], [1], [0, 0, 1, 1], [], []>} : vector<648x400xbf16>, vector<400x128xbf16>, vector<648x128xf32> -> vector<648x128xf32>
    %c0_3 = arith.constant 0 : index
    %c0_4 = arith.constant 0 : index
    %3 = vector.load %arg3[%c0_3, %c0_4] : memref<648x400xbf16, #tpu.memory_space<vmem>>, vector<648x400xbf16>
    %cst_5 = arith.constant dense<0.000000e+00> : vector<648x128xf32>
    %4 = tpu.matmul %3, %0, %cst_5 {dimension_numbers = #tpu.dot_dimension_numbers<[1], [0], [0], [1], [0, 0, 1, 1], [], []>} : vector<648x400xbf16>, vector<400x128xbf16>, vector<648x128xf32> -> vector<648x128xf32>
    %5 = arith.maximumf %2, %4 : vector<648x128xf32>
    %c0_6 = arith.constant 0 : index
    %c0_7 = arith.constant 0 : index
    %6 = vector.load %arg4[%c0_6, %c0_7] : memref<648x400xbf16, #tpu.memory_space<vmem>>, vector<648x400xbf16>
    %cst_8 = arith.constant dense<0.000000e+00> : vector<648x128xf32>
    %7 = tpu.matmul %6, %0, %cst_8 {dimension_numbers = #tpu.dot_dimension_numbers<[1], [0], [0], [1], [0, 0, 1, 1], [], []>} : vector<648x400xbf16>, vector<400x128xbf16>, vector<648x128xf32> -> vector<648x128xf32>
    %8 = arith.maximumf %5, %7 : vector<648x128xf32>
    %c0_9 = arith.constant 0 : index
    %c0_10 = arith.constant 0 : index
    %9 = vector.load %arg5[%c0_9, %c0_10] : memref<648x400xbf16, #tpu.memory_space<vmem>>, vector<648x400xbf16>
    %cst_11 = arith.constant dense<0.000000e+00> : vector<648x128xf32>
    %10 = tpu.matmul %9, %0, %cst_11 {dimension_numbers = #tpu.dot_dimension_numbers<[1], [0], [0], [1], [0, 0, 1, 1], [], []>} : vector<648x400xbf16>, vector<400x128xbf16>, vector<648x128xf32> -> vector<648x128xf32>
    %11 = arith.maximumf %8, %10 : vector<648x128xf32>
    %c0_12 = arith.constant 0 : index
    %c0_13 = arith.constant 0 : index
    %12 = vector.load %arg6[%c0_12, %c0_13] : memref<648x1xf32, #tpu.memory_space<vmem>>, vector<648x1xf32>
    %13 = vector.broadcast %12 : vector<648x1xf32> to vector<648x128xf32>
    %14 = arith.addf %11, %13 : vector<648x128xf32>
    %cst_14 = arith.constant 0.000000e+00 : f32
    %15 = vector.broadcast %cst_14 : f32 to vector<648x128xf32>
    %16 = arith.maximumf %14, %15 : vector<648x128xf32>
    %17 = arith.truncf %16 : vector<648x128xf32> to vector<648x128xbf16>
    %c0_15 = arith.constant 0 : index
    %c0_16 = arith.constant 0 : index
    %18 = vector.load %arg7[%c0_15, %c0_16] : memref<256x648xbf16, #tpu.memory_space<vmem>>, vector<256x648xbf16>
    %cst_17 = arith.constant dense<0.000000e+00> : vector<256x128xf32>
    %19 = tpu.matmul %18, %17, %cst_17 {dimension_numbers = #tpu.dot_dimension_numbers<[1], [0], [0], [1], [0, 0, 1, 1], [], []>} : vector<256x648xbf16>, vector<648x128xbf16>, vector<256x128xf32> -> vector<256x128xf32>
    %c0_18 = arith.constant 0 : index
    %c0_19 = arith.constant 0 : index
    %20 = vector.load %arg8[%c0_18, %c0_19] : memref<256x648xbf16, #tpu.memory_space<vmem>>, vector<256x648xbf16>
    %cst_20 = arith.constant dense<0.000000e+00> : vector<256x128xf32>
    %21 = tpu.matmul %20, %17, %cst_20 {dimension_numbers = #tpu.dot_dimension_numbers<[1], [0], [0], [1], [0, 0, 1, 1], [], []>} : vector<256x648xbf16>, vector<648x128xbf16>, vector<256x128xf32> -> vector<256x128xf32>
    %22 = arith.maximumf %19, %21 : vector<256x128xf32>
    %c0_21 = arith.constant 0 : index
    %c0_22 = arith.constant 0 : index
    %23 = vector.load %arg9[%c0_21, %c0_22] : memref<256x648xbf16, #tpu.memory_space<vmem>>, vector<256x648xbf16>
    %cst_23 = arith.constant dense<0.000000e+00> : vector<256x128xf32>
    %24 = tpu.matmul %23, %17, %cst_23 {dimension_numbers = #tpu.dot_dimension_numbers<[1], [0], [0], [1], [0, 0, 1, 1], [], []>} : vector<256x648xbf16>, vector<648x128xbf16>, vector<256x128xf32> -> vector<256x128xf32>
    %25 = arith.maximumf %22, %24 : vector<256x128xf32>
    %c0_24 = arith.constant 0 : index
    %c0_25 = arith.constant 0 : index
    %26 = vector.load %arg10[%c0_24, %c0_25] : memref<256x648xbf16, #tpu.memory_space<vmem>>, vector<256x648xbf16>
    %cst_26 = arith.constant dense<0.000000e+00> : vector<256x128xf32>
    %27 = tpu.matmul %26, %17, %cst_26 {dimension_numbers = #tpu.dot_dimension_numbers<[1], [0], [0], [1], [0, 0, 1, 1], [], []>} : vector<256x648xbf16>, vector<648x128xbf16>, vector<256x128xf32> -> vector<256x128xf32>
    %28 = arith.maximumf %25, %27 : vector<256x128xf32>
    %c0_27 = arith.constant 0 : index
    %c0_28 = arith.constant 0 : index
    %29 = vector.load %arg11[%c0_27, %c0_28] : memref<256x1xf32, #tpu.memory_space<vmem>>, vector<256x1xf32>
    %30 = vector.broadcast %29 : vector<256x1xf32> to vector<256x128xf32>
    %31 = arith.addf %28, %30 : vector<256x128xf32>
    %cst_29 = arith.constant 0.000000e+00 : f32
    %32 = vector.broadcast %cst_29 : f32 to vector<256x128xf32>
    %33 = arith.maximumf %31, %32 : vector<256x128xf32>
    %34 = arith.truncf %33 : vector<256x128xf32> to vector<256x128xbf16>
    %c0_30 = arith.constant 0 : index
    %c0_31 = arith.constant 0 : index
    %35 = vector.load %arg12[%c0_30, %c0_31] : memref<110x256xbf16, #tpu.memory_space<vmem>>, vector<110x256xbf16>
    %cst_32 = arith.constant dense<0.000000e+00> : vector<110x128xf32>
    %36 = tpu.matmul %35, %34, %cst_32 {dimension_numbers = #tpu.dot_dimension_numbers<[1], [0], [0], [1], [0, 0, 1, 1], [], []>} : vector<110x256xbf16>, vector<256x128xbf16>, vector<110x128xf32> -> vector<110x128xf32>
    %c0_33 = arith.constant 0 : index
    %c0_34 = arith.constant 0 : index
    %37 = vector.load %arg13[%c0_33, %c0_34] : memref<110x1xf32, #tpu.memory_space<vmem>>, vector<110x1xf32>
    %38 = vector.broadcast %37 : vector<110x1xf32> to vector<110x128xf32>
    %39 = arith.addf %36, %38 : vector<110x128xf32>
    %cst_35 = arith.constant 0.000000e+00 : f32
    %40 = vector.broadcast %cst_35 : f32 to vector<110x128xf32>
    %41 = arith.maximumf %39, %40 : vector<110x128xf32>
    %c0_36 = arith.constant 0 : index
    %c0_37 = arith.constant 0 : index
    %42 = vector.load %arg14[%c0_36, %c0_37] : memref<150x110xbf16, #tpu.memory_space<vmem>>, vector<150x110xbf16>
    %43 = arith.truncf %41 : vector<110x128xf32> to vector<110x128xbf16>
    %cst_38 = arith.constant dense<0.000000e+00> : vector<150x128xf32>
    %44 = tpu.matmul %42, %43, %cst_38 {dimension_numbers = #tpu.dot_dimension_numbers<[1], [0], [0], [1], [0, 0, 1, 1], [], []>} : vector<150x110xbf16>, vector<110x128xbf16>, vector<150x128xf32> -> vector<150x128xf32>
    %c0_39 = arith.constant 0 : index
    %c0_40 = arith.constant 0 : index
    %45 = vector.load %arg15[%c0_39, %c0_40] : memref<150x1xf32, #tpu.memory_space<vmem>>, vector<150x1xf32>
    %46 = vector.broadcast %45 : vector<150x1xf32> to vector<150x128xf32>
    %47 = arith.addf %44, %46 : vector<150x128xf32>
    %cst_41 = arith.constant 0.000000e+00 : f32
    %48 = vector.broadcast %cst_41 : f32 to vector<150x128xf32>
    %49 = arith.maximumf %47, %48 : vector<150x128xf32>
    %c0_42 = arith.constant 0 : index
    %c0_43 = arith.constant 0 : index
    %50 = vector.load %arg16[%c0_42, %c0_43] : memref<130x150xbf16, #tpu.memory_space<vmem>>, vector<130x150xbf16>
    %51 = arith.truncf %49 : vector<150x128xf32> to vector<150x128xbf16>
    %cst_44 = arith.constant dense<0.000000e+00> : vector<130x128xf32>
    %52 = tpu.matmul %50, %51, %cst_44 {dimension_numbers = #tpu.dot_dimension_numbers<[1], [0], [0], [1], [0, 0, 1, 1], [], []>} : vector<130x150xbf16>, vector<150x128xbf16>, vector<130x128xf32> -> vector<130x128xf32>
    %c0_45 = arith.constant 0 : index
    %c0_46 = arith.constant 0 : index
    %53 = vector.load %arg17[%c0_45, %c0_46] : memref<130x1xf32, #tpu.memory_space<vmem>>, vector<130x1xf32>
    %54 = vector.broadcast %53 : vector<130x1xf32> to vector<130x128xf32>
    %55 = arith.addf %52, %54 : vector<130x128xf32>
    %cst_47 = arith.constant 0.000000e+00 : f32
    %56 = vector.broadcast %cst_47 : f32 to vector<130x128xf32>
    %57 = arith.maximumf %55, %56 : vector<130x128xf32>
    %c0_48 = arith.constant 0 : index
    %c0_49 = arith.constant 0 : index
    %58 = vector.load %arg18[%c0_48, %c0_49] : memref<35x130xbf16, #tpu.memory_space<vmem>>, vector<35x130xbf16>
    %59 = arith.truncf %57 : vector<130x128xf32> to vector<130x128xbf16>
    %cst_50 = arith.constant dense<0.000000e+00> : vector<35x128xf32>
    %60 = tpu.matmul %58, %59, %cst_50 {dimension_numbers = #tpu.dot_dimension_numbers<[1], [0], [0], [1], [0, 0, 1, 1], [], []>} : vector<35x130xbf16>, vector<130x128xbf16>, vector<35x128xf32> -> vector<35x128xf32>
    %c0_51 = arith.constant 0 : index
    %c0_52 = arith.constant 0 : index
    %61 = vector.load %arg19[%c0_51, %c0_52] : memref<35x1xf32, #tpu.memory_space<vmem>>, vector<35x1xf32>
    %62 = vector.broadcast %61 : vector<35x1xf32> to vector<35x128xf32>
    %63 = arith.addf %60, %62 : vector<35x128xf32>
    %c0_53 = arith.constant 0 : index
    %c0_54 = arith.constant 0 : index
    %64 = vector.load %arg20[%c0_53, %c0_54] : memref<35x128xf32, #tpu.memory_space<vmem>>, vector<35x128xf32>
    tpu.vector_store %arg20[%c0_53, %c0_54], %63 {strides = array<i32>} : memref<35x128xf32, #tpu.memory_space<vmem>>, vector<35x128xf32>,
    return
  }
  func.func @transform_0(%arg0: i32) -> (i32, i32) {
    %c0_i32 = arith.constant 0 : i32
    %c0_i32_0 = arith.constant 0 : i32
    return %c0_i32, %arg0 : i32, i32
  }
  func.func @transform_1(%arg0: i32) -> (i32, i32) {
    %c0_i32 = arith.constant 0 : i32
    %c0_i32_0 = arith.constant 0 : i32
    %c0_i32_1 = arith.constant 0 : i32
    return %c0_i32, %c0_i32_0 : i32, i32
  }
  func.func @transform_2(%arg0: i32) -> (i32, i32) {
    %c0_i32 = arith.constant 0 : i32
    %c0_i32_0 = arith.constant 0 : i32
    %c0_i32_1 = arith.constant 0 : i32
    return %c0_i32, %c0_i32_0 : i32, i32
  }
  func.func @transform_3(%arg0: i32) -> (i32, i32) {
    %c0_i32 = arith.constant 0 : i32
    %c0_i32_0 = arith.constant 0 : i32
    %c0_i32_1 = arith.constant 0 : i32
    return %c0_i32, %c0_i32_0 : i32, i32
  }
  func.func @transform_4(%arg0: i32) -> (i32, i32) {
    %c0_i32 = arith.constant 0 : i32
    %c0_i32_0 = arith.constant 0 : i32
    %c0_i32_1 = arith.constant 0 : i32
    return %c0_i32, %c0_i32_0 : i32, i32
  }
  func.func @transform_5(%arg0: i32) -> (i32, i32) {
    %c0_i32 = arith.constant 0 : i32
    %c0_i32_0 = arith.constant 0 : i32
    %c0_i32_1 = arith.constant 0 : i32
    return %c0_i32, %c0_i32_0 : i32, i32
  }
  func.func @transform_6(%arg0: i32) -> (i32, i32) {
    %c0_i32 = arith.constant 0 : i32
    %c0_i32_0 = arith.constant 0 : i32
    %c0_i32_1 = arith.constant 0 : i32
    return %c0_i32, %c0_i32_0 : i32, i32
  }
  func.func @transform_7(%arg0: i32) -> (i32, i32) {
    %c0_i32 = arith.constant 0 : i32
    %c0_i32_0 = arith.constant 0 : i32
    %c0_i32_1 = arith.constant 0 : i32
    return %c0_i32, %c0_i32_0 : i32, i32
  }
  func.func @transform_8(%arg0: i32) -> (i32, i32) {
    %c0_i32 = arith.constant 0 : i32
    %c0_i32_0 = arith.constant 0 : i32
    %c0_i32_1 = arith.constant 0 : i32
    return %c0_i32, %c0_i32_0 : i32, i32
  }
  func.func @transform_9(%arg0: i32) -> (i32, i32) {
    %c0_i32 = arith.constant 0 : i32
    %c0_i32_0 = arith.constant 0 : i32
    %c0_i32_1 = arith.constant 0 : i32
    return %c0_i32, %c0_i32_0 : i32, i32
  }
  func.func @transform_10(%arg0: i32) -> (i32, i32) {
    %c0_i32 = arith.constant 0 : i32
    %c0_i32_0 = arith.constant 0 : i32
    %c0_i32_1 = arith.constant 0 : i32
    return %c0_i32, %c0_i32_0 : i32, i32
  }
  func.func @transform_11(%arg0: i32) -> (i32, i32) {
    %c0_i32 = arith.constant 0 : i32
    %c0_i32_0 = arith.constant 0 : i32
    %c0_i32_1 = arith.constant 0 : i32
    return %c0_i32, %c0_i32_0 : i32, i32
  }
  func.func @transform_12(%arg0: i32) -> (i32, i32) {
    %c0_i32 = arith.constant 0 : i32
    %c0_i32_0 = arith.constant 0 : i32
    %c0_i32_1 = arith.constant 0 : i32
    return %c0_i32, %c0_i32_0 : i32, i32
  }
  func.func @transform_13(%arg0: i32) -> (i32, i32) {
    %c0_i32 = arith.constant 0 : i32
    %c0_i32_0 = arith.constant 0 : i32
    %c0_i32_1 = arith.constant 0 : i32
    return %c0_i32, %c0_i32_0 : i32, i32
  }
  func.func @transform_14(%arg0: i32) -> (i32, i32) {
    %c0_i32 = arith.constant 0 : i32
    %c0_i32_0 = arith.constant 0 : i32
    %c0_i32_1 = arith.constant 0 : i32
    return %c0_i32, %c0_i32_0 : i32, i32
  }
  func.func @transform_15(%arg0: i32) -> (i32, i32) {
    %c0_i32 = arith.constant 0 : i32
    %c0_i32_0 = arith.constant 0 : i32
    %c0_i32_1 = arith.constant 0 : i32
    return %c0_i32, %c0_i32_0 : i32, i32
  }
  func.func @transform_16(%arg0: i32) -> (i32, i32) {
    %c0_i32 = arith.constant 0 : i32
    %c0_i32_0 = arith.constant 0 : i32
    %c0_i32_1 = arith.constant 0 : i32
    return %c0_i32, %c0_i32_0 : i32, i32
  }
  func.func @transform_17(%arg0: i32) -> (i32, i32) {
    %c0_i32 = arith.constant 0 : i32
    %c0_i32_0 = arith.constant 0 : i32
    %c0_i32_1 = arith.constant 0 : i32
    return %c0_i32, %c0_i32_0 : i32, i32
  }
  func.func @transform_18(%arg0: i32) -> (i32, i32) {
    %c0_i32 = arith.constant 0 : i32
    %c0_i32_0 = arith.constant 0 : i32
    %c0_i32_1 = arith.constant 0 : i32
    return %c0_i32, %c0_i32_0 : i32, i32
  }
  func.func @transform_19(%arg0: i32) -> (i32, i32) {
    %c0_i32 = arith.constant 0 : i32
    %c0_i32_0 = arith.constant 0 : i32
    return %c0_i32, %arg0 : i32, i32
  }
}

</mosaic_0001>

<llo_original>
// kernel: charcnn_forward.1
$region0: #{charcnn_forward.1}
  #allocation0 [shape = 'u32[]', space=smem, size = 0x4, offset = 0x4, fixed_abs, tag = 'smem constant byte address 0x4 - core index']
  #allocation1 [shape = 'u32[144,128]{1,0:T(1,128)}', space=vmem, size = 0x12000, scoped, tag = 'internal scratch']
  %s0 = inlined_call_operand.vmem [shape: bf16[400,128], index: 0, kind: input, shape index: {}]
  %s1 = inlined_call_operand.vmem [shape: bf16[648,400], index: 1, kind: input, shape index: {}]
  %s2 = inlined_call_operand.vmem [shape: bf16[648,400], index: 2, kind: input, shape index: {}]
  %s3 = inlined_call_operand.vmem [shape: bf16[648,400], index: 3, kind: input, shape index: {}]
  %s4 = inlined_call_operand.vmem [shape: bf16[648,400], index: 4, kind: input, shape index: {}]
  %s5 = inlined_call_operand.vmem [shape: f32[648,1], index: 5, kind: input, shape index: {}]
  %s6 = inlined_call_operand.vmem [shape: bf16[256,648], index: 6, kind: input, shape index: {}]
  %s7 = inlined_call_operand.vmem [shape: bf16[256,648], index: 7, kind: input, shape index: {}]
  %s8 = inlined_call_operand.vmem [shape: bf16[256,648], index: 8, kind: input, shape index: {}]
  %s9 = inlined_call_operand.vmem [shape: bf16[256,648], index: 9, kind: input, shape index: {}]
  %s10 = inlined_call_operand.vmem [shape: f32[256,1], index: 10, kind: input, shape index: {}]
  %s11 = inlined_call_operand.vmem [shape: bf16[110,256], index: 11, kind: input, shape index: {}]
  %s12 = inlined_call_operand.vmem [shape: f32[110,1], index: 12, kind: input, shape index: {}]
  %s13 = inlined_call_operand.vmem [shape: bf16[150,110], index: 13, kind: input, shape index: {}]
  %s14 = inlined_call_operand.vmem [shape: f32[150,1], index: 14, kind: input, shape index: {}]
  %s15 = inlined_call_operand.vmem [shape: bf16[130,150], index: 15, kind: input, shape index: {}]
  %s16 = inlined_call_operand.vmem [shape: f32[130,1], index: 16, kind: input, shape index: {}]
  %s17 = inlined_call_operand.vmem [shape: bf16[35,130], index: 17, kind: input, shape index: {}]
  %s18 = inlined_call_operand.vmem [shape: f32[35,1], index: 18, kind: input, shape index: {}]
  %s19 = inlined_call_operand.vmem [shape: f32[35,128], index: 19, kind: output, shape index: {}]
  %s20 = sld [smem:[#allocation0]]
  $region86: #{charcnn_forward.1} parent=0
    _
  %s22 = ssub.s32 1, %s20
  %s23 = scalar_select 0, %s22, %s20
  // Predicated region
  $region2: #{charcnn_forward.1} parent=0 // pred_check
    _
  $region3: #{charcnn_forward.1} parent=0 // pred_check_branch
    %25 = sbr.rel (0) target = $region5
  $region4: #{charcnn_forward.1} parent=0 // pred_region
    _
  $region5: #{charcnn_forward.1} parent=0 // pred_fallthru
    _
  // Predicated region
  $region6: #{charcnn_forward.1} parent=0 // pred_check
    _
  $region7: #{charcnn_forward.1} parent=0 // pred_check_branch
    %27 = sbr.rel (0) target = $region9
  $region8: #{charcnn_forward.1} parent=0 // pred_region
    _
  $region9: #{charcnn_forward.1} parent=0 // pred_fallthru
    _
  // Predicated region
  $region10: #{charcnn_forward.1} parent=0 // pred_check
    _
  $region11: #{charcnn_forward.1} parent=0 // pred_check_branch
    %29 = sbr.rel (0) target = $region13
  $region12: #{charcnn_forward.1} parent=0 // pred_region
    _
  $region13: #{charcnn_forward.1} parent=0 // pred_fallthru
    _
  // Predicated region
  $region14: #{charcnn_forward.1} parent=0 // pred_check
    _
  $region15: #{charcnn_forward.1} parent=0 // pred_check_branch
    %31 = sbr.rel (0) target = $region17
  $region16: #{charcnn_forward.1} parent=0 // pred_region
    _
  $region17: #{charcnn_forward.1} parent=0 // pred_fallthru
    _
  // Predicated region
  $region18: #{charcnn_forward.1} parent=0 // pred_check
    _
  $region19: #{charcnn_forward.1} parent=0 // pred_check_branch
    %33 = sbr.rel (0) target = $region21
  $region20: #{charcnn_forward.1} parent=0 // pred_region
    _
  $region21: #{charcnn_forward.1} parent=0 // pred_fallthru
    _
  // Predicated region
  $region22: #{charcnn_forward.1} parent=0 // pred_check
    _
  $region23: #{charcnn_forward.1} parent=0 // pred_check_branch
    %35 = sbr.rel (0) target = $region25
  $region24: #{charcnn_forward.1} parent=0 // pred_region
    _
  $region25: #{charcnn_forward.1} parent=0 // pred_fallthru
    _
  // Predicated region
  $region26: #{charcnn_forward.1} parent=0 // pred_check
    _
  $region27: #{charcnn_forward.1} parent=0 // pred_check_branch
    %37 = sbr.rel (0) target = $region29
  $region28: #{charcnn_forward.1} parent=0 // pred_region
    _
  $region29: #{charcnn_forward.1} parent=0 // pred_fallthru
    _
  // Predicated region
  $region30: #{charcnn_forward.1} parent=0 // pred_check
    _
  $region31: #{charcnn_forward.1} parent=0 // pred_check_branch
    %39 = sbr.rel (0) target = $region33
  $region32: #{charcnn_forward.1} parent=0 // pred_region
    _
  $region33: #{charcnn_forward.1} parent=0 // pred_fallthru
    _
  // Predicated region
  $region34: #{charcnn_forward.1} parent=0 // pred_check
    _
  $region35: #{charcnn_forward.1} parent=0 // pred_check_branch
    %41 = sbr.rel (0) target = $region37
  $region36: #{charcnn_forward.1} parent=0 // pred_region
    _
  $region37: #{charcnn_forward.1} parent=0 // pred_fallthru
    _
  // Predicated region
  $region38: #{charcnn_forward.1} parent=0 // pred_check
    _
  $region39: #{charcnn_forward.1} parent=0 // pred_check_branch
    %43 = sbr.rel (0) target = $region41
  $region40: #{charcnn_forward.1} parent=0 // pred_region
    _
  $region41: #{charcnn_forward.1} parent=0 // pred_fallthru
    _
  // Predicated region
  $region42: #{charcnn_forward.1} parent=0 // pred_check
    _
  $region43: #{charcnn_forward.1} parent=0 // pred_check_branch
    %45 = sbr.rel (0) target = $region45
  $region44: #{charcnn_forward.1} parent=0 // pred_region
    _
  $region45: #{charcnn_forward.1} parent=0 // pred_fallthru
    _
  // Predicated region
  $region46: #{charcnn_forward.1} parent=0 // pred_check
    _
  $region47: #{charcnn_forward.1} parent=0 // pred_check_branch
    %47 = sbr.rel (0) target = $region49
  $region48: #{charcnn_forward.1} parent=0 // pred_region
    _
  $region49: #{charcnn_forward.1} parent=0 // pred_fallthru
    _
  // Predicated region
  $region50: #{charcnn_forward.1} parent=0 // pred_check
    _
  $region51: #{charcnn_forward.1} parent=0 // pred_check_branch
    %49 = sbr.rel (0) target = $region53
  $region52: #{charcnn_forward.1} parent=0 // pred_region
    _
  $region53: #{charcnn_forward.1} parent=0 // pred_fallthru
    _
  // Predicated region
  $region54: #{charcnn_forward.1} parent=0 // pred_check
    _
  $region55: #{charcnn_forward.1} parent=0 // pred_check_branch
    %51 = sbr.rel (0) target = $region57
  $region56: #{charcnn_forward.1} parent=0 // pred_region
    _
  $region57: #{charcnn_forward.1} parent=0 // pred_fallthru
    _
  // Predicated region
  $region58: #{charcnn_forward.1} parent=0 // pred_check
    _
  $region59: #{charcnn_forward.1} parent=0 // pred_check_branch
    %53 = sbr.rel (0) target = $region61
  $region60: #{charcnn_forward.1} parent=0 // pred_region
    _
  $region61: #{charcnn_forward.1} parent=0 // pred_fallthru
    _
  // Predicated region
  $region62: #{charcnn_forward.1} parent=0 // pred_check
    _
  $region63: #{charcnn_forward.1} parent=0 // pred_check_branch
    %55 = sbr.rel (0) target = $region65
  $region64: #{charcnn_forward.1} parent=0 // pred_region
    _
  $region65: #{charcnn_forward.1} parent=0 // pred_fallthru
    _
  // Predicated region
  $region66: #{charcnn_forward.1} parent=0 // pred_check
    _
  $region67: #{charcnn_forward.1} parent=0 // pred_check_branch
    %57 = sbr.rel (0) target = $region69
  $region68: #{charcnn_forward.1} parent=0 // pred_region
    _
  $region69: #{charcnn_forward.1} parent=0 // pred_fallthru
    _
  // Predicated region
  $region70: #{charcnn_forward.1} parent=0 // pred_check
    _
  $region71: #{charcnn_forward.1} parent=0 // pred_check_branch
    %59 = sbr.rel (0) target = $region73
  $region72: #{charcnn_forward.1} parent=0 // pred_region
    _
  $region73: #{charcnn_forward.1} parent=0 // pred_fallthru
    _
  // Predicated region
  $region74: #{charcnn_forward.1} parent=0 // pred_check
    _
  $region75: #{charcnn_forward.1} parent=0 // pred_check_branch
    %61 = sbr.rel (0) target = $region77
  $region76: #{charcnn_forward.1} parent=0 // pred_region
    _
  $region77: #{charcnn_forward.1} parent=0 // pred_fallthru
    _
  %v63 = vld [vmem:[%s0] sm:$0xf]
  %v64 = vld [vmem:[%s0 + $0x4] sm:$0xf]
  %v65 = vld [vmem:[%s0 + $0x8] sm:$0xf]
  %v66 = vld [vmem:[%s0 + $0xc] sm:$0xf]
  %v67 = vld [vmem:[%s0 + $0x10] sm:$0xf]
  %v68 = vld [vmem:[%s0 + $0x14] sm:$0xf]
  %v69 = vld [vmem:[%s0 + $0x18] sm:$0xf]
  %v70 = vld [vmem:[%s0 + $0x1c] sm:$0xf]
  %v71 = vld [vmem:[%s0 + $0x20] sm:$0xf]
  %v72 = vld [vmem:[%s0 + $0x24] sm:$0xf]
  %v73 = vld [vmem:[%s0 + $0x28] sm:$0xf]
  %v74 = vld [vmem:[%s0 + $0x2c] sm:$0xf]
  %v75 = vld [vmem:[%s0 + $0x30] sm:$0xf]
  %v76 = vld [vmem:[%s0 + $0x34] sm:$0xf]
  %v77 = vld [vmem:[%s0 + $0x38] sm:$0xf]
  %v78 = vld [vmem:[%s0 + $0x3c] sm:$0xf]
  %v79 = vld [vmem:[%s0 + $0x40] sm:$0xf]
  %v80 = vld [vmem:[%s0 + $0x44] sm:$0xf]
  %v81 = vld [vmem:[%s0 + $0x48] sm:$0xf]
  %v82 = vld [vmem:[%s0 + $0x4c] sm:$0xf]
  %v83 = vld [vmem:[%s0 + $0x50] sm:$0xf]
  %v84 = vld [vmem:[%s0 + $0x54] sm:$0xf]
  %v85 = vld [vmem:[%s0 + $0x58] sm:$0xf]
  %v86 = vld [vmem:[%s0 + $0x5c] sm:$0xf]
  %v87 = vld [vmem:[%s0 + $0x60] sm:$0xf]
  %v88 = vld [vmem:[%s0 + $0x64] sm:$0xf]
  %v89 = vld [vmem:[%s0 + $0x68] sm:$0xf]
  %v90 = vld [vmem:[%s0 + $0x6c] sm:$0xf]
  %v91 = vld [vmem:[%s0 + $0x70] sm:$0xf]
  %v92 = vld [vmem:[%s0 + $0x74] sm:$0xf]
  %v93 = vld [vmem:[%s0 + $0x78] sm:$0xf]
  %v94 = vld [vmem:[%s0 + $0x7c] sm:$0xf]
  %v95 = vld [vmem:[%s0 + $0x80] sm:$0xf]
  %v96 = vld [vmem:[%s0 + $0x84] sm:$0xf]
  %v97 = vld [vmem:[%s0 + $0x88] sm:$0xf]
  %v98 = vld [vmem:[%s0 + $0x8c] sm:$0xf]
  %v99 = vld [vmem:[%s0 + $0x90] sm:$0xf]
  %v100 = vld [vmem:[%s0 + $0x94] sm:$0xf]
  %v101 = vld [vmem:[%s0 + $0x98] sm:$0xf]
  %v102 = vld [vmem:[%s0 + $0x9c] sm:$0xf]
  %v103 = vld [vmem:[%s0 + $0xa0] sm:$0xf]
  %v104 = vld [vmem:[%s0 + $0xa4] sm:$0xf]
  %v105 = vld [vmem:[%s0 + $0xa8] sm:$0xf]
  %v106 = vld [vmem:[%s0 + $0xac] sm:$0xf]
  %v107 = vld [vmem:[%s0 + $0xb0] sm:$0xf]
  %v108 = vld [vmem:[%s0 + $0xb4] sm:$0xf]
  %v109 = vld [vmem:[%s0 + $0xb8] sm:$0xf]
  %v110 = vld [vmem:[%s0 + $0xbc] sm:$0xf]
  %v111 = vld [vmem:[%s0 + $0xc0] sm:$0xf]
  %v112 = vld [vmem:[%s0 + $0xc4] sm:$0xf]
  %v113 = vld [vmem:[%s1] sm:$0xff]
  %v114 = vld [vmem:[%s1 + $0x8] sm:$0xff]
  %v115 = vld [vmem:[%s1 + $0x10] sm:$0xff]
  %v116 = vld [vmem:[%s1 + $0x18] sm:$0xff]
  %v117 = vld [vmem:[%s1 + $0x20] sm:$0xff]
  %v118 = vld [vmem:[%s1 + $0x28] sm:$0xff]
  %v119 = vld [vmem:[%s1 + $0x30] sm:$0xff]
  %v120 = vld [vmem:[%s1 + $0x38] sm:$0xff]
  %v121 = vld [vmem:[%s1 + $0x40] sm:$0xff]
  %v122 = vld [vmem:[%s1 + $0x48] sm:$0xff]
  %v123 = vld [vmem:[%s1 + $0x50] sm:$0xff]
  %v124 = vld [vmem:[%s1 + $0x58] sm:$0xff]
  %v125 = vld [vmem:[%s1 + $0x60] sm:$0xff]
  %v126 = vld [vmem:[%s1 + $0x68] sm:$0xff]
  %v127 = vld [vmem:[%s1 + $0x70] sm:$0xff]
  %v128 = vld [vmem:[%s1 + $0x78] sm:$0xff]
  %v129 = vld [vmem:[%s1 + $0x80] sm:$0xff]
  %v130 = vld [vmem:[%s1 + $0x88] sm:$0xff]
  %v131 = vld [vmem:[%s1 + $0x90] sm:$0xff]
  %v132 = vld [vmem:[%s1 + $0x98] sm:$0xff]
  %v133 = vld [vmem:[%s1 + $0xa0] sm:$0xff]
  %v134 = vld [vmem:[%s1 + $0xa8] sm:$0xff]
  %v135 = vld [vmem:[%s1 + $0xb0] sm:$0xff]
  %v136 = vld [vmem:[%s1 + $0xb8] sm:$0xff]
  %v137 = vld [vmem:[%s1 + $0xc0] sm:$0xff]
  %v138 = vld [vmem:[%s1 + $0xc8] sm:$0xff]
  %v139 = vld [vmem:[%s1 + $0xd0] sm:$0xff]
  %v140 = vld [vmem:[%s1 + $0xd8] sm:$0xff]
  %v141 = vld [vmem:[%s1 + $0xe0] sm:$0xff]
  %v142 = vld [vmem:[%s1 + $0xe8] sm:$0xff]
  %v143 = vld [vmem:[%s1 + $0xf0] sm:$0xff]
  %v144 = vld [vmem:[%s1 + $0xf8] sm:$0xff]
  %v145 = vld [vmem:[%s1 + $0x100] sm:$0xff]
  %v146 = vld [vmem:[%s1 + $0x108] sm:$0xff]
  %v147 = vld [vmem:[%s1 + $0x110] sm:$0xff]
  %v148 = vld [vmem:[%s1 + $0x118] sm:$0xff]
  %v149 = vld [vmem:[%s1 + $0x120] sm:$0xff]
  %v150 = vld [vmem:[%s1 + $0x128] sm:$0xff]
  %v151 = vld [vmem:[%s1 + $0x130] sm:$0xff]
  %v152 = vld [vmem:[%s1 + $0x138] sm:$0xff]
  %v153 = vld [vmem:[%s1 + $0x140] sm:$0xff]
  %v154 = vld [vmem:[%s1 + $0x148] sm:$0xff]
  %v155 = vld [vmem:[%s1 + $0x150] sm:$0xff]
  %v156 = vld [vmem:[%s1 + $0x158] sm:$0xff]
  %v157 = vld [vmem:[%s1 + $0x160] sm:$0xff]
  %v158 = vld [vmem:[%s1 + $0x168] sm:$0xff]
  %v159 = vld [vmem:[%s1 + $0x170] sm:$0xff]
  %v160 = vld [vmem:[%s1 + $0x178] sm:$0xff]
  %v161 = vld [vmem:[%s1 + $0x180] sm:$0xff]
  %v162 = vld [vmem:[%s1 + $0x188] sm:$0xff]
  %v163 = vld [vmem:[%s1 + $0x190] sm:$0xff]
  %v164 = vld [vmem:[%s1 + $0x198] sm:$0xff]
  %v165 = vld [vmem:[%s1 + $0x1a0] sm:$0xff]
  %v166 = vld [vmem:[%s1 + $0x1a8] sm:$0xff]
  %v167 = vld [vmem:[%s1 + $0x1b0] sm:$0xff]
  %v168 = vld [vmem:[%s1 + $0x1b8] sm:$0xff]
  %v169 = vld [vmem:[%s1 + $0x1c0] sm:$0xff]
  %v170 = vld [vmem:[%s1 + $0x1c8] sm:$0xff]
  %v171 = vld [vmem:[%s1 + $0x1d0] sm:$0xff]
  %v172 = vld [vmem:[%s1 + $0x1d8] sm:$0xff]
  %v173 = vld [vmem:[%s1 + $0x1e0] sm:$0xff]
  %v174 = vld [vmem:[%s1 + $0x1e8] sm:$0xff]
  %v175 = vld [vmem:[%s1 + $0x1f0] sm:$0xff]
  %v176 = vld [vmem:[%s1 + $0x1f8] sm:$0xff]
  %v177 = vld [vmem:[%s1 + $0x200] sm:$0xff]
  %v178 = vld [vmem:[%s1 + $0x208] sm:$0xff]
  %v179 = vld [vmem:[%s1 + $0x210] sm:$0xff]
  %v180 = vld [vmem:[%s1 + $0x218] sm:$0xff]
  %v181 = vld [vmem:[%s1 + $0x220] sm:$0xff]
  %v182 = vld [vmem:[%s1 + $0x228] sm:$0xff]
  %v183 = vld [vmem:[%s1 + $0x230] sm:$0xff]
  %v184 = vld [vmem:[%s1 + $0x238] sm:$0xff]
  %v185 = vld [vmem:[%s1 + $0x240] sm:$0xff]
  %v186 = vld [vmem:[%s1 + $0x248] sm:$0xff]
  %v187 = vld [vmem:[%s1 + $0x250] sm:$0xff]
  %v188 = vld [vmem:[%s1 + $0x258] sm:$0xff]
  %v189 = vld [vmem:[%s1 + $0x260] sm:$0xff]
  %v190 = vld [vmem:[%s1 + $0x268] sm:$0xff]
  %v191 = vld [vmem:[%s1 + $0x270] sm:$0xff]
  %v192 = vld [vmem:[%s1 + $0x278] sm:$0xff]
  %v193 = vld [vmem:[%s1 + $0x280] sm:$0xff]
  %v194 = vld [vmem:[%s1 + $0x288] sm:$0xff]
  %v195 = vld [vmem:[%s1 + $0x290] sm:$0xff]
  %v196 = vld [vmem:[%s1 + $0x298] sm:$0xff]
  %v197 = vld [vmem:[%s1 + $0x2a0] sm:$0xff]
  %v198 = vld [vmem:[%s1 + $0x2a8] sm:$0xff]
  %v199 = vld [vmem:[%s1 + $0x2b0] sm:$0xff]
  %v200 = vld [vmem:[%s1 + $0x2b8] sm:$0xff]
  %v201 = vld [vmem:[%s1 + $0x2c0] sm:$0xff]
  %v202 = vld [vmem:[%s1 + $0x2c8] sm:$0xff]
  %v203 = vld [vmem:[%s1 + $0x2d0] sm:$0xff]
  %v204 = vld [vmem:[%s1 + $0x2d8] sm:$0xff]
  %v205 = vld [vmem:[%s1 + $0x2e0] sm:$0xff]
  %v206 = vld [vmem:[%s1 + $0x2e8] sm:$0xff]
  %v207 = vld [vmem:[%s1 + $0x2f0] sm:$0xff]
  %v208 = vld [vmem:[%s1 + $0x2f8] sm:$0xff]
  %v209 = vld [vmem:[%s1 + $0x300] sm:$0xff]
  %v210 = vld [vmem:[%s1 + $0x308] sm:$0xff]
  %v211 = vld [vmem:[%s1 + $0x310] sm:$0xff]
  %v212 = vld [vmem:[%s1 + $0x318] sm:$0xff]
  %v213 = vld [vmem:[%s1 + $0x320] sm:$0xff]
  %v214 = vld [vmem:[%s1 + $0x328] sm:$0xff]
  %v215 = vld [vmem:[%s1 + $0x330] sm:$0xff]
  %v216 = vld [vmem:[%s1 + $0x338] sm:$0xff]
  %v217 = vld [vmem:[%s1 + $0x340] sm:$0xff]
  %v218 = vld [vmem:[%s1 + $0x348] sm:$0xff]
  %v219 = vld [vmem:[%s1 + $0x350] sm:$0xff]
  %v220 = vld [vmem:[%s1 + $0x358] sm:$0xff]
  %v221 = vld [vmem:[%s1 + $0x360] sm:$0xff]
  %v222 = vld [vmem:[%s1 + $0x368] sm:$0xff]
  %v223 = vld [vmem:[%s1 + $0x370] sm:$0xff]
  %v224 = vld [vmem:[%s1 + $0x378] sm:$0xff]
  %v225 = vld [vmem:[%s1 + $0x380] sm:$0xff]
  %v226 = vld [vmem:[%s1 + $0x388] sm:$0xff]
  %v227 = vld [vmem:[%s1 + $0x390] sm:$0xff]
  %v228 = vld [vmem:[%s1 + $0x398] sm:$0xff]
  %v229 = vld [vmem:[%s1 + $0x3a0] sm:$0xff]
  %v230 = vld [vmem:[%s1 + $0x3a8] sm:$0xff]
  %v231 = vld [vmem:[%s1 + $0x3b0] sm:$0xff]
  %v232 = vld [vmem:[%s1 + $0x3b8] sm:$0xff]
  %v233 = vld [vmem:[%s1 + $0x3c0] sm:$0xff]
  %v234 = vld [vmem:[%s1 + $0x3c8] sm:$0xff]
  %v235 = vld [vmem:[%s1 + $0x3d0] sm:$0xff]
  %v236 = vld [vmem:[%s1 + $0x3d8] sm:$0xff]
  %v237 = vld [vmem:[%s1 + $0x3e0] sm:$0xff]
  %v238 = vld [vmem:[%s1 + $0x3e8] sm:$0xff]
  %v239 = vld [vmem:[%s1 + $0x3f0] sm:$0xff]
  %v240 = vld [vmem:[%s1 + $0x3f8] sm:$0xff]
  %v241 = vld [vmem:[%s1 + $0x400] sm:$0xff]
  %v242 = vld [vmem:[%s1 + $0x408] sm:$0xff]
  %v243 = vld [vmem:[%s1 + $0x410] sm:$0xff]
  %v244 = vld [vmem:[%s1 + $0x418] sm:$0xff]
  %v245 = vld [vmem:[%s1 + $0x420] sm:$0xff]
  %v246 = vld [vmem:[%s1 + $0x428] sm:$0xff]
  %v247 = vld [vmem:[%s1 + $0x430] sm:$0xff]
  %v248 = vld [vmem:[%s1 + $0x438] sm:$0xff]
  %v249 = vld [vmem:[%s1 + $0x440] sm:$0xff]
  %v250 = vld [vmem:[%s1 + $0x448] sm:$0xff]
  %v251 = vld [vmem:[%s1 + $0x450] sm:$0xff]
  %v252 = vld [vmem:[%s1 + $0x458] sm:$0xff]
  %v253 = vld [vmem:[%s1 + $0x460] sm:$0xff]
  %v254 = vld [vmem:[%s1 + $0x468] sm:$0xff]
  %v255 = vld [vmem:[%s1 + $0x470] sm:$0xff]
  %v256 = vld [vmem:[%s1 + $0x478] sm:$0xff]
  %v257 = vld [vmem:[%s1 + $0x480] sm:$0xff]
  %v258 = vld [vmem:[%s1 + $0x488] sm:$0xff]
  %v259 = vld [vmem:[%s1 + $0x490] sm:$0xff]
  %v260 = vld [vmem:[%s1 + $0x498] sm:$0xff]
  %v261 = vld [vmem:[%s1 + $0x4a0] sm:$0xff]
  %v262 = vld [vmem:[%s1 + $0x4a8] sm:$0xff]
  %v263 = vld [vmem:[%s1 + $0x4b0] sm:$0xff]
  %v264 = vld [vmem:[%s1 + $0x4b8] sm:$0xff]
  %v265 = vld [vmem:[%s1 + $0x4c0] sm:$0xff]
  %v266 = vld [vmem:[%s1 + $0x4c8] sm:$0xff]
  %v267 = vld [vmem:[%s1 + $0x4d0] sm:$0xff]
  %v268 = vld [vmem:[%s1 + $0x4d8] sm:$0xff]
  %v269 = vld [vmem:[%s1 + $0x4e0] sm:$0xff]
  %v270 = vld [vmem:[%s1 + $0x4e8] sm:$0xff]
  %v271 = vld [vmem:[%s1 + $0x4f0] sm:$0xff]
  %v272 = vld [vmem:[%s1 + $0x4f8] sm:$0xff]
  %v273 = vld [vmem:[%s1 + $0x500] sm:$0xff]
  %v274 = vld [vmem:[%s1 + $0x508] sm:$0xff]
  %v437 = vunpack.c.l.b16 %v113
  %v438 = vunpack.c.h.b16 %v113
  %v439 = vunpack.c.l.b16 %v114
  %v440 = vunpack.c.h.b16 %v114
  %v441 = vunpack.c.l.b16 %v115
  %v442 = vunpack.c.h.b16 %v115
  %v443 = vunpack.c.l.b16 %v116
  %v444 = vunpack.c.h.b16 %v116
  %v445 = vunpack.c.l.b16 %v117
  %v446 = vunpack.c.h.b16 %v117
  %v447 = vunpack.c.l.b16 %v118
  %v448 = vunpack.c.h.b16 %v118
  %v449 = vunpack.c.l.b16 %v119
  %v450 = vunpack.c.h.b16 %v119
  %v451 = vunpack.c.l.b16 %v120
  %v452 = vunpack.c.h.b16 %v120
  %v453 = vunpack.c.l.b16 %v121
  %v454 = vunpack.c.h.b16 %v121
  %v455 = vunpack.c.l.b16 %v122
  %v456 = vunpack.c.h.b16 %v122
  %v457 = vunpack.c.l.b16 %v123
  %v458 = vunpack.c.h.b16 %v123
  %v459 = vunpack.c.l.b16 %v124
  %v460 = vunpack.c.h.b16 %v124
  %v461 = vunpack.c.l.b16 %v125
  %v462 = vunpack.c.h.b16 %v125
  %v463 = vunpack.c.l.b16 %v126
  %v464 = vunpack.c.h.b16 %v126
  %v465 = vunpack.c.l.b16 %v127
  %v466 = vunpack.c.h.b16 %v127
  %v467 = vunpack.c.l.b16 %v128
  %v468 = vunpack.c.h.b16 %v128
  %v469 = vunpack.c.l.b16 %v129
  %v470 = vunpack.c.h.b16 %v129
  %v471 = vunpack.c.l.b16 %v130
  %v472 = vunpack.c.h.b16 %v130
  %v473 = vunpack.c.l.b16 %v131
  %v474 = vunpack.c.h.b16 %v131
  %v475 = vunpack.c.l.b16 %v132
  %v476 = vunpack.c.h.b16 %v132
  %v477 = vunpack.c.l.b16 %v133
  %v478 = vunpack.c.h.b16 %v133
  %v479 = vunpack.c.l.b16 %v134
  %v480 = vunpack.c.h.b16 %v134
  %v481 = vunpack.c.l.b16 %v135
  %v482 = vunpack.c.h.b16 %v135
  %v483 = vunpack.c.l.b16 %v136
  %v484 = vunpack.c.h.b16 %v136
  %v485 = vunpack.c.l.b16 %v137
  %v486 = vunpack.c.h.b16 %v137
  %v487 = vunpack.c.l.b16 %v138
  %v488 = vunpack.c.h.b16 %v138
  %v489 = vunpack.c.l.b16 %v139
  %v490 = vunpack.c.h.b16 %v139
  %v491 = vunpack.c.l.b16 %v140
  %v492 = vunpack.c.h.b16 %v140
  %v493 = vunpack.c.l.b16 %v141
  %v494 = vunpack.c.h.b16 %v141
  %v495 = vunpack.c.l.b16 %v142
  %v496 = vunpack.c.h.b16 %v142
  %v497 = vunpack.c.l.b16 %v143
  %v498 = vunpack.c.h.b16 %v143
  %v499 = vunpack.c.l.b16 %v144
  %v500 = vunpack.c.h.b16 %v144
  %v501 = vunpack.c.l.b16 %v145
  %v502 = vunpack.c.h.b16 %v145
  %v503 = vunpack.c.l.b16 %v146
  %v504 = vunpack.c.h.b16 %v146
  %v505 = vunpack.c.l.b16 %v147
  %v506 = vunpack.c.h.b16 %v147
  %v507 = vunpack.c.l.b16 %v148
  %v508 = vunpack.c.h.b16 %v148
  %v509 = vunpack.c.l.b16 %v149
  %v510 = vunpack.c.h.b16 %v149
  %v511 = vunpack.c.l.b16 %v150
  %v512 = vunpack.c.h.b16 %v150
  %v513 = vunpack.c.l.b16 %v151
  %v514 = vunpack.c.h.b16 %v151
  %v515 = vunpack.c.l.b16 %v152
  %v516 = vunpack.c.h.b16 %v152
  %v517 = vunpack.c.l.b16 %v153
  %v518 = vunpack.c.h.b16 %v153
  %v519 = vunpack.c.l.b16 %v154
  %v520 = vunpack.c.h.b16 %v154
  %v521 = vunpack.c.l.b16 %v155
  %v522 = vunpack.c.h.b16 %v155
  %v523 = vunpack.c.l.b16 %v156
  %v524 = vunpack.c.h.b16 %v156
  %v525 = vunpack.c.l.b16 %v157
  %v526 = vunpack.c.h.b16 %v157
  %v527 = vunpack.c.l.b16 %v158
  %v528 = vunpack.c.h.b16 %v158
  %v529 = vunpack.c.l.b16 %v159
  %v530 = vunpack.c.h.b16 %v159
  %v531 = vunpack.c.l.b16 %v160
  %v532 = vunpack.c.h.b16 %v160
  %v533 = vunpack.c.l.b16 %v161
  %v534 = vunpack.c.h.b16 %v161
  %v535 = vunpack.c.l.b16 %v162
  %v536 = vunpack.c.h.b16 %v162
  %v537 = vunpack.c.l.b16 %v163
  %v538 = vunpack.c.h.b16 %v163
  %v539 = vunpack.c.l.b16 %v164
  %v540 = vunpack.c.h.b16 %v164
  %v541 = vunpack.c.l.b16 %v165
  %v542 = vunpack.c.h.b16 %v165
  %v543 = vunpack.c.l.b16 %v166
  %v544 = vunpack.c.h.b16 %v166
  %v545 = vunpack.c.l.b16 %v167
  %v546 = vunpack.c.h.b16 %v167
  %v547 = vunpack.c.l.b16 %v168
  %v548 = vunpack.c.h.b16 %v168
  %v549 = vunpack.c.l.b16 %v169
  %v550 = vunpack.c.h.b16 %v169
  %v551 = vunpack.c.l.b16 %v170
  %v552 = vunpack.c.h.b16 %v170
  %v553 = vunpack.c.l.b16 %v171
  %v554 = vunpack.c.h.b16 %v171
  %v555 = vunpack.c.l.b16 %v172
  %v556 = vunpack.c.h.b16 %v172
  %v557 = vunpack.c.l.b16 %v173
  %v558 = vunpack.c.h.b16 %v173
  %v559 = vunpack.c.l.b16 %v174
  %v560 = vunpack.c.h.b16 %v174
  %v561 = vunpack.c.l.b16 %v175
  %v562 = vunpack.c.h.b16 %v175
  %v563 = vunpack.c.l.b16 %v176
  %v564 = vunpack.c.h.b16 %v176
  %v565 = vunpack.c.l.b16 %v177
  %v566 = vunpack.c.h.b16 %v177
  %v567 = vunpack.c.l.b16 %v178
  %v568 = vunpack.c.h.b16 %v178
  %v569 = vunpack.c.l.b16 %v179
  %v570 = vunpack.c.h.b16 %v179
  %v571 = vunpack.c.l.b16 %v180
  %v572 = vunpack.c.h.b16 %v180
  %v573 = vunpack.c.l.b16 %v181
  %v574 = vunpack.c.h.b16 %v181
  %v575 = vunpack.c.l.b16 %v182
  %v576 = vunpack.c.h.b16 %v182
  %v577 = vunpack.c.l.b16 %v183
  %v578 = vunpack.c.h.b16 %v183
  %v579 = vunpack.c.l.b16 %v184
  %v580 = vunpack.c.h.b16 %v184
  %v581 = vunpack.c.l.b16 %v185
  %v582 = vunpack.c.h.b16 %v185
  %v583 = vunpack.c.l.b16 %v186
  %v584 = vunpack.c.h.b16 %v186
  %v585 = vunpack.c.l.b16 %v187
  %v586 = vunpack.c.h.b16 %v187
  %v587 = vunpack.c.l.b16 %v188
  %v588 = vunpack.c.h.b16 %v188
  %v589 = vunpack.c.l.b16 %v189
  %v590 = vunpack.c.h.b16 %v189
  %v591 = vunpack.c.l.b16 %v190
  %v592 = vunpack.c.h.b16 %v190
  %v593 = vunpack.c.l.b16 %v191
  %v594 = vunpack.c.h.b16 %v191
  %v595 = vunpack.c.l.b16 %v192
  %v596 = vunpack.c.h.b16 %v192
  %v597 = vunpack.c.l.b16 %v193
  %v598 = vunpack.c.h.b16 %v193
  %v599 = vunpack.c.l.b16 %v194
  %v600 = vunpack.c.h.b16 %v194
  %v601 = vunpack.c.l.b16 %v195
  %v602 = vunpack.c.h.b16 %v195
  %v603 = vunpack.c.l.b16 %v196
  %v604 = vunpack.c.h.b16 %v196
  %v605 = vunpack.c.l.b16 %v197
  %v606 = vunpack.c.h.b16 %v197
  %v607 = vunpack.c.l.b16 %v198
  %v608 = vunpack.c.h.b16 %v198
  %v609 = vunpack.c.l.b16 %v199
  %v610 = vunpack.c.h.b16 %v199
  %v611 = vunpack.c.l.b16 %v200
  %v612 = vunpack.c.h.b16 %v200
  %v613 = vunpack.c.l.b16 %v201
  %v614 = vunpack.c.h.b16 %v201
  %v615 = vunpack.c.l.b16 %v202
  %v616 = vunpack.c.h.b16 %v202
  %v617 = vunpack.c.l.b16 %v203
  %v618 = vunpack.c.h.b16 %v203
  %v619 = vunpack.c.l.b16 %v204
  %v620 = vunpack.c.h.b16 %v204
  %v621 = vunpack.c.l.b16 %v205
  %v622 = vunpack.c.h.b16 %v205
  %v623 = vunpack.c.l.b16 %v206
  %v624 = vunpack.c.h.b16 %v206
  %v625 = vunpack.c.l.b16 %v207
  %v626 = vunpack.c.h.b16 %v207
  %v627 = vunpack.c.l.b16 %v208
  %v628 = vunpack.c.h.b16 %v208
  %v629 = vunpack.c.l.b16 %v209
  %v630 = vunpack.c.h.b16 %v209
  %v631 = vunpack.c.l.b16 %v210
  %v632 = vunpack.c.h.b16 %v210
  %v633 = vunpack.c.l.b16 %v211
  %v634 = vunpack.c.h.b16 %v211
  %v635 = vunpack.c.l.b16 %v212
  %v636 = vunpack.c.h.b16 %v212
  %v637 = vunpack.c.l.b16 %v213
  %v638 = vunpack.c.h.b16 %v213
  %v639 = vunpack.c.l.b16 %v214
  %v640 = vunpack.c.h.b16 %v214
  %v641 = vunpack.c.l.b16 %v215
  %v642 = vunpack.c.h.b16 %v215
  %v643 = vunpack.c.l.b16 %v216
  %v644 = vunpack.c.h.b16 %v216
  %v645 = vunpack.c.l.b16 %v217
  %v646 = vunpack.c.h.b16 %v217
  %v647 = vunpack.c.l.b16 %v218
  %v648 = vunpack.c.h.b16 %v218
  %v649 = vunpack.c.l.b16 %v219
  %v650 = vunpack.c.h.b16 %v219
  %v651 = vunpack.c.l.b16 %v220
  %v652 = vunpack.c.h.b16 %v220
  %v653 = vunpack.c.l.b16 %v221
  %v654 = vunpack.c.h.b16 %v221
  %v655 = vunpack.c.l.b16 %v222
  %v656 = vunpack.c.h.b16 %v222
  %v657 = vunpack.c.l.b16 %v223
  %v658 = vunpack.c.h.b16 %v223
  %v659 = vunpack.c.l.b16 %v224
  %v660 = vunpack.c.h.b16 %v224
  %v661 = vunpack.c.l.b16 %v225
  %v662 = vunpack.c.h.b16 %v225
  %v663 = vunpack.c.l.b16 %v226
  %v664 = vunpack.c.h.b16 %v226
  %v665 = vunpack.c.l.b16 %v227
  %v666 = vunpack.c.h.b16 %v227
  %v667 = vunpack.c.l.b16 %v228
  %v668 = vunpack.c.h.b16 %v228
  %v669 = vunpack.c.l.b16 %v229
  %v670 = vunpack.c.h.b16 %v229
  %v671 = vunpack.c.l.b16 %v230
  %v672 = vunpack.c.h.b16 %v230
  %v673 = vunpack.c.l.b16 %v231
  %v674 = vunpack.c.h.b16 %v231
  %v675 = vunpack.c.l.b16 %v232
  %v676 = vunpack.c.h.b16 %v232
  %v677 = vunpack.c.l.b16 %v233
  %v678 = vunpack.c.h.b16 %v233
  %v679 = vunpack.c.l.b16 %v234
  %v680 = vunpack.c.h.b16 %v234
  %v681 = vunpack.c.l.b16 %v235
  %v682 = vunpack.c.h.b16 %v235
  %v683 = vunpack.c.l.b16 %v236
  %v684 = vunpack.c.h.b16 %v236
  %v685 = vunpack.c.l.b16 %v237
  %v686 = vunpack.c.h.b16 %v237
  %v687 = vunpack.c.l.b16 %v238
  %v688 = vunpack.c.h.b16 %v238
  %v689 = vunpack.c.l.b16 %v239
  %v690 = vunpack.c.h.b16 %v239
  %v691 = vunpack.c.l.b16 %v240
  %v692 = vunpack.c.h.b16 %v240
  %v693 = vunpack.c.l.b16 %v241
  %v694 = vunpack.c.h.b16 %v241
  %v695 = vunpack.c.l.b16 %v242
  %v696 = vunpack.c.h.b16 %v242
  %v697 = vunpack.c.l.b16 %v243
  %v698 = vunpack.c.h.b16 %v243
  %v699 = vunpack.c.l.b16 %v244
  %v700 = vunpack.c.h.b16 %v244
  %v701 = vunpack.c.l.b16 %v245
  %v702 = vunpack.c.h.b16 %v245
  %v703 = vunpack.c.l.b16 %v246
  %v704 = vunpack.c.h.b16 %v246
  %v705 = vunpack.c.l.b16 %v247
  %v706 = vunpack.c.h.b16 %v247
  %v707 = vunpack.c.l.b16 %v248
  %v708 = vunpack.c.h.b16 %v248
  %v709 = vunpack.c.l.b16 %v249
  %v710 = vunpack.c.h.b16 %v249
  %v711 = vunpack.c.l.b16 %v250
  %v712 = vunpack.c.h.b16 %v250
  %v713 = vunpack.c.l.b16 %v251
  %v714 = vunpack.c.h.b16 %v251
  %v715 = vunpack.c.l.b16 %v252
  %v716 = vunpack.c.h.b16 %v252
  %v717 = vunpack.c.l.b16 %v253
  %v718 = vunpack.c.h.b16 %v253
  %v719 = vunpack.c.l.b16 %v254
  %v720 = vunpack.c.h.b16 %v254
  %v721 = vunpack.c.l.b16 %v255
  %v722 = vunpack.c.h.b16 %v255
  %v723 = vunpack.c.l.b16 %v256
  %v724 = vunpack.c.h.b16 %v256
  %v725 = vunpack.c.l.b16 %v257
  %v726 = vunpack.c.h.b16 %v257
  %v727 = vunpack.c.l.b16 %v258
  %v728 = vunpack.c.h.b16 %v258
  %v729 = vunpack.c.l.b16 %v259
  %v730 = vunpack.c.h.b16 %v259
  %v731 = vunpack.c.l.b16 %v260
  %v732 = vunpack.c.h.b16 %v260
  %v733 = vunpack.c.l.b16 %v261
  %v734 = vunpack.c.h.b16 %v261
  %v735 = vunpack.c.l.b16 %v262
  %v736 = vunpack.c.h.b16 %v262
  %v737 = vunpack.c.l.b16 %v263
  %v738 = vunpack.c.h.b16 %v263
  %v739 = vunpack.c.l.b16 %v264
  %v740 = vunpack.c.h.b16 %v264
  %v741 = vunpack.c.l.b16 %v265
  %v742 = vunpack.c.h.b16 %v265
  %v743 = vunpack.c.l.b16 %v266
  %v744 = vunpack.c.h.b16 %v266
  %v745 = vunpack.c.l.b16 %v267
  %v746 = vunpack.c.h.b16 %v267
  %v747 = vunpack.c.l.b16 %v268
  %v748 = vunpack.c.h.b16 %v268
  %v749 = vunpack.c.l.b16 %v269
  %v750 = vunpack.c.h.b16 %v269
  %v751 = vunpack.c.l.b16 %v270
  %v752 = vunpack.c.h.b16 %v270
  %v753 = vunpack.c.l.b16 %v271
  %v754 = vunpack.c.h.b16 %v271
  %v755 = vunpack.c.l.b16 %v272
  %v756 = vunpack.c.h.b16 %v272
  %v757 = vunpack.c.l.b16 %v273
  %v758 = vunpack.c.h.b16 %v273
  %v759 = vunpack.c.l.b16 %v274
  %v760 = vunpack.c.h.b16 %v274
  %v761 = vpack.c.b16 %v441, %v437
  %v762 = vpack.c.b16 %v442, %v438
  %v763 = vpack.c.b16 %v443, %v439
  %v764 = vpack.c.b16 %v444, %v440
  %v765 = vpack.c.b16 %v449, %v445
  %v766 = vpack.c.b16 %v450, %v446
  %v767 = vpack.c.b16 %v451, %v447
  %v768 = vpack.c.b16 %v452, %v448
  %v769 = vpack.c.b16 %v457, %v453
  %v770 = vpack.c.b16 %v458, %v454
  %v771 = vpack.c.b16 %v459, %v455
  %v772 = vpack.c.b16 %v460, %v456
  %v773 = vpack.c.b16 %v465, %v461
  %v774 = vpack.c.b16 %v466, %v462
  %v775 = vpack.c.b16 %v467, %v463
  %v776 = vpack.c.b16 %v468, %v464
  %v777 = vpack.c.b16 %v473, %v469
  %v778 = vpack.c.b16 %v474, %v470
  %v779 = vpack.c.b16 %v475, %v471
  %v780 = vpack.c.b16 %v476, %v472
  %v781 = vpack.c.b16 %v481, %v477
  %v782 = vpack.c.b16 %v482, %v478
  %v783 = vpack.c.b16 %v483, %v479
  %v784 = vpack.c.b16 %v484, %v480
  %v785 = vpack.c.b16 %v489, %v485
  %v786 = vpack.c.b16 %v490, %v486
  %v787 = vpack.c.b16 %v491, %v487
  %v788 = vpack.c.b16 %v492, %v488
  %v789 = vpack.c.b16 %v497, %v493
  %v790 = vpack.c.b16 %v498, %v494
  %v791 = vpack.c.b16 %v499, %v495
  %v792 = vpack.c.b16 %v500, %v496
  %v793 = vpack.c.b16 %v505, %v501
  %v794 = vpack.c.b16 %v506, %v502
  %v795 = vpack.c.b16 %v507, %v503
  %v796 = vpack.c.b16 %v508, %v504
  %v797 = vpack.c.b16 %v513, %v509
  %v798 = vpack.c.b16 %v514, %v510
  %v799 = vpack.c.b16 %v515, %v511
  %v800 = vpack.c.b16 %v516, %v512
  %v801 = vpack.c.b16 %v521, %v517
  %v802 = vpack.c.b16 %v522, %v518
  %v803 = vpack.c.b16 %v523, %v519
  %v804 = vpack.c.b16 %v524, %v520
  %v805 = vpack.c.b16 %v529, %v525
  %v806 = vpack.c.b16 %v530, %v526
  %v807 = vpack.c.b16 %v531, %v527
  %v808 = vpack.c.b16 %v532, %v528
  %v809 = vpack.c.b16 %v537, %v533
  %v810 = vpack.c.b16 %v538, %v534
  %v811 = vpack.c.b16 %v539, %v535
  %v812 = vpack.c.b16 %v540, %v536
  %v813 = vpack.c.b16 %v545, %v541
  %v814 = vpack.c.b16 %v546, %v542
  %v815 = vpack.c.b16 %v547, %v543
  %v816 = vpack.c.b16 %v548, %v544
  %v817 = vpack.c.b16 %v553, %v549
  %v818 = vpack.c.b16 %v554, %v550
  %v819 = vpack.c.b16 %v555, %v551
  %v820 = vpack.c.b16 %v556, %v552
  %v821 = vpack.c.b16 %v561, %v557
  %v822 = vpack.c.b16 %v562, %v558
  %v823 = vpack.c.b16 %v563, %v559
  %v824 = vpack.c.b16 %v564, %v560
  %v825 = vpack.c.b16 %v569, %v565
  %v826 = vpack.c.b16 %v570, %v566
  %v827 = vpack.c.b16 %v571, %v567
  %v828 = vpack.c.b16 %v572, %v568
  %v829 = vpack.c.b16 %v577, %v573
  %v830 = vpack.c.b16 %v578, %v574
  %v831 = vpack.c.b16 %v579, %v575
  %v832 = vpack.c.b16 %v580, %v576
  %v833 = vpack.c.b16 %v585, %v581
  %v834 = vpack.c.b16 %v586, %v582
  %v835 = vpack.c.b16 %v587, %v583
  %v836 = vpack.c.b16 %v588, %v584
  %v837 = vpack.c.b16 %v593, %v589
  %v838 = vpack.c.b16 %v594, %v590
  %v839 = vpack.c.b16 %v595, %v591
  %v840 = vpack.c.b16 %v596, %v592
  %v841 = vpack.c.b16 %v601, %v597
  %v842 = vpack.c.b16 %v602, %v598
  %v843 = vpack.c.b16 %v603, %v599
  %v844 = vpack.c.b16 %v604, %v600
  %v845 = vpack.c.b16 %v609, %v605
  %v846 = vpack.c.b16 %v610, %v606
  %v847 = vpack.c.b16 %v611, %v607
  %v848 = vpack.c.b16 %v612, %v608
  %v849 = vpack.c.b16 %v617, %v613
  %v850 = vpack.c.b16 %v618, %v614
  %v851 = vpack.c.b16 %v619, %v615
  %v852 = vpack.c.b16 %v620, %v616
  %v853 = vpack.c.b16 %v625, %v621
  %v854 = vpack.c.b16 %v626, %v622
  %v855 = vpack.c.b16 %v627, %v623
  %v856 = vpack.c.b16 %v628, %v624
  %v857 = vpack.c.b16 %v633, %v629
  %v858 = vpack.c.b16 %v634, %v630
  %v859 = vpack.c.b16 %v635, %v631
  %v860 = vpack.c.b16 %v636, %v632
  %v861 = vpack.c.b16 %v641, %v637
  %v862 = vpack.c.b16 %v642, %v638
  %v863 = vpack.c.b16 %v643, %v639
  %v864 = vpack.c.b16 %v644, %v640
  %v865 = vpack.c.b16 %v649, %v645
  %v866 = vpack.c.b16 %v650, %v646
  %v867 = vpack.c.b16 %v651, %v647
  %v868 = vpack.c.b16 %v652, %v648
  %v869 = vpack.c.b16 %v657, %v653
  %v870 = vpack.c.b16 %v658, %v654
  %v871 = vpack.c.b16 %v659, %v655
  %v872 = vpack.c.b16 %v660, %v656
  %v873 = vpack.c.b16 %v665, %v661
  %v874 = vpack.c.b16 %v666, %v662
  %v875 = vpack.c.b16 %v667, %v663
  %v876 = vpack.c.b16 %v668, %v664
  %v877 = vpack.c.b16 %v673, %v669
  %v878 = vpack.c.b16 %v674, %v670
  %v879 = vpack.c.b16 %v675, %v671
  %v880 = vpack.c.b16 %v676, %v672
  %v881 = vpack.c.b16 %v681, %v677
  %v882 = vpack.c.b16 %v682, %v678
  %v883 = vpack.c.b16 %v683, %v679
  %v884 = vpack.c.b16 %v684, %v680
  %v885 = vpack.c.b16 %v689, %v685
  %v886 = vpack.c.b16 %v690, %v686
  %v887 = vpack.c.b16 %v691, %v687
  %v888 = vpack.c.b16 %v692, %v688
  %v889 = vpack.c.b16 %v697, %v693
  %v890 = vpack.c.b16 %v698, %v694
  %v891 = vpack.c.b16 %v699, %v695
  %v892 = vpack.c.b16 %v700, %v696
  %v893 = vpack.c.b16 %v705, %v701
  %v894 = vpack.c.b16 %v706, %v702
  %v895 = vpack.c.b16 %v707, %v703
  %v896 = vpack.c.b16 %v708, %v704
  %v897 = vpack.c.b16 %v713, %v709
  %v898 = vpack.c.b16 %v714, %v710
  %v899 = vpack.c.b16 %v715, %v711
  %v900 = vpack.c.b16 %v716, %v712
  %v901 = vpack.c.b16 %v721, %v717
  %v902 = vpack.c.b16 %v722, %v718
  %v903 = vpack.c.b16 %v723, %v719
  %v904 = vpack.c.b16 %v724, %v720
  %v905 = vpack.c.b16 %v729, %v725
  %v906 = vpack.c.b16 %v730, %v726
  %v907 = vpack.c.b16 %v731, %v727
  %v908 = vpack.c.b16 %v732, %v728
  %v909 = vpack.c.b16 %v737, %v733
  %v910 = vpack.c.b16 %v738, %v734
  %v911 = vpack.c.b16 %v739, %v735
  %v912 = vpack.c.b16 %v740, %v736
  %v913 = vpack.c.b16 %v745, %v741
  %v914 = vpack.c.b16 %v746, %v742
  %v915 = vpack.c.b16 %v747, %v743
  %v916 = vpack.c.b16 %v748, %v744
  %v917 = vpack.c.b16 %v753, %v749
  %v918 = vpack.c.b16 %v754, %v750
  %v919 = vpack.c.b16 %v755, %v751
  %v920 = vpack.c.b16 %v756, %v752
  %v921 = vpack.c.b16 %v757, %v757
  %v922 = vpack.c.b16 %v758, %v758
  %v923 = vpack.c.b16 %v759, %v759
  %v924 = vpack.c.b16 %v760, %v760
  %v1098 = vunpack.c.l.b16 %v63
  %v1099 = vunpack.c.l.b16 %v64
  %v1100 = vunpack.c.l.b16 %v65
  %v1101 = vunpack.c.l.b16 %v66
  %v1102 = vunpack.c.l.b16 %v67
  %v1103 = vunpack.c.l.b16 %v68
  %v1104 = vunpack.c.l.b16 %v69
  %v1105 = vunpack.c.l.b16 %v70
  %v1106 = vunpack.c.l.b16 %v71
  %v1107 = vunpack.c.l.b16 %v72
  %v1108 = vunpack.c.l.b16 %v73
  %v1109 = vunpack.c.l.b16 %v74
  %v1110 = vunpack.c.l.b16 %v75
  %v1111 = vunpack.c.l.b16 %v76
  %v1112 = vunpack.c.l.b16 %v77
  %v1113 = vunpack.c.l.b16 %v78
  %v1114 = vunpack.c.l.b16 %v79
  %v1115 = vunpack.c.l.b16 %v80
  %v1116 = vunpack.c.l.b16 %v81
  %v1117 = vunpack.c.l.b16 %v82
  %v1118 = vunpack.c.l.b16 %v83
  %v1119 = vunpack.c.l.b16 %v84
  %v1120 = vunpack.c.l.b16 %v85
  %v1121 = vunpack.c.l.b16 %v86
  %v1122 = vunpack.c.l.b16 %v87
  %v1123 = vunpack.c.l.b16 %v88
  %v1124 = vunpack.c.l.b16 %v89
  %v1125 = vunpack.c.l.b16 %v90
  %v1126 = vunpack.c.l.b16 %v91
  %v1127 = vunpack.c.l.b16 %v92
  %v1128 = vunpack.c.l.b16 %v93
  %v1129 = vunpack.c.l.b16 %v94
  %v1130 = vunpack.c.l.b16 %v95
  %v1131 = vunpack.c.l.b16 %v96
  %v1132 = vunpack.c.l.b16 %v97
  %v1133 = vunpack.c.l.b16 %v98
  %v1134 = vunpack.c.l.b16 %v99
  %v1135 = vunpack.c.l.b16 %v100
  %v1136 = vunpack.c.l.b16 %v101
  %v1137 = vunpack.c.l.b16 %v102
  %v1138 = vunpack.c.l.b16 %v103
  %v1139 = vunpack.c.l.b16 %v104
  %v1140 = vunpack.c.l.b16 %v105
  %v1141 = vunpack.c.l.b16 %v106
  %v1142 = vunpack.c.l.b16 %v107
  %v1143 = vunpack.c.l.b16 %v108
  %v1144 = vunpack.c.l.b16 %v109
  %v1145 = vunpack.c.l.b16 %v110
  %v1146 = vunpack.c.l.b16 %v111
  %v1147 = vunpack.c.l.b16 %v112
  %v1148 = vpack.c.b16 %v1099, %v1098
  %v1149 = vpack.c.b16 %v1101, %v1100
  %v1150 = vpack.c.b16 %v1103, %v1102
  %v1151 = vpack.c.b16 %v1105, %v1104
  %v1152 = vpack.c.b16 %v1107, %v1106
  %v1153 = vpack.c.b16 %v1109, %v1108
  %v1154 = vpack.c.b16 %v1111, %v1110
  %v1155 = vpack.c.b16 %v1113, %v1112
  %v1156 = vpack.c.b16 %v1115, %v1114
  %v1157 = vpack.c.b16 %v1117, %v1116
  %v1158 = vpack.c.b16 %v1119, %v1118
  %v1159 = vpack.c.b16 %v1121, %v1120
  %v1160 = vpack.c.b16 %v1123, %v1122
  %v1161 = vpack.c.b16 %v1125, %v1124
  %v1162 = vpack.c.b16 %v1127, %v1126
  %v1163 = vpack.c.b16 %v1129, %v1128
  %v1164 = vpack.c.b16 %v1131, %v1130
  %v1165 = vpack.c.b16 %v1133, %v1132
  %v1166 = vpack.c.b16 %v1135, %v1134
  %v1167 = vpack.c.b16 %v1137, %v1136
  %v1168 = vpack.c.b16 %v1139, %v1138
  %v1169 = vpack.c.b16 %v1141, %v1140
  %v1170 = vpack.c.b16 %v1143, %v1142
  %v1171 = vpack.c.b16 %v1145, %v1144
  %v1172 = vpack.c.b16 %v1147, %v1146
  %vm1198 = vcmask 130048
  %v1200 = vsel %vm1198, %v764, 0
  %v1203 = vsel %vm1198, %v768, 0
  %v1206 = vsel %vm1198, %v772, 0
  %v1209 = vsel %vm1198, %v776, 0
  %v1212 = vsel %vm1198, %v780, 0
  %v1215 = vsel %vm1198, %v784, 0
  %v1218 = vsel %vm1198, %v788, 0
  %v1221 = vsel %vm1198, %v792, 0
  %v1224 = vsel %vm1198, %v796, 0
  %v1227 = vsel %vm1198, %v800, 0
  %v1230 = vsel %vm1198, %v804, 0
  %v1233 = vsel %vm1198, %v808, 0
  %v1236 = vsel %vm1198, %v812, 0
  %v1239 = vsel %vm1198, %v816, 0
  %v1242 = vsel %vm1198, %v820, 0
  %v1245 = vsel %vm1198, %v824, 0
  %v1248 = vsel %vm1198, %v828, 0
  %v1251 = vsel %vm1198, %v832, 0
  %v1254 = vsel %vm1198, %v836, 0
  %v1257 = vsel %vm1198, %v840, 0
  %v1260 = vsel %vm1198, %v844, 0
  %v1263 = vsel %vm1198, %v848, 0
  %v1266 = vsel %vm1198, %v852, 0
  %v1269 = vsel %vm1198, %v856, 0
  %v1272 = vsel %vm1198, %v860, 0
  %v1275 = vsel %vm1198, %v864, 0
  %v1278 = vsel %vm1198, %v868, 0
  %v1281 = vsel %vm1198, %v872, 0
  %v1284 = vsel %vm1198, %v876, 0
  %v1287 = vsel %vm1198, %v880, 0
  %v1290 = vsel %vm1198, %v884, 0
  %v1293 = vsel %vm1198, %v888, 0
  %v1296 = vsel %vm1198, %v892, 0
  %v1299 = vsel %vm1198, %v896, 0
  %v1302 = vsel %vm1198, %v900, 0
  %v1305 = vsel %vm1198, %v904, 0
  %v1308 = vsel %vm1198, %v908, 0
  %v1311 = vsel %vm1198, %v912, 0
  %v1314 = vsel %vm1198, %v916, 0
  %v1317 = vsel %vm1198, %v920, 0
  %v1320 = vsel %vm1198, %v924, 0
  %1322 = vmatprep.subr.bf16.mxu0 0
  %1323 = vmatpush1.bf16.msra.mxu0 %v1155
  %1324 = vmatprep.subr.bf16.mxu0 0
  %1325 = vmatpush1.bf16.msra.mxu0 %v1154
  %1326 = vmatprep.subr.bf16.mxu0 0
  %1327 = vmatpush1.bf16.msra.mxu0 %v1153
  %1328 = vmatprep.subr.bf16.mxu0 0
  %1329 = vmatpush1.bf16.msra.mxu0 %v1152
  %1330 = vmatprep.subr.bf16.mxu0 0
  %1331 = vmatpush1.bf16.msra.mxu0 %v1151
  %1332 = vmatprep.subr.bf16.mxu0 0
  %1333 = vmatpush1.bf16.msra.mxu0 %v1150
  %1334 = vmatprep.subr.bf16.mxu0 0
  %1335 = vmatpush1.bf16.msra.mxu0 %v1149
  %1336 = vmatprep.subr.bf16.mxu0 0
  %1337 = vmatpush1.bf16.msra.mxu0 %v1148
  %1338 = vmatprep.subr.bf16.mxu0 0
  %1339 = vmatpush2.bf16.msra.mxu0 %v1163
  %1340 = vmatprep.subr.bf16.mxu0 0
  %1341 = vmatpush2.bf16.msra.mxu0 %v1162
  %1342 = vmatprep.subr.bf16.mxu0 0
  %1343 = vmatpush2.bf16.msra.mxu0 %v1161
  %1344 = vmatprep.subr.bf16.mxu0 0
  %1345 = vmatpush2.bf16.msra.mxu0 %v1160
  %1346 = vmatprep.subr.bf16.mxu0 0
  %1347 = vmatpush2.bf16.msra.mxu0 %v1159
  %1348 = vmatprep.subr.bf16.mxu0 0
  %1349 = vmatpush2.bf16.msra.mxu0 %v1158
  %1350 = vmatprep.subr.bf16.mxu0 0
  %1351 = vmatpush2.bf16.msra.mxu0 %v1157
  %1352 = vmatprep.subr.bf16.mxu0 0
  %1353 = vmatpush2.bf16.msra.mxu0 %v1156
  %1354 = vmatprep.mubr.bf16.mxu0 %v762
  %1355 = vmatmul.mubr.bf16.gmra.mxu0 %v761
  %v1356 = vpop.f32.mrf.mxu0
  %v1357 = vadd.f32 0.0, %v1356
  %v1358 = vpop.f32.mrf.mxu0
  %v1359 = vpop.f32.mrf.mxu0
  %v1360 = vadd.f32 0.0, %v1359
  %v1361 = vpop.f32.mrf.mxu0
  %1362 = vmatprep.mubr.bf16.mxu0 %v766
  %1363 = vmatmul.mubr.bf16.gmra.mxu0 %v765
  %v1364 = vpop.f32.mrf.mxu0
  %v1365 = vadd.f32 0.0, %v1364
  %v1366 = vpop.f32.mrf.mxu0
  %v1367 = vpop.f32.mrf.mxu0
  %v1368 = vadd.f32 0.0, %v1367
  %v1369 = vpop.f32.mrf.mxu0
  %1370 = vmatprep.mubr.bf16.mxu0 %v770
  %1371 = vmatmul.mubr.bf16.gmra.mxu0 %v769
  %v1372 = vpop.f32.mrf.mxu0
  %v1373 = vadd.f32 0.0, %v1372
  %v1374 = vpop.f32.mrf.mxu0
  %v1375 = vpop.f32.mrf.mxu0
  %v1376 = vadd.f32 0.0, %v1375
  %v1377 = vpop.f32.mrf.mxu0
  %1378 = vmatprep.mubr.bf16.mxu0 %v774
  %1379 = vmatmul.mubr.bf16.gmra.mxu0 %v773
  %v1380 = vpop.f32.mrf.mxu0
  %v1381 = vadd.f32 0.0, %v1380
  %v1382 = vpop.f32.mrf.mxu0
  %v1383 = vpop.f32.mrf.mxu0
  %v1384 = vadd.f32 0.0, %v1383
  %v1385 = vpop.f32.mrf.mxu0
  %1386 = vmatprep.mubr.bf16.mxu0 %v778
  %1387 = vmatmul.mubr.bf16.gmra.mxu0 %v777
  %v1388 = vpop.f32.mrf.mxu0
  %v1389 = vadd.f32 0.0, %v1388
  %v1390 = vpop.f32.mrf.mxu0
  %v1391 = vpop.f32.mrf.mxu0
  %v1392 = vadd.f32 0.0, %v1391
  %v1393 = vpop.f32.mrf.mxu0
  %1394 = vmatprep.mubr.bf16.mxu0 %v782
  %1395 = vmatmul.mubr.bf16.gmra.mxu0 %v781
  %v1396 = vpop.f32.mrf.mxu0
  %v1397 = vadd.f32 0.0, %v1396
  %v1398 = vpop.f32.mrf.mxu0
  %v1399 = vpop.f32.mrf.mxu0
  %v1400 = vadd.f32 0.0, %v1399
  %v1401 = vpop.f32.mrf.mxu0
  %1402 = vmatprep.mubr.bf16.mxu0 %v786
  %1403 = vmatmul.mubr.bf16.gmra.mxu0 %v785
  %v1404 = vpop.f32.mrf.mxu0
  %v1405 = vadd.f32 0.0, %v1404
  %v1406 = vpop.f32.mrf.mxu0
  %v1407 = vpop.f32.mrf.mxu0
  %v1408 = vadd.f32 0.0, %v1407
  %v1409 = vpop.f32.mrf.mxu0
  %1410 = vmatprep.mubr.bf16.mxu0 %v790
  %1411 = vmatmul.mubr.bf16.gmra.mxu0 %v789
  %v1412 = vpop.f32.mrf.mxu0
  %v1413 = vadd.f32 0.0, %v1412
  %v1414 = vpop.f32.mrf.mxu0
  %v1415 = vpop.f32.mrf.mxu0
  %v1416 = vadd.f32 0.0, %v1415
  %v1417 = vpop.f32.mrf.mxu0
  %1418 = vmatprep.mubr.bf16.mxu0 %v794
  %1419 = vmatmul.mubr.bf16.gmra.mxu0 %v793
  %v1420 = vpop.f32.mrf.mxu0
  %v1421 = vadd.f32 0.0, %v1420
  %v1422 = vpop.f32.mrf.mxu0
  %v1423 = vpop.f32.mrf.mxu0
  %v1424 = vadd.f32 0.0, %v1423
  %v1425 = vpop.f32.mrf.mxu0
  %1426 = vmatprep.mubr.bf16.mxu0 %v798
  %1427 = vmatmul.mubr.bf16.gmra.mxu0 %v797
  %v1428 = vpop.f32.mrf.mxu0
  %v1429 = vadd.f32 0.0, %v1428
  %v1430 = vpop.f32.mrf.mxu0
  %v1431 = vpop.f32.mrf.mxu0
  %v1432 = vadd.f32 0.0, %v1431
  %v1433 = vpop.f32.mrf.mxu0
  %1434 = vmatprep.mubr.bf16.mxu0 %v802
  %1435 = vmatmul.mubr.bf16.gmra.mxu0 %v801
  %v1436 = vpop.f32.mrf.mxu0
  %v1437 = vadd.f32 0.0, %v1436
  %v1438 = vpop.f32.mrf.mxu0
  %v1439 = vpop.f32.mrf.mxu0
  %v1440 = vadd.f32 0.0, %v1439
  %v1441 = vpop.f32.mrf.mxu0
  %1442 = vmatprep.mubr.bf16.mxu0 %v806
  %1443 = vmatmul.mubr.bf16.gmra.mxu0 %v805
  %v1444 = vpop.f32.mrf.mxu0
  %v1445 = vadd.f32 0.0, %v1444
  %v1446 = vpop.f32.mrf.mxu0
  %v1447 = vpop.f32.mrf.mxu0
  %v1448 = vadd.f32 0.0, %v1447
  %v1449 = vpop.f32.mrf.mxu0
  %1450 = vmatprep.mubr.bf16.mxu0 %v810
  %1451 = vmatmul.mubr.bf16.gmra.mxu0 %v809
  %v1452 = vpop.f32.mrf.mxu0
  %v1453 = vadd.f32 0.0, %v1452
  %v1454 = vpop.f32.mrf.mxu0
  %v1455 = vpop.f32.mrf.mxu0
  %v1456 = vadd.f32 0.0, %v1455
  %v1457 = vpop.f32.mrf.mxu0
  %1458 = vmatprep.mubr.bf16.mxu0 %v814
  %1459 = vmatmul.mubr.bf16.gmra.mxu0 %v813
  %v1460 = vpop.f32.mrf.mxu0
  %v1461 = vadd.f32 0.0, %v1460
  %v1462 = vpop.f32.mrf.mxu0
  %v1463 = vpop.f32.mrf.mxu0
  %v1464 = vadd.f32 0.0, %v1463
  %v1465 = vpop.f32.mrf.mxu0
  %1466 = vmatprep.mubr.bf16.mxu0 %v818
  %1467 = vmatmul.mubr.bf16.gmra.mxu0 %v817
  %v1468 = vpop.f32.mrf.mxu0
  %v1469 = vadd.f32 0.0, %v1468
  %v1470 = vpop.f32.mrf.mxu0
  %v1471 = vpop.f32.mrf.mxu0
  %v1472 = vadd.f32 0.0, %v1471
  %v1473 = vpop.f32.mrf.mxu0
  %1474 = vmatprep.mubr.bf16.mxu0 %v822
  %1475 = vmatmul.mubr.bf16.gmra.mxu0 %v821
  %v1476 = vpop.f32.mrf.mxu0
  %v1477 = vadd.f32 0.0, %v1476
  %v1478 = vpop.f32.mrf.mxu0
  %v1479 = vpop.f32.mrf.mxu0
  %v1480 = vadd.f32 0.0, %v1479
  %v1481 = vpop.f32.mrf.mxu0
  %1482 = vmatprep.mubr.bf16.mxu0 %v826
  %1483 = vmatmul.mubr.bf16.gmra.mxu0 %v825
  %v1484 = vpop.f32.mrf.mxu0
  %v1485 = vadd.f32 0.0, %v1484
  %v1486 = vpop.f32.mrf.mxu0
  %v1487 = vpop.f32.mrf.mxu0
  %v1488 = vadd.f32 0.0, %v1487
  %v1489 = vpop.f32.mrf.mxu0
  %1490 = vmatprep.mubr.bf16.mxu0 %v830
  %1491 = vmatmul.mubr.bf16.gmra.mxu0 %v829
  %v1492 = vpop.f32.mrf.mxu0
  %v1493 = vadd.f32 0.0, %v1492
  %v1494 = vpop.f32.mrf.mxu0
  %v1495 = vpop.f32.mrf.mxu0
  %v1496 = vadd.f32 0.0, %v1495
  %v1497 = vpop.f32.mrf.mxu0
  %1498 = vmatprep.mubr.bf16.mxu0 %v834
  %1499 = vmatmul.mubr.bf16.gmra.mxu0 %v833
  %v1500 = vpop.f32.mrf.mxu0
  %v1501 = vadd.f32 0.0, %v1500
  %v1502 = vpop.f32.mrf.mxu0
  %v1503 = vpop.f32.mrf.mxu0
  %v1504 = vadd.f32 0.0, %v1503
  %v1505 = vpop.f32.mrf.mxu0
  %1506 = vmatprep.mubr.bf16.mxu0 %v838
  %1507 = vmatmul.mubr.bf16.gmra.mxu0 %v837
  %v1508 = vpop.f32.mrf.mxu0
  %v1509 = vadd.f32 0.0, %v1508
  %v1510 = vpop.f32.mrf.mxu0
  %v1511 = vpop.f32.mrf.mxu0
  %v1512 = vadd.f32 0.0, %v1511
  %v1513 = vpop.f32.mrf.mxu0
  %1514 = vmatprep.mubr.bf16.mxu0 %v842
  %1515 = vmatmul.mubr.bf16.gmra.mxu0 %v841
  %v1516 = vpop.f32.mrf.mxu0
  %v1517 = vadd.f32 0.0, %v1516
  %v1518 = vpop.f32.mrf.mxu0
  %v1519 = vpop.f32.mrf.mxu0
  %v1520 = vadd.f32 0.0, %v1519
  %v1521 = vpop.f32.mrf.mxu0
  %1522 = vmatprep.mubr.bf16.mxu0 %v846
  %1523 = vmatmul.mubr.bf16.gmra.mxu0 %v845
  %v1524 = vpop.f32.mrf.mxu0
  %v1525 = vadd.f32 0.0, %v1524
  %v1526 = vpop.f32.mrf.mxu0
  %v1527 = vpop.f32.mrf.mxu0
  %v1528 = vadd.f32 0.0, %v1527
  %v1529 = vpop.f32.mrf.mxu0
  %1530 = vmatprep.mubr.bf16.mxu0 %v850
  %1531 = vmatmul.mubr.bf16.gmra.mxu0 %v849
  %v1532 = vpop.f32.mrf.mxu0
  %v1533 = vadd.f32 0.0, %v1532
  %v1534 = vpop.f32.mrf.mxu0
  %v1535 = vpop.f32.mrf.mxu0
  %v1536 = vadd.f32 0.0, %v1535
  %v1537 = vpop.f32.mrf.mxu0
  %1538 = vmatprep.mubr.bf16.mxu0 %v854
  %1539 = vmatmul.mubr.bf16.gmra.mxu0 %v853
  %v1540 = vpop.f32.mrf.mxu0
  %v1541 = vadd.f32 0.0, %v1540
  %v1542 = vpop.f32.mrf.mxu0
  %v1543 = vpop.f32.mrf.mxu0
  %v1544 = vadd.f32 0.0, %v1543
  %v1545 = vpop.f32.mrf.mxu0
  %1546 = vmatprep.mubr.bf16.mxu0 %v858
  %1547 = vmatmul.mubr.bf16.gmra.mxu0 %v857
  %v1548 = vpop.f32.mrf.mxu0
  %v1549 = vadd.f32 0.0, %v1548
  %v1550 = vpop.f32.mrf.mxu0
  %v1551 = vpop.f32.mrf.mxu0
  %v1552 = vadd.f32 0.0, %v1551
  %v1553 = vpop.f32.mrf.mxu0
  %1554 = vmatprep.mubr.bf16.mxu0 %v862
  %1555 = vmatmul.mubr.bf16.gmra.mxu0 %v861
  %v1556 = vpop.f32.mrf.mxu0
  %v1557 = vadd.f32 0.0, %v1556
  %v1558 = vpop.f32.mrf.mxu0
  %v1559 = vpop.f32.mrf.mxu0
  %v1560 = vadd.f32 0.0, %v1559
  %v1561 = vpop.f32.mrf.mxu0
  %1562 = vmatprep.mubr.bf16.mxu0 %v866
  %1563 = vmatmul.mubr.bf16.gmra.mxu0 %v865
  %v1564 = vpop.f32.mrf.mxu0
  %v1565 = vadd.f32 0.0, %v1564
  %v1566 = vpop.f32.mrf.mxu0
  %v1567 = vpop.f32.mrf.mxu0
  %v1568 = vadd.f32 0.0, %v1567
  %v1569 = vpop.f32.mrf.mxu0
  %1570 = vmatprep.mubr.bf16.mxu0 %v870
  %1571 = vmatmul.mubr.bf16.gmra.mxu0 %v869
  %v1572 = vpop.f32.mrf.mxu0
  %v1573 = vadd.f32 0.0, %v1572
  %v1574 = vpop.f32.mrf.mxu0
  %v1575 = vpop.f32.mrf.mxu0
  %v1576 = vadd.f32 0.0, %v1575
  %v1577 = vpop.f32.mrf.mxu0
  %1578 = vmatprep.mubr.bf16.mxu0 %v874
  %1579 = vmatmul.mubr.bf16.gmra.mxu0 %v873
  %v1580 = vpop.f32.mrf.mxu0
  %v1581 = vadd.f32 0.0, %v1580
  %v1582 = vpop.f32.mrf.mxu0
  %v1583 = vpop.f32.mrf.mxu0
  %v1584 = vadd.f32 0.0, %v1583
  %v1585 = vpop.f32.mrf.mxu0
  %1586 = vmatprep.mubr.bf16.mxu0 %v878
  %1587 = vmatmul.mubr.bf16.gmra.mxu0 %v877
  %v1588 = vpop.f32.mrf.mxu0
  %v1589 = vadd.f32 0.0, %v1588
  %v1590 = vpop.f32.mrf.mxu0
  %v1591 = vpop.f32.mrf.mxu0
  %v1592 = vadd.f32 0.0, %v1591
  %v1593 = vpop.f32.mrf.mxu0
  %1594 = vmatprep.mubr.bf16.mxu0 %v882
  %1595 = vmatmul.mubr.bf16.gmra.mxu0 %v881
  %v1596 = vpop.f32.mrf.mxu0
  %v1597 = vadd.f32 0.0, %v1596
  %v1598 = vpop.f32.mrf.mxu0
  %v1599 = vpop.f32.mrf.mxu0
  %v1600 = vadd.f32 0.0, %v1599
  %v1601 = vpop.f32.mrf.mxu0
  %1602 = vmatprep.mubr.bf16.mxu0 %v886
  %1603 = vmatmul.mubr.bf16.gmra.mxu0 %v885
  %v1604 = vpop.f32.mrf.mxu0
  %v1605 = vadd.f32 0.0, %v1604
  %v1606 = vpop.f32.mrf.mxu0
  %v1607 = vpop.f32.mrf.mxu0
  %v1608 = vadd.f32 0.0, %v1607
  %v1609 = vpop.f32.mrf.mxu0
  %1610 = vmatprep.mubr.bf16.mxu0 %v890
  %1611 = vmatmul.mubr.bf16.gmra.mxu0 %v889
  %v1612 = vpop.f32.mrf.mxu0
  %v1613 = vadd.f32 0.0, %v1612
  %v1614 = vpop.f32.mrf.mxu0
  %v1615 = vpop.f32.mrf.mxu0
  %v1616 = vadd.f32 0.0, %v1615
  %v1617 = vpop.f32.mrf.mxu0
  %1618 = vmatprep.mubr.bf16.mxu0 %v894
  %1619 = vmatmul.mubr.bf16.gmra.mxu0 %v893
  %v1620 = vpop.f32.mrf.mxu0
  %v1621 = vadd.f32 0.0, %v1620
  %v1622 = vpop.f32.mrf.mxu0
  %v1623 = vpop.f32.mrf.mxu0
  %v1624 = vadd.f32 0.0, %v1623
  %v1625 = vpop.f32.mrf.mxu0
  %1626 = vmatprep.mubr.bf16.mxu0 %v898
  %1627 = vmatmul.mubr.bf16.gmra.mxu0 %v897
  %v1628 = vpop.f32.mrf.mxu0
  %v1629 = vadd.f32 0.0, %v1628
  %v1630 = vpop.f32.mrf.mxu0
  %v1631 = vpop.f32.mrf.mxu0
  %v1632 = vadd.f32 0.0, %v1631
  %v1633 = vpop.f32.mrf.mxu0
  %1634 = vmatprep.mubr.bf16.mxu0 %v902
  %1635 = vmatmul.mubr.bf16.gmra.mxu0 %v901
  %v1636 = vpop.f32.mrf.mxu0
  %v1637 = vadd.f32 0.0, %v1636
  %v1638 = vpop.f32.mrf.mxu0
  %v1639 = vpop.f32.mrf.mxu0
  %v1640 = vadd.f32 0.0, %v1639
  %v1641 = vpop.f32.mrf.mxu0
  %1642 = vmatprep.mubr.bf16.mxu0 %v906
  %1643 = vmatmul.mubr.bf16.gmra.mxu0 %v905
  %v1644 = vpop.f32.mrf.mxu0
  %v1645 = vadd.f32 0.0, %v1644
  %v1646 = vpop.f32.mrf.mxu0
  %v1647 = vpop.f32.mrf.mxu0
  %v1648 = vadd.f32 0.0, %v1647
  %v1649 = vpop.f32.mrf.mxu0
  %1650 = vmatprep.mubr.bf16.mxu0 %v910
  %1651 = vmatmul.mubr.bf16.gmra.mxu0 %v909
  %v1652 = vpop.f32.mrf.mxu0
  %v1653 = vadd.f32 0.0, %v1652
  %v1654 = vpop.f32.mrf.mxu0
  %v1655 = vpop.f32.mrf.mxu0
  %v1656 = vadd.f32 0.0, %v1655
  %v1657 = vpop.f32.mrf.mxu0
  %1658 = vmatprep.mubr.bf16.mxu0 %v914
  %1659 = vmatmul.mubr.bf16.gmra.mxu0 %v913
  %v1660 = vpop.f32.mrf.mxu0
  %v1661 = vadd.f32 0.0, %v1660
  %v1662 = vpop.f32.mrf.mxu0
  %v1663 = vpop.f32.mrf.mxu0
  %v1664 = vadd.f32 0.0, %v1663
  %v1665 = vpop.f32.mrf.mxu0
  %1666 = vmatprep.mubr.bf16.mxu0 %v918
  %1667 = vmatmul.mubr.bf16.gmra.mxu0 %v917
  %v1668 = vpop.f32.mrf.mxu0
  %v1669 = vadd.f32 0.0, %v1668
  %v1670 = vpop.f32.mrf.mxu0
  %v1671 = vpop.f32.mrf.mxu0
  %v1672 = vadd.f32 0.0, %v1671
  %v1673 = vpop.f32.mrf.mxu0
  %1674 = vmatprep.mubr.bf16.mxu0 %v922
  %1675 = vmatmul.mubr.bf16.gmra.mxu0 %v921
  %v1676 = vpop.f32.mrf.mxu0
  %v1677 = vadd.f32 0.0, %v1676
  %v1678 = vpop.f32.mrf.mxu0
  %v1679 = vpop.f32.mrf.mxu0
  %v1680 = vpop.f32.mrf.mxu0
  %1681 = vdwg.mxu0
  %1682 = vmatprep.subr.bf16.mxu0 0
  %1683 = vmatpush1.bf16.msra.mxu0 %v1171
  %1684 = vmatprep.subr.bf16.mxu0 0
  %1685 = vmatpush1.bf16.msra.mxu0 %v1170
  %1686 = vmatprep.subr.bf16.mxu0 0
  %1687 = vmatpush1.bf16.msra.mxu0 %v1169
  %1688 = vmatprep.subr.bf16.mxu0 0
  %1689 = vmatpush1.bf16.msra.mxu0 %v1168
  %1690 = vmatprep.subr.bf16.mxu0 0
  %1691 = vmatpush1.bf16.msra.mxu0 %v1167
  %1692 = vmatprep.subr.bf16.mxu0 0
  %1693 = vmatpush1.bf16.msra.mxu0 %v1166
  %1694 = vmatprep.subr.bf16.mxu0 0
  %1695 = vmatpush1.bf16.msra.mxu0 %v1165
  %1696 = vmatprep.subr.bf16.mxu0 0
  %1697 = vmatpush1.bf16.msra.mxu0 %v1164
  %1698 = vmatprep.subr.bf16.mxu0 0
  %1699 = vmatpush2.bf16.msra.mxu0 0
  %1700 = vmatprep.subr.bf16.mxu0 0
  %1701 = vmatpush2.bf16.msra.mxu0 0
  %1702 = vmatprep.subr.bf16.mxu0 0
  %1703 = vmatpush2.bf16.msra.mxu0 0
  %1704 = vmatprep.subr.bf16.mxu0 0
  %1705 = vmatpush2.bf16.msra.mxu0 0
  %1706 = vmatprep.subr.bf16.mxu0 0
  %1707 = vmatpush2.bf16.msra.mxu0 0
  %1708 = vmatprep.subr.bf16.mxu0 0
  %1709 = vmatpush2.bf16.msra.mxu0 0
  %1710 = vmatprep.subr.bf16.mxu0 0
  %1711 = vmatpush2.bf16.msra.mxu0 0
  %1712 = vmatprep.subr.bf16.mxu0 0
  %1713 = vmatpush2.bf16.msra.mxu0 %v1172
  %1714 = vmatprep.mubr.bf16.mxu0 %v1200
  %1715 = vmatmul.mubr.bf16.gmra.mxu0 %v763
  %v1716 = vpop.f32.mrf.mxu0
  %v1717 = vadd.f32 %v1357, %v1716
  %v1718 = vpop.f32.mrf.mxu0
  %v1719 = vpop.f32.mrf.mxu0
  %v1720 = vadd.f32 %v1360, %v1719
  %v1721 = vpop.f32.mrf.mxu0
  %1722 = vmatprep.mubr.bf16.mxu0 %v1203
  %1723 = vmatmul.mubr.bf16.gmra.mxu0 %v767
  %v1724 = vpop.f32.mrf.mxu0
  %v1725 = vadd.f32 %v1365, %v1724
  %v1726 = vpop.f32.mrf.mxu0
  %v1727 = vpop.f32.mrf.mxu0
  %v1728 = vadd.f32 %v1368, %v1727
  %v1729 = vpop.f32.mrf.mxu0
  %1730 = vmatprep.mubr.bf16.mxu0 %v1206
  %1731 = vmatmul.mubr.bf16.gmra.mxu0 %v771
  %v1732 = vpop.f32.mrf.mxu0
  %v1733 = vadd.f32 %v1373, %v1732
  %v1734 = vpop.f32.mrf.mxu0
  %v1735 = vpop.f32.mrf.mxu0
  %v1736 = vadd.f32 %v1376, %v1735
  %v1737 = vpop.f32.mrf.mxu0
  %1738 = vmatprep.mubr.bf16.mxu0 %v1209
  %1739 = vmatmul.mubr.bf16.gmra.mxu0 %v775
  %v1740 = vpop.f32.mrf.mxu0
  %v1741 = vadd.f32 %v1381, %v1740
  %v1742 = vpop.f32.mrf.mxu0
  %v1743 = vpop.f32.mrf.mxu0
  %v1744 = vadd.f32 %v1384, %v1743
  %v1745 = vpop.f32.mrf.mxu0
  %1746 = vmatprep.mubr.bf16.mxu0 %v1212
  %1747 = vmatmul.mubr.bf16.gmra.mxu0 %v779
  %v1748 = vpop.f32.mrf.mxu0
  %v1749 = vadd.f32 %v1389, %v1748
  %v1750 = vpop.f32.mrf.mxu0
  %v1751 = vpop.f32.mrf.mxu0
  %v1752 = vadd.f32 %v1392, %v1751
  %v1753 = vpop.f32.mrf.mxu0
  %1754 = vmatprep.mubr.bf16.mxu0 %v1215
  %1755 = vmatmul.mubr.bf16.gmra.mxu0 %v783
  %v1756 = vpop.f32.mrf.mxu0
  %v1757 = vadd.f32 %v1397, %v1756
  %v1758 = vpop.f32.mrf.mxu0
  %v1759 = vpop.f32.mrf.mxu0
  %v1760 = vadd.f32 %v1400, %v1759
  %v1761 = vpop.f32.mrf.mxu0
  %1762 = vmatprep.mubr.bf16.mxu0 %v1218
  %1763 = vmatmul.mubr.bf16.gmra.mxu0 %v787
  %v1764 = vpop.f32.mrf.mxu0
  %v1765 = vadd.f32 %v1405, %v1764
  %v1766 = vpop.f32.mrf.mxu0
  %v1767 = vpop.f32.mrf.mxu0
  %v1768 = vadd.f32 %v1408, %v1767
  %v1769 = vpop.f32.mrf.mxu0
  %1770 = vmatprep.mubr.bf16.mxu0 %v1221
  %1771 = vmatmul.mubr.bf16.gmra.mxu0 %v791
  %v1772 = vpop.f32.mrf.mxu0
  %v1773 = vadd.f32 %v1413, %v1772
  %v1774 = vpop.f32.mrf.mxu0
  %v1775 = vpop.f32.mrf.mxu0
  %v1776 = vadd.f32 %v1416, %v1775
  %v1777 = vpop.f32.mrf.mxu0
  %1778 = vmatprep.mubr.bf16.mxu0 %v1224
  %1779 = vmatmul.mubr.bf16.gmra.mxu0 %v795
  %v1780 = vpop.f32.mrf.mxu0
  %v1781 = vadd.f32 %v1421, %v1780
  %v1782 = vpop.f32.mrf.mxu0
  %v1783 = vpop.f32.mrf.mxu0
  %v1784 = vadd.f32 %v1424, %v1783
  %v1785 = vpop.f32.mrf.mxu0
  %1786 = vmatprep.mubr.bf16.mxu0 %v1227
  %1787 = vmatmul.mubr.bf16.gmra.mxu0 %v799
  %v1788 = vpop.f32.mrf.mxu0
  %v1789 = vadd.f32 %v1429, %v1788
  %v1790 = vpop.f32.mrf.mxu0
  %v1791 = vpop.f32.mrf.mxu0
  %v1792 = vadd.f32 %v1432, %v1791
  %v1793 = vpop.f32.mrf.mxu0
  %1794 = vmatprep.mubr.bf16.mxu0 %v1230
  %1795 = vmatmul.mubr.bf16.gmra.mxu0 %v803
  %v1796 = vpop.f32.mrf.mxu0
  %v1797 = vadd.f32 %v1437, %v1796
  %v1798 = vpop.f32.mrf.mxu0
  %v1799 = vpop.f32.mrf.mxu0
  %v1800 = vadd.f32 %v1440, %v1799
  %v1801 = vpop.f32.mrf.mxu0
  %1802 = vmatprep.mubr.bf16.mxu0 %v1233
  %1803 = vmatmul.mubr.bf16.gmra.mxu0 %v807
  %v1804 = vpop.f32.mrf.mxu0
  %v1805 = vadd.f32 %v1445, %v1804
  %v1806 = vpop.f32.mrf.mxu0
  %v1807 = vpop.f32.mrf.mxu0
  %v1808 = vadd.f32 %v1448, %v1807
  %v1809 = vpop.f32.mrf.mxu0
  %1810 = vmatprep.mubr.bf16.mxu0 %v1236
  %1811 = vmatmul.mubr.bf16.gmra.mxu0 %v811
  %v1812 = vpop.f32.mrf.mxu0
  %v1813 = vadd.f32 %v1453, %v1812
  %v1814 = vpop.f32.mrf.mxu0
  %v1815 = vpop.f32.mrf.mxu0
  %v1816 = vadd.f32 %v1456, %v1815
  %v1817 = vpop.f32.mrf.mxu0
  %1818 = vmatprep.mubr.bf16.mxu0 %v1239
  %1819 = vmatmul.mubr.bf16.gmra.mxu0 %v815
  %v1820 = vpop.f32.mrf.mxu0
  %v1821 = vadd.f32 %v1461, %v1820
  %v1822 = vpop.f32.mrf.mxu0
  %v1823 = vpop.f32.mrf.mxu0
  %v1824 = vadd.f32 %v1464, %v1823
  %v1825 = vpop.f32.mrf.mxu0
  %1826 = vmatprep.mubr.bf16.mxu0 %v1242
  %1827 = vmatmul.mubr.bf16.gmra.mxu0 %v819
  %v1828 = vpop.f32.mrf.mxu0
  %v1829 = vadd.f32 %v1469, %v1828
  %v1830 = vpop.f32.mrf.mxu0
  %v1831 = vpop.f32.mrf.mxu0
  %v1832 = vadd.f32 %v1472, %v1831
  %v1833 = vpop.f32.mrf.mxu0
  %1834 = vmatprep.mubr.bf16.mxu0 %v1245
  %1835 = vmatmul.mubr.bf16.gmra.mxu0 %v823
  %v1836 = vpop.f32.mrf.mxu0
  %v1837 = vadd.f32 %v1477, %v1836
  %v1838 = vpop.f32.mrf.mxu0
  %v1839 = vpop.f32.mrf.mxu0
  %v1840 = vadd.f32 %v1480, %v1839
  %v1841 = vpop.f32.mrf.mxu0
  %1842 = vmatprep.mubr.bf16.mxu0 %v1248
  %1843 = vmatmul.mubr.bf16.gmra.mxu0 %v827
  %v1844 = vpop.f32.mrf.mxu0
  %v1845 = vadd.f32 %v1485, %v1844
  %v1846 = vpop.f32.mrf.mxu0
  %v1847 = vpop.f32.mrf.mxu0
  %v1848 = vadd.f32 %v1488, %v1847
  %v1849 = vpop.f32.mrf.mxu0
  %1850 = vmatprep.mubr.bf16.mxu0 %v1251
  %1851 = vmatmul.mubr.bf16.gmra.mxu0 %v831
  %v1852 = vpop.f32.mrf.mxu0
  %v1853 = vadd.f32 %v1493, %v1852
  %v1854 = vpop.f32.mrf.mxu0
  %v1855 = vpop.f32.mrf.mxu0
  %v1856 = vadd.f32 %v1496, %v1855
  %v1857 = vpop.f32.mrf.mxu0
  %1858 = vmatprep.mubr.bf16.mxu0 %v1254
  %1859 = vmatmul.mubr.bf16.gmra.mxu0 %v835
  %v1860 = vpop.f32.mrf.mxu0
  %v1861 = vadd.f32 %v1501, %v1860
  %v1862 = vpop.f32.mrf.mxu0
  %v1863 = vpop.f32.mrf.mxu0
  %v1864 = vadd.f32 %v1504, %v1863
  %v1865 = vpop.f32.mrf.mxu0
  %1866 = vmatprep.mubr.bf16.mxu0 %v1257
  %1867 = vmatmul.mubr.bf16.gmra.mxu0 %v839
  %v1868 = vpop.f32.mrf.mxu0
  %v1869 = vadd.f32 %v1509, %v1868
  %v1870 = vpop.f32.mrf.mxu0
  %v1871 = vpop.f32.mrf.mxu0
  %v1872 = vadd.f32 %v1512, %v1871
  %v1873 = vpop.f32.mrf.mxu0
  %1874 = vmatprep.mubr.bf16.mxu0 %v1260
  %1875 = vmatmul.mubr.bf16.gmra.mxu0 %v843
  %v1876 = vpop.f32.mrf.mxu0
  %v1877 = vadd.f32 %v1517, %v1876
  %v1878 = vpop.f32.mrf.mxu0
  %v1879 = vpop.f32.mrf.mxu0
  %v1880 = vadd.f32 %v1520, %v1879
  %v1881 = vpop.f32.mrf.mxu0
  %1882 = vmatprep.mubr.bf16.mxu0 %v1263
  %1883 = vmatmul.mubr.bf16.gmra.mxu0 %v847
  %v1884 = vpop.f32.mrf.mxu0
  %v1885 = vadd.f32 %v1525, %v1884
  %v1886 = vpop.f32.mrf.mxu0
  %v1887 = vpop.f32.mrf.mxu0
  %v1888 = vadd.f32 %v1528, %v1887
  %v1889 = vpop.f32.mrf.mxu0
  %1890 = vmatprep.mubr.bf16.mxu0 %v1266
  %1891 = vmatmul.mubr.bf16.gmra.mxu0 %v851
  %v1892 = vpop.f32.mrf.mxu0
  %v1893 = vadd.f32 %v1533, %v1892
  %v1894 = vpop.f32.mrf.mxu0
  %v1895 = vpop.f32.mrf.mxu0
  %v1896 = vadd.f32 %v1536, %v1895
  %v1897 = vpop.f32.mrf.mxu0
  %1898 = vmatprep.mubr.bf16.mxu0 %v1269
  %1899 = vmatmul.mubr.bf16.gmra.mxu0 %v855
  %v1900 = vpop.f32.mrf.mxu0
  %v1901 = vadd.f32 %v1541, %v1900
  %v1902 = vpop.f32.mrf.mxu0
  %v1903 = vpop.f32.mrf.mxu0
  %v1904 = vadd.f32 %v1544, %v1903
  %v1905 = vpop.f32.mrf.mxu0
  %1906 = vmatprep.mubr.bf16.mxu0 %v1272
  %1907 = vmatmul.mubr.bf16.gmra.mxu0 %v859
  %v1908 = vpop.f32.mrf.mxu0
  %v1909 = vadd.f32 %v1549, %v1908
  %v1910 = vpop.f32.mrf.mxu0
  %v1911 = vpop.f32.mrf.mxu0
  %v1912 = vadd.f32 %v1552, %v1911
  %v1913 = vpop.f32.mrf.mxu0
  %1914 = vmatprep.mubr.bf16.mxu0 %v1275
  %1915 = vmatmul.mubr.bf16.gmra.mxu0 %v863
  %v1916 = vpop.f32.mrf.mxu0
  %v1917 = vadd.f32 %v1557, %v1916
  %v1918 = vpop.f32.mrf.mxu0
  %v1919 = vpop.f32.mrf.mxu0
  %v1920 = vadd.f32 %v1560, %v1919
  %v1921 = vpop.f32.mrf.mxu0
  %1922 = vmatprep.mubr.bf16.mxu0 %v1278
  %1923 = vmatmul.mubr.bf16.gmra.mxu0 %v867
  %v1924 = vpop.f32.mrf.mxu0
  %v1925 = vadd.f32 %v1565, %v1924
  %v1926 = vpop.f32.mrf.mxu0
  %v1927 = vpop.f32.mrf.mxu0
  %v1928 = vadd.f32 %v1568, %v1927
  %v1929 = vpop.f32.mrf.mxu0
  %1930 = vmatprep.mubr.bf16.mxu0 %v1281
  %1931 = vmatmul.mubr.bf16.gmra.mxu0 %v871
  %v1932 = vpop.f32.mrf.mxu0
  %v1933 = vadd.f32 %v1573, %v1932
  %v1934 = vpop.f32.mrf.mxu0
  %v1935 = vpop.f32.mrf.mxu0
  %v1936 = vadd.f32 %v1576, %v1935
  %v1937 = vpop.f32.mrf.mxu0
  %1938 = vmatprep.mubr.bf16.mxu0 %v1284
  %1939 = vmatmul.mubr.bf16.gmra.mxu0 %v875
  %v1940 = vpop.f32.mrf.mxu0
  %v1941 = vadd.f32 %v1581, %v1940
  %v1942 = vpop.f32.mrf.mxu0
  %v1943 = vpop.f32.mrf.mxu0
  %v1944 = vadd.f32 %v1584, %v1943
  %v1945 = vpop.f32.mrf.mxu0
  %1946 = vmatprep.mubr.bf16.mxu0 %v1287
  %1947 = vmatmul.mubr.bf16.gmra.mxu0 %v879
  %v1948 = vpop.f32.mrf.mxu0
  %v1949 = vadd.f32 %v1589, %v1948
  %v1950 = vpop.f32.mrf.mxu0
  %v1951 = vpop.f32.mrf.mxu0
  %v1952 = vadd.f32 %v1592, %v1951
  %v1953 = vpop.f32.mrf.mxu0
  %1954 = vmatprep.mubr.bf16.mxu0 %v1290
  %1955 = vmatmul.mubr.bf16.gmra.mxu0 %v883
  %v1956 = vpop.f32.mrf.mxu0
  %v1957 = vadd.f32 %v1597, %v1956
  %v1958 = vpop.f32.mrf.mxu0
  %v1959 = vpop.f32.mrf.mxu0
  %v1960 = vadd.f32 %v1600, %v1959
  %v1961 = vpop.f32.mrf.mxu0
  %1962 = vmatprep.mubr.bf16.mxu0 %v1293
  %1963 = vmatmul.mubr.bf16.gmra.mxu0 %v887
  %v1964 = vpop.f32.mrf.mxu0
  %v1965 = vadd.f32 %v1605, %v1964
  %v1966 = vpop.f32.mrf.mxu0
  %v1967 = vpop.f32.mrf.mxu0
  %v1968 = vadd.f32 %v1608, %v1967
  %v1969 = vpop.f32.mrf.mxu0
  %1970 = vmatprep.mubr.bf16.mxu0 %v1296
  %1971 = vmatmul.mubr.bf16.gmra.mxu0 %v891
  %v1972 = vpop.f32.mrf.mxu0
  %v1973 = vadd.f32 %v1613, %v1972
  %v1974 = vpop.f32.mrf.mxu0
  %v1975 = vpop.f32.mrf.mxu0
  %v1976 = vadd.f32 %v1616, %v1975
  %v1977 = vpop.f32.mrf.mxu0
  %1978 = vmatprep.mubr.bf16.mxu0 %v1299
  %1979 = vmatmul.mubr.bf16.gmra.mxu0 %v895
  %v1980 = vpop.f32.mrf.mxu0
  %v1981 = vadd.f32 %v1621, %v1980
  %v1982 = vpop.f32.mrf.mxu0
  %v1983 = vpop.f32.mrf.mxu0
  %v1984 = vadd.f32 %v1624, %v1983
  %v1985 = vpop.f32.mrf.mxu0
  %1986 = vmatprep.mubr.bf16.mxu0 %v1302
  %1987 = vmatmul.mubr.bf16.gmra.mxu0 %v899
  %v1988 = vpop.f32.mrf.mxu0
  %v1989 = vadd.f32 %v1629, %v1988
  %v1990 = vpop.f32.mrf.mxu0
  %v1991 = vpop.f32.mrf.mxu0
  %v1992 = vadd.f32 %v1632, %v1991
  %v1993 = vpop.f32.mrf.mxu0
  %1994 = vmatprep.mubr.bf16.mxu0 %v1305
  %1995 = vmatmul.mubr.bf16.gmra.mxu0 %v903
  %v1996 = vpop.f32.mrf.mxu0
  %v1997 = vadd.f32 %v1637, %v1996
  %v1998 = vpop.f32.mrf.mxu0
  %v1999 = vpop.f32.mrf.mxu0
  %v2000 = vadd.f32 %v1640, %v1999
  %v2001 = vpop.f32.mrf.mxu0
  %2002 = vmatprep.mubr.bf16.mxu0 %v1308
  %2003 = vmatmul.mubr.bf16.gmra.mxu0 %v907
  %v2004 = vpop.f32.mrf.mxu0
  %v2005 = vadd.f32 %v1645, %v2004
  %v2006 = vpop.f32.mrf.mxu0
  %v2007 = vpop.f32.mrf.mxu0
  %v2008 = vadd.f32 %v1648, %v2007
  %v2009 = vpop.f32.mrf.mxu0
  %2010 = vmatprep.mubr.bf16.mxu0 %v1311
  %2011 = vmatmul.mubr.bf16.gmra.mxu0 %v911
  %v2012 = vpop.f32.mrf.mxu0
  %v2013 = vadd.f32 %v1653, %v2012
  %v2014 = vpop.f32.mrf.mxu0
  %v2015 = vpop.f32.mrf.mxu0
  %v2016 = vadd.f32 %v1656, %v2015
  %v2017 = vpop.f32.mrf.mxu0
  %2018 = vmatprep.mubr.bf16.mxu0 %v1314
  %2019 = vmatmul.mubr.bf16.gmra.mxu0 %v915
  %v2020 = vpop.f32.mrf.mxu0
  %v2021 = vadd.f32 %v1661, %v2020
  %v2022 = vpop.f32.mrf.mxu0
  %v2023 = vpop.f32.mrf.mxu0
  %v2024 = vadd.f32 %v1664, %v2023
  %v2025 = vpop.f32.mrf.mxu0
  %2026 = vmatprep.mubr.bf16.mxu0 %v1317
  %2027 = vmatmul.mubr.bf16.gmra.mxu0 %v919
  %v2028 = vpop.f32.mrf.mxu0
  %v2029 = vadd.f32 %v1669, %v2028
  %v2030 = vpop.f32.mrf.mxu0
  %v2031 = vpop.f32.mrf.mxu0
  %v2032 = vadd.f32 %v1672, %v2031
  %v2033 = vpop.f32.mrf.mxu0
  %2034 = vmatprep.mubr.bf16.mxu0 %v1320
  %2035 = vmatmul.mubr.bf16.gmra.mxu0 %v923
  %v2036 = vpop.f32.mrf.mxu0
  %v2037 = vadd.f32 %v1677, %v2036
  %v2038 = vpop.f32.mrf.mxu0
  %v2039 = vpop.f32.mrf.mxu0
  %v2040 = vpop.f32.mrf.mxu0
  %2041 = vdwg.mxu0
  %v2042 = vld [vmem:[%s2] sm:$0xff]
  %v2043 = vld [vmem:[%s2 + $0x8] sm:$0xff]
  %v2044 = vld [vmem:[%s2 + $0x10] sm:$0xff]
  %v2045 = vld [vmem:[%s2 + $0x18] sm:$0xff]
  %v2046 = vld [vmem:[%s2 + $0x20] sm:$0xff]
  %v2047 = vld [vmem:[%s2 + $0x28] sm:$0xff]
  %v2048 = vld [vmem:[%s2 + $0x30] sm:$0xff]
  %v2049 = vld [vmem:[%s2 + $0x38] sm:$0xff]
  %v2050 = vld [vmem:[%s2 + $0x40] sm:$0xff]
  %v2051 = vld [vmem:[%s2 + $0x48] sm:$0xff]
  %v2052 = vld [vmem:[%s2 + $0x50] sm:$0xff]
  %v2053 = vld [vmem:[%s2 + $0x58] sm:$0xff]
  %v2054 = vld [vmem:[%s2 + $0x60] sm:$0xff]
  %v2055 = vld [vmem:[%s2 + $0x68] sm:$0xff]
  %v2056 = vld [vmem:[%s2 + $0x70] sm:$0xff]
  %v2057 = vld [vmem:[%s2 + $0x78] sm:$0xff]
  %v2058 = vld [vmem:[%s2 + $0x80] sm:$0xff]
  %v2059 = vld [vmem:[%s2 + $0x88] sm:$0xff]
  %v2060 = vld [vmem:[%s2 + $0x90] sm:$0xff]
  %v2061 = vld [vmem:[%s2 + $0x98] sm:$0xff]
  %v2062 = vld [vmem:[%s2 + $0xa0] sm:$0xff]
  %v2063 = vld [vmem:[%s2 + $0xa8] sm:$0xff]
  %v2064 = vld [vmem:[%s2 + $0xb0] sm:$0xff]
  %v2065 = vld [vmem:[%s2 + $0xb8] sm:$0xff]
  %v2066 = vld [vmem:[%s2 + $0xc0] sm:$0xff]
  %v2067 = vld [vmem:[%s2 + $0xc8] sm:$0xff]
  %v2068 = vld [vmem:[%s2 + $0xd0] sm:$0xff]
  %v2069 = vld [vmem:[%s2 + $0xd8] sm:$0xff]
  %v2070 = vld [vmem:[%s2 + $0xe0] sm:$0xff]
  %v2071 = vld [vmem:[%s2 + $0xe8] sm:$0xff]
  %v2072 = vld [vmem:[%s2 + $0xf0] sm:$0xff]
  %v2073 = vld [vmem:[%s2 + $0xf8] sm:$0xff]
  %v2074 = vld [vmem:[%s2 + $0x100] sm:$0xff]
  %v2075 = vld [vmem:[%s2 + $0x108] sm:$0xff]
  %v2076 = vld [vmem:[%s2 + $0x110] sm:$0xff]
  %v2077 = vld [vmem:[%s2 + $0x118] sm:$0xff]
  %v2078 = vld [vmem:[%s2 + $0x120] sm:$0xff]
  %v2079 = vld [vmem:[%s2 + $0x128] sm:$0xff]
  %v2080 = vld [vmem:[%s2 + $0x130] sm:$0xff]
  %v2081 = vld [vmem:[%s2 + $0x138] sm:$0xff]
  %v2082 = vld [vmem:[%s2 + $0x140] sm:$0xff]
  %v2083 = vld [vmem:[%s2 + $0x148] sm:$0xff]
  %v2084 = vld [vmem:[%s2 + $0x150] sm:$0xff]
  %v2085 = vld [vmem:[%s2 + $0x158] sm:$0xff]
  %v2086 = vld [vmem:[%s2 + $0x160] sm:$0xff]
  %v2087 = vld [vmem:[%s2 + $0x168] sm:$0xff]
  %v2088 = vld [vmem:[%s2 + $0x170] sm:$0xff]
  %v2089 = vld [vmem:[%s2 + $0x178] sm:$0xff]
  %v2090 = vld [vmem:[%s2 + $0x180] sm:$0xff]
  %v2091 = vld [vmem:[%s2 + $0x188] sm:$0xff]
  %v2092 = vld [vmem:[%s2 + $0x190] sm:$0xff]
  %v2093 = vld [vmem:[%s2 + $0x198] sm:$0xff]
  %v2094 = vld [vmem:[%s2 + $0x1a0] sm:$0xff]
  %v2095 = vld [vmem:[%s2 + $0x1a8] sm:$0xff]
  %v2096 = vld [vmem:[%s2 + $0x1b0] sm:$0xff]
  %v2097 = vld [vmem:[%s2 + $0x1b8] sm:$0xff]
  %v2098 = vld [vmem:[%s2 + $0x1c0] sm:$0xff]
  %v2099 = vld [vmem:[%s2 + $0x1c8] sm:$0xff]
  %v2100 = vld [vmem:[%s2 + $0x1d0] sm:$0xff]
  %v2101 = vld [vmem:[%s2 + $0x1d8] sm:$0xff]
  %v2102 = vld [vmem:[%s2 + $0x1e0] sm:$0xff]
  %v2103 = vld [vmem:[%s2 + $0x1e8] sm:$0xff]
  %v2104 = vld [vmem:[%s2 + $0x1f0] sm:$0xff]
  %v2105 = vld [vmem:[%s2 + $0x1f8] sm:$0xff]
  %v2106 = vld [vmem:[%s2 + $0x200] sm:$0xff]
  %v2107 = vld [vmem:[%s2 + $0x208] sm:$0xff]
  %v2108 = vld [vmem:[%s2 + $0x210] sm:$0xff]
  %v2109 = vld [vmem:[%s2 + $0x218] sm:$0xff]
  %v2110 = vld [vmem:[%s2 + $0x220] sm:$0xff]
  %v2111 = vld [vmem:[%s2 + $0x228] sm:$0xff]
  %v2112 = vld [vmem:[%s2 + $0x230] sm:$0xff]
  %v2113 = vld [vmem:[%s2 + $0x238] sm:$0xff]
  %v2114 = vld [vmem:[%s2 + $0x240] sm:$0xff]
  %v2115 = vld [vmem:[%s2 + $0x248] sm:$0xff]
  %v2116 = vld [vmem:[%s2 + $0x250] sm:$0xff]
  %v2117 = vld [vmem:[%s2 + $0x258] sm:$0xff]
  %v2118 = vld [vmem:[%s2 + $0x260] sm:$0xff]
  %v2119 = vld [vmem:[%s2 + $0x268] sm:$0xff]
  %v2120 = vld [vmem:[%s2 + $0x270] sm:$0xff]
  %v2121 = vld [vmem:[%s2 + $0x278] sm:$0xff]
  %v2122 = vld [vmem:[%s2 + $0x280] sm:$0xff]
  %v2123 = vld [vmem:[%s2 + $0x288] sm:$0xff]
  %v2124 = vld [vmem:[%s2 + $0x290] sm:$0xff]
  %v2125 = vld [vmem:[%s2 + $0x298] sm:$0xff]
  %v2126 = vld [vmem:[%s2 + $0x2a0] sm:$0xff]
  %v2127 = vld [vmem:[%s2 + $0x2a8] sm:$0xff]
  %v2128 = vld [vmem:[%s2 + $0x2b0] sm:$0xff]
  %v2129 = vld [vmem:[%s2 + $0x2b8] sm:$0xff]
  %v2130 = vld [vmem:[%s2 + $0x2c0] sm:$0xff]
  %v2131 = vld [vmem:[%s2 + $0x2c8] sm:$0xff]
  %v2132 = vld [vmem:[%s2 + $0x2d0] sm:$0xff]
  %v2133 = vld [vmem:[%s2 + $0x2d8] sm:$0xff]
  %v2134 = vld [vmem:[%s2 + $0x2e0] sm:$0xff]
  %v2135 = vld [vmem:[%s2 + $0x2e8] sm:$0xff]
  %v2136 = vld [vmem:[%s2 + $0x2f0] sm:$0xff]
  %v2137 = vld [vmem:[%s2 + $0x2f8] sm:$0xff]
  %v2138 = vld [vmem:[%s2 + $0x300] sm:$0xff]
  %v2139 = vld [vmem:[%s2 + $0x308] sm:$0xff]
  %v2140 = vld [vmem:[%s2 + $0x310] sm:$0xff]
  %v2141 = vld [vmem:[%s2 + $0x318] sm:$0xff]
  %v2142 = vld [vmem:[%s2 + $0x320] sm:$0xff]
  %v2143 = vld [vmem:[%s2 + $0x328] sm:$0xff]
  %v2144 = vld [vmem:[%s2 + $0x330] sm:$0xff]
  %v2145 = vld [vmem:[%s2 + $0x338] sm:$0xff]
  %v2146 = vld [vmem:[%s2 + $0x340] sm:$0xff]
  %v2147 = vld [vmem:[%s2 + $0x348] sm:$0xff]
  %v2148 = vld [vmem:[%s2 + $0x350] sm:$0xff]
  %v2149 = vld [vmem:[%s2 + $0x358] sm:$0xff]
  %v2150 = vld [vmem:[%s2 + $0x360] sm:$0xff]
  %v2151 = vld [vmem:[%s2 + $0x368] sm:$0xff]
  %v2152 = vld [vmem:[%s2 + $0x370] sm:$0xff]
  %v2153 = vld [vmem:[%s2 + $0x378] sm:$0xff]
  %v2154 = vld [vmem:[%s2 + $0x380] sm:$0xff]
  %v2155 = vld [vmem:[%s2 + $0x388] sm:$0xff]
  %v2156 = vld [vmem:[%s2 + $0x390] sm:$0xff]
  %v2157 = vld [vmem:[%s2 + $0x398] sm:$0xff]
  %v2158 = vld [vmem:[%s2 + $0x3a0] sm:$0xff]
  %v2159 = vld [vmem:[%s2 + $0x3a8] sm:$0xff]
  %v2160 = vld [vmem:[%s2 + $0x3b0] sm:$0xff]
  %v2161 = vld [vmem:[%s2 + $0x3b8] sm:$0xff]
  %v2162 = vld [vmem:[%s2 + $0x3c0] sm:$0xff]
  %v2163 = vld [vmem:[%s2 + $0x3c8] sm:$0xff]
  %v2164 = vld [vmem:[%s2 + $0x3d0] sm:$0xff]
  %v2165 = vld [vmem:[%s2 + $0x3d8] sm:$0xff]
  %v2166 = vld [vmem:[%s2 + $0x3e0] sm:$0xff]
  %v2167 = vld [vmem:[%s2 + $0x3e8] sm:$0xff]
  %v2168 = vld [vmem:[%s2 + $0x3f0] sm:$0xff]
  %v2169 = vld [vmem:[%s2 + $0x3f8] sm:$0xff]
  %v2170 = vld [vmem:[%s2 + $0x400] sm:$0xff]
  %v2171 = vld [vmem:[%s2 + $0x408] sm:$0xff]
  %v2172 = vld [vmem:[%s2 + $0x410] sm:$0xff]
  %v2173 = vld [vmem:[%s2 + $0x418] sm:$0xff]
  %v2174 = vld [vmem:[%s2 + $0x420] sm:$0xff]
  %v2175 = vld [vmem:[%s2 + $0x428] sm:$0xff]
  %v2176 = vld [vmem:[%s2 + $0x430] sm:$0xff]
  %v2177 = vld [vmem:[%s2 + $0x438] sm:$0xff]
  %v2178 = vld [vmem:[%s2 + $0x440] sm:$0xff]
  %v2179 = vld [vmem:[%s2 + $0x448] sm:$0xff]
  %v2180 = vld [vmem:[%s2 + $0x450] sm:$0xff]
  %v2181 = vld [vmem:[%s2 + $0x458] sm:$0xff]
  %v2182 = vld [vmem:[%s2 + $0x460] sm:$0xff]
  %v2183 = vld [vmem:[%s2 + $0x468] sm:$0xff]
  %v2184 = vld [vmem:[%s2 + $0x470] sm:$0xff]
  %v2185 = vld [vmem:[%s2 + $0x478] sm:$0xff]
  %v2186 = vld [vmem:[%s2 + $0x480] sm:$0xff]
  %v2187 = vld [vmem:[%s2 + $0x488] sm:$0xff]
  %v2188 = vld [vmem:[%s2 + $0x490] sm:$0xff]
  %v2189 = vld [vmem:[%s2 + $0x498] sm:$0xff]
  %v2190 = vld [vmem:[%s2 + $0x4a0] sm:$0xff]
  %v2191 = vld [vmem:[%s2 + $0x4a8] sm:$0xff]
  %v2192 = vld [vmem:[%s2 + $0x4b0] sm:$0xff]
  %v2193 = vld [vmem:[%s2 + $0x4b8] sm:$0xff]
  %v2194 = vld [vmem:[%s2 + $0x4c0] sm:$0xff]
  %v2195 = vld [vmem:[%s2 + $0x4c8] sm:$0xff]
  %v2196 = vld [vmem:[%s2 + $0x4d0] sm:$0xff]
  %v2197 = vld [vmem:[%s2 + $0x4d8] sm:$0xff]
  %v2198 = vld [vmem:[%s2 + $0x4e0] sm:$0xff]
  %v2199 = vld [vmem:[%s2 + $0x4e8] sm:$0xff]
  %v2200 = vld [vmem:[%s2 + $0x4f0] sm:$0xff]
  %v2201 = vld [vmem:[%s2 + $0x4f8] sm:$0xff]
  %v2202 = vld [vmem:[%s2 + $0x500] sm:$0xff]
  %v2203 = vld [vmem:[%s2 + $0x508] sm:$0xff]
  %v2366 = vunpack.c.l.b16 %v2042
  %v2367 = vunpack.c.h.b16 %v2042
  %v2368 = vunpack.c.l.b16 %v2043
  %v2369 = vunpack.c.h.b16 %v2043
  %v2370 = vunpack.c.l.b16 %v2044
  %v2371 = vunpack.c.h.b16 %v2044
  %v2372 = vunpack.c.l.b16 %v2045
  %v2373 = vunpack.c.h.b16 %v2045
  %v2374 = vunpack.c.l.b16 %v2046
  %v2375 = vunpack.c.h.b16 %v2046
  %v2376 = vunpack.c.l.b16 %v2047
  %v2377 = vunpack.c.h.b16 %v2047
  %v2378 = vunpack.c.l.b16 %v2048
  %v2379 = vunpack.c.h.b16 %v2048
  %v2380 = vunpack.c.l.b16 %v2049
  %v2381 = vunpack.c.h.b16 %v2049
  %v2382 = vunpack.c.l.b16 %v2050
  %v2383 = vunpack.c.h.b16 %v2050
  %v2384 = vunpack.c.l.b16 %v2051
  %v2385 = vunpack.c.h.b16 %v2051
  %v2386 = vunpack.c.l.b16 %v2052
  %v2387 = vunpack.c.h.b16 %v2052
  %v2388 = vunpack.c.l.b16 %v2053
  %v2389 = vunpack.c.h.b16 %v2053
  %v2390 = vunpack.c.l.b16 %v2054
  %v2391 = vunpack.c.h.b16 %v2054
  %v2392 = vunpack.c.l.b16 %v2055
  %v2393 = vunpack.c.h.b16 %v2055
  %v2394 = vunpack.c.l.b16 %v2056
  %v2395 = vunpack.c.h.b16 %v2056
  %v2396 = vunpack.c.l.b16 %v2057
  %v2397 = vunpack.c.h.b16 %v2057
  %v2398 = vunpack.c.l.b16 %v2058
  %v2399 = vunpack.c.h.b16 %v2058
  %v2400 = vunpack.c.l.b16 %v2059
  %v2401 = vunpack.c.h.b16 %v2059
  %v2402 = vunpack.c.l.b16 %v2060
  %v2403 = vunpack.c.h.b16 %v2060
  %v2404 = vunpack.c.l.b16 %v2061
  %v2405 = vunpack.c.h.b16 %v2061
  %v2406 = vunpack.c.l.b16 %v2062
  %v2407 = vunpack.c.h.b16 %v2062
  %v2408 = vunpack.c.l.b16 %v2063
  %v2409 = vunpack.c.h.b16 %v2063
  %v2410 = vunpack.c.l.b16 %v2064
  %v2411 = vunpack.c.h.b16 %v2064
  %v2412 = vunpack.c.l.b16 %v2065
  %v2413 = vunpack.c.h.b16 %v2065
  %v2414 = vunpack.c.l.b16 %v2066
  %v2415 = vunpack.c.h.b16 %v2066
  %v2416 = vunpack.c.l.b16 %v2067
  %v2417 = vunpack.c.h.b16 %v2067
  %v2418 = vunpack.c.l.b16 %v2068
  %v2419 = vunpack.c.h.b16 %v2068
  %v2420 = vunpack.c.l.b16 %v2069
  %v2421 = vunpack.c.h.b16 %v2069
  %v2422 = vunpack.c.l.b16 %v2070
  %v2423 = vunpack.c.h.b16 %v2070
  %v2424 = vunpack.c.l.b16 %v2071
  %v2425 = vunpack.c.h.b16 %v2071
  %v2426 = vunpack.c.l.b16 %v2072
  %v2427 = vunpack.c.h.b16 %v2072
  %v2428 = vunpack.c.l.b16 %v2073
  %v2429 = vunpack.c.h.b16 %v2073
  %v2430 = vunpack.c.l.b16 %v2074
  %v2431 = vunpack.c.h.b16 %v2074
  %v2432 = vunpack.c.l.b16 %v2075
  %v2433 = vunpack.c.h.b16 %v2075
  %v2434 = vunpack.c.l.b16 %v2076
  %v2435 = vunpack.c.h.b16 %v2076
  %v2436 = vunpack.c.l.b16 %v2077
  %v2437 = vunpack.c.h.b16 %v2077
  %v2438 = vunpack.c.l.b16 %v2078
  %v2439 = vunpack.c.h.b16 %v2078
  %v2440 = vunpack.c.l.b16 %v2079
  %v2441 = vunpack.c.h.b16 %v2079
  %v2442 = vunpack.c.l.b16 %v2080
  %v2443 = vunpack.c.h.b16 %v2080
  %v2444 = vunpack.c.l.b16 %v2081
  %v2445 = vunpack.c.h.b16 %v2081
  %v2446 = vunpack.c.l.b16 %v2082
  %v2447 = vunpack.c.h.b16 %v2082
  %v2448 = vunpack.c.l.b16 %v2083
  %v2449 = vunpack.c.h.b16 %v2083
  %v2450 = vunpack.c.l.b16 %v2084
  %v2451 = vunpack.c.h.b16 %v2084
  %v2452 = vunpack.c.l.b16 %v2085
  %v2453 = vunpack.c.h.b16 %v2085
  %v2454 = vunpack.c.l.b16 %v2086
  %v2455 = vunpack.c.h.b16 %v2086
  %v2456 = vunpack.c.l.b16 %v2087
  %v2457 = vunpack.c.h.b16 %v2087
  %v2458 = vunpack.c.l.b16 %v2088
  %v2459 = vunpack.c.h.b16 %v2088
  %v2460 = vunpack.c.l.b16 %v2089
  %v2461 = vunpack.c.h.b16 %v2089
  %v2462 = vunpack.c.l.b16 %v2090
  %v2463 = vunpack.c.h.b16 %v2090
  %v2464 = vunpack.c.l.b16 %v2091
  %v2465 = vunpack.c.h.b16 %v2091
  %v2466 = vunpack.c.l.b16 %v2092
  %v2467 = vunpack.c.h.b16 %v2092
  %v2468 = vunpack.c.l.b16 %v2093
  %v2469 = vunpack.c.h.b16 %v2093
  %v2470 = vunpack.c.l.b16 %v2094
  %v2471 = vunpack.c.h.b16 %v2094
  %v2472 = vunpack.c.l.b16 %v2095
  %v2473 = vunpack.c.h.b16 %v2095
  %v2474 = vunpack.c.l.b16 %v2096
  %v2475 = vunpack.c.h.b16 %v2096
  %v2476 = vunpack.c.l.b16 %v2097
  %v2477 = vunpack.c.h.b16 %v2097
  %v2478 = vunpack.c.l.b16 %v2098
  %v2479 = vunpack.c.h.b16 %v2098
  %v2480 = vunpack.c.l.b16 %v2099
  %v2481 = vunpack.c.h.b16 %v2099
  %v2482 = vunpack.c.l.b16 %v2100
  %v2483 = vunpack.c.h.b16 %v2100
  %v2484 = vunpack.c.l.b16 %v2101
  %v2485 = vunpack.c.h.b16 %v2101
  %v2486 = vunpack.c.l.b16 %v2102
  %v2487 = vunpack.c.h.b16 %v2102
  %v2488 = vunpack.c.l.b16 %v2103
  %v2489 = vunpack.c.h.b16 %v2103
  %v2490 = vunpack.c.l.b16 %v2104
  %v2491 = vunpack.c.h.b16 %v2104
  %v2492 = vunpack.c.l.b16 %v2105
  %v2493 = vunpack.c.h.b16 %v2105
  %v2494 = vunpack.c.l.b16 %v2106
  %v2495 = vunpack.c.h.b16 %v2106
  %v2496 = vunpack.c.l.b16 %v2107
  %v2497 = vunpack.c.h.b16 %v2107
  %v2498 = vunpack.c.l.b16 %v2108
  %v2499 = vunpack.c.h.b16 %v2108
  %v2500 = vunpack.c.l.b16 %v2109
  %v2501 = vunpack.c.h.b16 %v2109
  %v2502 = vunpack.c.l.b16 %v2110
  %v2503 = vunpack.c.h.b16 %v2110
  %v2504 = vunpack.c.l.b16 %v2111
  %v2505 = vunpack.c.h.b16 %v2111
  %v2506 = vunpack.c.l.b16 %v2112
  %v2507 = vunpack.c.h.b16 %v2112
  %v2508 = vunpack.c.l.b16 %v2113
  %v2509 = vunpack.c.h.b16 %v2113
  %v2510 = vunpack.c.l.b16 %v2114
  %v2511 = vunpack.c.h.b16 %v2114
  %v2512 = vunpack.c.l.b16 %v2115
  %v2513 = vunpack.c.h.b16 %v2115
  %v2514 = vunpack.c.l.b16 %v2116
  %v2515 = vunpack.c.h.b16 %v2116
  %v2516 = vunpack.c.l.b16 %v2117
  %v2517 = vunpack.c.h.b16 %v2117
  %v2518 = vunpack.c.l.b16 %v2118
  %v2519 = vunpack.c.h.b16 %v2118
  %v2520 = vunpack.c.l.b16 %v2119
  %v2521 = vunpack.c.h.b16 %v2119
  %v2522 = vunpack.c.l.b16 %v2120
  %v2523 = vunpack.c.h.b16 %v2120
  %v2524 = vunpack.c.l.b16 %v2121
  %v2525 = vunpack.c.h.b16 %v2121
  %v2526 = vunpack.c.l.b16 %v2122
  %v2527 = vunpack.c.h.b16 %v2122
  %v2528 = vunpack.c.l.b16 %v2123
  %v2529 = vunpack.c.h.b16 %v2123
  %v2530 = vunpack.c.l.b16 %v2124
  %v2531 = vunpack.c.h.b16 %v2124
  %v2532 = vunpack.c.l.b16 %v2125
  %v2533 = vunpack.c.h.b16 %v2125
  %v2534 = vunpack.c.l.b16 %v2126
  %v2535 = vunpack.c.h.b16 %v2126
  %v2536 = vunpack.c.l.b16 %v2127
  %v2537 = vunpack.c.h.b16 %v2127
  %v2538 = vunpack.c.l.b16 %v2128
  %v2539 = vunpack.c.h.b16 %v2128
  %v2540 = vunpack.c.l.b16 %v2129
  %v2541 = vunpack.c.h.b16 %v2129
  %v2542 = vunpack.c.l.b16 %v2130
  %v2543 = vunpack.c.h.b16 %v2130
  %v2544 = vunpack.c.l.b16 %v2131
  %v2545 = vunpack.c.h.b16 %v2131
  %v2546 = vunpack.c.l.b16 %v2132
  %v2547 = vunpack.c.h.b16 %v2132
  %v2548 = vunpack.c.l.b16 %v2133
  %v2549 = vunpack.c.h.b16 %v2133
  %v2550 = vunpack.c.l.b16 %v2134
  %v2551 = vunpack.c.h.b16 %v2134
  %v2552 = vunpack.c.l.b16 %v2135
  %v2553 = vunpack.c.h.b16 %v2135
  %v2554 = vunpack.c.l.b16 %v2136
  %v2555 = vunpack.c.h.b16 %v2136
  %v2556 = vunpack.c.l.b16 %v2137
  %v2557 = vunpack.c.h.b16 %v2137
  %v2558 = vunpack.c.l.b16 %v2138
  %v2559 = vunpack.c.h.b16 %v2138
  %v2560 = vunpack.c.l.b16 %v2139
  %v2561 = vunpack.c.h.b16 %v2139
  %v2562 = vunpack.c.l.b16 %v2140
  %v2563 = vunpack.c.h.b16 %v2140
  %v2564 = vunpack.c.l.b16 %v2141
  %v2565 = vunpack.c.h.b16 %v2141
  %v2566 = vunpack.c.l.b16 %v2142
  %v2567 = vunpack.c.h.b16 %v2142
  %v2568 = vunpack.c.l.b16 %v2143
  %v2569 = vunpack.c.h.b16 %v2143
  %v2570 = vunpack.c.l.b16 %v2144
  %v2571 = vunpack.c.h.b16 %v2144
  %v2572 = vunpack.c.l.b16 %v2145
  %v2573 = vunpack.c.h.b16 %v2145
  %v2574 = vunpack.c.l.b16 %v2146
  %v2575 = vunpack.c.h.b16 %v2146
  %v2576 = vunpack.c.l.b16 %v2147
  %v2577 = vunpack.c.h.b16 %v2147
  %v2578 = vunpack.c.l.b16 %v2148
  %v2579 = vunpack.c.h.b16 %v2148
  %v2580 = vunpack.c.l.b16 %v2149
  %v2581 = vunpack.c.h.b16 %v2149
  %v2582 = vunpack.c.l.b16 %v2150
  %v2583 = vunpack.c.h.b16 %v2150
  %v2584 = vunpack.c.l.b16 %v2151
  %v2585 = vunpack.c.h.b16 %v2151
  %v2586 = vunpack.c.l.b16 %v2152
  %v2587 = vunpack.c.h.b16 %v2152
  %v2588 = vunpack.c.l.b16 %v2153
  %v2589 = vunpack.c.h.b16 %v2153
  %v2590 = vunpack.c.l.b16 %v2154
  %v2591 = vunpack.c.h.b16 %v2154
  %v2592 = vunpack.c.l.b16 %v2155
  %v2593 = vunpack.c.h.b16 %v2155
  %v2594 = vunpack.c.l.b16 %v2156
  %v2595 = vunpack.c.h.b16 %v2156
  %v2596 = vunpack.c.l.b16 %v2157
  %v2597 = vunpack.c.h.b16 %v2157
  %v2598 = vunpack.c.l.b16 %v2158
  %v2599 = vunpack.c.h.b16 %v2158
  %v2600 = vunpack.c.l.b16 %v2159
  %v2601 = vunpack.c.h.b16 %v2159
  %v2602 = vunpack.c.l.b16 %v2160
  %v2603 = vunpack.c.h.b16 %v2160
  %v2604 = vunpack.c.l.b16 %v2161
  %v2605 = vunpack.c.h.b16 %v2161
  %v2606 = vunpack.c.l.b16 %v2162
  %v2607 = vunpack.c.h.b16 %v2162
  %v2608 = vunpack.c.l.b16 %v2163
  %v2609 = vunpack.c.h.b16 %v2163
  %v2610 = vunpack.c.l.b16 %v2164
  %v2611 = vunpack.c.h.b16 %v2164
  %v2612 = vunpack.c.l.b16 %v2165
  %v2613 = vunpack.c.h.b16 %v2165
  %v2614 = vunpack.c.l.b16 %v2166
  %v2615 = vunpack.c.h.b16 %v2166
  %v2616 = vunpack.c.l.b16 %v2167
  %v2617 = vunpack.c.h.b16 %v2167
  %v2618 = vunpack.c.l.b16 %v2168
  %v2619 = vunpack.c.h.b16 %v2168
  %v2620 = vunpack.c.l.b16 %v2169
  %v2621 = vunpack.c.h.b16 %v2169
  %v2622 = vunpack.c.l.b16 %v2170
  %v2623 = vunpack.c.h.b16 %v2170
  %v2624 = vunpack.c.l.b16 %v2171
  %v2625 = vunpack.c.h.b16 %v2171
  %v2626 = vunpack.c.l.b16 %v2172
  %v2627 = vunpack.c.h.b16 %v2172
  %v2628 = vunpack.c.l.b16 %v2173
  %v2629 = vunpack.c.h.b16 %v2173
  %v2630 = vunpack.c.l.b16 %v2174
  %v2631 = vunpack.c.h.b16 %v2174
  %v2632 = vunpack.c.l.b16 %v2175
  %v2633 = vunpack.c.h.b16 %v2175
  %v2634 = vunpack.c.l.b16 %v2176
  %v2635 = vunpack.c.h.b16 %v2176
  %v2636 = vunpack.c.l.b16 %v2177
  %v2637 = vunpack.c.h.b16 %v2177
  %v2638 = vunpack.c.l.b16 %v2178
  %v2639 = vunpack.c.h.b16 %v2178
  %v2640 = vunpack.c.l.b16 %v2179
  %v2641 = vunpack.c.h.b16 %v2179
  %v2642 = vunpack.c.l.b16 %v2180
  %v2643 = vunpack.c.h.b16 %v2180
  %v2644 = vunpack.c.l.b16 %v2181
  %v2645 = vunpack.c.h.b16 %v2181
  %v2646 = vunpack.c.l.b16 %v2182
  %v2647 = vunpack.c.h.b16 %v2182
  %v2648 = vunpack.c.l.b16 %v2183
  %v2649 = vunpack.c.h.b16 %v2183
  %v2650 = vunpack.c.l.b16 %v2184
  %v2651 = vunpack.c.h.b16 %v2184
  %v2652 = vunpack.c.l.b16 %v2185
  %v2653 = vunpack.c.h.b16 %v2185
  %v2654 = vunpack.c.l.b16 %v2186
  %v2655 = vunpack.c.h.b16 %v2186
  %v2656 = vunpack.c.l.b16 %v2187
  %v2657 = vunpack.c.h.b16 %v2187
  %v2658 = vunpack.c.l.b16 %v2188
  %v2659 = vunpack.c.h.b16 %v2188
  %v2660 = vunpack.c.l.b16 %v2189
  %v2661 = vunpack.c.h.b16 %v2189
  %v2662 = vunpack.c.l.b16 %v2190
  %v2663 = vunpack.c.h.b16 %v2190
  %v2664 = vunpack.c.l.b16 %v2191
  %v2665 = vunpack.c.h.b16 %v2191
  %v2666 = vunpack.c.l.b16 %v2192
  %v2667 = vunpack.c.h.b16 %v2192
  %v2668 = vunpack.c.l.b16 %v2193
  %v2669 = vunpack.c.h.b16 %v2193
  %v2670 = vunpack.c.l.b16 %v2194
  %v2671 = vunpack.c.h.b16 %v2194
  %v2672 = vunpack.c.l.b16 %v2195
  %v2673 = vunpack.c.h.b16 %v2195
  %v2674 = vunpack.c.l.b16 %v2196
  %v2675 = vunpack.c.h.b16 %v2196
  %v2676 = vunpack.c.l.b16 %v2197
  %v2677 = vunpack.c.h.b16 %v2197
  %v2678 = vunpack.c.l.b16 %v2198
  %v2679 = vunpack.c.h.b16 %v2198
  %v2680 = vunpack.c.l.b16 %v2199
  %v2681 = vunpack.c.h.b16 %v2199
  %v2682 = vunpack.c.l.b16 %v2200
  %v2683 = vunpack.c.h.b16 %v2200
  %v2684 = vunpack.c.l.b16 %v2201
  %v2685 = vunpack.c.h.b16 %v2201
  %v2686 = vunpack.c.l.b16 %v2202
  %v2687 = vunpack.c.h.b16 %v2202
  %v2688 = vunpack.c.l.b16 %v2203
  %v2689 = vunpack.c.h.b16 %v2203
  %v2690 = vpack.c.b16 %v2370, %v2366
  %v2691 = vpack.c.b16 %v2371, %v2367
  %v2692 = vpack.c.b16 %v2372, %v2368
  %v2693 = vpack.c.b16 %v2373, %v2369
  %v2694 = vpack.c.b16 %v2378, %v2374
  %v2695 = vpack.c.b16 %v2379, %v2375
  %v2696 = vpack.c.b16 %v2380, %v2376
  %v2697 = vpack.c.b16 %v2381, %v2377
  %v2698 = vpack.c.b16 %v2386, %v2382
  %v2699 = vpack.c.b16 %v2387, %v2383
  %v2700 = vpack.c.b16 %v2388, %v2384
  %v2701 = vpack.c.b16 %v2389, %v2385
  %v2702 = vpack.c.b16 %v2394, %v2390
  %v2703 = vpack.c.b16 %v2395, %v2391
  %v2704 = vpack.c.b16 %v2396, %v2392
  %v2705 = vpack.c.b16 %v2397, %v2393
  %v2706 = vpack.c.b16 %v2402, %v2398
  %v2707 = vpack.c.b16 %v2403, %v2399
  %v2708 = vpack.c.b16 %v2404, %v2400
  %v2709 = vpack.c.b16 %v2405, %v2401
  %v2710 = vpack.c.b16 %v2410, %v2406
  %v2711 = vpack.c.b16 %v2411, %v2407
  %v2712 = vpack.c.b16 %v2412, %v2408
  %v2713 = vpack.c.b16 %v2413, %v2409
  %v2714 = vpack.c.b16 %v2418, %v2414
  %v2715 = vpack.c.b16 %v2419, %v2415
  %v2716 = vpack.c.b16 %v2420, %v2416
  %v2717 = vpack.c.b16 %v2421, %v2417
  %v2718 = vpack.c.b16 %v2426, %v2422
  %v2719 = vpack.c.b16 %v2427, %v2423
  %v2720 = vpack.c.b16 %v2428, %v2424
  %v2721 = vpack.c.b16 %v2429, %v2425
  %v2722 = vpack.c.b16 %v2434, %v2430
  %v2723 = vpack.c.b16 %v2435, %v2431
  %v2724 = vpack.c.b16 %v2436, %v2432
  %v2725 = vpack.c.b16 %v2437, %v2433
  %v2726 = vpack.c.b16 %v2442, %v2438
  %v2727 = vpack.c.b16 %v2443, %v2439
  %v2728 = vpack.c.b16 %v2444, %v2440
  %v2729 = vpack.c.b16 %v2445, %v2441
  %v2730 = vpack.c.b16 %v2450, %v2446
  %v2731 = vpack.c.b16 %v2451, %v2447
  %v2732 = vpack.c.b16 %v2452, %v2448
  %v2733 = vpack.c.b16 %v2453, %v2449
  %v2734 = vpack.c.b16 %v2458, %v2454
  %v2735 = vpack.c.b16 %v2459, %v2455
  %v2736 = vpack.c.b16 %v2460, %v2456
  %v2737 = vpack.c.b16 %v2461, %v2457
  %v2738 = vpack.c.b16 %v2466, %v2462
  %v2739 = vpack.c.b16 %v2467, %v2463
  %v2740 = vpack.c.b16 %v2468, %v2464
  %v2741 = vpack.c.b16 %v2469, %v2465
  %v2742 = vpack.c.b16 %v2474, %v2470
  %v2743 = vpack.c.b16 %v2475, %v2471
  %v2744 = vpack.c.b16 %v2476, %v2472
  %v2745 = vpack.c.b16 %v2477, %v2473
  %v2746 = vpack.c.b16 %v2482, %v2478
  %v2747 = vpack.c.b16 %v2483, %v2479
  %v2748 = vpack.c.b16 %v2484, %v2480
  %v2749 = vpack.c.b16 %v2485, %v2481
  %v2750 = vpack.c.b16 %v2490, %v2486
  %v2751 = vpack.c.b16 %v2491, %v2487
  %v2752 = vpack.c.b16 %v2492, %v2488
  %v2753 = vpack.c.b16 %v2493, %v2489
  %v2754 = vpack.c.b16 %v2498, %v2494
  %v2755 = vpack.c.b16 %v2499, %v2495
  %v2756 = vpack.c.b16 %v2500, %v2496
  %v2757 = vpack.c.b16 %v2501, %v2497
  %v2758 = vpack.c.b16 %v2506, %v2502
  %v2759 = vpack.c.b16 %v2507, %v2503
  %v2760 = vpack.c.b16 %v2508, %v2504
  %v2761 = vpack.c.b16 %v2509, %v2505
  %v2762 = vpack.c.b16 %v2514, %v2510
  %v2763 = vpack.c.b16 %v2515, %v2511
  %v2764 = vpack.c.b16 %v2516, %v2512
  %v2765 = vpack.c.b16 %v2517, %v2513
  %v2766 = vpack.c.b16 %v2522, %v2518
  %v2767 = vpack.c.b16 %v2523, %v2519
  %v2768 = vpack.c.b16 %v2524, %v2520
  %v2769 = vpack.c.b16 %v2525, %v2521
  %v2770 = vpack.c.b16 %v2530, %v2526
  %v2771 = vpack.c.b16 %v2531, %v2527
  %v2772 = vpack.c.b16 %v2532, %v2528
  %v2773 = vpack.c.b16 %v2533, %v2529
  %v2774 = vpack.c.b16 %v2538, %v2534
  %v2775 = vpack.c.b16 %v2539, %v2535
  %v2776 = vpack.c.b16 %v2540, %v2536
  %v2777 = vpack.c.b16 %v2541, %v2537
  %v2778 = vpack.c.b16 %v2546, %v2542
  %v2779 = vpack.c.b16 %v2547, %v2543
  %v2780 = vpack.c.b16 %v2548, %v2544
  %v2781 = vpack.c.b16 %v2549, %v2545
  %v2782 = vpack.c.b16 %v2554, %v2550
  %v2783 = vpack.c.b16 %v2555, %v2551
  %v2784 = vpack.c.b16 %v2556, %v2552
  %v2785 = vpack.c.b16 %v2557, %v2553
  %v2786 = vpack.c.b16 %v2562, %v2558
  %v2787 = vpack.c.b16 %v2563, %v2559
  %v2788 = vpack.c.b16 %v2564, %v2560
  %v2789 = vpack.c.b16 %v2565, %v2561
  %v2790 = vpack.c.b16 %v2570, %v2566
  %v2791 = vpack.c.b16 %v2571, %v2567
  %v2792 = vpack.c.b16 %v2572, %v2568
  %v2793 = vpack.c.b16 %v2573, %v2569
  %v2794 = vpack.c.b16 %v2578, %v2574
  %v2795 = vpack.c.b16 %v2579, %v2575
  %v2796 = vpack.c.b16 %v2580, %v2576
  %v2797 = vpack.c.b16 %v2581, %v2577
  %v2798 = vpack.c.b16 %v2586, %v2582
  %v2799 = vpack.c.b16 %v2587, %v2583
  %v2800 = vpack.c.b16 %v2588, %v2584
  %v2801 = vpack.c.b16 %v2589, %v2585
  %v2802 = vpack.c.b16 %v2594, %v2590
  %v2803 = vpack.c.b16 %v2595, %v2591
  %v2804 = vpack.c.b16 %v2596, %v2592
  %v2805 = vpack.c.b16 %v2597, %v2593
  %v2806 = vpack.c.b16 %v2602, %v2598
  %v2807 = vpack.c.b16 %v2603, %v2599
  %v2808 = vpack.c.b16 %v2604, %v2600
  %v2809 = vpack.c.b16 %v2605, %v2601
  %v2810 = vpack.c.b16 %v2610, %v2606
  %v2811 = vpack.c.b16 %v2611, %v2607
  %v2812 = vpack.c.b16 %v2612, %v2608
  %v2813 = vpack.c.b16 %v2613, %v2609
  %v2814 = vpack.c.b16 %v2618, %v2614
  %v2815 = vpack.c.b16 %v2619, %v2615
  %v2816 = vpack.c.b16 %v2620, %v2616
  %v2817 = vpack.c.b16 %v2621, %v2617
  %v2818 = vpack.c.b16 %v2626, %v2622
  %v2819 = vpack.c.b16 %v2627, %v2623
  %v2820 = vpack.c.b16 %v2628, %v2624
  %v2821 = vpack.c.b16 %v2629, %v2625
  %v2822 = vpack.c.b16 %v2634, %v2630
  %v2823 = vpack.c.b16 %v2635, %v2631
  %v2824 = vpack.c.b16 %v2636, %v2632
  %v2825 = vpack.c.b16 %v2637, %v2633
  %v2826 = vpack.c.b16 %v2642, %v2638
  %v2827 = vpack.c.b16 %v2643, %v2639
  %v2828 = vpack.c.b16 %v2644, %v2640
  %v2829 = vpack.c.b16 %v2645, %v2641
  %v2830 = vpack.c.b16 %v2650, %v2646
  %v2831 = vpack.c.b16 %v2651, %v2647
  %v2832 = vpack.c.b16 %v2652, %v2648
  %v2833 = vpack.c.b16 %v2653, %v2649
  %v2834 = vpack.c.b16 %v2658, %v2654
  %v2835 = vpack.c.b16 %v2659, %v2655
  %v2836 = vpack.c.b16 %v2660, %v2656
  %v2837 = vpack.c.b16 %v2661, %v2657
  %v2838 = vpack.c.b16 %v2666, %v2662
  %v2839 = vpack.c.b16 %v2667, %v2663
  %v2840 = vpack.c.b16 %v2668, %v2664
  %v2841 = vpack.c.b16 %v2669, %v2665
  %v2842 = vpack.c.b16 %v2674, %v2670
  %v2843 = vpack.c.b16 %v2675, %v2671
  %v2844 = vpack.c.b16 %v2676, %v2672
  %v2845 = vpack.c.b16 %v2677, %v2673
  %v2846 = vpack.c.b16 %v2682, %v2678
  %v2847 = vpack.c.b16 %v2683, %v2679
  %v2848 = vpack.c.b16 %v2684, %v2680
  %v2849 = vpack.c.b16 %v2685, %v2681
  %v2850 = vpack.c.b16 %v2686, %v2686
  %v2851 = vpack.c.b16 %v2687, %v2687
  %v2852 = vpack.c.b16 %v2688, %v2688
  %v2853 = vpack.c.b16 %v2689, %v2689
  %v2978 = vsel %vm1198, %v2693, 0
  %v2981 = vsel %vm1198, %v2697, 0
  %v2984 = vsel %vm1198, %v2701, 0
  %v2987 = vsel %vm1198, %v2705, 0
  %v2990 = vsel %vm1198, %v2709, 0
  %v2993 = vsel %vm1198, %v2713, 0
  %v2996 = vsel %vm1198, %v2717, 0
  %v2999 = vsel %vm1198, %v2721, 0
  %v3002 = vsel %vm1198, %v2725, 0
  %v3005 = vsel %vm1198, %v2729, 0
  %v3008 = vsel %vm1198, %v2733, 0
  %v3011 = vsel %vm1198, %v2737, 0
  %v3014 = vsel %vm1198, %v2741, 0
  %v3017 = vsel %vm1198, %v2745, 0
  %v3020 = vsel %vm1198, %v2749, 0
  %v3023 = vsel %vm1198, %v2753, 0
  %v3026 = vsel %vm1198, %v2757, 0
  %v3029 = vsel %vm1198, %v2761, 0
  %v3032 = vsel %vm1198, %v2765, 0
  %v3035 = vsel %vm1198, %v2769, 0
  %v3038 = vsel %vm1198, %v2773, 0
  %v3041 = vsel %vm1198, %v2777, 0
  %v3044 = vsel %vm1198, %v2781, 0
  %v3047 = vsel %vm1198, %v2785, 0
  %v3050 = vsel %vm1198, %v2789, 0
  %v3053 = vsel %vm1198, %v2793, 0
  %v3056 = vsel %vm1198, %v2797, 0
  %v3059 = vsel %vm1198, %v2801, 0
  %v3062 = vsel %vm1198, %v2805, 0
  %v3065 = vsel %vm1198, %v2809, 0
  %v3068 = vsel %vm1198, %v2813, 0
  %v3071 = vsel %vm1198, %v2817, 0
  %v3074 = vsel %vm1198, %v2821, 0
  %v3077 = vsel %vm1198, %v2825, 0
  %v3080 = vsel %vm1198, %v2829, 0
  %v3083 = vsel %vm1198, %v2833, 0
  %v3086 = vsel %vm1198, %v2837, 0
  %v3089 = vsel %vm1198, %v2841, 0
  %v3092 = vsel %vm1198, %v2845, 0
  %v3095 = vsel %vm1198, %v2849, 0
  %v3098 = vsel %vm1198, %v2853, 0
  %3100 = vmatprep.subr.bf16.mxu0 0
  %3101 = vmatpush1.bf16.msra.mxu0 %v1155
  %3102 = vmatprep.subr.bf16.mxu0 0
  %3103 = vmatpush1.bf16.msra.mxu0 %v1154
  %3104 = vmatprep.subr.bf16.mxu0 0
  %3105 = vmatpush1.bf16.msra.mxu0 %v1153
  %3106 = vmatprep.subr.bf16.mxu0 0
  %3107 = vmatpush1.bf16.msra.mxu0 %v1152
  %3108 = vmatprep.subr.bf16.mxu0 0
  %3109 = vmatpush1.bf16.msra.mxu0 %v1151
  %3110 = vmatprep.subr.bf16.mxu0 0
  %3111 = vmatpush1.bf16.msra.mxu0 %v1150
  %3112 = vmatprep.subr.bf16.mxu0 0
  %3113 = vmatpush1.bf16.msra.mxu0 %v1149
  %3114 = vmatprep.subr.bf16.mxu0 0
  %3115 = vmatpush1.bf16.msra.mxu0 %v1148
  %3116 = vmatprep.subr.bf16.mxu0 0
  %3117 = vmatpush2.bf16.msra.mxu0 %v1163
  %3118 = vmatprep.subr.bf16.mxu0 0
  %3119 = vmatpush2.bf16.msra.mxu0 %v1162
  %3120 = vmatprep.subr.bf16.mxu0 0
  %3121 = vmatpush2.bf16.msra.mxu0 %v1161
  %3122 = vmatprep.subr.bf16.mxu0 0
  %3123 = vmatpush2.bf16.msra.mxu0 %v1160
  %3124 = vmatprep.subr.bf16.mxu0 0
  %3125 = vmatpush2.bf16.msra.mxu0 %v1159
  %3126 = vmatprep.subr.bf16.mxu0 0
  %3127 = vmatpush2.bf16.msra.mxu0 %v1158
  %3128 = vmatprep.subr.bf16.mxu0 0
  %3129 = vmatpush2.bf16.msra.mxu0 %v1157
  %3130 = vmatprep.subr.bf16.mxu0 0
  %3131 = vmatpush2.bf16.msra.mxu0 %v1156
  %3132 = vmatprep.mubr.bf16.mxu0 %v2691
  %3133 = vmatmul.mubr.bf16.gmra.mxu0 %v2690
  %v3134 = vpop.f32.mrf.mxu0
  %v3135 = vadd.f32 0.0, %v3134
  %v3136 = vpop.f32.mrf.mxu0
  %v3137 = vpop.f32.mrf.mxu0
  %v3138 = vadd.f32 0.0, %v3137
  %v3139 = vpop.f32.mrf.mxu0
  %3140 = vmatprep.mubr.bf16.mxu0 %v2695
  %3141 = vmatmul.mubr.bf16.gmra.mxu0 %v2694
  %v3142 = vpop.f32.mrf.mxu0
  %v3143 = vadd.f32 0.0, %v3142
  %v3144 = vpop.f32.mrf.mxu0
  %v3145 = vpop.f32.mrf.mxu0
  %v3146 = vadd.f32 0.0, %v3145
  %v3147 = vpop.f32.mrf.mxu0
  %3148 = vmatprep.mubr.bf16.mxu0 %v2699
  %3149 = vmatmul.mubr.bf16.gmra.mxu0 %v2698
  %v3150 = vpop.f32.mrf.mxu0
  %v3151 = vadd.f32 0.0, %v3150
  %v3152 = vpop.f32.mrf.mxu0
  %v3153 = vpop.f32.mrf.mxu0
  %v3154 = vadd.f32 0.0, %v3153
  %v3155 = vpop.f32.mrf.mxu0
  %3156 = vmatprep.mubr.bf16.mxu0 %v2703
  %3157 = vmatmul.mubr.bf16.gmra.mxu0 %v2702
  %v3158 = vpop.f32.mrf.mxu0
  %v3159 = vadd.f32 0.0, %v3158
  %v3160 = vpop.f32.mrf.mxu0
  %v3161 = vpop.f32.mrf.mxu0
  %v3162 = vadd.f32 0.0, %v3161
  %v3163 = vpop.f32.mrf.mxu0
  %3164 = vmatprep.mubr.bf16.mxu0 %v2707
  %3165 = vmatmul.mubr.bf16.gmra.mxu0 %v2706
  %v3166 = vpop.f32.mrf.mxu0
  %v3167 = vadd.f32 0.0, %v3166
  %v3168 = vpop.f32.mrf.mxu0
  %v3169 = vpop.f32.mrf.mxu0
  %v3170 = vadd.f32 0.0, %v3169
  %v3171 = vpop.f32.mrf.mxu0
  %3172 = vmatprep.mubr.bf16.mxu0 %v2711
  %3173 = vmatmul.mubr.bf16.gmra.mxu0 %v2710
  %v3174 = vpop.f32.mrf.mxu0
  %v3175 = vadd.f32 0.0, %v3174
  %v3176 = vpop.f32.mrf.mxu0
  %v3177 = vpop.f32.mrf.mxu0
  %v3178 = vadd.f32 0.0, %v3177
  %v3179 = vpop.f32.mrf.mxu0
  %3180 = vmatprep.mubr.bf16.mxu0 %v2715
  %3181 = vmatmul.mubr.bf16.gmra.mxu0 %v2714
  %v3182 = vpop.f32.mrf.mxu0
  %v3183 = vadd.f32 0.0, %v3182
  %v3184 = vpop.f32.mrf.mxu0
  %v3185 = vpop.f32.mrf.mxu0
  %v3186 = vadd.f32 0.0, %v3185
  %v3187 = vpop.f32.mrf.mxu0
  %3188 = vmatprep.mubr.bf16.mxu0 %v2719
  %3189 = vmatmul.mubr.bf16.gmra.mxu0 %v2718
  %v3190 = vpop.f32.mrf.mxu0
  %v3191 = vadd.f32 0.0, %v3190
  %v3192 = vpop.f32.mrf.mxu0
  %v3193 = vpop.f32.mrf.mxu0
  %v3194 = vadd.f32 0.0, %v3193
  %v3195 = vpop.f32.mrf.mxu0
  %3196 = vmatprep.mubr.bf16.mxu0 %v2723
  %3197 = vmatmul.mubr.bf16.gmra.mxu0 %v2722
  %v3198 = vpop.f32.mrf.mxu0
  %v3199 = vadd.f32 0.0, %v3198
  %v3200 = vpop.f32.mrf.mxu0
  %v3201 = vpop.f32.mrf.mxu0
  %v3202 = vadd.f32 0.0, %v3201
  %v3203 = vpop.f32.mrf.mxu0
  %3204 = vmatprep.mubr.bf16.mxu0 %v2727
  %3205 = vmatmul.mubr.bf16.gmra.mxu0 %v2726
  %v3206 = vpop.f32.mrf.mxu0
  %v3207 = vadd.f32 0.0, %v3206
  %v3208 = vpop.f32.mrf.mxu0
  %v3209 = vpop.f32.mrf.mxu0
  %v3210 = vadd.f32 0.0, %v3209
  %v3211 = vpop.f32.mrf.mxu0
  %3212 = vmatprep.mubr.bf16.mxu0 %v2731
  %3213 = vmatmul.mubr.bf16.gmra.mxu0 %v2730
  %v3214 = vpop.f32.mrf.mxu0
  %v3215 = vadd.f32 0.0, %v3214
  %v3216 = vpop.f32.mrf.mxu0
  %v3217 = vpop.f32.mrf.mxu0
  %v3218 = vadd.f32 0.0, %v3217
  %v3219 = vpop.f32.mrf.mxu0
  %3220 = vmatprep.mubr.bf16.mxu0 %v2735
  %3221 = vmatmul.mubr.bf16.gmra.mxu0 %v2734
  %v3222 = vpop.f32.mrf.mxu0
  %v3223 = vadd.f32 0.0, %v3222
  %v3224 = vpop.f32.mrf.mxu0
  %v3225 = vpop.f32.mrf.mxu0
  %v3226 = vadd.f32 0.0, %v3225
  %v3227 = vpop.f32.mrf.mxu0
  %3228 = vmatprep.mubr.bf16.mxu0 %v2739
  %3229 = vmatmul.mubr.bf16.gmra.mxu0 %v2738
  %v3230 = vpop.f32.mrf.mxu0
  %v3231 = vadd.f32 0.0, %v3230
  %v3232 = vpop.f32.mrf.mxu0
  %v3233 = vpop.f32.mrf.mxu0
  %v3234 = vadd.f32 0.0, %v3233
  %v3235 = vpop.f32.mrf.mxu0
  %3236 = vmatprep.mubr.bf16.mxu0 %v2743
  %3237 = vmatmul.mubr.bf16.gmra.mxu0 %v2742
  %v3238 = vpop.f32.mrf.mxu0
  %v3239 = vadd.f32 0.0, %v3238
  %v3240 = vpop.f32.mrf.mxu0
  %v3241 = vpop.f32.mrf.mxu0
  %v3242 = vadd.f32 0.0, %v3241
  %v3243 = vpop.f32.mrf.mxu0
  %3244 = vmatprep.mubr.bf16.mxu0 %v2747
  %3245 = vmatmul.mubr.bf16.gmra.mxu0 %v2746
  %v3246 = vpop.f32.mrf.mxu0
  %v3247 = vadd.f32 0.0, %v3246
  %v3248 = vpop.f32.mrf.mxu0
  %v3249 = vpop.f32.mrf.mxu0
  %v3250 = vadd.f32 0.0, %v3249
  %v3251 = vpop.f32.mrf.mxu0
  %3252 = vmatprep.mubr.bf16.mxu0 %v2751
  %3253 = vmatmul.mubr.bf16.gmra.mxu0 %v2750
  %v3254 = vpop.f32.mrf.mxu0
  %v3255 = vadd.f32 0.0, %v3254
  %v3256 = vpop.f32.mrf.mxu0
  %v3257 = vpop.f32.mrf.mxu0
  %v3258 = vadd.f32 0.0, %v3257
  %v3259 = vpop.f32.mrf.mxu0
  %3260 = vmatprep.mubr.bf16.mxu0 %v2755
  %3261 = vmatmul.mubr.bf16.gmra.mxu0 %v2754
  %v3262 = vpop.f32.mrf.mxu0
  %v3263 = vadd.f32 0.0, %v3262
  %v3264 = vpop.f32.mrf.mxu0
  %v3265 = vpop.f32.mrf.mxu0
  %v3266 = vadd.f32 0.0, %v3265
  %v3267 = vpop.f32.mrf.mxu0
  %3268 = vmatprep.mubr.bf16.mxu0 %v2759
  %3269 = vmatmul.mubr.bf16.gmra.mxu0 %v2758
  %v3270 = vpop.f32.mrf.mxu0
  %v3271 = vadd.f32 0.0, %v3270
  %v3272 = vpop.f32.mrf.mxu0
  %v3273 = vpop.f32.mrf.mxu0
  %v3274 = vadd.f32 0.0, %v3273
  %v3275 = vpop.f32.mrf.mxu0
  %3276 = vmatprep.mubr.bf16.mxu0 %v2763
  %3277 = vmatmul.mubr.bf16.gmra.mxu0 %v2762
  %v3278 = vpop.f32.mrf.mxu0
  %v3279 = vadd.f32 0.0, %v3278
  %v3280 = vpop.f32.mrf.mxu0
  %v3281 = vpop.f32.mrf.mxu0
  %v3282 = vadd.f32 0.0, %v3281
  %v3283 = vpop.f32.mrf.mxu0
  %3284 = vmatprep.mubr.bf16.mxu0 %v2767
  %3285 = vmatmul.mubr.bf16.gmra.mxu0 %v2766
  %v3286 = vpop.f32.mrf.mxu0
  %v3287 = vadd.f32 0.0, %v3286
  %v3288 = vpop.f32.mrf.mxu0
  %v3289 = vpop.f32.mrf.mxu0
  %v3290 = vadd.f32 0.0, %v3289
  %v3291 = vpop.f32.mrf.mxu0
  %3292 = vmatprep.mubr.bf16.mxu0 %v2771
  %3293 = vmatmul.mubr.bf16.gmra.mxu0 %v2770
  %v3294 = vpop.f32.mrf.mxu0
  %v3295 = vadd.f32 0.0, %v3294
  %v3296 = vpop.f32.mrf.mxu0
  %v3297 = vpop.f32.mrf.mxu0
  %v3298 = vadd.f32 0.0, %v3297
  %v3299 = vpop.f32.mrf.mxu0
  %3300 = vmatprep.mubr.bf16.mxu0 %v2775
  %3301 = vmatmul.mubr.bf16.gmra.mxu0 %v2774
  %v3302 = vpop.f32.mrf.mxu0
  %v3303 = vadd.f32 0.0, %v3302
  %v3304 = vpop.f32.mrf.mxu0
  %v3305 = vpop.f32.mrf.mxu0
  %v3306 = vadd.f32 0.0, %v3305
  %v3307 = vpop.f32.mrf.mxu0
  %3308 = vmatprep.mubr.bf16.mxu0 %v2779
  %3309 = vmatmul.mubr.bf16.gmra.mxu0 %v2778
  %v3310 = vpop.f32.mrf.mxu0
  %v3311 = vadd.f32 0.0, %v3310
  %v3312 = vpop.f32.mrf.mxu0
  %v3313 = vpop.f32.mrf.mxu0
  %v3314 = vadd.f32 0.0, %v3313
  %v3315 = vpop.f32.mrf.mxu0
  %3316 = vmatprep.mubr.bf16.mxu0 %v2783
  %3317 = vmatmul.mubr.bf16.gmra.mxu0 %v2782
  %v3318 = vpop.f32.mrf.mxu0
  %v3319 = vadd.f32 0.0, %v3318
  %v3320 = vpop.f32.mrf.mxu0
  %v3321 = vpop.f32.mrf.mxu0
  %v3322 = vadd.f32 0.0, %v3321
  %v3323 = vpop.f32.mrf.mxu0
  %3324 = vmatprep.mubr.bf16.mxu0 %v2787
  %3325 = vmatmul.mubr.bf16.gmra.mxu0 %v2786
  %v3326 = vpop.f32.mrf.mxu0
  %v3327 = vadd.f32 0.0, %v3326
  %v3328 = vpop.f32.mrf.mxu0
  %v3329 = vpop.f32.mrf.mxu0
  %v3330 = vadd.f32 0.0, %v3329
  %v3331 = vpop.f32.mrf.mxu0
  %3332 = vmatprep.mubr.bf16.mxu0 %v2791
  %3333 = vmatmul.mubr.bf16.gmra.mxu0 %v2790
  %v3334 = vpop.f32.mrf.mxu0
  %v3335 = vadd.f32 0.0, %v3334
  %v3336 = vpop.f32.mrf.mxu0
  %v3337 = vpop.f32.mrf.mxu0
  %v3338 = vadd.f32 0.0, %v3337
  %v3339 = vpop.f32.mrf.mxu0
  %3340 = vmatprep.mubr.bf16.mxu0 %v2795
  %3341 = vmatmul.mubr.bf16.gmra.mxu0 %v2794
  %v3342 = vpop.f32.mrf.mxu0
  %v3343 = vadd.f32 0.0, %v3342
  %v3344 = vpop.f32.mrf.mxu0
  %v3345 = vpop.f32.mrf.mxu0
  %v3346 = vadd.f32 0.0, %v3345
  %v3347 = vpop.f32.mrf.mxu0
  %3348 = vmatprep.mubr.bf16.mxu0 %v2799
  %3349 = vmatmul.mubr.bf16.gmra.mxu0 %v2798
  %v3350 = vpop.f32.mrf.mxu0
  %v3351 = vadd.f32 0.0, %v3350
  %v3352 = vpop.f32.mrf.mxu0
  %v3353 = vpop.f32.mrf.mxu0
  %v3354 = vadd.f32 0.0, %v3353
  %v3355 = vpop.f32.mrf.mxu0
  %3356 = vmatprep.mubr.bf16.mxu0 %v2803
  %3357 = vmatmul.mubr.bf16.gmra.mxu0 %v2802
  %v3358 = vpop.f32.mrf.mxu0
  %v3359 = vadd.f32 0.0, %v3358
  %v3360 = vpop.f32.mrf.mxu0
  %v3361 = vpop.f32.mrf.mxu0
  %v3362 = vadd.f32 0.0, %v3361
  %v3363 = vpop.f32.mrf.mxu0
  %3364 = vmatprep.mubr.bf16.mxu0 %v2807
  %3365 = vmatmul.mubr.bf16.gmra.mxu0 %v2806
  %v3366 = vpop.f32.mrf.mxu0
  %v3367 = vadd.f32 0.0, %v3366
  %v3368 = vpop.f32.mrf.mxu0
  %v3369 = vpop.f32.mrf.mxu0
  %v3370 = vadd.f32 0.0, %v3369
  %v3371 = vpop.f32.mrf.mxu0
  %3372 = vmatprep.mubr.bf16.mxu0 %v2811
  %3373 = vmatmul.mubr.bf16.gmra.mxu0 %v2810
  %v3374 = vpop.f32.mrf.mxu0
  %v3375 = vadd.f32 0.0, %v3374
  %v3376 = vpop.f32.mrf.mxu0
  %v3377 = vpop.f32.mrf.mxu0
  %v3378 = vadd.f32 0.0, %v3377
  %v3379 = vpop.f32.mrf.mxu0
  %3380 = vmatprep.mubr.bf16.mxu0 %v2815
  %3381 = vmatmul.mubr.bf16.gmra.mxu0 %v2814
  %v3382 = vpop.f32.mrf.mxu0
  %v3383 = vadd.f32 0.0, %v3382
  %v3384 = vpop.f32.mrf.mxu0
  %v3385 = vpop.f32.mrf.mxu0
  %v3386 = vadd.f32 0.0, %v3385
  %v3387 = vpop.f32.mrf.mxu0
  %3388 = vmatprep.mubr.bf16.mxu0 %v2819
  %3389 = vmatmul.mubr.bf16.gmra.mxu0 %v2818
  %v3390 = vpop.f32.mrf.mxu0
  %v3391 = vadd.f32 0.0, %v3390
  %v3392 = vpop.f32.mrf.mxu0
  %v3393 = vpop.f32.mrf.mxu0
  %v3394 = vadd.f32 0.0, %v3393
  %v3395 = vpop.f32.mrf.mxu0
  %3396 = vmatprep.mubr.bf16.mxu0 %v2823
  %3397 = vmatmul.mubr.bf16.gmra.mxu0 %v2822
  %v3398 = vpop.f32.mrf.mxu0
  %v3399 = vadd.f32 0.0, %v3398
  %v3400 = vpop.f32.mrf.mxu0
  %v3401 = vpop.f32.mrf.mxu0
  %v3402 = vadd.f32 0.0, %v3401
  %v3403 = vpop.f32.mrf.mxu0
  %3404 = vmatprep.mubr.bf16.mxu0 %v2827
  %3405 = vmatmul.mubr.bf16.gmra.mxu0 %v2826
  %v3406 = vpop.f32.mrf.mxu0
  %v3407 = vadd.f32 0.0, %v3406
  %v3408 = vpop.f32.mrf.mxu0
  %v3409 = vpop.f32.mrf.mxu0
  %v3410 = vadd.f32 0.0, %v3409
  %v3411 = vpop.f32.mrf.mxu0
  %3412 = vmatprep.mubr.bf16.mxu0 %v2831
  %3413 = vmatmul.mubr.bf16.gmra.mxu0 %v2830
  %v3414 = vpop.f32.mrf.mxu0
  %v3415 = vadd.f32 0.0, %v3414
  %v3416 = vpop.f32.mrf.mxu0
  %v3417 = vpop.f32.mrf.mxu0
  %v3418 = vadd.f32 0.0, %v3417
  %v3419 = vpop.f32.mrf.mxu0
  %3420 = vmatprep.mubr.bf16.mxu0 %v2835
  %3421 = vmatmul.mubr.bf16.gmra.mxu0 %v2834
  %v3422 = vpop.f32.mrf.mxu0
  %v3423 = vadd.f32 0.0, %v3422
  %v3424 = vpop.f32.mrf.mxu0
  %v3425 = vpop.f32.mrf.mxu0
  %v3426 = vadd.f32 0.0, %v3425
  %v3427 = vpop.f32.mrf.mxu0
  %3428 = vmatprep.mubr.bf16.mxu0 %v2839
  %3429 = vmatmul.mubr.bf16.gmra.mxu0 %v2838
  %v3430 = vpop.f32.mrf.mxu0
  %v3431 = vadd.f32 0.0, %v3430
  %v3432 = vpop.f32.mrf.mxu0
  %v3433 = vpop.f32.mrf.mxu0
  %v3434 = vadd.f32 0.0, %v3433
  %v3435 = vpop.f32.mrf.mxu0
  %3436 = vmatprep.mubr.bf16.mxu0 %v2843
  %3437 = vmatmul.mubr.bf16.gmra.mxu0 %v2842
  %v3438 = vpop.f32.mrf.mxu0
  %v3439 = vadd.f32 0.0, %v3438
  %v3440 = vpop.f32.mrf.mxu0
  %v3441 = vpop.f32.mrf.mxu0
  %v3442 = vadd.f32 0.0, %v3441
  %v3443 = vpop.f32.mrf.mxu0
  %3444 = vmatprep.mubr.bf16.mxu0 %v2847
  %3445 = vmatmul.mubr.bf16.gmra.mxu0 %v2846
  %v3446 = vpop.f32.mrf.mxu0
  %v3447 = vadd.f32 0.0, %v3446
  %v3448 = vpop.f32.mrf.mxu0
  %v3449 = vpop.f32.mrf.mxu0
  %v3450 = vadd.f32 0.0, %v3449
  %v3451 = vpop.f32.mrf.mxu0
  %3452 = vmatprep.mubr.bf16.mxu0 %v2851
  %3453 = vmatmul.mubr.bf16.gmra.mxu0 %v2850
  %v3454 = vpop.f32.mrf.mxu0
  %v3455 = vadd.f32 0.0, %v3454
  %v3456 = vpop.f32.mrf.mxu0
  %v3457 = vpop.f32.mrf.mxu0
  %v3458 = vpop.f32.mrf.mxu0
  %3459 = vdwg.mxu0
  %3460 = vmatprep.subr.bf16.mxu0 0
  %3461 = vmatpush1.bf16.msra.mxu0 %v1171
  %3462 = vmatprep.subr.bf16.mxu0 0
  %3463 = vmatpush1.bf16.msra.mxu0 %v1170
  %3464 = vmatprep.subr.bf16.mxu0 0
  %3465 = vmatpush1.bf16.msra.mxu0 %v1169
  %3466 = vmatprep.subr.bf16.mxu0 0
  %3467 = vmatpush1.bf16.msra.mxu0 %v1168
  %3468 = vmatprep.subr.bf16.mxu0 0
  %3469 = vmatpush1.bf16.msra.mxu0 %v1167
  %3470 = vmatprep.subr.bf16.mxu0 0
  %3471 = vmatpush1.bf16.msra.mxu0 %v1166
  %3472 = vmatprep.subr.bf16.mxu0 0
  %3473 = vmatpush1.bf16.msra.mxu0 %v1165
  %3474 = vmatprep.subr.bf16.mxu0 0
  %3475 = vmatpush1.bf16.msra.mxu0 %v1164
  %3476 = vmatprep.subr.bf16.mxu0 0
  %3477 = vmatpush2.bf16.msra.mxu0 0
  %3478 = vmatprep.subr.bf16.mxu0 0
  %3479 = vmatpush2.bf16.msra.mxu0 0
  %3480 = vmatprep.subr.bf16.mxu0 0
  %3481 = vmatpush2.bf16.msra.mxu0 0
  %3482 = vmatprep.subr.bf16.mxu0 0
  %3483 = vmatpush2.bf16.msra.mxu0 0
  %3484 = vmatprep.subr.bf16.mxu0 0
  %3485 = vmatpush2.bf16.msra.mxu0 0
  %3486 = vmatprep.subr.bf16.mxu0 0
  %3487 = vmatpush2.bf16.msra.mxu0 0
  %3488 = vmatprep.subr.bf16.mxu0 0
  %3489 = vmatpush2.bf16.msra.mxu0 0
  %3490 = vmatprep.subr.bf16.mxu0 0
  %3491 = vmatpush2.bf16.msra.mxu0 %v1172
  %3492 = vmatprep.mubr.bf16.mxu0 %v2978
  %3493 = vmatmul.mubr.bf16.gmra.mxu0 %v2692
  %v3494 = vpop.f32.mrf.mxu0
  %v3495 = vadd.f32 %v3135, %v3494
  %v3496 = vpop.f32.mrf.mxu0
  %v3497 = vpop.f32.mrf.mxu0
  %v3498 = vadd.f32 %v3138, %v3497
  %v3499 = vpop.f32.mrf.mxu0
  %3500 = vmatprep.mubr.bf16.mxu0 %v2981
  %3501 = vmatmul.mubr.bf16.gmra.mxu0 %v2696
  %v3502 = vpop.f32.mrf.mxu0
  %v3503 = vadd.f32 %v3143, %v3502
  %v3504 = vpop.f32.mrf.mxu0
  %v3505 = vpop.f32.mrf.mxu0
  %v3506 = vadd.f32 %v3146, %v3505
  %v3507 = vpop.f32.mrf.mxu0
  %3508 = vmatprep.mubr.bf16.mxu0 %v2984
  %3509 = vmatmul.mubr.bf16.gmra.mxu0 %v2700
  %v3510 = vpop.f32.mrf.mxu0
  %v3511 = vadd.f32 %v3151, %v3510
  %v3512 = vpop.f32.mrf.mxu0
  %v3513 = vpop.f32.mrf.mxu0
  %v3514 = vadd.f32 %v3154, %v3513
  %v3515 = vpop.f32.mrf.mxu0
  %3516 = vmatprep.mubr.bf16.mxu0 %v2987
  %3517 = vmatmul.mubr.bf16.gmra.mxu0 %v2704
  %v3518 = vpop.f32.mrf.mxu0
  %v3519 = vadd.f32 %v3159, %v3518
  %v3520 = vpop.f32.mrf.mxu0
  %v3521 = vpop.f32.mrf.mxu0
  %v3522 = vadd.f32 %v3162, %v3521
  %v3523 = vpop.f32.mrf.mxu0
  %3524 = vmatprep.mubr.bf16.mxu0 %v2990
  %3525 = vmatmul.mubr.bf16.gmra.mxu0 %v2708
  %v3526 = vpop.f32.mrf.mxu0
  %v3527 = vadd.f32 %v3167, %v3526
  %v3528 = vpop.f32.mrf.mxu0
  %v3529 = vpop.f32.mrf.mxu0
  %v3530 = vadd.f32 %v3170, %v3529
  %v3531 = vpop.f32.mrf.mxu0
  %3532 = vmatprep.mubr.bf16.mxu0 %v2993
  %3533 = vmatmul.mubr.bf16.gmra.mxu0 %v2712
  %v3534 = vpop.f32.mrf.mxu0
  %v3535 = vadd.f32 %v3175, %v3534
  %v3536 = vpop.f32.mrf.mxu0
  %v3537 = vpop.f32.mrf.mxu0
  %v3538 = vadd.f32 %v3178, %v3537
  %v3539 = vpop.f32.mrf.mxu0
  %3540 = vmatprep.mubr.bf16.mxu0 %v2996
  %3541 = vmatmul.mubr.bf16.gmra.mxu0 %v2716
  %v3542 = vpop.f32.mrf.mxu0
  %v3543 = vadd.f32 %v3183, %v3542
  %v3544 = vpop.f32.mrf.mxu0
  %v3545 = vpop.f32.mrf.mxu0
  %v3546 = vadd.f32 %v3186, %v3545
  %v3547 = vpop.f32.mrf.mxu0
  %3548 = vmatprep.mubr.bf16.mxu0 %v2999
  %3549 = vmatmul.mubr.bf16.gmra.mxu0 %v2720
  %v3550 = vpop.f32.mrf.mxu0
  %v3551 = vadd.f32 %v3191, %v3550
  %v3552 = vpop.f32.mrf.mxu0
  %v3553 = vpop.f32.mrf.mxu0
  %v3554 = vadd.f32 %v3194, %v3553
  %v3555 = vpop.f32.mrf.mxu0
  %3556 = vmatprep.mubr.bf16.mxu0 %v3002
  %3557 = vmatmul.mubr.bf16.gmra.mxu0 %v2724
  %v3558 = vpop.f32.mrf.mxu0
  %v3559 = vadd.f32 %v3199, %v3558
  %v3560 = vpop.f32.mrf.mxu0
  %v3561 = vpop.f32.mrf.mxu0
  %v3562 = vadd.f32 %v3202, %v3561
  %v3563 = vpop.f32.mrf.mxu0
  %3564 = vmatprep.mubr.bf16.mxu0 %v3005
  %3565 = vmatmul.mubr.bf16.gmra.mxu0 %v2728
  %v3566 = vpop.f32.mrf.mxu0
  %v3567 = vadd.f32 %v3207, %v3566
  %v3568 = vpop.f32.mrf.mxu0
  %v3569 = vpop.f32.mrf.mxu0
  %v3570 = vadd.f32 %v3210, %v3569
  %v3571 = vpop.f32.mrf.mxu0
  %3572 = vmatprep.mubr.bf16.mxu0 %v3008
  %3573 = vmatmul.mubr.bf16.gmra.mxu0 %v2732
  %v3574 = vpop.f32.mrf.mxu0
  %v3575 = vadd.f32 %v3215, %v3574
  %v3576 = vpop.f32.mrf.mxu0
  %v3577 = vpop.f32.mrf.mxu0
  %v3578 = vadd.f32 %v3218, %v3577
  %v3579 = vpop.f32.mrf.mxu0
  %3580 = vmatprep.mubr.bf16.mxu0 %v3011
  %3581 = vmatmul.mubr.bf16.gmra.mxu0 %v2736
  %v3582 = vpop.f32.mrf.mxu0
  %v3583 = vadd.f32 %v3223, %v3582
  %v3584 = vpop.f32.mrf.mxu0
  %v3585 = vpop.f32.mrf.mxu0
  %v3586 = vadd.f32 %v3226, %v3585
  %v3587 = vpop.f32.mrf.mxu0
  %3588 = vmatprep.mubr.bf16.mxu0 %v3014
  %3589 = vmatmul.mubr.bf16.gmra.mxu0 %v2740
  %v3590 = vpop.f32.mrf.mxu0
  %v3591 = vadd.f32 %v3231, %v3590
  %v3592 = vpop.f32.mrf.mxu0
  %v3593 = vpop.f32.mrf.mxu0
  %v3594 = vadd.f32 %v3234, %v3593
  %v3595 = vpop.f32.mrf.mxu0
  %3596 = vmatprep.mubr.bf16.mxu0 %v3017
  %3597 = vmatmul.mubr.bf16.gmra.mxu0 %v2744
  %v3598 = vpop.f32.mrf.mxu0
  %v3599 = vadd.f32 %v3239, %v3598
  %v3600 = vpop.f32.mrf.mxu0
  %v3601 = vpop.f32.mrf.mxu0
  %v3602 = vadd.f32 %v3242, %v3601
  %v3603 = vpop.f32.mrf.mxu0
  %3604 = vmatprep.mubr.bf16.mxu0 %v3020
  %3605 = vmatmul.mubr.bf16.gmra.mxu0 %v2748
  %v3606 = vpop.f32.mrf.mxu0
  %v3607 = vadd.f32 %v3247, %v3606
  %v3608 = vpop.f32.mrf.mxu0
  %v3609 = vpop.f32.mrf.mxu0
  %v3610 = vadd.f32 %v3250, %v3609
  %v3611 = vpop.f32.mrf.mxu0
  %3612 = vmatprep.mubr.bf16.mxu0 %v3023
  %3613 = vmatmul.mubr.bf16.gmra.mxu0 %v2752
  %v3614 = vpop.f32.mrf.mxu0
  %v3615 = vadd.f32 %v3255, %v3614
  %v3616 = vpop.f32.mrf.mxu0
  %v3617 = vpop.f32.mrf.mxu0
  %v3618 = vadd.f32 %v3258, %v3617
  %v3619 = vpop.f32.mrf.mxu0
  %3620 = vmatprep.mubr.bf16.mxu0 %v3026
  %3621 = vmatmul.mubr.bf16.gmra.mxu0 %v2756
  %v3622 = vpop.f32.mrf.mxu0
  %v3623 = vadd.f32 %v3263, %v3622
  %v3624 = vpop.f32.mrf.mxu0
  %v3625 = vpop.f32.mrf.mxu0
  %v3626 = vadd.f32 %v3266, %v3625
  %v3627 = vpop.f32.mrf.mxu0
  %3628 = vmatprep.mubr.bf16.mxu0 %v3029
  %3629 = vmatmul.mubr.bf16.gmra.mxu0 %v2760
  %v3630 = vpop.f32.mrf.mxu0
  %v3631 = vadd.f32 %v3271, %v3630
  %v3632 = vpop.f32.mrf.mxu0
  %v3633 = vpop.f32.mrf.mxu0
  %v3634 = vadd.f32 %v3274, %v3633
  %v3635 = vpop.f32.mrf.mxu0
  %3636 = vmatprep.mubr.bf16.mxu0 %v3032
  %3637 = vmatmul.mubr.bf16.gmra.mxu0 %v2764
  %v3638 = vpop.f32.mrf.mxu0
  %v3639 = vadd.f32 %v3279, %v3638
  %v3640 = vpop.f32.mrf.mxu0
  %v3641 = vpop.f32.mrf.mxu0
  %v3642 = vadd.f32 %v3282, %v3641
  %v3643 = vpop.f32.mrf.mxu0
  %3644 = vmatprep.mubr.bf16.mxu0 %v3035
  %3645 = vmatmul.mubr.bf16.gmra.mxu0 %v2768
  %v3646 = vpop.f32.mrf.mxu0
  %v3647 = vadd.f32 %v3287, %v3646
  %v3648 = vpop.f32.mrf.mxu0
  %v3649 = vpop.f32.mrf.mxu0
  %v3650 = vadd.f32 %v3290, %v3649
  %v3651 = vpop.f32.mrf.mxu0
  %3652 = vmatprep.mubr.bf16.mxu0 %v3038
  %3653 = vmatmul.mubr.bf16.gmra.mxu0 %v2772
  %v3654 = vpop.f32.mrf.mxu0
  %v3655 = vadd.f32 %v3295, %v3654
  %v3656 = vpop.f32.mrf.mxu0
  %v3657 = vpop.f32.mrf.mxu0
  %v3658 = vadd.f32 %v3298, %v3657
  %v3659 = vpop.f32.mrf.mxu0
  %3660 = vmatprep.mubr.bf16.mxu0 %v3041
  %3661 = vmatmul.mubr.bf16.gmra.mxu0 %v2776
  %v3662 = vpop.f32.mrf.mxu0
  %v3663 = vadd.f32 %v3303, %v3662
  %v3664 = vpop.f32.mrf.mxu0
  %v3665 = vpop.f32.mrf.mxu0
  %v3666 = vadd.f32 %v3306, %v3665
  %v3667 = vpop.f32.mrf.mxu0
  %3668 = vmatprep.mubr.bf16.mxu0 %v3044
  %3669 = vmatmul.mubr.bf16.gmra.mxu0 %v2780
  %v3670 = vpop.f32.mrf.mxu0
  %v3671 = vadd.f32 %v3311, %v3670
  %v3672 = vpop.f32.mrf.mxu0
  %v3673 = vpop.f32.mrf.mxu0
  %v3674 = vadd.f32 %v3314, %v3673
  %v3675 = vpop.f32.mrf.mxu0
  %3676 = vmatprep.mubr.bf16.mxu0 %v3047
  %3677 = vmatmul.mubr.bf16.gmra.mxu0 %v2784
  %v3678 = vpop.f32.mrf.mxu0
  %v3679 = vadd.f32 %v3319, %v3678
  %v3680 = vpop.f32.mrf.mxu0
  %v3681 = vpop.f32.mrf.mxu0
  %v3682 = vadd.f32 %v3322, %v3681
  %v3683 = vpop.f32.mrf.mxu0
  %3684 = vmatprep.mubr.bf16.mxu0 %v3050
  %3685 = vmatmul.mubr.bf16.gmra.mxu0 %v2788
  %v3686 = vpop.f32.mrf.mxu0
  %v3687 = vadd.f32 %v3327, %v3686
  %v3688 = vpop.f32.mrf.mxu0
  %v3689 = vpop.f32.mrf.mxu0
  %v3690 = vadd.f32 %v3330, %v3689
  %v3691 = vpop.f32.mrf.mxu0
  %3692 = vmatprep.mubr.bf16.mxu0 %v3053
  %3693 = vmatmul.mubr.bf16.gmra.mxu0 %v2792
  %v3694 = vpop.f32.mrf.mxu0
  %v3695 = vadd.f32 %v3335, %v3694
  %v3696 = vpop.f32.mrf.mxu0
  %v3697 = vpop.f32.mrf.mxu0
  %v3698 = vadd.f32 %v3338, %v3697
  %v3699 = vpop.f32.mrf.mxu0
  %3700 = vmatprep.mubr.bf16.mxu0 %v3056
  %3701 = vmatmul.mubr.bf16.gmra.mxu0 %v2796
  %v3702 = vpop.f32.mrf.mxu0
  %v3703 = vadd.f32 %v3343, %v3702
  %v3704 = vpop.f32.mrf.mxu0
  %v3705 = vpop.f32.mrf.mxu0
  %v3706 = vadd.f32 %v3346, %v3705
  %v3707 = vpop.f32.mrf.mxu0
  %3708 = vmatprep.mubr.bf16.mxu0 %v3059
  %3709 = vmatmul.mubr.bf16.gmra.mxu0 %v2800
  %v3710 = vpop.f32.mrf.mxu0
  %v3711 = vadd.f32 %v3351, %v3710
  %v3712 = vpop.f32.mrf.mxu0
  %v3713 = vpop.f32.mrf.mxu0
  %v3714 = vadd.f32 %v3354, %v3713
  %v3715 = vpop.f32.mrf.mxu0
  %3716 = vmatprep.mubr.bf16.mxu0 %v3062
  %3717 = vmatmul.mubr.bf16.gmra.mxu0 %v2804
  %v3718 = vpop.f32.mrf.mxu0
  %v3719 = vadd.f32 %v3359, %v3718
  %v3720 = vpop.f32.mrf.mxu0
  %v3721 = vpop.f32.mrf.mxu0
  %v3722 = vadd.f32 %v3362, %v3721
  %v3723 = vpop.f32.mrf.mxu0
  %3724 = vmatprep.mubr.bf16.mxu0 %v3065
  %3725 = vmatmul.mubr.bf16.gmra.mxu0 %v2808
  %v3726 = vpop.f32.mrf.mxu0
  %v3727 = vadd.f32 %v3367, %v3726
  %v3728 = vpop.f32.mrf.mxu0
  %v3729 = vpop.f32.mrf.mxu0
  %v3730 = vadd.f32 %v3370, %v3729
  %v3731 = vpop.f32.mrf.mxu0
  %3732 = vmatprep.mubr.bf16.mxu0 %v3068
  %3733 = vmatmul.mubr.bf16.gmra.mxu0 %v2812
  %v3734 = vpop.f32.mrf.mxu0
  %v3735 = vadd.f32 %v3375, %v3734
  %v3736 = vpop.f32.mrf.mxu0
  %v3737 = vpop.f32.mrf.mxu0
  %v3738 = vadd.f32 %v3378, %v3737
  %v3739 = vpop.f32.mrf.mxu0
  %3740 = vmatprep.mubr.bf16.mxu0 %v3071
  %3741 = vmatmul.mubr.bf16.gmra.mxu0 %v2816
  %v3742 = vpop.f32.mrf.mxu0
  %v3743 = vadd.f32 %v3383, %v3742
  %v3744 = vpop.f32.mrf.mxu0
  %v3745 = vpop.f32.mrf.mxu0
  %v3746 = vadd.f32 %v3386, %v3745
  %v3747 = vpop.f32.mrf.mxu0
  %3748 = vmatprep.mubr.bf16.mxu0 %v3074
  %3749 = vmatmul.mubr.bf16.gmra.mxu0 %v2820
  %v3750 = vpop.f32.mrf.mxu0
  %v3751 = vadd.f32 %v3391, %v3750
  %v3752 = vpop.f32.mrf.mxu0
  %v3753 = vpop.f32.mrf.mxu0
  %v3754 = vadd.f32 %v3394, %v3753
  %v3755 = vpop.f32.mrf.mxu0
  %3756 = vmatprep.mubr.bf16.mxu0 %v3077
  %3757 = vmatmul.mubr.bf16.gmra.mxu0 %v2824
  %v3758 = vpop.f32.mrf.mxu0
  %v3759 = vadd.f32 %v3399, %v3758
  %v3760 = vpop.f32.mrf.mxu0
  %v3761 = vpop.f32.mrf.mxu0
  %v3762 = vadd.f32 %v3402, %v3761
  %v3763 = vpop.f32.mrf.mxu0
  %3764 = vmatprep.mubr.bf16.mxu0 %v3080
  %3765 = vmatmul.mubr.bf16.gmra.mxu0 %v2828
  %v3766 = vpop.f32.mrf.mxu0
  %v3767 = vadd.f32 %v3407, %v3766
  %v3768 = vpop.f32.mrf.mxu0
  %v3769 = vpop.f32.mrf.mxu0
  %v3770 = vadd.f32 %v3410, %v3769
  %v3771 = vpop.f32.mrf.mxu0
  %3772 = vmatprep.mubr.bf16.mxu0 %v3083
  %3773 = vmatmul.mubr.bf16.gmra.mxu0 %v2832
  %v3774 = vpop.f32.mrf.mxu0
  %v3775 = vadd.f32 %v3415, %v3774
  %v3776 = vpop.f32.mrf.mxu0
  %v3777 = vpop.f32.mrf.mxu0
  %v3778 = vadd.f32 %v3418, %v3777
  %v3779 = vpop.f32.mrf.mxu0
  %3780 = vmatprep.mubr.bf16.mxu0 %v3086
  %3781 = vmatmul.mubr.bf16.gmra.mxu0 %v2836
  %v3782 = vpop.f32.mrf.mxu0
  %v3783 = vadd.f32 %v3423, %v3782
  %v3784 = vpop.f32.mrf.mxu0
  %v3785 = vpop.f32.mrf.mxu0
  %v3786 = vadd.f32 %v3426, %v3785
  %v3787 = vpop.f32.mrf.mxu0
  %3788 = vmatprep.mubr.bf16.mxu0 %v3089
  %3789 = vmatmul.mubr.bf16.gmra.mxu0 %v2840
  %v3790 = vpop.f32.mrf.mxu0
  %v3791 = vadd.f32 %v3431, %v3790
  %v3792 = vpop.f32.mrf.mxu0
  %v3793 = vpop.f32.mrf.mxu0
  %v3794 = vadd.f32 %v3434, %v3793
  %v3795 = vpop.f32.mrf.mxu0
  %3796 = vmatprep.mubr.bf16.mxu0 %v3092
  %3797 = vmatmul.mubr.bf16.gmra.mxu0 %v2844
  %v3798 = vpop.f32.mrf.mxu0
  %v3799 = vadd.f32 %v3439, %v3798
  %v3800 = vpop.f32.mrf.mxu0
  %v3801 = vpop.f32.mrf.mxu0
  %v3802 = vadd.f32 %v3442, %v3801
  %v3803 = vpop.f32.mrf.mxu0
  %3804 = vmatprep.mubr.bf16.mxu0 %v3095
  %3805 = vmatmul.mubr.bf16.gmra.mxu0 %v2848
  %v3806 = vpop.f32.mrf.mxu0
  %v3807 = vadd.f32 %v3447, %v3806
  %v3808 = vpop.f32.mrf.mxu0
  %v3809 = vpop.f32.mrf.mxu0
  %v3810 = vadd.f32 %v3450, %v3809
  %v3811 = vpop.f32.mrf.mxu0
  %3812 = vmatprep.mubr.bf16.mxu0 %v3098
  %3813 = vmatmul.mubr.bf16.gmra.mxu0 %v2852
  %v3814 = vpop.f32.mrf.mxu0
  %v3815 = vadd.f32 %v3455, %v3814
  %v3816 = vpop.f32.mrf.mxu0
  %v3817 = vpop.f32.mrf.mxu0
  %v3818 = vpop.f32.mrf.mxu0
  %3819 = vdwg.mxu0
  %v3820 = vmax.f32 %v1717, %v3495
  %v3821 = vmax.f32 %v1720, %v3498
  %v3822 = vmax.f32 %v1725, %v3503
  %v3823 = vmax.f32 %v1728, %v3506
  %v3824 = vmax.f32 %v1733, %v3511
  %v3825 = vmax.f32 %v1736, %v3514
  %v3826 = vmax.f32 %v1741, %v3519
  %v3827 = vmax.f32 %v1744, %v3522
  %v3828 = vmax.f32 %v1749, %v3527
  %v3829 = vmax.f32 %v1752, %v3530
  %v3830 = vmax.f32 %v1757, %v3535
  %v3831 = vmax.f32 %v1760, %v3538
  %v3832 = vmax.f32 %v1765, %v3543
  %v3833 = vmax.f32 %v1768, %v3546
  %v3834 = vmax.f32 %v1773, %v3551
  %v3835 = vmax.f32 %v1776, %v3554
  %v3836 = vmax.f32 %v1781, %v3559
  %v3837 = vmax.f32 %v1784, %v3562
  %v3838 = vmax.f32 %v1789, %v3567
  %v3839 = vmax.f32 %v1792, %v3570
  %v3840 = vmax.f32 %v1797, %v3575
  %v3841 = vmax.f32 %v1800, %v3578
  %v3842 = vmax.f32 %v1805, %v3583
  %v3843 = vmax.f32 %v1808, %v3586
  %v3844 = vmax.f32 %v1813, %v3591
  %v3845 = vmax.f32 %v1816, %v3594
  %v3846 = vmax.f32 %v1821, %v3599
  %v3847 = vmax.f32 %v1824, %v3602
  %v3848 = vmax.f32 %v1829, %v3607
  %v3849 = vmax.f32 %v1832, %v3610
  %v3850 = vmax.f32 %v1837, %v3615
  %v3851 = vmax.f32 %v1840, %v3618
  %v3852 = vmax.f32 %v1845, %v3623
  %v3853 = vmax.f32 %v1848, %v3626
  %v3854 = vmax.f32 %v1853, %v3631
  %v3855 = vmax.f32 %v1856, %v3634
  %v3856 = vmax.f32 %v1861, %v3639
  %v3857 = vmax.f32 %v1864, %v3642
  %v3858 = vmax.f32 %v1869, %v3647
  %v3859 = vmax.f32 %v1872, %v3650
  %v3860 = vmax.f32 %v1877, %v3655
  %v3861 = vmax.f32 %v1880, %v3658
  %v3862 = vmax.f32 %v1885, %v3663
  %v3863 = vmax.f32 %v1888, %v3666
  %v3864 = vmax.f32 %v1893, %v3671
  %v3865 = vmax.f32 %v1896, %v3674
  %v3866 = vmax.f32 %v1901, %v3679
  %v3867 = vmax.f32 %v1904, %v3682
  %v3868 = vmax.f32 %v1909, %v3687
  %v3869 = vmax.f32 %v1912, %v3690
  %v3870 = vmax.f32 %v1917, %v3695
  %v3871 = vmax.f32 %v1920, %v3698
  %v3872 = vmax.f32 %v1925, %v3703
  %v3873 = vmax.f32 %v1928, %v3706
  %v3874 = vmax.f32 %v1933, %v3711
  %v3875 = vmax.f32 %v1936, %v3714
  %v3876 = vmax.f32 %v1941, %v3719
  %v3877 = vmax.f32 %v1944, %v3722
  %v3878 = vmax.f32 %v1949, %v3727
  %v3879 = vmax.f32 %v1952, %v3730
  %v3880 = vmax.f32 %v1957, %v3735
  %v3881 = vmax.f32 %v1960, %v3738
  %v3882 = vmax.f32 %v1965, %v3743
  %v3883 = vmax.f32 %v1968, %v3746
  %v3884 = vmax.f32 %v1973, %v3751
  %v3885 = vmax.f32 %v1976, %v3754
  %v3886 = vmax.f32 %v1981, %v3759
  %v3887 = vmax.f32 %v1984, %v3762
  %v3888 = vmax.f32 %v1989, %v3767
  %v3889 = vmax.f32 %v1992, %v3770
  %v3890 = vmax.f32 %v1997, %v3775
  %v3891 = vmax.f32 %v2000, %v3778
  %v3892 = vmax.f32 %v2005, %v3783
  %v3893 = vmax.f32 %v2008, %v3786
  %v3894 = vmax.f32 %v2013, %v3791
  %v3895 = vmax.f32 %v2016, %v3794
  %v3896 = vmax.f32 %v2021, %v3799
  %v3897 = vmax.f32 %v2024, %v3802
  %v3898 = vmax.f32 %v2029, %v3807
  %v3899 = vmax.f32 %v2032, %v3810
  %v3900 = vmax.f32 %v2037, %v3815
  %v3901 = vld [vmem:[%s3] sm:$0xff]
  %v3902 = vld [vmem:[%s3 + $0x8] sm:$0xff]
  %v3903 = vld [vmem:[%s3 + $0x10] sm:$0xff]
  %v3904 = vld [vmem:[%s3 + $0x18] sm:$0xff]
  %v3905 = vld [vmem:[%s3 + $0x20] sm:$0xff]
  %v3906 = vld [vmem:[%s3 + $0x28] sm:$0xff]
  %v3907 = vld [vmem:[%s3 + $0x30] sm:$0xff]
  %v3908 = vld [vmem:[%s3 + $0x38] sm:$0xff]
  %v3909 = vld [vmem:[%s3 + $0x40] sm:$0xff]
  %v3910 = vld [vmem:[%s3 + $0x48] sm:$0xff]
  %v3911 = vld [vmem:[%s3 + $0x50] sm:$0xff]
  %v3912 = vld [vmem:[%s3 + $0x58] sm:$0xff]
  %v3913 = vld [vmem:[%s3 + $0x60] sm:$0xff]
  %v3914 = vld [vmem:[%s3 + $0x68] sm:$0xff]
  %v3915 = vld [vmem:[%s3 + $0x70] sm:$0xff]
  %v3916 = vld [vmem:[%s3 + $0x78] sm:$0xff]
  %v3917 = vld [vmem:[%s3 + $0x80] sm:$0xff]
  %v3918 = vld [vmem:[%s3 + $0x88] sm:$0xff]
  %v3919 = vld [vmem:[%s3 + $0x90] sm:$0xff]
  %v3920 = vld [vmem:[%s3 + $0x98] sm:$0xff]
  %v3921 = vld [vmem:[%s3 + $0xa0] sm:$0xff]
  %v3922 = vld [vmem:[%s3 + $0xa8] sm:$0xff]
  %v3923 = vld [vmem:[%s3 + $0xb0] sm:$0xff]
  %v3924 = vld [vmem:[%s3 + $0xb8] sm:$0xff]
  %v3925 = vld [vmem:[%s3 + $0xc0] sm:$0xff]
  %v3926 = vld [vmem:[%s3 + $0xc8] sm:$0xff]
  %v3927 = vld [vmem:[%s3 + $0xd0] sm:$0xff]
  %v3928 = vld [vmem:[%s3 + $0xd8] sm:$0xff]
  %v3929 = vld [vmem:[%s3 + $0xe0] sm:$0xff]
  %v3930 = vld [vmem:[%s3 + $0xe8] sm:$0xff]
  %v3931 = vld [vmem:[%s3 + $0xf0] sm:$0xff]
  %v3932 = vld [vmem:[%s3 + $0xf8] sm:$0xff]
  %v3933 = vld [vmem:[%s3 + $0x100] sm:$0xff]
  %v3934 = vld [vmem:[%s3 + $0x108] sm:$0xff]
  %v3935 = vld [vmem:[%s3 + $0x110] sm:$0xff]
  %v3936 = vld [vmem:[%s3 + $0x118] sm:$0xff]
  %v3937 = vld [vmem:[%s3 + $0x120] sm:$0xff]
  %v3938 = vld [vmem:[%s3 + $0x128] sm:$0xff]
  %v3939 = vld [vmem:[%s3 + $0x130] sm:$0xff]
  %v3940 = vld [vmem:[%s3 + $0x138] sm:$0xff]
  %v3941 = vld [vmem:[%s3 + $0x140] sm:$0xff]
  %v3942 = vld [vmem:[%s3 + $0x148] sm:$0xff]
  %v3943 = vld [vmem:[%s3 + $0x150] sm:$0xff]
  %v3944 = vld [vmem:[%s3 + $0x158] sm:$0xff]
  %v3945 = vld [vmem:[%s3 + $0x160] sm:$0xff]
  %v3946 = vld [vmem:[%s3 + $0x168] sm:$0xff]
  %v3947 = vld [vmem:[%s3 + $0x170] sm:$0xff]
  %v3948 = vld [vmem:[%s3 + $0x178] sm:$0xff]
  %v3949 = vld [vmem:[%s3 + $0x180] sm:$0xff]
  %v3950 = vld [vmem:[%s3 + $0x188] sm:$0xff]
  %v3951 = vld [vmem:[%s3 + $0x190] sm:$0xff]
  %v3952 = vld [vmem:[%s3 + $0x198] sm:$0xff]
  %v3953 = vld [vmem:[%s3 + $0x1a0] sm:$0xff]
  %v3954 = vld [vmem:[%s3 + $0x1a8] sm:$0xff]
  %v3955 = vld [vmem:[%s3 + $0x1b0] sm:$0xff]
  %v3956 = vld [vmem:[%s3 + $0x1b8] sm:$0xff]
  %v3957 = vld [vmem:[%s3 + $0x1c0] sm:$0xff]
  %v3958 = vld [vmem:[%s3 + $0x1c8] sm:$0xff]
  %v3959 = vld [vmem:[%s3 + $0x1d0] sm:$0xff]
  %v3960 = vld [vmem:[%s3 + $0x1d8] sm:$0xff]
  %v3961 = vld [vmem:[%s3 + $0x1e0] sm:$0xff]
  %v3962 = vld [vmem:[%s3 + $0x1e8] sm:$0xff]
  %v3963 = vld [vmem:[%s3 + $0x1f0] sm:$0xff]
  %v3964 = vld [vmem:[%s3 + $0x1f8] sm:$0xff]
  %v3965 = vld [vmem:[%s3 + $0x200] sm:$0xff]
  %v3966 = vld [vmem:[%s3 + $0x208] sm:$0xff]
  %v3967 = vld [vmem:[%s3 + $0x210] sm:$0xff]
  %v3968 = vld [vmem:[%s3 + $0x218] sm:$0xff]
  %v3969 = vld [vmem:[%s3 + $0x220] sm:$0xff]
  %v3970 = vld [vmem:[%s3 + $0x228] sm:$0xff]
  %v3971 = vld [vmem:[%s3 + $0x230] sm:$0xff]
  %v3972 = vld [vmem:[%s3 + $0x238] sm:$0xff]
  %v3973 = vld [vmem:[%s3 + $0x240] sm:$0xff]
  %v3974 = vld [vmem:[%s3 + $0x248] sm:$0xff]
  %v3975 = vld [vmem:[%s3 + $0x250] sm:$0xff]
  %v3976 = vld [vmem:[%s3 + $0x258] sm:$0xff]
  %v3977 = vld [vmem:[%s3 + $0x260] sm:$0xff]
  %v3978 = vld [vmem:[%s3 + $0x268] sm:$0xff]
  %v3979 = vld [vmem:[%s3 + $0x270] sm:$0xff]
  %v3980 = vld [vmem:[%s3 + $0x278] sm:$0xff]
  %v3981 = vld [vmem:[%s3 + $0x280] sm:$0xff]
  %v3982 = vld [vmem:[%s3 + $0x288] sm:$0xff]
  %v3983 = vld [vmem:[%s3 + $0x290] sm:$0xff]
  %v3984 = vld [vmem:[%s3 + $0x298] sm:$0xff]
  %v3985 = vld [vmem:[%s3 + $0x2a0] sm:$0xff]
  %v3986 = vld [vmem:[%s3 + $0x2a8] sm:$0xff]
  %v3987 = vld [vmem:[%s3 + $0x2b0] sm:$0xff]
  %v3988 = vld [vmem:[%s3 + $0x2b8] sm:$0xff]
  %v3989 = vld [vmem:[%s3 + $0x2c0] sm:$0xff]
  %v3990 = vld [vmem:[%s3 + $0x2c8] sm:$0xff]
  %v3991 = vld [vmem:[%s3 + $0x2d0] sm:$0xff]
  %v3992 = vld [vmem:[%s3 + $0x2d8] sm:$0xff]
  %v3993 = vld [vmem:[%s3 + $0x2e0] sm:$0xff]
  %v3994 = vld [vmem:[%s3 + $0x2e8] sm:$0xff]
  %v3995 = vld [vmem:[%s3 + $0x2f0] sm:$0xff]
  %v3996 = vld [vmem:[%s3 + $0x2f8] sm:$0xff]
  %v3997 = vld [vmem:[%s3 + $0x300] sm:$0xff]
  %v3998 = vld [vmem:[%s3 + $0x308] sm:$0xff]
  %v3999 = vld [vmem:[%s3 + $0x310] sm:$0xff]
  %v4000 = vld [vmem:[%s3 + $0x318] sm:$0xff]
  %v4001 = vld [vmem:[%s3 + $0x320] sm:$0xff]
  %v4002 = vld [vmem:[%s3 + $0x328] sm:$0xff]
  %v4003 = vld [vmem:[%s3 + $0x330] sm:$0xff]
  %v4004 = vld [vmem:[%s3 + $0x338] sm:$0xff]
  %v4005 = vld [vmem:[%s3 + $0x340] sm:$0xff]
  %v4006 = vld [vmem:[%s3 + $0x348] sm:$0xff]
  %v4007 = vld [vmem:[%s3 + $0x350] sm:$0xff]
  %v4008 = vld [vmem:[%s3 + $0x358] sm:$0xff]
  %v4009 = vld [vmem:[%s3 + $0x360] sm:$0xff]
  %v4010 = vld [vmem:[%s3 + $0x368] sm:$0xff]
  %v4011 = vld [vmem:[%s3 + $0x370] sm:$0xff]
  %v4012 = vld [vmem:[%s3 + $0x378] sm:$0xff]
  %v4013 = vld [vmem:[%s3 + $0x380] sm:$0xff]
  %v4014 = vld [vmem:[%s3 + $0x388] sm:$0xff]
  %v4015 = vld [vmem:[%s3 + $0x390] sm:$0xff]
  %v4016 = vld [vmem:[%s3 + $0x398] sm:$0xff]
  %v4017 = vld [vmem:[%s3 + $0x3a0] sm:$0xff]
  %v4018 = vld [vmem:[%s3 + $0x3a8] sm:$0xff]
  %v4019 = vld [vmem:[%s3 + $0x3b0] sm:$0xff]
  %v4020 = vld [vmem:[%s3 + $0x3b8] sm:$0xff]
  %v4021 = vld [vmem:[%s3 + $0x3c0] sm:$0xff]
  %v4022 = vld [vmem:[%s3 + $0x3c8] sm:$0xff]
  %v4023 = vld [vmem:[%s3 + $0x3d0] sm:$0xff]
  %v4024 = vld [vmem:[%s3 + $0x3d8] sm:$0xff]
  %v4025 = vld [vmem:[%s3 + $0x3e0] sm:$0xff]
  %v4026 = vld [vmem:[%s3 + $0x3e8] sm:$0xff]
  %v4027 = vld [vmem:[%s3 + $0x3f0] sm:$0xff]
  %v4028 = vld [vmem:[%s3 + $0x3f8] sm:$0xff]
  %v4029 = vld [vmem:[%s3 + $0x400] sm:$0xff]
  %v4030 = vld [vmem:[%s3 + $0x408] sm:$0xff]
  %v4031 = vld [vmem:[%s3 + $0x410] sm:$0xff]
  %v4032 = vld [vmem:[%s3 + $0x418] sm:$0xff]
  %v4033 = vld [vmem:[%s3 + $0x420] sm:$0xff]
  %v4034 = vld [vmem:[%s3 + $0x428] sm:$0xff]
  %v4035 = vld [vmem:[%s3 + $0x430] sm:$0xff]
  %v4036 = vld [vmem:[%s3 + $0x438] sm:$0xff]
  %v4037 = vld [vmem:[%s3 + $0x440] sm:$0xff]
  %v4038 = vld [vmem:[%s3 + $0x448] sm:$0xff]
  %v4039 = vld [vmem:[%s3 + $0x450] sm:$0xff]
  %v4040 = vld [vmem:[%s3 + $0x458] sm:$0xff]
  %v4041 = vld [vmem:[%s3 + $0x460] sm:$0xff]
  %v4042 = vld [vmem:[%s3 + $0x468] sm:$0xff]
  %v4043 = vld [vmem:[%s3 + $0x470] sm:$0xff]
  %v4044 = vld [vmem:[%s3 + $0x478] sm:$0xff]
  %v4045 = vld [vmem:[%s3 + $0x480] sm:$0xff]
  %v4046 = vld [vmem:[%s3 + $0x488] sm:$0xff]
  %v4047 = vld [vmem:[%s3 + $0x490] sm:$0xff]
  %v4048 = vld [vmem:[%s3 + $0x498] sm:$0xff]
  %v4049 = vld [vmem:[%s3 + $0x4a0] sm:$0xff]
  %v4050 = vld [vmem:[%s3 + $0x4a8] sm:$0xff]
  %v4051 = vld [vmem:[%s3 + $0x4b0] sm:$0xff]
  %v4052 = vld [vmem:[%s3 + $0x4b8] sm:$0xff]
  %v4053 = vld [vmem:[%s3 + $0x4c0] sm:$0xff]
  %v4054 = vld [vmem:[%s3 + $0x4c8] sm:$0xff]
  %v4055 = vld [vmem:[%s3 + $0x4d0] sm:$0xff]
  %v4056 = vld [vmem:[%s3 + $0x4d8] sm:$0xff]
  %v4057 = vld [vmem:[%s3 + $0x4e0] sm:$0xff]
  %v4058 = vld [vmem:[%s3 + $0x4e8] sm:$0xff]
  %v4059 = vld [vmem:[%s3 + $0x4f0] sm:$0xff]
  %v4060 = vld [vmem:[%s3 + $0x4f8] sm:$0xff]
  %v4061 = vld [vmem:[%s3 + $0x500] sm:$0xff]
  %v4062 = vld [vmem:[%s3 + $0x508] sm:$0xff]
  %v4225 = vunpack.c.l.b16 %v3901
  %v4226 = vunpack.c.h.b16 %v3901
  %v4227 = vunpack.c.l.b16 %v3902
  %v4228 = vunpack.c.h.b16 %v3902
  %v4229 = vunpack.c.l.b16 %v3903
  %v4230 = vunpack.c.h.b16 %v3903
  %v4231 = vunpack.c.l.b16 %v3904
  %v4232 = vunpack.c.h.b16 %v3904
  %v4233 = vunpack.c.l.b16 %v3905
  %v4234 = vunpack.c.h.b16 %v3905
  %v4235 = vunpack.c.l.b16 %v3906
  %v4236 = vunpack.c.h.b16 %v3906
  %v4237 = vunpack.c.l.b16 %v3907
  %v4238 = vunpack.c.h.b16 %v3907
  %v4239 = vunpack.c.l.b16 %v3908
  %v4240 = vunpack.c.h.b16 %v3908
  %v4241 = vunpack.c.l.b16 %v3909
  %v4242 = vunpack.c.h.b16 %v3909
  %v4243 = vunpack.c.l.b16 %v3910
  %v4244 = vunpack.c.h.b16 %v3910
  %v4245 = vunpack.c.l.b16 %v3911
  %v4246 = vunpack.c.h.b16 %v3911
  %v4247 = vunpack.c.l.b16 %v3912
  %v4248 = vunpack.c.h.b16 %v3912
  %v4249 = vunpack.c.l.b16 %v3913
  %v4250 = vunpack.c.h.b16 %v3913
  %v4251 = vunpack.c.l.b16 %v3914
  %v4252 = vunpack.c.h.b16 %v3914
  %v4253 = vunpack.c.l.b16 %v3915
  %v4254 = vunpack.c.h.b16 %v3915
  %v4255 = vunpack.c.l.b16 %v3916
  %v4256 = vunpack.c.h.b16 %v3916
  %v4257 = vunpack.c.l.b16 %v3917
  %v4258 = vunpack.c.h.b16 %v3917
  %v4259 = vunpack.c.l.b16 %v3918
  %v4260 = vunpack.c.h.b16 %v3918
  %v4261 = vunpack.c.l.b16 %v3919
  %v4262 = vunpack.c.h.b16 %v3919
  %v4263 = vunpack.c.l.b16 %v3920
  %v4264 = vunpack.c.h.b16 %v3920
  %v4265 = vunpack.c.l.b16 %v3921
  %v4266 = vunpack.c.h.b16 %v3921
  %v4267 = vunpack.c.l.b16 %v3922
  %v4268 = vunpack.c.h.b16 %v3922
  %v4269 = vunpack.c.l.b16 %v3923
  %v4270 = vunpack.c.h.b16 %v3923
  %v4271 = vunpack.c.l.b16 %v3924
  %v4272 = vunpack.c.h.b16 %v3924
  %v4273 = vunpack.c.l.b16 %v3925
  %v4274 = vunpack.c.h.b16 %v3925
  %v4275 = vunpack.c.l.b16 %v3926
  %v4276 = vunpack.c.h.b16 %v3926
  %v4277 = vunpack.c.l.b16 %v3927
  %v4278 = vunpack.c.h.b16 %v3927
  %v4279 = vunpack.c.l.b16 %v3928
  %v4280 = vunpack.c.h.b16 %v3928
  %v4281 = vunpack.c.l.b16 %v3929
  %v4282 = vunpack.c.h.b16 %v3929
  %v4283 = vunpack.c.l.b16 %v3930
  %v4284 = vunpack.c.h.b16 %v3930
  %v4285 = vunpack.c.l.b16 %v3931
  %v4286 = vunpack.c.h.b16 %v3931
  %v4287 = vunpack.c.l.b16 %v3932
  %v4288 = vunpack.c.h.b16 %v3932
  %v4289 = vunpack.c.l.b16 %v3933
  %v4290 = vunpack.c.h.b16 %v3933
  %v4291 = vunpack.c.l.b16 %v3934
  %v4292 = vunpack.c.h.b16 %v3934
  %v4293 = vunpack.c.l.b16 %v3935
  %v4294 = vunpack.c.h.b16 %v3935
  %v4295 = vunpack.c.l.b16 %v3936
  %v4296 = vunpack.c.h.b16 %v3936
  %v4297 = vunpack.c.l.b16 %v3937
  %v4298 = vunpack.c.h.b16 %v3937
  %v4299 = vunpack.c.l.b16 %v3938
  %v4300 = vunpack.c.h.b16 %v3938
  %v4301 = vunpack.c.l.b16 %v3939
  %v4302 = vunpack.c.h.b16 %v3939
  %v4303 = vunpack.c.l.b16 %v3940
  %v4304 = vunpack.c.h.b16 %v3940
  %v4305 = vunpack.c.l.b16 %v3941
  %v4306 = vunpack.c.h.b16 %v3941
  %v4307 = vunpack.c.l.b16 %v3942
  %v4308 = vunpack.c.h.b16 %v3942
  %v4309 = vunpack.c.l.b16 %v3943
  %v4310 = vunpack.c.h.b16 %v3943
  %v4311 = vunpack.c.l.b16 %v3944
  %v4312 = vunpack.c.h.b16 %v3944
  %v4313 = vunpack.c.l.b16 %v3945
  %v4314 = vunpack.c.h.b16 %v3945
  %v4315 = vunpack.c.l.b16 %v3946
  %v4316 = vunpack.c.h.b16 %v3946
  %v4317 = vunpack.c.l.b16 %v3947
  %v4318 = vunpack.c.h.b16 %v3947
  %v4319 = vunpack.c.l.b16 %v3948
  %v4320 = vunpack.c.h.b16 %v3948
  %v4321 = vunpack.c.l.b16 %v3949
  %v4322 = vunpack.c.h.b16 %v3949
  %v4323 = vunpack.c.l.b16 %v3950
  %v4324 = vunpack.c.h.b16 %v3950
  %v4325 = vunpack.c.l.b16 %v3951
  %v4326 = vunpack.c.h.b16 %v3951
  %v4327 = vunpack.c.l.b16 %v3952
  %v4328 = vunpack.c.h.b16 %v3952
  %v4329 = vunpack.c.l.b16 %v3953
  %v4330 = vunpack.c.h.b16 %v3953
  %v4331 = vunpack.c.l.b16 %v3954
  %v4332 = vunpack.c.h.b16 %v3954
  %v4333 = vunpack.c.l.b16 %v3955
  %v4334 = vunpack.c.h.b16 %v3955
  %v4335 = vunpack.c.l.b16 %v3956
  %v4336 = vunpack.c.h.b16 %v3956
  %v4337 = vunpack.c.l.b16 %v3957
  %v4338 = vunpack.c.h.b16 %v3957
  %v4339 = vunpack.c.l.b16 %v3958
  %v4340 = vunpack.c.h.b16 %v3958
  %v4341 = vunpack.c.l.b16 %v3959
  %v4342 = vunpack.c.h.b16 %v3959
  %v4343 = vunpack.c.l.b16 %v3960
  %v4344 = vunpack.c.h.b16 %v3960
  %v4345 = vunpack.c.l.b16 %v3961
  %v4346 = vunpack.c.h.b16 %v3961
  %v4347 = vunpack.c.l.b16 %v3962
  %v4348 = vunpack.c.h.b16 %v3962
  %v4349 = vunpack.c.l.b16 %v3963
  %v4350 = vunpack.c.h.b16 %v3963
  %v4351 = vunpack.c.l.b16 %v3964
  %v4352 = vunpack.c.h.b16 %v3964
  %v4353 = vunpack.c.l.b16 %v3965
  %v4354 = vunpack.c.h.b16 %v3965
  %v4355 = vunpack.c.l.b16 %v3966
  %v4356 = vunpack.c.h.b16 %v3966
  %v4357 = vunpack.c.l.b16 %v3967
  %v4358 = vunpack.c.h.b16 %v3967
  %v4359 = vunpack.c.l.b16 %v3968
  %v4360 = vunpack.c.h.b16 %v3968
  %v4361 = vunpack.c.l.b16 %v3969
  %v4362 = vunpack.c.h.b16 %v3969
  %v4363 = vunpack.c.l.b16 %v3970
  %v4364 = vunpack.c.h.b16 %v3970
  %v4365 = vunpack.c.l.b16 %v3971
  %v4366 = vunpack.c.h.b16 %v3971
  %v4367 = vunpack.c.l.b16 %v3972
  %v4368 = vunpack.c.h.b16 %v3972
  %v4369 = vunpack.c.l.b16 %v3973
  %v4370 = vunpack.c.h.b16 %v3973
  %v4371 = vunpack.c.l.b16 %v3974
  %v4372 = vunpack.c.h.b16 %v3974
  %v4373 = vunpack.c.l.b16 %v3975
  %v4374 = vunpack.c.h.b16 %v3975
  %v4375 = vunpack.c.l.b16 %v3976
  %v4376 = vunpack.c.h.b16 %v3976
  %v4377 = vunpack.c.l.b16 %v3977
  %v4378 = vunpack.c.h.b16 %v3977
  %v4379 = vunpack.c.l.b16 %v3978
  %v4380 = vunpack.c.h.b16 %v3978
  %v4381 = vunpack.c.l.b16 %v3979
  %v4382 = vunpack.c.h.b16 %v3979
  %v4383 = vunpack.c.l.b16 %v3980
  %v4384 = vunpack.c.h.b16 %v3980
  %v4385 = vunpack.c.l.b16 %v3981
  %v4386 = vunpack.c.h.b16 %v3981
  %v4387 = vunpack.c.l.b16 %v3982
  %v4388 = vunpack.c.h.b16 %v3982
  %v4389 = vunpack.c.l.b16 %v3983
  %v4390 = vunpack.c.h.b16 %v3983
  %v4391 = vunpack.c.l.b16 %v3984
  %v4392 = vunpack.c.h.b16 %v3984
  %v4393 = vunpack.c.l.b16 %v3985
  %v4394 = vunpack.c.h.b16 %v3985
  %v4395 = vunpack.c.l.b16 %v3986
  %v4396 = vunpack.c.h.b16 %v3986
  %v4397 = vunpack.c.l.b16 %v3987
  %v4398 = vunpack.c.h.b16 %v3987
  %v4399 = vunpack.c.l.b16 %v3988
  %v4400 = vunpack.c.h.b16 %v3988
  %v4401 = vunpack.c.l.b16 %v3989
  %v4402 = vunpack.c.h.b16 %v3989
  %v4403 = vunpack.c.l.b16 %v3990
  %v4404 = vunpack.c.h.b16 %v3990
  %v4405 = vunpack.c.l.b16 %v3991
  %v4406 = vunpack.c.h.b16 %v3991
  %v4407 = vunpack.c.l.b16 %v3992
  %v4408 = vunpack.c.h.b16 %v3992
  %v4409 = vunpack.c.l.b16 %v3993
  %v4410 = vunpack.c.h.b16 %v3993
  %v4411 = vunpack.c.l.b16 %v3994
  %v4412 = vunpack.c.h.b16 %v3994
  %v4413 = vunpack.c.l.b16 %v3995
  %v4414 = vunpack.c.h.b16 %v3995
  %v4415 = vunpack.c.l.b16 %v3996
  %v4416 = vunpack.c.h.b16 %v3996
  %v4417 = vunpack.c.l.b16 %v3997
  %v4418 = vunpack.c.h.b16 %v3997
  %v4419 = vunpack.c.l.b16 %v3998
  %v4420 = vunpack.c.h.b16 %v3998
  %v4421 = vunpack.c.l.b16 %v3999
  %v4422 = vunpack.c.h.b16 %v3999
  %v4423 = vunpack.c.l.b16 %v4000
  %v4424 = vunpack.c.h.b16 %v4000
  %v4425 = vunpack.c.l.b16 %v4001
  %v4426 = vunpack.c.h.b16 %v4001
  %v4427 = vunpack.c.l.b16 %v4002
  %v4428 = vunpack.c.h.b16 %v4002
  %v4429 = vunpack.c.l.b16 %v4003
  %v4430 = vunpack.c.h.b16 %v4003
  %v4431 = vunpack.c.l.b16 %v4004
  %v4432 = vunpack.c.h.b16 %v4004
  %v4433 = vunpack.c.l.b16 %v4005
  %v4434 = vunpack.c.h.b16 %v4005
  %v4435 = vunpack.c.l.b16 %v4006
  %v4436 = vunpack.c.h.b16 %v4006
  %v4437 = vunpack.c.l.b16 %v4007
  %v4438 = vunpack.c.h.b16 %v4007
  %v4439 = vunpack.c.l.b16 %v4008
  %v4440 = vunpack.c.h.b16 %v4008
  %v4441 = vunpack.c.l.b16 %v4009
  %v4442 = vunpack.c.h.b16 %v4009
  %v4443 = vunpack.c.l.b16 %v4010
  %v4444 = vunpack.c.h.b16 %v4010
  %v4445 = vunpack.c.l.b16 %v4011
  %v4446 = vunpack.c.h.b16 %v4011
  %v4447 = vunpack.c.l.b16 %v4012
  %v4448 = vunpack.c.h.b16 %v4012
  %v4449 = vunpack.c.l.b16 %v4013
  %v4450 = vunpack.c.h.b16 %v4013
  %v4451 = vunpack.c.l.b16 %v4014
  %v4452 = vunpack.c.h.b16 %v4014
  %v4453 = vunpack.c.l.b16 %v4015
  %v4454 = vunpack.c.h.b16 %v4015
  %v4455 = vunpack.c.l.b16 %v4016
  %v4456 = vunpack.c.h.b16 %v4016
  %v4457 = vunpack.c.l.b16 %v4017
  %v4458 = vunpack.c.h.b16 %v4017
  %v4459 = vunpack.c.l.b16 %v4018
  %v4460 = vunpack.c.h.b16 %v4018
  %v4461 = vunpack.c.l.b16 %v4019
  %v4462 = vunpack.c.h.b16 %v4019
  %v4463 = vunpack.c.l.b16 %v4020
  %v4464 = vunpack.c.h.b16 %v4020
  %v4465 = vunpack.c.l.b16 %v4021
  %v4466 = vunpack.c.h.b16 %v4021
  %v4467 = vunpack.c.l.b16 %v4022
  %v4468 = vunpack.c.h.b16 %v4022
  %v4469 = vunpack.c.l.b16 %v4023
  %v4470 = vunpack.c.h.b16 %v4023
  %v4471 = vunpack.c.l.b16 %v4024
  %v4472 = vunpack.c.h.b16 %v4024
  %v4473 = vunpack.c.l.b16 %v4025
  %v4474 = vunpack.c.h.b16 %v4025
  %v4475 = vunpack.c.l.b16 %v4026
  %v4476 = vunpack.c.h.b16 %v4026
  %v4477 = vunpack.c.l.b16 %v4027
  %v4478 = vunpack.c.h.b16 %v4027
  %v4479 = vunpack.c.l.b16 %v4028
  %v4480 = vunpack.c.h.b16 %v4028
  %v4481 = vunpack.c.l.b16 %v4029
  %v4482 = vunpack.c.h.b16 %v4029
  %v4483 = vunpack.c.l.b16 %v4030
  %v4484 = vunpack.c.h.b16 %v4030
  %v4485 = vunpack.c.l.b16 %v4031
  %v4486 = vunpack.c.h.b16 %v4031
  %v4487 = vunpack.c.l.b16 %v4032
  %v4488 = vunpack.c.h.b16 %v4032
  %v4489 = vunpack.c.l.b16 %v4033
  %v4490 = vunpack.c.h.b16 %v4033
  %v4491 = vunpack.c.l.b16 %v4034
  %v4492 = vunpack.c.h.b16 %v4034
  %v4493 = vunpack.c.l.b16 %v4035
  %v4494 = vunpack.c.h.b16 %v4035
  %v4495 = vunpack.c.l.b16 %v4036
  %v4496 = vunpack.c.h.b16 %v4036
  %v4497 = vunpack.c.l.b16 %v4037
  %v4498 = vunpack.c.h.b16 %v4037
  %v4499 = vunpack.c.l.b16 %v4038
  %v4500 = vunpack.c.h.b16 %v4038
  %v4501 = vunpack.c.l.b16 %v4039
  %v4502 = vunpack.c.h.b16 %v4039
  %v4503 = vunpack.c.l.b16 %v4040
  %v4504 = vunpack.c.h.b16 %v4040
  %v4505 = vunpack.c.l.b16 %v4041
  %v4506 = vunpack.c.h.b16 %v4041
  %v4507 = vunpack.c.l.b16 %v4042
  %v4508 = vunpack.c.h.b16 %v4042
  %v4509 = vunpack.c.l.b16 %v4043
  %v4510 = vunpack.c.h.b16 %v4043
  %v4511 = vunpack.c.l.b16 %v4044
  %v4512 = vunpack.c.h.b16 %v4044
  %v4513 = vunpack.c.l.b16 %v4045
  %v4514 = vunpack.c.h.b16 %v4045
  %v4515 = vunpack.c.l.b16 %v4046
  %v4516 = vunpack.c.h.b16 %v4046
  %v4517 = vunpack.c.l.b16 %v4047
  %v4518 = vunpack.c.h.b16 %v4047
  %v4519 = vunpack.c.l.b16 %v4048
  %v4520 = vunpack.c.h.b16 %v4048
  %v4521 = vunpack.c.l.b16 %v4049
  %v4522 = vunpack.c.h.b16 %v4049
  %v4523 = vunpack.c.l.b16 %v4050
  %v4524 = vunpack.c.h.b16 %v4050
  %v4525 = vunpack.c.l.b16 %v4051
  %v4526 = vunpack.c.h.b16 %v4051
  %v4527 = vunpack.c.l.b16 %v4052
  %v4528 = vunpack.c.h.b16 %v4052
  %v4529 = vunpack.c.l.b16 %v4053
  %v4530 = vunpack.c.h.b16 %v4053
  %v4531 = vunpack.c.l.b16 %v4054
  %v4532 = vunpack.c.h.b16 %v4054
  %v4533 = vunpack.c.l.b16 %v4055
  %v4534 = vunpack.c.h.b16 %v4055
  %v4535 = vunpack.c.l.b16 %v4056
  %v4536 = vunpack.c.h.b16 %v4056
  %v4537 = vunpack.c.l.b16 %v4057
  %v4538 = vunpack.c.h.b16 %v4057
  %v4539 = vunpack.c.l.b16 %v4058
  %v4540 = vunpack.c.h.b16 %v4058
  %v4541 = vunpack.c.l.b16 %v4059
  %v4542 = vunpack.c.h.b16 %v4059
  %v4543 = vunpack.c.l.b16 %v4060
  %v4544 = vunpack.c.h.b16 %v4060
  %v4545 = vunpack.c.l.b16 %v4061
  %v4546 = vunpack.c.h.b16 %v4061
  %v4547 = vunpack.c.l.b16 %v4062
  %v4548 = vunpack.c.h.b16 %v4062
  %v4549 = vpack.c.b16 %v4229, %v4225
  %v4550 = vpack.c.b16 %v4230, %v4226
  %v4551 = vpack.c.b16 %v4231, %v4227
  %v4552 = vpack.c.b16 %v4232, %v4228
  %v4553 = vpack.c.b16 %v4237, %v4233
  %v4554 = vpack.c.b16 %v4238, %v4234
  %v4555 = vpack.c.b16 %v4239, %v4235
  %v4556 = vpack.c.b16 %v4240, %v4236
  %v4557 = vpack.c.b16 %v4245, %v4241
  %v4558 = vpack.c.b16 %v4246, %v4242
  %v4559 = vpack.c.b16 %v4247, %v4243
  %v4560 = vpack.c.b16 %v4248, %v4244
  %v4561 = vpack.c.b16 %v4253, %v4249
  %v4562 = vpack.c.b16 %v4254, %v4250
  %v4563 = vpack.c.b16 %v4255, %v4251
  %v4564 = vpack.c.b16 %v4256, %v4252
  %v4565 = vpack.c.b16 %v4261, %v4257
  %v4566 = vpack.c.b16 %v4262, %v4258
  %v4567 = vpack.c.b16 %v4263, %v4259
  %v4568 = vpack.c.b16 %v4264, %v4260
  %v4569 = vpack.c.b16 %v4269, %v4265
  %v4570 = vpack.c.b16 %v4270, %v4266
  %v4571 = vpack.c.b16 %v4271, %v4267
  %v4572 = vpack.c.b16 %v4272, %v4268
  %v4573 = vpack.c.b16 %v4277, %v4273
  %v4574 = vpack.c.b16 %v4278, %v4274
  %v4575 = vpack.c.b16 %v4279, %v4275
  %v4576 = vpack.c.b16 %v4280, %v4276
  %v4577 = vpack.c.b16 %v4285, %v4281
  %v4578 = vpack.c.b16 %v4286, %v4282
  %v4579 = vpack.c.b16 %v4287, %v4283
  %v4580 = vpack.c.b16 %v4288, %v4284
  %v4581 = vpack.c.b16 %v4293, %v4289
  %v4582 = vpack.c.b16 %v4294, %v4290
  %v4583 = vpack.c.b16 %v4295, %v4291
  %v4584 = vpack.c.b16 %v4296, %v4292
  %v4585 = vpack.c.b16 %v4301, %v4297
  %v4586 = vpack.c.b16 %v4302, %v4298
  %v4587 = vpack.c.b16 %v4303, %v4299
  %v4588 = vpack.c.b16 %v4304, %v4300
  %v4589 = vpack.c.b16 %v4309, %v4305
  %v4590 = vpack.c.b16 %v4310, %v4306
  %v4591 = vpack.c.b16 %v4311, %v4307
  %v4592 = vpack.c.b16 %v4312, %v4308
  %v4593 = vpack.c.b16 %v4317, %v4313
  %v4594 = vpack.c.b16 %v4318, %v4314
  %v4595 = vpack.c.b16 %v4319, %v4315
  %v4596 = vpack.c.b16 %v4320, %v4316
  %v4597 = vpack.c.b16 %v4325, %v4321
  %v4598 = vpack.c.b16 %v4326, %v4322
  %v4599 = vpack.c.b16 %v4327, %v4323
  %v4600 = vpack.c.b16 %v4328, %v4324
  %v4601 = vpack.c.b16 %v4333, %v4329
  %v4602 = vpack.c.b16 %v4334, %v4330
  %v4603 = vpack.c.b16 %v4335, %v4331
  %v4604 = vpack.c.b16 %v4336, %v4332
  %v4605 = vpack.c.b16 %v4341, %v4337
  %v4606 = vpack.c.b16 %v4342, %v4338
  %v4607 = vpack.c.b16 %v4343, %v4339
  %v4608 = vpack.c.b16 %v4344, %v4340
  %v4609 = vpack.c.b16 %v4349, %v4345
  %v4610 = vpack.c.b16 %v4350, %v4346
  %v4611 = vpack.c.b16 %v4351, %v4347
  %v4612 = vpack.c.b16 %v4352, %v4348
  %v4613 = vpack.c.b16 %v4357, %v4353
  %v4614 = vpack.c.b16 %v4358, %v4354
  %v4615 = vpack.c.b16 %v4359, %v4355
  %v4616 = vpack.c.b16 %v4360, %v4356
  %v4617 = vpack.c.b16 %v4365, %v4361
  %v4618 = vpack.c.b16 %v4366, %v4362
  %v4619 = vpack.c.b16 %v4367, %v4363
  %v4620 = vpack.c.b16 %v4368, %v4364
  %v4621 = vpack.c.b16 %v4373, %v4369
  %v4622 = vpack.c.b16 %v4374, %v4370
  %v4623 = vpack.c.b16 %v4375, %v4371
  %v4624 = vpack.c.b16 %v4376, %v4372
  %v4625 = vpack.c.b16 %v4381, %v4377
  %v4626 = vpack.c.b16 %v4382, %v4378
  %v4627 = vpack.c.b16 %v4383, %v4379
  %v4628 = vpack.c.b16 %v4384, %v4380
  %v4629 = vpack.c.b16 %v4389, %v4385
  %v4630 = vpack.c.b16 %v4390, %v4386
  %v4631 = vpack.c.b16 %v4391, %v4387
  %v4632 = vpack.c.b16 %v4392, %v4388
  %v4633 = vpack.c.b16 %v4397, %v4393
  %v4634 = vpack.c.b16 %v4398, %v4394
  %v4635 = vpack.c.b16 %v4399, %v4395
  %v4636 = vpack.c.b16 %v4400, %v4396
  %v4637 = vpack.c.b16 %v4405, %v4401
  %v4638 = vpack.c.b16 %v4406, %v4402
  %v4639 = vpack.c.b16 %v4407, %v4403
  %v4640 = vpack.c.b16 %v4408, %v4404
  %v4641 = vpack.c.b16 %v4413, %v4409
  %v4642 = vpack.c.b16 %v4414, %v4410
  %v4643 = vpack.c.b16 %v4415, %v4411
  %v4644 = vpack.c.b16 %v4416, %v4412
  %v4645 = vpack.c.b16 %v4421, %v4417
  %v4646 = vpack.c.b16 %v4422, %v4418
  %v4647 = vpack.c.b16 %v4423, %v4419
  %v4648 = vpack.c.b16 %v4424, %v4420
  %v4649 = vpack.c.b16 %v4429, %v4425
  %v4650 = vpack.c.b16 %v4430, %v4426
  %v4651 = vpack.c.b16 %v4431, %v4427
  %v4652 = vpack.c.b16 %v4432, %v4428
  %v4653 = vpack.c.b16 %v4437, %v4433
  %v4654 = vpack.c.b16 %v4438, %v4434
  %v4655 = vpack.c.b16 %v4439, %v4435
  %v4656 = vpack.c.b16 %v4440, %v4436
  %v4657 = vpack.c.b16 %v4445, %v4441
  %v4658 = vpack.c.b16 %v4446, %v4442
  %v4659 = vpack.c.b16 %v4447, %v4443
  %v4660 = vpack.c.b16 %v4448, %v4444
  %v4661 = vpack.c.b16 %v4453, %v4449
  %v4662 = vpack.c.b16 %v4454, %v4450
  %v4663 = vpack.c.b16 %v4455, %v4451
  %v4664 = vpack.c.b16 %v4456, %v4452
  %v4665 = vpack.c.b16 %v4461, %v4457
  %v4666 = vpack.c.b16 %v4462, %v4458
  %v4667 = vpack.c.b16 %v4463, %v4459
  %v4668 = vpack.c.b16 %v4464, %v4460
  %v4669 = vpack.c.b16 %v4469, %v4465
  %v4670 = vpack.c.b16 %v4470, %v4466
  %v4671 = vpack.c.b16 %v4471, %v4467
  %v4672 = vpack.c.b16 %v4472, %v4468
  %v4673 = vpack.c.b16 %v4477, %v4473
  %v4674 = vpack.c.b16 %v4478, %v4474
  %v4675 = vpack.c.b16 %v4479, %v4475
  %v4676 = vpack.c.b16 %v4480, %v4476
  %v4677 = vpack.c.b16 %v4485, %v4481
  %v4678 = vpack.c.b16 %v4486, %v4482
  %v4679 = vpack.c.b16 %v4487, %v4483
  %v4680 = vpack.c.b16 %v4488, %v4484
  %v4681 = vpack.c.b16 %v4493, %v4489
  %v4682 = vpack.c.b16 %v4494, %v4490
  %v4683 = vpack.c.b16 %v4495, %v4491
  %v4684 = vpack.c.b16 %v4496, %v4492
  %v4685 = vpack.c.b16 %v4501, %v4497
  %v4686 = vpack.c.b16 %v4502, %v4498
  %v4687 = vpack.c.b16 %v4503, %v4499
  %v4688 = vpack.c.b16 %v4504, %v4500
  %v4689 = vpack.c.b16 %v4509, %v4505
  %v4690 = vpack.c.b16 %v4510, %v4506
  %v4691 = vpack.c.b16 %v4511, %v4507
  %v4692 = vpack.c.b16 %v4512, %v4508
  %v4693 = vpack.c.b16 %v4517, %v4513
  %v4694 = vpack.c.b16 %v4518, %v4514
  %v4695 = vpack.c.b16 %v4519, %v4515
  %v4696 = vpack.c.b16 %v4520, %v4516
  %v4697 = vpack.c.b16 %v4525, %v4521
  %v4698 = vpack.c.b16 %v4526, %v4522
  %v4699 = vpack.c.b16 %v4527, %v4523
  %v4700 = vpack.c.b16 %v4528, %v4524
  %v4701 = vpack.c.b16 %v4533, %v4529
  %v4702 = vpack.c.b16 %v4534, %v4530
  %v4703 = vpack.c.b16 %v4535, %v4531
  %v4704 = vpack.c.b16 %v4536, %v4532
  %v4705 = vpack.c.b16 %v4541, %v4537
  %v4706 = vpack.c.b16 %v4542, %v4538
  %v4707 = vpack.c.b16 %v4543, %v4539
  %v4708 = vpack.c.b16 %v4544, %v4540
  %v4709 = vpack.c.b16 %v4545, %v4545
  %v4710 = vpack.c.b16 %v4546, %v4546
  %v4711 = vpack.c.b16 %v4547, %v4547
  %v4712 = vpack.c.b16 %v4548, %v4548
  %v4837 = vsel %vm1198, %v4552, 0
  %v4840 = vsel %vm1198, %v4556, 0
  %v4843 = vsel %vm1198, %v4560, 0
  %v4846 = vsel %vm1198, %v4564, 0
  %v4849 = vsel %vm1198, %v4568, 0
  %v4852 = vsel %vm1198, %v4572, 0
  %v4855 = vsel %vm1198, %v4576, 0
  %v4858 = vsel %vm1198, %v4580, 0
  %v4861 = vsel %vm1198, %v4584, 0
  %v4864 = vsel %vm1198, %v4588, 0
  %v4867 = vsel %vm1198, %v4592, 0
  %v4870 = vsel %vm1198, %v4596, 0
  %v4873 = vsel %vm1198, %v4600, 0
  %v4876 = vsel %vm1198, %v4604, 0
  %v4879 = vsel %vm1198, %v4608, 0
  %v4882 = vsel %vm1198, %v4612, 0
  %v4885 = vsel %vm1198, %v4616, 0
  %v4888 = vsel %vm1198, %v4620, 0
  %v4891 = vsel %vm1198, %v4624, 0
  %v4894 = vsel %vm1198, %v4628, 0
  %v4897 = vsel %vm1198, %v4632, 0
  %v4900 = vsel %vm1198, %v4636, 0
  %v4903 = vsel %vm1198, %v4640, 0
  %v4906 = vsel %vm1198, %v4644, 0
  %v4909 = vsel %vm1198, %v4648, 0
  %v4912 = vsel %vm1198, %v4652, 0
  %v4915 = vsel %vm1198, %v4656, 0
  %v4918 = vsel %vm1198, %v4660, 0
  %v4921 = vsel %vm1198, %v4664, 0
  %v4924 = vsel %vm1198, %v4668, 0
  %v4927 = vsel %vm1198, %v4672, 0
  %v4930 = vsel %vm1198, %v4676, 0
  %v4933 = vsel %vm1198, %v4680, 0
  %v4936 = vsel %vm1198, %v4684, 0
  %v4939 = vsel %vm1198, %v4688, 0
  %v4942 = vsel %vm1198, %v4692, 0
  %v4945 = vsel %vm1198, %v4696, 0
  %v4948 = vsel %vm1198, %v4700, 0
  %v4951 = vsel %vm1198, %v4704, 0
  %v4954 = vsel %vm1198, %v4708, 0
  %v4957 = vsel %vm1198, %v4712, 0
  %4959 = vmatprep.subr.bf16.mxu0 0
  %4960 = vmatpush1.bf16.msra.mxu0 %v1155
  %4961 = vmatprep.subr.bf16.mxu0 0
  %4962 = vmatpush1.bf16.msra.mxu0 %v1154
  %4963 = vmatprep.subr.bf16.mxu0 0
  %4964 = vmatpush1.bf16.msra.mxu0 %v1153
  %4965 = vmatprep.subr.bf16.mxu0 0
  %4966 = vmatpush1.bf16.msra.mxu0 %v1152
  %4967 = vmatprep.subr.bf16.mxu0 0
  %4968 = vmatpush1.bf16.msra.mxu0 %v1151
  %4969 = vmatprep.subr.bf16.mxu0 0
  %4970 = vmatpush1.bf16.msra.mxu0 %v1150
  %4971 = vmatprep.subr.bf16.mxu0 0
  %4972 = vmatpush1.bf16.msra.mxu0 %v1149
  %4973 = vmatprep.subr.bf16.mxu0 0
  %4974 = vmatpush1.bf16.msra.mxu0 %v1148
  %4975 = vmatprep.subr.bf16.mxu0 0
  %4976 = vmatpush2.bf16.msra.mxu0 %v1163
  %4977 = vmatprep.subr.bf16.mxu0 0
  %4978 = vmatpush2.bf16.msra.mxu0 %v1162
  %4979 = vmatprep.subr.bf16.mxu0 0
  %4980 = vmatpush2.bf16.msra.mxu0 %v1161
  %4981 = vmatprep.subr.bf16.mxu0 0
  %4982 = vmatpush2.bf16.msra.mxu0 %v1160
  %4983 = vmatprep.subr.bf16.mxu0 0
  %4984 = vmatpush2.bf16.msra.mxu0 %v1159
  %4985 = vmatprep.subr.bf16.mxu0 0
  %4986 = vmatpush2.bf16.msra.mxu0 %v1158
  %4987 = vmatprep.subr.bf16.mxu0 0
  %4988 = vmatpush2.bf16.msra.mxu0 %v1157
  %4989 = vmatprep.subr.bf16.mxu0 0
  %4990 = vmatpush2.bf16.msra.mxu0 %v1156
  %4991 = vmatprep.mubr.bf16.mxu0 %v4550
  %4992 = vmatmul.mubr.bf16.gmra.mxu0 %v4549
  %v4993 = vpop.f32.mrf.mxu0
  %v4994 = vadd.f32 0.0, %v4993
  %v4995 = vpop.f32.mrf.mxu0
  %v4996 = vpop.f32.mrf.mxu0
  %v4997 = vadd.f32 0.0, %v4996
  %v4998 = vpop.f32.mrf.mxu0
  %4999 = vmatprep.mubr.bf16.mxu0 %v4554
  %5000 = vmatmul.mubr.bf16.gmra.mxu0 %v4553
  %v5001 = vpop.f32.mrf.mxu0
  %v5002 = vadd.f32 0.0, %v5001
  %v5003 = vpop.f32.mrf.mxu0
  %v5004 = vpop.f32.mrf.mxu0
  %v5005 = vadd.f32 0.0, %v5004
  %v5006 = vpop.f32.mrf.mxu0
  %5007 = vmatprep.mubr.bf16.mxu0 %v4558
  %5008 = vmatmul.mubr.bf16.gmra.mxu0 %v4557
  %v5009 = vpop.f32.mrf.mxu0
  %v5010 = vadd.f32 0.0, %v5009
  %v5011 = vpop.f32.mrf.mxu0
  %v5012 = vpop.f32.mrf.mxu0
  %v5013 = vadd.f32 0.0, %v5012
  %v5014 = vpop.f32.mrf.mxu0
  %5015 = vmatprep.mubr.bf16.mxu0 %v4562
  %5016 = vmatmul.mubr.bf16.gmra.mxu0 %v4561
  %v5017 = vpop.f32.mrf.mxu0
  %v5018 = vadd.f32 0.0, %v5017
  %v5019 = vpop.f32.mrf.mxu0
  %v5020 = vpop.f32.mrf.mxu0
  %v5021 = vadd.f32 0.0, %v5020
  %v5022 = vpop.f32.mrf.mxu0
  %5023 = vmatprep.mubr.bf16.mxu0 %v4566
  %5024 = vmatmul.mubr.bf16.gmra.mxu0 %v4565
  %v5025 = vpop.f32.mrf.mxu0
  %v5026 = vadd.f32 0.0, %v5025
  %v5027 = vpop.f32.mrf.mxu0
  %v5028 = vpop.f32.mrf.mxu0
  %v5029 = vadd.f32 0.0, %v5028
  %v5030 = vpop.f32.mrf.mxu0
  %5031 = vmatprep.mubr.bf16.mxu0 %v4570
  %5032 = vmatmul.mubr.bf16.gmra.mxu0 %v4569
  %v5033 = vpop.f32.mrf.mxu0
  %v5034 = vadd.f32 0.0, %v5033
  %v5035 = vpop.f32.mrf.mxu0
  %v5036 = vpop.f32.mrf.mxu0
  %v5037 = vadd.f32 0.0, %v5036
  %v5038 = vpop.f32.mrf.mxu0
  %5039 = vmatprep.mubr.bf16.mxu0 %v4574
  %5040 = vmatmul.mubr.bf16.gmra.mxu0 %v4573
  %v5041 = vpop.f32.mrf.mxu0
  %v5042 = vadd.f32 0.0, %v5041
  %v5043 = vpop.f32.mrf.mxu0
  %v5044 = vpop.f32.mrf.mxu0
  %v5045 = vadd.f32 0.0, %v5044
  %v5046 = vpop.f32.mrf.mxu0
  %5047 = vmatprep.mubr.bf16.mxu0 %v4578
  %5048 = vmatmul.mubr.bf16.gmra.mxu0 %v4577
  %v5049 = vpop.f32.mrf.mxu0
  %v5050 = vadd.f32 0.0, %v5049
  %v5051 = vpop.f32.mrf.mxu0
  %v5052 = vpop.f32.mrf.mxu0
  %v5053 = vadd.f32 0.0, %v5052
  %v5054 = vpop.f32.mrf.mxu0
  %5055 = vmatprep.mubr.bf16.mxu0 %v4582
  %5056 = vmatmul.mubr.bf16.gmra.mxu0 %v4581
  %v5057 = vpop.f32.mrf.mxu0
  %v5058 = vadd.f32 0.0, %v5057
  %v5059 = vpop.f32.mrf.mxu0
  %v5060 = vpop.f32.mrf.mxu0
  %v5061 = vadd.f32 0.0, %v5060
  %v5062 = vpop.f32.mrf.mxu0
  %5063 = vmatprep.mubr.bf16.mxu0 %v4586
  %5064 = vmatmul.mubr.bf16.gmra.mxu0 %v4585
  %v5065 = vpop.f32.mrf.mxu0
  %v5066 = vadd.f32 0.0, %v5065
  %v5067 = vpop.f32.mrf.mxu0
  %v5068 = vpop.f32.mrf.mxu0
  %v5069 = vadd.f32 0.0, %v5068
  %v5070 = vpop.f32.mrf.mxu0
  %5071 = vmatprep.mubr.bf16.mxu0 %v4590
  %5072 = vmatmul.mubr.bf16.gmra.mxu0 %v4589
  %v5073 = vpop.f32.mrf.mxu0
  %v5074 = vadd.f32 0.0, %v5073
  %v5075 = vpop.f32.mrf.mxu0
  %v5076 = vpop.f32.mrf.mxu0
  %v5077 = vadd.f32 0.0, %v5076
  %v5078 = vpop.f32.mrf.mxu0
  %5079 = vmatprep.mubr.bf16.mxu0 %v4594
  %5080 = vmatmul.mubr.bf16.gmra.mxu0 %v4593
  %v5081 = vpop.f32.mrf.mxu0
  %v5082 = vadd.f32 0.0, %v5081
  %v5083 = vpop.f32.mrf.mxu0
  %v5084 = vpop.f32.mrf.mxu0
  %v5085 = vadd.f32 0.0, %v5084
  %v5086 = vpop.f32.mrf.mxu0
  %5087 = vmatprep.mubr.bf16.mxu0 %v4598
  %5088 = vmatmul.mubr.bf16.gmra.mxu0 %v4597
  %v5089 = vpop.f32.mrf.mxu0
  %v5090 = vadd.f32 0.0, %v5089
  %v5091 = vpop.f32.mrf.mxu0
  %v5092 = vpop.f32.mrf.mxu0
  %v5093 = vadd.f32 0.0, %v5092
  %v5094 = vpop.f32.mrf.mxu0
  %5095 = vmatprep.mubr.bf16.mxu0 %v4602
  %5096 = vmatmul.mubr.bf16.gmra.mxu0 %v4601
  %v5097 = vpop.f32.mrf.mxu0
  %v5098 = vadd.f32 0.0, %v5097
  %v5099 = vpop.f32.mrf.mxu0
  %v5100 = vpop.f32.mrf.mxu0
  %v5101 = vadd.f32 0.0, %v5100
  %v5102 = vpop.f32.mrf.mxu0
  %5103 = vmatprep.mubr.bf16.mxu0 %v4606
  %5104 = vmatmul.mubr.bf16.gmra.mxu0 %v4605
  %v5105 = vpop.f32.mrf.mxu0
  %v5106 = vadd.f32 0.0, %v5105
  %v5107 = vpop.f32.mrf.mxu0
  %v5108 = vpop.f32.mrf.mxu0
  %v5109 = vadd.f32 0.0, %v5108
  %v5110 = vpop.f32.mrf.mxu0
  %5111 = vmatprep.mubr.bf16.mxu0 %v4610
  %5112 = vmatmul.mubr.bf16.gmra.mxu0 %v4609
  %v5113 = vpop.f32.mrf.mxu0
  %v5114 = vadd.f32 0.0, %v5113
  %v5115 = vpop.f32.mrf.mxu0
  %v5116 = vpop.f32.mrf.mxu0
  %v5117 = vadd.f32 0.0, %v5116
  %v5118 = vpop.f32.mrf.mxu0
  %5119 = vmatprep.mubr.bf16.mxu0 %v4614
  %5120 = vmatmul.mubr.bf16.gmra.mxu0 %v4613
  %v5121 = vpop.f32.mrf.mxu0
  %v5122 = vadd.f32 0.0, %v5121
  %v5123 = vpop.f32.mrf.mxu0
  %v5124 = vpop.f32.mrf.mxu0
  %v5125 = vadd.f32 0.0, %v5124
  %v5126 = vpop.f32.mrf.mxu0
  %5127 = vmatprep.mubr.bf16.mxu0 %v4618
  %5128 = vmatmul.mubr.bf16.gmra.mxu0 %v4617
  %v5129 = vpop.f32.mrf.mxu0
  %v5130 = vadd.f32 0.0, %v5129
  %v5131 = vpop.f32.mrf.mxu0
  %v5132 = vpop.f32.mrf.mxu0
  %v5133 = vadd.f32 0.0, %v5132
  %v5134 = vpop.f32.mrf.mxu0
  %5135 = vmatprep.mubr.bf16.mxu0 %v4622
  %5136 = vmatmul.mubr.bf16.gmra.mxu0 %v4621
  %v5137 = vpop.f32.mrf.mxu0
  %v5138 = vadd.f32 0.0, %v5137
  %v5139 = vpop.f32.mrf.mxu0
  %v5140 = vpop.f32.mrf.mxu0
  %v5141 = vadd.f32 0.0, %v5140
  %v5142 = vpop.f32.mrf.mxu0
  %5143 = vmatprep.mubr.bf16.mxu0 %v4626
  %5144 = vmatmul.mubr.bf16.gmra.mxu0 %v4625
  %v5145 = vpop.f32.mrf.mxu0
  %v5146 = vadd.f32 0.0, %v5145
  %v5147 = vpop.f32.mrf.mxu0
  %v5148 = vpop.f32.mrf.mxu0
  %v5149 = vadd.f32 0.0, %v5148
  %v5150 = vpop.f32.mrf.mxu0
  %5151 = vmatprep.mubr.bf16.mxu0 %v4630
  %5152 = vmatmul.mubr.bf16.gmra.mxu0 %v4629
  %v5153 = vpop.f32.mrf.mxu0
  %v5154 = vadd.f32 0.0, %v5153
  %v5155 = vpop.f32.mrf.mxu0
  %v5156 = vpop.f32.mrf.mxu0
  %v5157 = vadd.f32 0.0, %v5156
  %v5158 = vpop.f32.mrf.mxu0
  %5159 = vmatprep.mubr.bf16.mxu0 %v4634
  %5160 = vmatmul.mubr.bf16.gmra.mxu0 %v4633
  %v5161 = vpop.f32.mrf.mxu0
  %v5162 = vadd.f32 0.0, %v5161
  %v5163 = vpop.f32.mrf.mxu0
  %v5164 = vpop.f32.mrf.mxu0
  %v5165 = vadd.f32 0.0, %v5164
  %v5166 = vpop.f32.mrf.mxu0
  %5167 = vmatprep.mubr.bf16.mxu0 %v4638
  %5168 = vmatmul.mubr.bf16.gmra.mxu0 %v4637
  %v5169 = vpop.f32.mrf.mxu0
  %v5170 = vadd.f32 0.0, %v5169
  %v5171 = vpop.f32.mrf.mxu0
  %v5172 = vpop.f32.mrf.mxu0
  %v5173 = vadd.f32 0.0, %v5172
  %v5174 = vpop.f32.mrf.mxu0
  %5175 = vmatprep.mubr.bf16.mxu0 %v4642
  %5176 = vmatmul.mubr.bf16.gmra.mxu0 %v4641
  %v5177 = vpop.f32.mrf.mxu0
  %v5178 = vadd.f32 0.0, %v5177
  %v5179 = vpop.f32.mrf.mxu0
  %v5180 = vpop.f32.mrf.mxu0
  %v5181 = vadd.f32 0.0, %v5180
  %v5182 = vpop.f32.mrf.mxu0
  %5183 = vmatprep.mubr.bf16.mxu0 %v4646
  %5184 = vmatmul.mubr.bf16.gmra.mxu0 %v4645
  %v5185 = vpop.f32.mrf.mxu0
  %v5186 = vadd.f32 0.0, %v5185
  %v5187 = vpop.f32.mrf.mxu0
  %v5188 = vpop.f32.mrf.mxu0
  %v5189 = vadd.f32 0.0, %v5188
  %v5190 = vpop.f32.mrf.mxu0
  %5191 = vmatprep.mubr.bf16.mxu0 %v4650
  %5192 = vmatmul.mubr.bf16.gmra.mxu0 %v4649
  %v5193 = vpop.f32.mrf.mxu0
  %v5194 = vadd.f32 0.0, %v5193
  %v5195 = vpop.f32.mrf.mxu0
  %v5196 = vpop.f32.mrf.mxu0
  %v5197 = vadd.f32 0.0, %v5196
  %v5198 = vpop.f32.mrf.mxu0
  %5199 = vmatprep.mubr.bf16.mxu0 %v4654
  %5200 = vmatmul.mubr.bf16.gmra.mxu0 %v4653
  %v5201 = vpop.f32.mrf.mxu0
  %v5202 = vadd.f32 0.0, %v5201
  %v5203 = vpop.f32.mrf.mxu0
  %v5204 = vpop.f32.mrf.mxu0
  %v5205 = vadd.f32 0.0, %v5204
  %v5206 = vpop.f32.mrf.mxu0
  %5207 = vmatprep.mubr.bf16.mxu0 %v4658
  %5208 = vmatmul.mubr.bf16.gmra.mxu0 %v4657
  %v5209 = vpop.f32.mrf.mxu0
  %v5210 = vadd.f32 0.0, %v5209
  %v5211 = vpop.f32.mrf.mxu0
  %v5212 = vpop.f32.mrf.mxu0
  %v5213 = vadd.f32 0.0, %v5212
  %v5214 = vpop.f32.mrf.mxu0
  %5215 = vmatprep.mubr.bf16.mxu0 %v4662
  %5216 = vmatmul.mubr.bf16.gmra.mxu0 %v4661
  %v5217 = vpop.f32.mrf.mxu0
  %v5218 = vadd.f32 0.0, %v5217
  %v5219 = vpop.f32.mrf.mxu0
  %v5220 = vpop.f32.mrf.mxu0
  %v5221 = vadd.f32 0.0, %v5220
  %v5222 = vpop.f32.mrf.mxu0
  %5223 = vmatprep.mubr.bf16.mxu0 %v4666
  %5224 = vmatmul.mubr.bf16.gmra.mxu0 %v4665
  %v5225 = vpop.f32.mrf.mxu0
  %v5226 = vadd.f32 0.0, %v5225
  %v5227 = vpop.f32.mrf.mxu0
  %v5228 = vpop.f32.mrf.mxu0
  %v5229 = vadd.f32 0.0, %v5228
  %v5230 = vpop.f32.mrf.mxu0
  %5231 = vmatprep.mubr.bf16.mxu0 %v4670
  %5232 = vmatmul.mubr.bf16.gmra.mxu0 %v4669
  %v5233 = vpop.f32.mrf.mxu0
  %v5234 = vadd.f32 0.0, %v5233
  %v5235 = vpop.f32.mrf.mxu0
  %v5236 = vpop.f32.mrf.mxu0
  %v5237 = vadd.f32 0.0, %v5236
  %v5238 = vpop.f32.mrf.mxu0
  %5239 = vmatprep.mubr.bf16.mxu0 %v4674
  %5240 = vmatmul.mubr.bf16.gmra.mxu0 %v4673
  %v5241 = vpop.f32.mrf.mxu0
  %v5242 = vadd.f32 0.0, %v5241
  %v5243 = vpop.f32.mrf.mxu0
  %v5244 = vpop.f32.mrf.mxu0
  %v5245 = vadd.f32 0.0, %v5244
  %v5246 = vpop.f32.mrf.mxu0
  %5247 = vmatprep.mubr.bf16.mxu0 %v4678
  %5248 = vmatmul.mubr.bf16.gmra.mxu0 %v4677
  %v5249 = vpop.f32.mrf.mxu0
  %v5250 = vadd.f32 0.0, %v5249
  %v5251 = vpop.f32.mrf.mxu0
  %v5252 = vpop.f32.mrf.mxu0
  %v5253 = vadd.f32 0.0, %v5252
  %v5254 = vpop.f32.mrf.mxu0
  %5255 = vmatprep.mubr.bf16.mxu0 %v4682
  %5256 = vmatmul.mubr.bf16.gmra.mxu0 %v4681
  %v5257 = vpop.f32.mrf.mxu0
  %v5258 = vadd.f32 0.0, %v5257
  %v5259 = vpop.f32.mrf.mxu0
  %v5260 = vpop.f32.mrf.mxu0
  %v5261 = vadd.f32 0.0, %v5260
  %v5262 = vpop.f32.mrf.mxu0
  %5263 = vmatprep.mubr.bf16.mxu0 %v4686
  %5264 = vmatmul.mubr.bf16.gmra.mxu0 %v4685
  %v5265 = vpop.f32.mrf.mxu0
  %v5266 = vadd.f32 0.0, %v5265
  %v5267 = vpop.f32.mrf.mxu0
  %v5268 = vpop.f32.mrf.mxu0
  %v5269 = vadd.f32 0.0, %v5268
  %v5270 = vpop.f32.mrf.mxu0
  %5271 = vmatprep.mubr.bf16.mxu0 %v4690
  %5272 = vmatmul.mubr.bf16.gmra.mxu0 %v4689
  %v5273 = vpop.f32.mrf.mxu0
  %v5274 = vadd.f32 0.0, %v5273
  %v5275 = vpop.f32.mrf.mxu0
  %v5276 = vpop.f32.mrf.mxu0
  %v5277 = vadd.f32 0.0, %v5276
  %v5278 = vpop.f32.mrf.mxu0
  %5279 = vmatprep.mubr.bf16.mxu0 %v4694
  %5280 = vmatmul.mubr.bf16.gmra.mxu0 %v4693
  %v5281 = vpop.f32.mrf.mxu0
  %v5282 = vadd.f32 0.0, %v5281
  %v5283 = vpop.f32.mrf.mxu0
  %v5284 = vpop.f32.mrf.mxu0
  %v5285 = vadd.f32 0.0, %v5284
  %v5286 = vpop.f32.mrf.mxu0
  %5287 = vmatprep.mubr.bf16.mxu0 %v4698
  %5288 = vmatmul.mubr.bf16.gmra.mxu0 %v4697
  %v5289 = vpop.f32.mrf.mxu0
  %v5290 = vadd.f32 0.0, %v5289
  %v5291 = vpop.f32.mrf.mxu0
  %v5292 = vpop.f32.mrf.mxu0
  %v5293 = vadd.f32 0.0, %v5292
  %v5294 = vpop.f32.mrf.mxu0
  %5295 = vmatprep.mubr.bf16.mxu0 %v4702
  %5296 = vmatmul.mubr.bf16.gmra.mxu0 %v4701
  %v5297 = vpop.f32.mrf.mxu0
  %v5298 = vadd.f32 0.0, %v5297
  %v5299 = vpop.f32.mrf.mxu0
  %v5300 = vpop.f32.mrf.mxu0
  %v5301 = vadd.f32 0.0, %v5300
  %v5302 = vpop.f32.mrf.mxu0
  %5303 = vmatprep.mubr.bf16.mxu0 %v4706
  %5304 = vmatmul.mubr.bf16.gmra.mxu0 %v4705
  %v5305 = vpop.f32.mrf.mxu0
  %v5306 = vadd.f32 0.0, %v5305
  %v5307 = vpop.f32.mrf.mxu0
  %v5308 = vpop.f32.mrf.mxu0
  %v5309 = vadd.f32 0.0, %v5308
  %v5310 = vpop.f32.mrf.mxu0
  %5311 = vmatprep.mubr.bf16.mxu0 %v4710
  %5312 = vmatmul.mubr.bf16.gmra.mxu0 %v4709
  %v5313 = vpop.f32.mrf.mxu0
  %v5314 = vadd.f32 0.0, %v5313
  %v5315 = vpop.f32.mrf.mxu0
  %v5316 = vpop.f32.mrf.mxu0
  %v5317 = vpop.f32.mrf.mxu0
  %5318 = vdwg.mxu0
  %5319 = vmatprep.subr.bf16.mxu0 0
  %5320 = vmatpush1.bf16.msra.mxu0 %v1171
  %5321 = vmatprep.subr.bf16.mxu0 0
  %5322 = vmatpush1.bf16.msra.mxu0 %v1170
  %5323 = vmatprep.subr.bf16.mxu0 0
  %5324 = vmatpush1.bf16.msra.mxu0 %v1169
  %5325 = vmatprep.subr.bf16.mxu0 0
  %5326 = vmatpush1.bf16.msra.mxu0 %v1168
  %5327 = vmatprep.subr.bf16.mxu0 0
  %5328 = vmatpush1.bf16.msra.mxu0 %v1167
  %5329 = vmatprep.subr.bf16.mxu0 0
  %5330 = vmatpush1.bf16.msra.mxu0 %v1166
  %5331 = vmatprep.subr.bf16.mxu0 0
  %5332 = vmatpush1.bf16.msra.mxu0 %v1165
  %5333 = vmatprep.subr.bf16.mxu0 0
  %5334 = vmatpush1.bf16.msra.mxu0 %v1164
  %5335 = vmatprep.subr.bf16.mxu0 0
  %5336 = vmatpush2.bf16.msra.mxu0 0
  %5337 = vmatprep.subr.bf16.mxu0 0
  %5338 = vmatpush2.bf16.msra.mxu0 0
  %5339 = vmatprep.subr.bf16.mxu0 0
  %5340 = vmatpush2.bf16.msra.mxu0 0
  %5341 = vmatprep.subr.bf16.mxu0 0
  %5342 = vmatpush2.bf16.msra.mxu0 0
  %5343 = vmatprep.subr.bf16.mxu0 0
  %5344 = vmatpush2.bf16.msra.mxu0 0
  %5345 = vmatprep.subr.bf16.mxu0 0
  %5346 = vmatpush2.bf16.msra.mxu0 0
  %5347 = vmatprep.subr.bf16.mxu0 0
  %5348 = vmatpush2.bf16.msra.mxu0 0
  %5349 = vmatprep.subr.bf16.mxu0 0
  %5350 = vmatpush2.bf16.msra.mxu0 %v1172
  %5351 = vmatprep.mubr.bf16.mxu0 %v4837
  %5352 = vmatmul.mubr.bf16.gmra.mxu0 %v4551
  %v5353 = vpop.f32.mrf.mxu0
  %v5354 = vadd.f32 %v4994, %v5353
  %v5355 = vpop.f32.mrf.mxu0
  %v5356 = vpop.f32.mrf.mxu0
  %v5357 = vadd.f32 %v4997, %v5356
  %v5358 = vpop.f32.mrf.mxu0
  %5359 = vmatprep.mubr.bf16.mxu0 %v4840
  %5360 = vmatmul.mubr.bf16.gmra.mxu0 %v4555
  %v5361 = vpop.f32.mrf.mxu0
  %v5362 = vadd.f32 %v5002, %v5361
  %v5363 = vpop.f32.mrf.mxu0
  %v5364 = vpop.f32.mrf.mxu0
  %v5365 = vadd.f32 %v5005, %v5364
  %v5366 = vpop.f32.mrf.mxu0
  %5367 = vmatprep.mubr.bf16.mxu0 %v4843
  %5368 = vmatmul.mubr.bf16.gmra.mxu0 %v4559
  %v5369 = vpop.f32.mrf.mxu0
  %v5370 = vadd.f32 %v5010, %v5369
  %v5371 = vpop.f32.mrf.mxu0
  %v5372 = vpop.f32.mrf.mxu0
  %v5373 = vadd.f32 %v5013, %v5372
  %v5374 = vpop.f32.mrf.mxu0
  %5375 = vmatprep.mubr.bf16.mxu0 %v4846
  %5376 = vmatmul.mubr.bf16.gmra.mxu0 %v4563
  %v5377 = vpop.f32.mrf.mxu0
  %v5378 = vadd.f32 %v5018, %v5377
  %v5379 = vpop.f32.mrf.mxu0
  %v5380 = vpop.f32.mrf.mxu0
  %v5381 = vadd.f32 %v5021, %v5380
  %v5382 = vpop.f32.mrf.mxu0
  %5383 = vmatprep.mubr.bf16.mxu0 %v4849
  %5384 = vmatmul.mubr.bf16.gmra.mxu0 %v4567
  %v5385 = vpop.f32.mrf.mxu0
  %v5386 = vadd.f32 %v5026, %v5385
  %v5387 = vpop.f32.mrf.mxu0
  %v5388 = vpop.f32.mrf.mxu0
  %v5389 = vadd.f32 %v5029, %v5388
  %v5390 = vpop.f32.mrf.mxu0
  %5391 = vmatprep.mubr.bf16.mxu0 %v4852
  %5392 = vmatmul.mubr.bf16.gmra.mxu0 %v4571
  %v5393 = vpop.f32.mrf.mxu0
  %v5394 = vadd.f32 %v5034, %v5393
  %v5395 = vpop.f32.mrf.mxu0
  %v5396 = vpop.f32.mrf.mxu0
  %v5397 = vadd.f32 %v5037, %v5396
  %v5398 = vpop.f32.mrf.mxu0
  %5399 = vmatprep.mubr.bf16.mxu0 %v4855
  %5400 = vmatmul.mubr.bf16.gmra.mxu0 %v4575
  %v5401 = vpop.f32.mrf.mxu0
  %v5402 = vadd.f32 %v5042, %v5401
  %v5403 = vpop.f32.mrf.mxu0
  %v5404 = vpop.f32.mrf.mxu0
  %v5405 = vadd.f32 %v5045, %v5404
  %v5406 = vpop.f32.mrf.mxu0
  %5407 = vmatprep.mubr.bf16.mxu0 %v4858
  %5408 = vmatmul.mubr.bf16.gmra.mxu0 %v4579
  %v5409 = vpop.f32.mrf.mxu0
  %v5410 = vadd.f32 %v5050, %v5409
  %v5411 = vpop.f32.mrf.mxu0
  %v5412 = vpop.f32.mrf.mxu0
  %v5413 = vadd.f32 %v5053, %v5412
  %v5414 = vpop.f32.mrf.mxu0
  %5415 = vmatprep.mubr.bf16.mxu0 %v4861
  %5416 = vmatmul.mubr.bf16.gmra.mxu0 %v4583
  %v5417 = vpop.f32.mrf.mxu0
  %v5418 = vadd.f32 %v5058, %v5417
  %v5419 = vpop.f32.mrf.mxu0
  %v5420 = vpop.f32.mrf.mxu0
  %v5421 = vadd.f32 %v5061, %v5420
  %v5422 = vpop.f32.mrf.mxu0
  %5423 = vmatprep.mubr.bf16.mxu0 %v4864
  %5424 = vmatmul.mubr.bf16.gmra.mxu0 %v4587
  %v5425 = vpop.f32.mrf.mxu0
  %v5426 = vadd.f32 %v5066, %v5425
  %v5427 = vpop.f32.mrf.mxu0
  %v5428 = vpop.f32.mrf.mxu0
  %v5429 = vadd.f32 %v5069, %v5428
  %v5430 = vpop.f32.mrf.mxu0
  %5431 = vmatprep.mubr.bf16.mxu0 %v4867
  %5432 = vmatmul.mubr.bf16.gmra.mxu0 %v4591
  %v5433 = vpop.f32.mrf.mxu0
  %v5434 = vadd.f32 %v5074, %v5433
  %v5435 = vpop.f32.mrf.mxu0
  %v5436 = vpop.f32.mrf.mxu0
  %v5437 = vadd.f32 %v5077, %v5436
  %v5438 = vpop.f32.mrf.mxu0
  %5439 = vmatprep.mubr.bf16.mxu0 %v4870
  %5440 = vmatmul.mubr.bf16.gmra.mxu0 %v4595
  %v5441 = vpop.f32.mrf.mxu0
  %v5442 = vadd.f32 %v5082, %v5441
  %v5443 = vpop.f32.mrf.mxu0
  %v5444 = vpop.f32.mrf.mxu0
  %v5445 = vadd.f32 %v5085, %v5444
  %v5446 = vpop.f32.mrf.mxu0
  %5447 = vmatprep.mubr.bf16.mxu0 %v4873
  %5448 = vmatmul.mubr.bf16.gmra.mxu0 %v4599
  %v5449 = vpop.f32.mrf.mxu0
  %v5450 = vadd.f32 %v5090, %v5449
  %v5451 = vpop.f32.mrf.mxu0
  %v5452 = vpop.f32.mrf.mxu0
  %v5453 = vadd.f32 %v5093, %v5452
  %v5454 = vpop.f32.mrf.mxu0
  %5455 = vmatprep.mubr.bf16.mxu0 %v4876
  %5456 = vmatmul.mubr.bf16.gmra.mxu0 %v4603
  %v5457 = vpop.f32.mrf.mxu0
  %v5458 = vadd.f32 %v5098, %v5457
  %v5459 = vpop.f32.mrf.mxu0
  %v5460 = vpop.f32.mrf.mxu0
  %v5461 = vadd.f32 %v5101, %v5460
  %v5462 = vpop.f32.mrf.mxu0
  %5463 = vmatprep.mubr.bf16.mxu0 %v4879
  %5464 = vmatmul.mubr.bf16.gmra.mxu0 %v4607
  %v5465 = vpop.f32.mrf.mxu0
  %v5466 = vadd.f32 %v5106, %v5465
  %v5467 = vpop.f32.mrf.mxu0
  %v5468 = vpop.f32.mrf.mxu0
  %v5469 = vadd.f32 %v5109, %v5468
  %v5470 = vpop.f32.mrf.mxu0
  %5471 = vmatprep.mubr.bf16.mxu0 %v4882
  %5472 = vmatmul.mubr.bf16.gmra.mxu0 %v4611
  %v5473 = vpop.f32.mrf.mxu0
  %v5474 = vadd.f32 %v5114, %v5473
  %v5475 = vpop.f32.mrf.mxu0
  %v5476 = vpop.f32.mrf.mxu0
  %v5477 = vadd.f32 %v5117, %v5476
  %v5478 = vpop.f32.mrf.mxu0
  %5479 = vmatprep.mubr.bf16.mxu0 %v4885
  %5480 = vmatmul.mubr.bf16.gmra.mxu0 %v4615
  %v5481 = vpop.f32.mrf.mxu0
  %v5482 = vadd.f32 %v5122, %v5481
  %v5483 = vpop.f32.mrf.mxu0
  %v5484 = vpop.f32.mrf.mxu0
  %v5485 = vadd.f32 %v5125, %v5484
  %v5486 = vpop.f32.mrf.mxu0
  %5487 = vmatprep.mubr.bf16.mxu0 %v4888
  %5488 = vmatmul.mubr.bf16.gmra.mxu0 %v4619
  %v5489 = vpop.f32.mrf.mxu0
  %v5490 = vadd.f32 %v5130, %v5489
  %v5491 = vpop.f32.mrf.mxu0
  %v5492 = vpop.f32.mrf.mxu0
  %v5493 = vadd.f32 %v5133, %v5492
  %v5494 = vpop.f32.mrf.mxu0
  %5495 = vmatprep.mubr.bf16.mxu0 %v4891
  %5496 = vmatmul.mubr.bf16.gmra.mxu0 %v4623
  %v5497 = vpop.f32.mrf.mxu0
  %v5498 = vadd.f32 %v5138, %v5497
  %v5499 = vpop.f32.mrf.mxu0
  %v5500 = vpop.f32.mrf.mxu0
  %v5501 = vadd.f32 %v5141, %v5500
  %v5502 = vpop.f32.mrf.mxu0
  %5503 = vmatprep.mubr.bf16.mxu0 %v4894
  %5504 = vmatmul.mubr.bf16.gmra.mxu0 %v4627
  %v5505 = vpop.f32.mrf.mxu0
  %v5506 = vadd.f32 %v5146, %v5505
  %v5507 = vpop.f32.mrf.mxu0
  %v5508 = vpop.f32.mrf.mxu0
  %v5509 = vadd.f32 %v5149, %v5508
  %v5510 = vpop.f32.mrf.mxu0
  %5511 = vmatprep.mubr.bf16.mxu0 %v4897
  %5512 = vmatmul.mubr.bf16.gmra.mxu0 %v4631
  %v5513 = vpop.f32.mrf.mxu0
  %v5514 = vadd.f32 %v5154, %v5513
  %v5515 = vpop.f32.mrf.mxu0
  %v5516 = vpop.f32.mrf.mxu0
  %v5517 = vadd.f32 %v5157, %v5516
  %v5518 = vpop.f32.mrf.mxu0
  %5519 = vmatprep.mubr.bf16.mxu0 %v4900
  %5520 = vmatmul.mubr.bf16.gmra.mxu0 %v4635
  %v5521 = vpop.f32.mrf.mxu0
  %v5522 = vadd.f32 %v5162, %v5521
  %v5523 = vpop.f32.mrf.mxu0
  %v5524 = vpop.f32.mrf.mxu0
  %v5525 = vadd.f32 %v5165, %v5524
  %v5526 = vpop.f32.mrf.mxu0
  %5527 = vmatprep.mubr.bf16.mxu0 %v4903
  %5528 = vmatmul.mubr.bf16.gmra.mxu0 %v4639
  %v5529 = vpop.f32.mrf.mxu0
  %v5530 = vadd.f32 %v5170, %v5529
  %v5531 = vpop.f32.mrf.mxu0
  %v5532 = vpop.f32.mrf.mxu0
  %v5533 = vadd.f32 %v5173, %v5532
  %v5534 = vpop.f32.mrf.mxu0
  %5535 = vmatprep.mubr.bf16.mxu0 %v4906
  %5536 = vmatmul.mubr.bf16.gmra.mxu0 %v4643
  %v5537 = vpop.f32.mrf.mxu0
  %v5538 = vadd.f32 %v5178, %v5537
  %v5539 = vpop.f32.mrf.mxu0
  %v5540 = vpop.f32.mrf.mxu0
  %v5541 = vadd.f32 %v5181, %v5540
  %v5542 = vpop.f32.mrf.mxu0
  %5543 = vmatprep.mubr.bf16.mxu0 %v4909
  %5544 = vmatmul.mubr.bf16.gmra.mxu0 %v4647
  %v5545 = vpop.f32.mrf.mxu0
  %v5546 = vadd.f32 %v5186, %v5545
  %v5547 = vpop.f32.mrf.mxu0
  %v5548 = vpop.f32.mrf.mxu0
  %v5549 = vadd.f32 %v5189, %v5548
  %v5550 = vpop.f32.mrf.mxu0
  %5551 = vmatprep.mubr.bf16.mxu0 %v4912
  %5552 = vmatmul.mubr.bf16.gmra.mxu0 %v4651
  %v5553 = vpop.f32.mrf.mxu0
  %v5554 = vadd.f32 %v5194, %v5553
  %v5555 = vpop.f32.mrf.mxu0
  %v5556 = vpop.f32.mrf.mxu0
  %v5557 = vadd.f32 %v5197, %v5556
  %v5558 = vpop.f32.mrf.mxu0
  %5559 = vmatprep.mubr.bf16.mxu0 %v4915
  %5560 = vmatmul.mubr.bf16.gmra.mxu0 %v4655
  %v5561 = vpop.f32.mrf.mxu0
  %v5562 = vadd.f32 %v5202, %v5561
  %v5563 = vpop.f32.mrf.mxu0
  %v5564 = vpop.f32.mrf.mxu0
  %v5565 = vadd.f32 %v5205, %v5564
  %v5566 = vpop.f32.mrf.mxu0
  %5567 = vmatprep.mubr.bf16.mxu0 %v4918
  %5568 = vmatmul.mubr.bf16.gmra.mxu0 %v4659
  %v5569 = vpop.f32.mrf.mxu0
  %v5570 = vadd.f32 %v5210, %v5569
  %v5571 = vpop.f32.mrf.mxu0
  %v5572 = vpop.f32.mrf.mxu0
  %v5573 = vadd.f32 %v5213, %v5572
  %v5574 = vpop.f32.mrf.mxu0
  %5575 = vmatprep.mubr.bf16.mxu0 %v4921
  %5576 = vmatmul.mubr.bf16.gmra.mxu0 %v4663
  %v5577 = vpop.f32.mrf.mxu0
  %v5578 = vadd.f32 %v5218, %v5577
  %v5579 = vpop.f32.mrf.mxu0
  %v5580 = vpop.f32.mrf.mxu0
  %v5581 = vadd.f32 %v5221, %v5580
  %v5582 = vpop.f32.mrf.mxu0
  %5583 = vmatprep.mubr.bf16.mxu0 %v4924
  %5584 = vmatmul.mubr.bf16.gmra.mxu0 %v4667
  %v5585 = vpop.f32.mrf.mxu0
  %v5586 = vadd.f32 %v5226, %v5585
  %v5587 = vpop.f32.mrf.mxu0
  %v5588 = vpop.f32.mrf.mxu0
  %v5589 = vadd.f32 %v5229, %v5588
  %v5590 = vpop.f32.mrf.mxu0
  %5591 = vmatprep.mubr.bf16.mxu0 %v4927
  %5592 = vmatmul.mubr.bf16.gmra.mxu0 %v4671
  %v5593 = vpop.f32.mrf.mxu0
  %v5594 = vadd.f32 %v5234, %v5593
  %v5595 = vpop.f32.mrf.mxu0
  %v5596 = vpop.f32.mrf.mxu0
  %v5597 = vadd.f32 %v5237, %v5596
  %v5598 = vpop.f32.mrf.mxu0
  %5599 = vmatprep.mubr.bf16.mxu0 %v4930
  %5600 = vmatmul.mubr.bf16.gmra.mxu0 %v4675
  %v5601 = vpop.f32.mrf.mxu0
  %v5602 = vadd.f32 %v5242, %v5601
  %v5603 = vpop.f32.mrf.mxu0
  %v5604 = vpop.f32.mrf.mxu0
  %v5605 = vadd.f32 %v5245, %v5604
  %v5606 = vpop.f32.mrf.mxu0
  %5607 = vmatprep.mubr.bf16.mxu0 %v4933
  %5608 = vmatmul.mubr.bf16.gmra.mxu0 %v4679
  %v5609 = vpop.f32.mrf.mxu0
  %v5610 = vadd.f32 %v5250, %v5609
  %v5611 = vpop.f32.mrf.mxu0
  %v5612 = vpop.f32.mrf.mxu0
  %v5613 = vadd.f32 %v5253, %v5612
  %v5614 = vpop.f32.mrf.mxu0
  %5615 = vmatprep.mubr.bf16.mxu0 %v4936
  %5616 = vmatmul.mubr.bf16.gmra.mxu0 %v4683
  %v5617 = vpop.f32.mrf.mxu0
  %v5618 = vadd.f32 %v5258, %v5617
  %v5619 = vpop.f32.mrf.mxu0
  %v5620 = vpop.f32.mrf.mxu0
  %v5621 = vadd.f32 %v5261, %v5620
  %v5622 = vpop.f32.mrf.mxu0
  %5623 = vmatprep.mubr.bf16.mxu0 %v4939
  %5624 = vmatmul.mubr.bf16.gmra.mxu0 %v4687
  %v5625 = vpop.f32.mrf.mxu0
  %v5626 = vadd.f32 %v5266, %v5625
  %v5627 = vpop.f32.mrf.mxu0
  %v5628 = vpop.f32.mrf.mxu0
  %v5629 = vadd.f32 %v5269, %v5628
  %v5630 = vpop.f32.mrf.mxu0
  %5631 = vmatprep.mubr.bf16.mxu0 %v4942
  %5632 = vmatmul.mubr.bf16.gmra.mxu0 %v4691
  %v5633 = vpop.f32.mrf.mxu0
  %v5634 = vadd.f32 %v5274, %v5633
  %v5635 = vpop.f32.mrf.mxu0
  %v5636 = vpop.f32.mrf.mxu0
  %v5637 = vadd.f32 %v5277, %v5636
  %v5638 = vpop.f32.mrf.mxu0
  %5639 = vmatprep.mubr.bf16.mxu0 %v4945
  %5640 = vmatmul.mubr.bf16.gmra.mxu0 %v4695
  %v5641 = vpop.f32.mrf.mxu0
  %v5642 = vadd.f32 %v5282, %v5641
  %v5643 = vpop.f32.mrf.mxu0
  %v5644 = vpop.f32.mrf.mxu0
  %v5645 = vadd.f32 %v5285, %v5644
  %v5646 = vpop.f32.mrf.mxu0
  %5647 = vmatprep.mubr.bf16.mxu0 %v4948
  %5648 = vmatmul.mubr.bf16.gmra.mxu0 %v4699
  %v5649 = vpop.f32.mrf.mxu0
  %v5650 = vadd.f32 %v5290, %v5649
  %v5651 = vpop.f32.mrf.mxu0
  %v5652 = vpop.f32.mrf.mxu0
  %v5653 = vadd.f32 %v5293, %v5652
  %v5654 = vpop.f32.mrf.mxu0
  %5655 = vmatprep.mubr.bf16.mxu0 %v4951
  %5656 = vmatmul.mubr.bf16.gmra.mxu0 %v4703
  %v5657 = vpop.f32.mrf.mxu0
  %v5658 = vadd.f32 %v5298, %v5657
  %v5659 = vpop.f32.mrf.mxu0
  %v5660 = vpop.f32.mrf.mxu0
  %v5661 = vadd.f32 %v5301, %v5660
  %v5662 = vpop.f32.mrf.mxu0
  %5663 = vmatprep.mubr.bf16.mxu0 %v4954
  %5664 = vmatmul.mubr.bf16.gmra.mxu0 %v4707
  %v5665 = vpop.f32.mrf.mxu0
  %v5666 = vadd.f32 %v5306, %v5665
  %v5667 = vpop.f32.mrf.mxu0
  %v5668 = vpop.f32.mrf.mxu0
  %v5669 = vadd.f32 %v5309, %v5668
  %v5670 = vpop.f32.mrf.mxu0
  %5671 = vmatprep.mubr.bf16.mxu0 %v4957
  %5672 = vmatmul.mubr.bf16.gmra.mxu0 %v4711
  %v5673 = vpop.f32.mrf.mxu0
  %v5674 = vadd.f32 %v5314, %v5673
  %v5675 = vpop.f32.mrf.mxu0
  %v5676 = vpop.f32.mrf.mxu0
  %v5677 = vpop.f32.mrf.mxu0
  %5678 = vdwg.mxu0
  %v5679 = vmax.f32 %v3820, %v5354
  %v5680 = vmax.f32 %v3821, %v5357
  %v5681 = vmax.f32 %v3822, %v5362
  %v5682 = vmax.f32 %v3823, %v5365
  %v5683 = vmax.f32 %v3824, %v5370
  %v5684 = vmax.f32 %v3825, %v5373
  %v5685 = vmax.f32 %v3826, %v5378
  %v5686 = vmax.f32 %v3827, %v5381
  %v5687 = vmax.f32 %v3828, %v5386
  %v5688 = vmax.f32 %v3829, %v5389
  %v5689 = vmax.f32 %v3830, %v5394
  %v5690 = vmax.f32 %v3831, %v5397
  %v5691 = vmax.f32 %v3832, %v5402
  %v5692 = vmax.f32 %v3833, %v5405
  %v5693 = vmax.f32 %v3834, %v5410
  %v5694 = vmax.f32 %v3835, %v5413
  %v5695 = vmax.f32 %v3836, %v5418
  %v5696 = vmax.f32 %v3837, %v5421
  %v5697 = vmax.f32 %v3838, %v5426
  %v5698 = vmax.f32 %v3839, %v5429
  %v5699 = vmax.f32 %v3840, %v5434
  %v5700 = vmax.f32 %v3841, %v5437
  %v5701 = vmax.f32 %v3842, %v5442
  %v5702 = vmax.f32 %v3843, %v5445
  %v5703 = vmax.f32 %v3844, %v5450
  %v5704 = vmax.f32 %v3845, %v5453
  %v5705 = vmax.f32 %v3846, %v5458
  %v5706 = vmax.f32 %v3847, %v5461
  %v5707 = vmax.f32 %v3848, %v5466
  %v5708 = vmax.f32 %v3849, %v5469
  %v5709 = vmax.f32 %v3850, %v5474
  %v5710 = vmax.f32 %v3851, %v5477
  %v5711 = vmax.f32 %v3852, %v5482
  %v5712 = vmax.f32 %v3853, %v5485
  %v5713 = vmax.f32 %v3854, %v5490
  %v5714 = vmax.f32 %v3855, %v5493
  %v5715 = vmax.f32 %v3856, %v5498
  %v5716 = vmax.f32 %v3857, %v5501
  %v5717 = vmax.f32 %v3858, %v5506
  %v5718 = vmax.f32 %v3859, %v5509
  %v5719 = vmax.f32 %v3860, %v5514
  %v5720 = vmax.f32 %v3861, %v5517
  %v5721 = vmax.f32 %v3862, %v5522
  %v5722 = vmax.f32 %v3863, %v5525
  %v5723 = vmax.f32 %v3864, %v5530
  %v5724 = vmax.f32 %v3865, %v5533
  %v5725 = vmax.f32 %v3866, %v5538
  %v5726 = vmax.f32 %v3867, %v5541
  %v5727 = vmax.f32 %v3868, %v5546
  %v5728 = vmax.f32 %v3869, %v5549
  %v5729 = vmax.f32 %v3870, %v5554
  %v5730 = vmax.f32 %v3871, %v5557
  %v5731 = vmax.f32 %v3872, %v5562
  %v5732 = vmax.f32 %v3873, %v5565
  %v5733 = vmax.f32 %v3874, %v5570
  %v5734 = vmax.f32 %v3875, %v5573
  %v5735 = vmax.f32 %v3876, %v5578
  %v5736 = vmax.f32 %v3877, %v5581
  %v5737 = vmax.f32 %v3878, %v5586
  %v5738 = vmax.f32 %v3879, %v5589
  %v5739 = vmax.f32 %v3880, %v5594
  %v5740 = vmax.f32 %v3881, %v5597
  %v5741 = vmax.f32 %v3882, %v5602
  %v5742 = vmax.f32 %v3883, %v5605
  %v5743 = vmax.f32 %v3884, %v5610
  %v5744 = vmax.f32 %v3885, %v5613
  %v5745 = vmax.f32 %v3886, %v5618
  %v5746 = vmax.f32 %v3887, %v5621
  %v5747 = vmax.f32 %v3888, %v5626
  %v5748 = vmax.f32 %v3889, %v5629
  %v5749 = vmax.f32 %v3890, %v5634
  %v5750 = vmax.f32 %v3891, %v5637
  %v5751 = vmax.f32 %v3892, %v5642
  %v5752 = vmax.f32 %v3893, %v5645
  %v5753 = vmax.f32 %v3894, %v5650
  %v5754 = vmax.f32 %v3895, %v5653
  %v5755 = vmax.f32 %v3896, %v5658
  %v5756 = vmax.f32 %v3897, %v5661
  %v5757 = vmax.f32 %v3898, %v5666
  %v5758 = vmax.f32 %v3899, %v5669
  %v5759 = vmax.f32 %v3900, %v5674
  %v5760 = vld [vmem:[%s4] sm:$0xff]
  %v5761 = vld [vmem:[%s4 + $0x8] sm:$0xff]
  %v5762 = vld [vmem:[%s4 + $0x10] sm:$0xff]
  %v5763 = vld [vmem:[%s4 + $0x18] sm:$0xff]
  %v5764 = vld [vmem:[%s4 + $0x20] sm:$0xff]
  %v5765 = vld [vmem:[%s4 + $0x28] sm:$0xff]
  %v5766 = vld [vmem:[%s4 + $0x30] sm:$0xff]
  %v5767 = vld [vmem:[%s4 + $0x38] sm:$0xff]
  %v5768 = vld [vmem:[%s4 + $0x40] sm:$0xff]
  %v5769 = vld [vmem:[%s4 + $0x48] sm:$0xff]
  %v5770 = vld [vmem:[%s4 + $0x50] sm:$0xff]
  %v5771 = vld [vmem:[%s4 + $0x58] sm:$0xff]
  %v5772 = vld [vmem:[%s4 + $0x60] sm:$0xff]
  %v5773 = vld [vmem:[%s4 + $0x68] sm:$0xff]
  %v5774 = vld [vmem:[%s4 + $0x70] sm:$0xff]
  %v5775 = vld [vmem:[%s4 + $0x78] sm:$0xff]
  %v5776 = vld [vmem:[%s4 + $0x80] sm:$0xff]
  %v5777 = vld [vmem:[%s4 + $0x88] sm:$0xff]
  %v5778 = vld [vmem:[%s4 + $0x90] sm:$0xff]
  %v5779 = vld [vmem:[%s4 + $0x98] sm:$0xff]
  %v5780 = vld [vmem:[%s4 + $0xa0] sm:$0xff]
  %v5781 = vld [vmem:[%s4 + $0xa8] sm:$0xff]
  %v5782 = vld [vmem:[%s4 + $0xb0] sm:$0xff]
  %v5783 = vld [vmem:[%s4 + $0xb8] sm:$0xff]
  %v5784 = vld [vmem:[%s4 + $0xc0] sm:$0xff]
  %v5785 = vld [vmem:[%s4 + $0xc8] sm:$0xff]
  %v5786 = vld [vmem:[%s4 + $0xd0] sm:$0xff]
  %v5787 = vld [vmem:[%s4 + $0xd8] sm:$0xff]
  %v5788 = vld [vmem:[%s4 + $0xe0] sm:$0xff]
  %v5789 = vld [vmem:[%s4 + $0xe8] sm:$0xff]
  %v5790 = vld [vmem:[%s4 + $0xf0] sm:$0xff]
  %v5791 = vld [vmem:[%s4 + $0xf8] sm:$0xff]
  %v5792 = vld [vmem:[%s4 + $0x100] sm:$0xff]
  %v5793 = vld [vmem:[%s4 + $0x108] sm:$0xff]
  %v5794 = vld [vmem:[%s4 + $0x110] sm:$0xff]
  %v5795 = vld [vmem:[%s4 + $0x118] sm:$0xff]
  %v5796 = vld [vmem:[%s4 + $0x120] sm:$0xff]
  %v5797 = vld [vmem:[%s4 + $0x128] sm:$0xff]
  %v5798 = vld [vmem:[%s4 + $0x130] sm:$0xff]
  %v5799 = vld [vmem:[%s4 + $0x138] sm:$0xff]
  %v5800 = vld [vmem:[%s4 + $0x140] sm:$0xff]
  %v5801 = vld [vmem:[%s4 + $0x148] sm:$0xff]
  %v5802 = vld [vmem:[%s4 + $0x150] sm:$0xff]
  %v5803 = vld [vmem:[%s4 + $0x158] sm:$0xff]
  %v5804 = vld [vmem:[%s4 + $0x160] sm:$0xff]
  %v5805 = vld [vmem:[%s4 + $0x168] sm:$0xff]
  %v5806 = vld [vmem:[%s4 + $0x170] sm:$0xff]
  %v5807 = vld [vmem:[%s4 + $0x178] sm:$0xff]
  %v5808 = vld [vmem:[%s4 + $0x180] sm:$0xff]
  %v5809 = vld [vmem:[%s4 + $0x188] sm:$0xff]
  %v5810 = vld [vmem:[%s4 + $0x190] sm:$0xff]
  %v5811 = vld [vmem:[%s4 + $0x198] sm:$0xff]
  %v5812 = vld [vmem:[%s4 + $0x1a0] sm:$0xff]
  %v5813 = vld [vmem:[%s4 + $0x1a8] sm:$0xff]
  %v5814 = vld [vmem:[%s4 + $0x1b0] sm:$0xff]
  %v5815 = vld [vmem:[%s4 + $0x1b8] sm:$0xff]
  %v5816 = vld [vmem:[%s4 + $0x1c0] sm:$0xff]
  %v5817 = vld [vmem:[%s4 + $0x1c8] sm:$0xff]
  %v5818 = vld [vmem:[%s4 + $0x1d0] sm:$0xff]
  %v5819 = vld [vmem:[%s4 + $0x1d8] sm:$0xff]
  %v5820 = vld [vmem:[%s4 + $0x1e0] sm:$0xff]
  %v5821 = vld [vmem:[%s4 + $0x1e8] sm:$0xff]
  %v5822 = vld [vmem:[%s4 + $0x1f0] sm:$0xff]
  %v5823 = vld [vmem:[%s4 + $0x1f8] sm:$0xff]
  %v5824 = vld [vmem:[%s4 + $0x200] sm:$0xff]
  %v5825 = vld [vmem:[%s4 + $0x208] sm:$0xff]
  %v5826 = vld [vmem:[%s4 + $0x210] sm:$0xff]
  %v5827 = vld [vmem:[%s4 + $0x218] sm:$0xff]
  %v5828 = vld [vmem:[%s4 + $0x220] sm:$0xff]
  %v5829 = vld [vmem:[%s4 + $0x228] sm:$0xff]
  %v5830 = vld [vmem:[%s4 + $0x230] sm:$0xff]
  %v5831 = vld [vmem:[%s4 + $0x238] sm:$0xff]
  %v5832 = vld [vmem:[%s4 + $0x240] sm:$0xff]
  %v5833 = vld [vmem:[%s4 + $0x248] sm:$0xff]
  %v5834 = vld [vmem:[%s4 + $0x250] sm:$0xff]
  %v5835 = vld [vmem:[%s4 + $0x258] sm:$0xff]
  %v5836 = vld [vmem:[%s4 + $0x260] sm:$0xff]
  %v5837 = vld [vmem:[%s4 + $0x268] sm:$0xff]
  %v5838 = vld [vmem:[%s4 + $0x270] sm:$0xff]
  %v5839 = vld [vmem:[%s4 + $0x278] sm:$0xff]
  %v5840 = vld [vmem:[%s4 + $0x280] sm:$0xff]
  %v5841 = vld [vmem:[%s4 + $0x288] sm:$0xff]
  %v5842 = vld [vmem:[%s4 + $0x290] sm:$0xff]
  %v5843 = vld [vmem:[%s4 + $0x298] sm:$0xff]
  %v5844 = vld [vmem:[%s4 + $0x2a0] sm:$0xff]
  %v5845 = vld [vmem:[%s4 + $0x2a8] sm:$0xff]
  %v5846 = vld [vmem:[%s4 + $0x2b0] sm:$0xff]
  %v5847 = vld [vmem:[%s4 + $0x2b8] sm:$0xff]
  %v5848 = vld [vmem:[%s4 + $0x2c0] sm:$0xff]
  %v5849 = vld [vmem:[%s4 + $0x2c8] sm:$0xff]
  %v5850 = vld [vmem:[%s4 + $0x2d0] sm:$0xff]
  %v5851 = vld [vmem:[%s4 + $0x2d8] sm:$0xff]
  %v5852 = vld [vmem:[%s4 + $0x2e0] sm:$0xff]
  %v5853 = vld [vmem:[%s4 + $0x2e8] sm:$0xff]
  %v5854 = vld [vmem:[%s4 + $0x2f0] sm:$0xff]
  %v5855 = vld [vmem:[%s4 + $0x2f8] sm:$0xff]
  %v5856 = vld [vmem:[%s4 + $0x300] sm:$0xff]
  %v5857 = vld [vmem:[%s4 + $0x308] sm:$0xff]
  %v5858 = vld [vmem:[%s4 + $0x310] sm:$0xff]
  %v5859 = vld [vmem:[%s4 + $0x318] sm:$0xff]
  %v5860 = vld [vmem:[%s4 + $0x320] sm:$0xff]
  %v5861 = vld [vmem:[%s4 + $0x328] sm:$0xff]
  %v5862 = vld [vmem:[%s4 + $0x330] sm:$0xff]
  %v5863 = vld [vmem:[%s4 + $0x338] sm:$0xff]
  %v5864 = vld [vmem:[%s4 + $0x340] sm:$0xff]
  %v5865 = vld [vmem:[%s4 + $0x348] sm:$0xff]
  %v5866 = vld [vmem:[%s4 + $0x350] sm:$0xff]
  %v5867 = vld [vmem:[%s4 + $0x358] sm:$0xff]
  %v5868 = vld [vmem:[%s4 + $0x360] sm:$0xff]
  %v5869 = vld [vmem:[%s4 + $0x368] sm:$0xff]
  %v5870 = vld [vmem:[%s4 + $0x370] sm:$0xff]
  %v5871 = vld [vmem:[%s4 + $0x378] sm:$0xff]
  %v5872 = vld [vmem:[%s4 + $0x380] sm:$0xff]
  %v5873 = vld [vmem:[%s4 + $0x388] sm:$0xff]
  %v5874 = vld [vmem:[%s4 + $0x390] sm:$0xff]
  %v5875 = vld [vmem:[%s4 + $0x398] sm:$0xff]
  %v5876 = vld [vmem:[%s4 + $0x3a0] sm:$0xff]
  %v5877 = vld [vmem:[%s4 + $0x3a8] sm:$0xff]
  %v5878 = vld [vmem:[%s4 + $0x3b0] sm:$0xff]
  %v5879 = vld [vmem:[%s4 + $0x3b8] sm:$0xff]
  %v5880 = vld [vmem:[%s4 + $0x3c0] sm:$0xff]
  %v5881 = vld [vmem:[%s4 + $0x3c8] sm:$0xff]
  %v5882 = vld [vmem:[%s4 + $0x3d0] sm:$0xff]
  %v5883 = vld [vmem:[%s4 + $0x3d8] sm:$0xff]
  %v5884 = vld [vmem:[%s4 + $0x3e0] sm:$0xff]
  %v5885 = vld [vmem:[%s4 + $0x3e8] sm:$0xff]
  %v5886 = vld [vmem:[%s4 + $0x3f0] sm:$0xff]
  %v5887 = vld [vmem:[%s4 + $0x3f8] sm:$0xff]
  %v5888 = vld [vmem:[%s4 + $0x400] sm:$0xff]
  %v5889 = vld [vmem:[%s4 + $0x408] sm:$0xff]
  %v5890 = vld [vmem:[%s4 + $0x410] sm:$0xff]
  %v5891 = vld [vmem:[%s4 + $0x418] sm:$0xff]
  %v5892 = vld [vmem:[%s4 + $0x420] sm:$0xff]
  %v5893 = vld [vmem:[%s4 + $0x428] sm:$0xff]
  %v5894 = vld [vmem:[%s4 + $0x430] sm:$0xff]
  %v5895 = vld [vmem:[%s4 + $0x438] sm:$0xff]
  %v5896 = vld [vmem:[%s4 + $0x440] sm:$0xff]
  %v5897 = vld [vmem:[%s4 + $0x448] sm:$0xff]
  %v5898 = vld [vmem:[%s4 + $0x450] sm:$0xff]
  %v5899 = vld [vmem:[%s4 + $0x458] sm:$0xff]
  %v5900 = vld [vmem:[%s4 + $0x460] sm:$0xff]
  %v5901 = vld [vmem:[%s4 + $0x468] sm:$0xff]
  %v5902 = vld [vmem:[%s4 + $0x470] sm:$0xff]
  %v5903 = vld [vmem:[%s4 + $0x478] sm:$0xff]
  %v5904 = vld [vmem:[%s4 + $0x480] sm:$0xff]
  %v5905 = vld [vmem:[%s4 + $0x488] sm:$0xff]
  %v5906 = vld [vmem:[%s4 + $0x490] sm:$0xff]
  %v5907 = vld [vmem:[%s4 + $0x498] sm:$0xff]
  %v5908 = vld [vmem:[%s4 + $0x4a0] sm:$0xff]
  %v5909 = vld [vmem:[%s4 + $0x4a8] sm:$0xff]
  %v5910 = vld [vmem:[%s4 + $0x4b0] sm:$0xff]
  %v5911 = vld [vmem:[%s4 + $0x4b8] sm:$0xff]
  %v5912 = vld [vmem:[%s4 + $0x4c0] sm:$0xff]
  %v5913 = vld [vmem:[%s4 + $0x4c8] sm:$0xff]
  %v5914 = vld [vmem:[%s4 + $0x4d0] sm:$0xff]
  %v5915 = vld [vmem:[%s4 + $0x4d8] sm:$0xff]
  %v5916 = vld [vmem:[%s4 + $0x4e0] sm:$0xff]
  %v5917 = vld [vmem:[%s4 + $0x4e8] sm:$0xff]
  %v5918 = vld [vmem:[%s4 + $0x4f0] sm:$0xff]
  %v5919 = vld [vmem:[%s4 + $0x4f8] sm:$0xff]
  %v5920 = vld [vmem:[%s4 + $0x500] sm:$0xff]
  %v5921 = vld [vmem:[%s4 + $0x508] sm:$0xff]
  %v6084 = vunpack.c.l.b16 %v5760
  %v6085 = vunpack.c.h.b16 %v5760
  %v6086 = vunpack.c.l.b16 %v5761
  %v6087 = vunpack.c.h.b16 %v5761
  %v6088 = vunpack.c.l.b16 %v5762
  %v6089 = vunpack.c.h.b16 %v5762
  %v6090 = vunpack.c.l.b16 %v5763
  %v6091 = vunpack.c.h.b16 %v5763
  %v6092 = vunpack.c.l.b16 %v5764
  %v6093 = vunpack.c.h.b16 %v5764
  %v6094 = vunpack.c.l.b16 %v5765
  %v6095 = vunpack.c.h.b16 %v5765
  %v6096 = vunpack.c.l.b16 %v5766
  %v6097 = vunpack.c.h.b16 %v5766
  %v6098 = vunpack.c.l.b16 %v5767
  %v6099 = vunpack.c.h.b16 %v5767
  %v6100 = vunpack.c.l.b16 %v5768
  %v6101 = vunpack.c.h.b16 %v5768
  %v6102 = vunpack.c.l.b16 %v5769
  %v6103 = vunpack.c.h.b16 %v5769
  %v6104 = vunpack.c.l.b16 %v5770
  %v6105 = vunpack.c.h.b16 %v5770
  %v6106 = vunpack.c.l.b16 %v5771
  %v6107 = vunpack.c.h.b16 %v5771
  %v6108 = vunpack.c.l.b16 %v5772
  %v6109 = vunpack.c.h.b16 %v5772
  %v6110 = vunpack.c.l.b16 %v5773
  %v6111 = vunpack.c.h.b16 %v5773
  %v6112 = vunpack.c.l.b16 %v5774
  %v6113 = vunpack.c.h.b16 %v5774
  %v6114 = vunpack.c.l.b16 %v5775
  %v6115 = vunpack.c.h.b16 %v5775
  %v6116 = vunpack.c.l.b16 %v5776
  %v6117 = vunpack.c.h.b16 %v5776
  %v6118 = vunpack.c.l.b16 %v5777
  %v6119 = vunpack.c.h.b16 %v5777
  %v6120 = vunpack.c.l.b16 %v5778
  %v6121 = vunpack.c.h.b16 %v5778
  %v6122 = vunpack.c.l.b16 %v5779
  %v6123 = vunpack.c.h.b16 %v5779
  %v6124 = vunpack.c.l.b16 %v5780
  %v6125 = vunpack.c.h.b16 %v5780
  %v6126 = vunpack.c.l.b16 %v5781
  %v6127 = vunpack.c.h.b16 %v5781
  %v6128 = vunpack.c.l.b16 %v5782
  %v6129 = vunpack.c.h.b16 %v5782
  %v6130 = vunpack.c.l.b16 %v5783
  %v6131 = vunpack.c.h.b16 %v5783
  %v6132 = vunpack.c.l.b16 %v5784
  %v6133 = vunpack.c.h.b16 %v5784
  %v6134 = vunpack.c.l.b16 %v5785
  %v6135 = vunpack.c.h.b16 %v5785
  %v6136 = vunpack.c.l.b16 %v5786
  %v6137 = vunpack.c.h.b16 %v5786
  %v6138 = vunpack.c.l.b16 %v5787
  %v6139 = vunpack.c.h.b16 %v5787
  %v6140 = vunpack.c.l.b16 %v5788
  %v6141 = vunpack.c.h.b16 %v5788
  %v6142 = vunpack.c.l.b16 %v5789
  %v6143 = vunpack.c.h.b16 %v5789
  %v6144 = vunpack.c.l.b16 %v5790
  %v6145 = vunpack.c.h.b16 %v5790
  %v6146 = vunpack.c.l.b16 %v5791
  %v6147 = vunpack.c.h.b16 %v5791
  %v6148 = vunpack.c.l.b16 %v5792
  %v6149 = vunpack.c.h.b16 %v5792
  %v6150 = vunpack.c.l.b16 %v5793
  %v6151 = vunpack.c.h.b16 %v5793
  %v6152 = vunpack.c.l.b16 %v5794
  %v6153 = vunpack.c.h.b16 %v5794
  %v6154 = vunpack.c.l.b16 %v5795
  %v6155 = vunpack.c.h.b16 %v5795
  %v6156 = vunpack.c.l.b16 %v5796
  %v6157 = vunpack.c.h.b16 %v5796
  %v6158 = vunpack.c.l.b16 %v5797
  %v6159 = vunpack.c.h.b16 %v5797
  %v6160 = vunpack.c.l.b16 %v5798
  %v6161 = vunpack.c.h.b16 %v5798
  %v6162 = vunpack.c.l.b16 %v5799
  %v6163 = vunpack.c.h.b16 %v5799
  %v6164 = vunpack.c.l.b16 %v5800
  %v6165 = vunpack.c.h.b16 %v5800
  %v6166 = vunpack.c.l.b16 %v5801
  %v6167 = vunpack.c.h.b16 %v5801
  %v6168 = vunpack.c.l.b16 %v5802
  %v6169 = vunpack.c.h.b16 %v5802
  %v6170 = vunpack.c.l.b16 %v5803
  %v6171 = vunpack.c.h.b16 %v5803
  %v6172 = vunpack.c.l.b16 %v5804
  %v6173 = vunpack.c.h.b16 %v5804
  %v6174 = vunpack.c.l.b16 %v5805
  %v6175 = vunpack.c.h.b16 %v5805
  %v6176 = vunpack.c.l.b16 %v5806
  %v6177 = vunpack.c.h.b16 %v5806
  %v6178 = vunpack.c.l.b16 %v5807
  %v6179 = vunpack.c.h.b16 %v5807
  %v6180 = vunpack.c.l.b16 %v5808
  %v6181 = vunpack.c.h.b16 %v5808
  %v6182 = vunpack.c.l.b16 %v5809
  %v6183 = vunpack.c.h.b16 %v5809
  %v6184 = vunpack.c.l.b16 %v5810
  %v6185 = vunpack.c.h.b16 %v5810
  %v6186 = vunpack.c.l.b16 %v5811
  %v6187 = vunpack.c.h.b16 %v5811
  %v6188 = vunpack.c.l.b16 %v5812
  %v6189 = vunpack.c.h.b16 %v5812
  %v6190 = vunpack.c.l.b16 %v5813
  %v6191 = vunpack.c.h.b16 %v5813
  %v6192 = vunpack.c.l.b16 %v5814
  %v6193 = vunpack.c.h.b16 %v5814
  %v6194 = vunpack.c.l.b16 %v5815
  %v6195 = vunpack.c.h.b16 %v5815
  %v6196 = vunpack.c.l.b16 %v5816
  %v6197 = vunpack.c.h.b16 %v5816
  %v6198 = vunpack.c.l.b16 %v5817
  %v6199 = vunpack.c.h.b16 %v5817
  %v6200 = vunpack.c.l.b16 %v5818
  %v6201 = vunpack.c.h.b16 %v5818
  %v6202 = vunpack.c.l.b16 %v5819
  %v6203 = vunpack.c.h.b16 %v5819
  %v6204 = vunpack.c.l.b16 %v5820
  %v6205 = vunpack.c.h.b16 %v5820
  %v6206 = vunpack.c.l.b16 %v5821
  %v6207 = vunpack.c.h.b16 %v5821
  %v6208 = vunpack.c.l.b16 %v5822
  %v6209 = vunpack.c.h.b16 %v5822
  %v6210 = vunpack.c.l.b16 %v5823
  %v6211 = vunpack.c.h.b16 %v5823
  %v6212 = vunpack.c.l.b16 %v5824
  %v6213 = vunpack.c.h.b16 %v5824
  %v6214 = vunpack.c.l.b16 %v5825
  %v6215 = vunpack.c.h.b16 %v5825
  %v6216 = vunpack.c.l.b16 %v5826
  %v6217 = vunpack.c.h.b16 %v5826
  %v6218 = vunpack.c.l.b16 %v5827
  %v6219 = vunpack.c.h.b16 %v5827
  %v6220 = vunpack.c.l.b16 %v5828
  %v6221 = vunpack.c.h.b16 %v5828
  %v6222 = vunpack.c.l.b16 %v5829
  %v6223 = vunpack.c.h.b16 %v5829
  %v6224 = vunpack.c.l.b16 %v5830
  %v6225 = vunpack.c.h.b16 %v5830
  %v6226 = vunpack.c.l.b16 %v5831
  %v6227 = vunpack.c.h.b16 %v5831
  %v6228 = vunpack.c.l.b16 %v5832
  %v6229 = vunpack.c.h.b16 %v5832
  %v6230 = vunpack.c.l.b16 %v5833
  %v6231 = vunpack.c.h.b16 %v5833
  %v6232 = vunpack.c.l.b16 %v5834
  %v6233 = vunpack.c.h.b16 %v5834
  %v6234 = vunpack.c.l.b16 %v5835
  %v6235 = vunpack.c.h.b16 %v5835
  %v6236 = vunpack.c.l.b16 %v5836
  %v6237 = vunpack.c.h.b16 %v5836
  %v6238 = vunpack.c.l.b16 %v5837
  %v6239 = vunpack.c.h.b16 %v5837
  %v6240 = vunpack.c.l.b16 %v5838
  %v6241 = vunpack.c.h.b16 %v5838
  %v6242 = vunpack.c.l.b16 %v5839
  %v6243 = vunpack.c.h.b16 %v5839
  %v6244 = vunpack.c.l.b16 %v5840
  %v6245 = vunpack.c.h.b16 %v5840
  %v6246 = vunpack.c.l.b16 %v5841
  %v6247 = vunpack.c.h.b16 %v5841
  %v6248 = vunpack.c.l.b16 %v5842
  %v6249 = vunpack.c.h.b16 %v5842
  %v6250 = vunpack.c.l.b16 %v5843
  %v6251 = vunpack.c.h.b16 %v5843
  %v6252 = vunpack.c.l.b16 %v5844
  %v6253 = vunpack.c.h.b16 %v5844
  %v6254 = vunpack.c.l.b16 %v5845
  %v6255 = vunpack.c.h.b16 %v5845
  %v6256 = vunpack.c.l.b16 %v5846
  %v6257 = vunpack.c.h.b16 %v5846
  %v6258 = vunpack.c.l.b16 %v5847
  %v6259 = vunpack.c.h.b16 %v5847
  %v6260 = vunpack.c.l.b16 %v5848
  %v6261 = vunpack.c.h.b16 %v5848
  %v6262 = vunpack.c.l.b16 %v5849
  %v6263 = vunpack.c.h.b16 %v5849
  %v6264 = vunpack.c.l.b16 %v5850
  %v6265 = vunpack.c.h.b16 %v5850
  %v6266 = vunpack.c.l.b16 %v5851
  %v6267 = vunpack.c.h.b16 %v5851
  %v6268 = vunpack.c.l.b16 %v5852
  %v6269 = vunpack.c.h.b16 %v5852
  %v6270 = vunpack.c.l.b16 %v5853
  %v6271 = vunpack.c.h.b16 %v5853
  %v6272 = vunpack.c.l.b16 %v5854
  %v6273 = vunpack.c.h.b16 %v5854
  %v6274 = vunpack.c.l.b16 %v5855
  %v6275 = vunpack.c.h.b16 %v5855
  %v6276 = vunpack.c.l.b16 %v5856
  %v6277 = vunpack.c.h.b16 %v5856
  %v6278 = vunpack.c.l.b16 %v5857
  %v6279 = vunpack.c.h.b16 %v5857
  %v6280 = vunpack.c.l.b16 %v5858
  %v6281 = vunpack.c.h.b16 %v5858
  %v6282 = vunpack.c.l.b16 %v5859
  %v6283 = vunpack.c.h.b16 %v5859
  %v6284 = vunpack.c.l.b16 %v5860
  %v6285 = vunpack.c.h.b16 %v5860
  %v6286 = vunpack.c.l.b16 %v5861
  %v6287 = vunpack.c.h.b16 %v5861
  %v6288 = vunpack.c.l.b16 %v5862
  %v6289 = vunpack.c.h.b16 %v5862
  %v6290 = vunpack.c.l.b16 %v5863
  %v6291 = vunpack.c.h.b16 %v5863
  %v6292 = vunpack.c.l.b16 %v5864
  %v6293 = vunpack.c.h.b16 %v5864
  %v6294 = vunpack.c.l.b16 %v5865
  %v6295 = vunpack.c.h.b16 %v5865
  %v6296 = vunpack.c.l.b16 %v5866
  %v6297 = vunpack.c.h.b16 %v5866
  %v6298 = vunpack.c.l.b16 %v5867
  %v6299 = vunpack.c.h.b16 %v5867
  %v6300 = vunpack.c.l.b16 %v5868
  %v6301 = vunpack.c.h.b16 %v5868
  %v6302 = vunpack.c.l.b16 %v5869
  %v6303 = vunpack.c.h.b16 %v5869
  %v6304 = vunpack.c.l.b16 %v5870
  %v6305 = vunpack.c.h.b16 %v5870
  %v6306 = vunpack.c.l.b16 %v5871
  %v6307 = vunpack.c.h.b16 %v5871
  %v6308 = vunpack.c.l.b16 %v5872
  %v6309 = vunpack.c.h.b16 %v5872
  %v6310 = vunpack.c.l.b16 %v5873
  %v6311 = vunpack.c.h.b16 %v5873
  %v6312 = vunpack.c.l.b16 %v5874
  %v6313 = vunpack.c.h.b16 %v5874
  %v6314 = vunpack.c.l.b16 %v5875
  %v6315 = vunpack.c.h.b16 %v5875
  %v6316 = vunpack.c.l.b16 %v5876
  %v6317 = vunpack.c.h.b16 %v5876
  %v6318 = vunpack.c.l.b16 %v5877
  %v6319 = vunpack.c.h.b16 %v5877
  %v6320 = vunpack.c.l.b16 %v5878
  %v6321 = vunpack.c.h.b16 %v5878
  %v6322 = vunpack.c.l.b16 %v5879
  %v6323 = vunpack.c.h.b16 %v5879
  %v6324 = vunpack.c.l.b16 %v5880
  %v6325 = vunpack.c.h.b16 %v5880
  %v6326 = vunpack.c.l.b16 %v5881
  %v6327 = vunpack.c.h.b16 %v5881
  %v6328 = vunpack.c.l.b16 %v5882
  %v6329 = vunpack.c.h.b16 %v5882
  %v6330 = vunpack.c.l.b16 %v5883
  %v6331 = vunpack.c.h.b16 %v5883
  %v6332 = vunpack.c.l.b16 %v5884
  %v6333 = vunpack.c.h.b16 %v5884
  %v6334 = vunpack.c.l.b16 %v5885
  %v6335 = vunpack.c.h.b16 %v5885
  %v6336 = vunpack.c.l.b16 %v5886
  %v6337 = vunpack.c.h.b16 %v5886
  %v6338 = vunpack.c.l.b16 %v5887
  %v6339 = vunpack.c.h.b16 %v5887
  %v6340 = vunpack.c.l.b16 %v5888
  %v6341 = vunpack.c.h.b16 %v5888
  %v6342 = vunpack.c.l.b16 %v5889
  %v6343 = vunpack.c.h.b16 %v5889
  %v6344 = vunpack.c.l.b16 %v5890
  %v6345 = vunpack.c.h.b16 %v5890
  %v6346 = vunpack.c.l.b16 %v5891
  %v6347 = vunpack.c.h.b16 %v5891
  %v6348 = vunpack.c.l.b16 %v5892
  %v6349 = vunpack.c.h.b16 %v5892
  %v6350 = vunpack.c.l.b16 %v5893
  %v6351 = vunpack.c.h.b16 %v5893
  %v6352 = vunpack.c.l.b16 %v5894
  %v6353 = vunpack.c.h.b16 %v5894
  %v6354 = vunpack.c.l.b16 %v5895
  %v6355 = vunpack.c.h.b16 %v5895
  %v6356 = vunpack.c.l.b16 %v5896
  %v6357 = vunpack.c.h.b16 %v5896
  %v6358 = vunpack.c.l.b16 %v5897
  %v6359 = vunpack.c.h.b16 %v5897
  %v6360 = vunpack.c.l.b16 %v5898
  %v6361 = vunpack.c.h.b16 %v5898
  %v6362 = vunpack.c.l.b16 %v5899
  %v6363 = vunpack.c.h.b16 %v5899
  %v6364 = vunpack.c.l.b16 %v5900
  %v6365 = vunpack.c.h.b16 %v5900
  %v6366 = vunpack.c.l.b16 %v5901
  %v6367 = vunpack.c.h.b16 %v5901
  %v6368 = vunpack.c.l.b16 %v5902
  %v6369 = vunpack.c.h.b16 %v5902
  %v6370 = vunpack.c.l.b16 %v5903
  %v6371 = vunpack.c.h.b16 %v5903
  %v6372 = vunpack.c.l.b16 %v5904
  %v6373 = vunpack.c.h.b16 %v5904
  %v6374 = vunpack.c.l.b16 %v5905
  %v6375 = vunpack.c.h.b16 %v5905
  %v6376 = vunpack.c.l.b16 %v5906
  %v6377 = vunpack.c.h.b16 %v5906
  %v6378 = vunpack.c.l.b16 %v5907
  %v6379 = vunpack.c.h.b16 %v5907
  %v6380 = vunpack.c.l.b16 %v5908
  %v6381 = vunpack.c.h.b16 %v5908
  %v6382 = vunpack.c.l.b16 %v5909
  %v6383 = vunpack.c.h.b16 %v5909
  %v6384 = vunpack.c.l.b16 %v5910
  %v6385 = vunpack.c.h.b16 %v5910
  %v6386 = vunpack.c.l.b16 %v5911
  %v6387 = vunpack.c.h.b16 %v5911
  %v6388 = vunpack.c.l.b16 %v5912
  %v6389 = vunpack.c.h.b16 %v5912
  %v6390 = vunpack.c.l.b16 %v5913
  %v6391 = vunpack.c.h.b16 %v5913
  %v6392 = vunpack.c.l.b16 %v5914
  %v6393 = vunpack.c.h.b16 %v5914
  %v6394 = vunpack.c.l.b16 %v5915
  %v6395 = vunpack.c.h.b16 %v5915
  %v6396 = vunpack.c.l.b16 %v5916
  %v6397 = vunpack.c.h.b16 %v5916
  %v6398 = vunpack.c.l.b16 %v5917
  %v6399 = vunpack.c.h.b16 %v5917
  %v6400 = vunpack.c.l.b16 %v5918
  %v6401 = vunpack.c.h.b16 %v5918
  %v6402 = vunpack.c.l.b16 %v5919
  %v6403 = vunpack.c.h.b16 %v5919
  %v6404 = vunpack.c.l.b16 %v5920
  %v6405 = vunpack.c.h.b16 %v5920
  %v6406 = vunpack.c.l.b16 %v5921
  %v6407 = vunpack.c.h.b16 %v5921
  %v6408 = vpack.c.b16 %v6088, %v6084
  %v6409 = vpack.c.b16 %v6089, %v6085
  %v6410 = vpack.c.b16 %v6090, %v6086
  %v6411 = vpack.c.b16 %v6091, %v6087
  %v6412 = vpack.c.b16 %v6096, %v6092
  %v6413 = vpack.c.b16 %v6097, %v6093
  %v6414 = vpack.c.b16 %v6098, %v6094
  %v6415 = vpack.c.b16 %v6099, %v6095
  %v6416 = vpack.c.b16 %v6104, %v6100
  %v6417 = vpack.c.b16 %v6105, %v6101
  %v6418 = vpack.c.b16 %v6106, %v6102
  %v6419 = vpack.c.b16 %v6107, %v6103
  %v6420 = vpack.c.b16 %v6112, %v6108
  %v6421 = vpack.c.b16 %v6113, %v6109
  %v6422 = vpack.c.b16 %v6114, %v6110
  %v6423 = vpack.c.b16 %v6115, %v6111
  %v6424 = vpack.c.b16 %v6120, %v6116
  %v6425 = vpack.c.b16 %v6121, %v6117
  %v6426 = vpack.c.b16 %v6122, %v6118
  %v6427 = vpack.c.b16 %v6123, %v6119
  %v6428 = vpack.c.b16 %v6128, %v6124
  %v6429 = vpack.c.b16 %v6129, %v6125
  %v6430 = vpack.c.b16 %v6130, %v6126
  %v6431 = vpack.c.b16 %v6131, %v6127
  %v6432 = vpack.c.b16 %v6136, %v6132
  %v6433 = vpack.c.b16 %v6137, %v6133
  %v6434 = vpack.c.b16 %v6138, %v6134
  %v6435 = vpack.c.b16 %v6139, %v6135
  %v6436 = vpack.c.b16 %v6144, %v6140
  %v6437 = vpack.c.b16 %v6145, %v6141
  %v6438 = vpack.c.b16 %v6146, %v6142
  %v6439 = vpack.c.b16 %v6147, %v6143
  %v6440 = vpack.c.b16 %v6152, %v6148
  %v6441 = vpack.c.b16 %v6153, %v6149
  %v6442 = vpack.c.b16 %v6154, %v6150
  %v6443 = vpack.c.b16 %v6155, %v6151
  %v6444 = vpack.c.b16 %v6160, %v6156
  %v6445 = vpack.c.b16 %v6161, %v6157
  %v6446 = vpack.c.b16 %v6162, %v6158
  %v6447 = vpack.c.b16 %v6163, %v6159
  %v6448 = vpack.c.b16 %v6168, %v6164
  %v6449 = vpack.c.b16 %v6169, %v6165
  %v6450 = vpack.c.b16 %v6170, %v6166
  %v6451 = vpack.c.b16 %v6171, %v6167
  %v6452 = vpack.c.b16 %v6176, %v6172
  %v6453 = vpack.c.b16 %v6177, %v6173
  %v6454 = vpack.c.b16 %v6178, %v6174
  %v6455 = vpack.c.b16 %v6179, %v6175
  %v6456 = vpack.c.b16 %v6184, %v6180
  %v6457 = vpack.c.b16 %v6185, %v6181
  %v6458 = vpack.c.b16 %v6186, %v6182
  %v6459 = vpack.c.b16 %v6187, %v6183
  %v6460 = vpack.c.b16 %v6192, %v6188
  %v6461 = vpack.c.b16 %v6193, %v6189
  %v6462 = vpack.c.b16 %v6194, %v6190
  %v6463 = vpack.c.b16 %v6195, %v6191
  %v6464 = vpack.c.b16 %v6200, %v6196
  %v6465 = vpack.c.b16 %v6201, %v6197
  %v6466 = vpack.c.b16 %v6202, %v6198
  %v6467 = vpack.c.b16 %v6203, %v6199
  %v6468 = vpack.c.b16 %v6208, %v6204
  %v6469 = vpack.c.b16 %v6209, %v6205
  %v6470 = vpack.c.b16 %v6210, %v6206
  %v6471 = vpack.c.b16 %v6211, %v6207
  %v6472 = vpack.c.b16 %v6216, %v6212
  %v6473 = vpack.c.b16 %v6217, %v6213
  %v6474 = vpack.c.b16 %v6218, %v6214
  %v6475 = vpack.c.b16 %v6219, %v6215
  %v6476 = vpack.c.b16 %v6224, %v6220
  %v6477 = vpack.c.b16 %v6225, %v6221
  %v6478 = vpack.c.b16 %v6226, %v6222
  %v6479 = vpack.c.b16 %v6227, %v6223
  %v6480 = vpack.c.b16 %v6232, %v6228
  %v6481 = vpack.c.b16 %v6233, %v6229
  %v6482 = vpack.c.b16 %v6234, %v6230
  %v6483 = vpack.c.b16 %v6235, %v6231
  %v6484 = vpack.c.b16 %v6240, %v6236
  %v6485 = vpack.c.b16 %v6241, %v6237
  %v6486 = vpack.c.b16 %v6242, %v6238
  %v6487 = vpack.c.b16 %v6243, %v6239
  %v6488 = vpack.c.b16 %v6248, %v6244
  %v6489 = vpack.c.b16 %v6249, %v6245
  %v6490 = vpack.c.b16 %v6250, %v6246
  %v6491 = vpack.c.b16 %v6251, %v6247
  %v6492 = vpack.c.b16 %v6256, %v6252
  %v6493 = vpack.c.b16 %v6257, %v6253
  %v6494 = vpack.c.b16 %v6258, %v6254
  %v6495 = vpack.c.b16 %v6259, %v6255
  %v6496 = vpack.c.b16 %v6264, %v6260
  %v6497 = vpack.c.b16 %v6265, %v6261
  %v6498 = vpack.c.b16 %v6266, %v6262
  %v6499 = vpack.c.b16 %v6267, %v6263
  %v6500 = vpack.c.b16 %v6272, %v6268
  %v6501 = vpack.c.b16 %v6273, %v6269
  %v6502 = vpack.c.b16 %v6274, %v6270
  %v6503 = vpack.c.b16 %v6275, %v6271
  %v6504 = vpack.c.b16 %v6280, %v6276
  %v6505 = vpack.c.b16 %v6281, %v6277
  %v6506 = vpack.c.b16 %v6282, %v6278
  %v6507 = vpack.c.b16 %v6283, %v6279
  %v6508 = vpack.c.b16 %v6288, %v6284
  %v6509 = vpack.c.b16 %v6289, %v6285
  %v6510 = vpack.c.b16 %v6290, %v6286
  %v6511 = vpack.c.b16 %v6291, %v6287
  %v6512 = vpack.c.b16 %v6296, %v6292
  %v6513 = vpack.c.b16 %v6297, %v6293
  %v6514 = vpack.c.b16 %v6298, %v6294
  %v6515 = vpack.c.b16 %v6299, %v6295
  %v6516 = vpack.c.b16 %v6304, %v6300
  %v6517 = vpack.c.b16 %v6305, %v6301
  %v6518 = vpack.c.b16 %v6306, %v6302
  %v6519 = vpack.c.b16 %v6307, %v6303
  %v6520 = vpack.c.b16 %v6312, %v6308
  %v6521 = vpack.c.b16 %v6313, %v6309
  %v6522 = vpack.c.b16 %v6314, %v6310
  %v6523 = vpack.c.b16 %v6315, %v6311
  %v6524 = vpack.c.b16 %v6320, %v6316
  %v6525 = vpack.c.b16 %v6321, %v6317
  %v6526 = vpack.c.b16 %v6322, %v6318
  %v6527 = vpack.c.b16 %v6323, %v6319
  %v6528 = vpack.c.b16 %v6328, %v6324
  %v6529 = vpack.c.b16 %v6329, %v6325
  %v6530 = vpack.c.b16 %v6330, %v6326
  %v6531 = vpack.c.b16 %v6331, %v6327
  %v6532 = vpack.c.b16 %v6336, %v6332
  %v6533 = vpack.c.b16 %v6337, %v6333
  %v6534 = vpack.c.b16 %v6338, %v6334
  %v6535 = vpack.c.b16 %v6339, %v6335
  %v6536 = vpack.c.b16 %v6344, %v6340
  %v6537 = vpack.c.b16 %v6345, %v6341
  %v6538 = vpack.c.b16 %v6346, %v6342
  %v6539 = vpack.c.b16 %v6347, %v6343
  %v6540 = vpack.c.b16 %v6352, %v6348
  %v6541 = vpack.c.b16 %v6353, %v6349
  %v6542 = vpack.c.b16 %v6354, %v6350
  %v6543 = vpack.c.b16 %v6355, %v6351
  %v6544 = vpack.c.b16 %v6360, %v6356
  %v6545 = vpack.c.b16 %v6361, %v6357
  %v6546 = vpack.c.b16 %v6362, %v6358
  %v6547 = vpack.c.b16 %v6363, %v6359
  %v6548 = vpack.c.b16 %v6368, %v6364
  %v6549 = vpack.c.b16 %v6369, %v6365
  %v6550 = vpack.c.b16 %v6370, %v6366
  %v6551 = vpack.c.b16 %v6371, %v6367
  %v6552 = vpack.c.b16 %v6376, %v6372
  %v6553 = vpack.c.b16 %v6377, %v6373
  %v6554 = vpack.c.b16 %v6378, %v6374
  %v6555 = vpack.c.b16 %v6379, %v6375
  %v6556 = vpack.c.b16 %v6384, %v6380
  %v6557 = vpack.c.b16 %v6385, %v6381
  %v6558 = vpack.c.b16 %v6386, %v6382
  %v6559 = vpack.c.b16 %v6387, %v6383
  %v6560 = vpack.c.b16 %v6392, %v6388
  %v6561 = vpack.c.b16 %v6393, %v6389
  %v6562 = vpack.c.b16 %v6394, %v6390
  %v6563 = vpack.c.b16 %v6395, %v6391
  %v6564 = vpack.c.b16 %v6400, %v6396
  %v6565 = vpack.c.b16 %v6401, %v6397
  %v6566 = vpack.c.b16 %v6402, %v6398
  %v6567 = vpack.c.b16 %v6403, %v6399
  %v6568 = vpack.c.b16 %v6404, %v6404
  %v6569 = vpack.c.b16 %v6405, %v6405
  %v6570 = vpack.c.b16 %v6406, %v6406
  %v6571 = vpack.c.b16 %v6407, %v6407
  %v6696 = vsel %vm1198, %v6411, 0
  %v6699 = vsel %vm1198, %v6415, 0
  %v6702 = vsel %vm1198, %v6419, 0
  %v6705 = vsel %vm1198, %v6423, 0
  %v6708 = vsel %vm1198, %v6427, 0
  %v6711 = vsel %vm1198, %v6431, 0
  %v6714 = vsel %vm1198, %v6435, 0
  %v6717 = vsel %vm1198, %v6439, 0
  %v6720 = vsel %vm1198, %v6443, 0
  %v6723 = vsel %vm1198, %v6447, 0
  %v6726 = vsel %vm1198, %v6451, 0
  %v6729 = vsel %vm1198, %v6455, 0
  %v6732 = vsel %vm1198, %v6459, 0
  %v6735 = vsel %vm1198, %v6463, 0
  %v6738 = vsel %vm1198, %v6467, 0
  %v6741 = vsel %vm1198, %v6471, 0
  %v6744 = vsel %vm1198, %v6475, 0
  %v6747 = vsel %vm1198, %v6479, 0
  %v6750 = vsel %vm1198, %v6483, 0
  %v6753 = vsel %vm1198, %v6487, 0
  %v6756 = vsel %vm1198, %v6491, 0
  %v6759 = vsel %vm1198, %v6495, 0
  %v6762 = vsel %vm1198, %v6499, 0
  %v6765 = vsel %vm1198, %v6503, 0
  %v6768 = vsel %vm1198, %v6507, 0
  %v6771 = vsel %vm1198, %v6511, 0
  %v6774 = vsel %vm1198, %v6515, 0
  %v6777 = vsel %vm1198, %v6519, 0
  %v6780 = vsel %vm1198, %v6523, 0
  %v6783 = vsel %vm1198, %v6527, 0
  %v6786 = vsel %vm1198, %v6531, 0
  %v6789 = vsel %vm1198, %v6535, 0
  %v6792 = vsel %vm1198, %v6539, 0
  %v6795 = vsel %vm1198, %v6543, 0
  %v6798 = vsel %vm1198, %v6547, 0
  %v6801 = vsel %vm1198, %v6551, 0
  %v6804 = vsel %vm1198, %v6555, 0
  %v6807 = vsel %vm1198, %v6559, 0
  %v6810 = vsel %vm1198, %v6563, 0
  %v6813 = vsel %vm1198, %v6567, 0
  %v6816 = vsel %vm1198, %v6571, 0
  %6818 = vmatprep.subr.bf16.mxu0 0
  %6819 = vmatpush1.bf16.msra.mxu0 %v1155
  %6820 = vmatprep.subr.bf16.mxu0 0
  %6821 = vmatpush1.bf16.msra.mxu0 %v1154
  %6822 = vmatprep.subr.bf16.mxu0 0
  %6823 = vmatpush1.bf16.msra.mxu0 %v1153
  %6824 = vmatprep.subr.bf16.mxu0 0
  %6825 = vmatpush1.bf16.msra.mxu0 %v1152
  %6826 = vmatprep.subr.bf16.mxu0 0
  %6827 = vmatpush1.bf16.msra.mxu0 %v1151
  %6828 = vmatprep.subr.bf16.mxu0 0
  %6829 = vmatpush1.bf16.msra.mxu0 %v1150
  %6830 = vmatprep.subr.bf16.mxu0 0
  %6831 = vmatpush1.bf16.msra.mxu0 %v1149
  %6832 = vmatprep.subr.bf16.mxu0 0
  %6833 = vmatpush1.bf16.msra.mxu0 %v1148
  %6834 = vmatprep.subr.bf16.mxu0 0
  %6835 = vmatpush2.bf16.msra.mxu0 %v1163
  %6836 = vmatprep.subr.bf16.mxu0 0
  %6837 = vmatpush2.bf16.msra.mxu0 %v1162
  %6838 = vmatprep.subr.bf16.mxu0 0
  %6839 = vmatpush2.bf16.msra.mxu0 %v1161
  %6840 = vmatprep.subr.bf16.mxu0 0
  %6841 = vmatpush2.bf16.msra.mxu0 %v1160
  %6842 = vmatprep.subr.bf16.mxu0 0
  %6843 = vmatpush2.bf16.msra.mxu0 %v1159
  %6844 = vmatprep.subr.bf16.mxu0 0
  %6845 = vmatpush2.bf16.msra.mxu0 %v1158
  %6846 = vmatprep.subr.bf16.mxu0 0
  %6847 = vmatpush2.bf16.msra.mxu0 %v1157
  %6848 = vmatprep.subr.bf16.mxu0 0
  %6849 = vmatpush2.bf16.msra.mxu0 %v1156
  %6850 = vmatprep.mubr.bf16.mxu0 %v6409
  %6851 = vmatmul.mubr.bf16.gmra.mxu0 %v6408
  %v6852 = vpop.f32.mrf.mxu0
  %v6853 = vadd.f32 0.0, %v6852
  %v6854 = vpop.f32.mrf.mxu0
  %v6855 = vpop.f32.mrf.mxu0
  %v6856 = vadd.f32 0.0, %v6855
  %v6857 = vpop.f32.mrf.mxu0
  %6858 = vmatprep.mubr.bf16.mxu0 %v6413
  %6859 = vmatmul.mubr.bf16.gmra.mxu0 %v6412
  %v6860 = vpop.f32.mrf.mxu0
  %v6861 = vadd.f32 0.0, %v6860
  %v6862 = vpop.f32.mrf.mxu0
  %v6863 = vpop.f32.mrf.mxu0
  %v6864 = vadd.f32 0.0, %v6863
  %v6865 = vpop.f32.mrf.mxu0
  %6866 = vmatprep.mubr.bf16.mxu0 %v6417
  %6867 = vmatmul.mubr.bf16.gmra.mxu0 %v6416
  %v6868 = vpop.f32.mrf.mxu0
  %v6869 = vadd.f32 0.0, %v6868
  %v6870 = vpop.f32.mrf.mxu0
  %v6871 = vpop.f32.mrf.mxu0
  %v6872 = vadd.f32 0.0, %v6871
  %v6873 = vpop.f32.mrf.mxu0
  %6874 = vmatprep.mubr.bf16.mxu0 %v6421
  %6875 = vmatmul.mubr.bf16.gmra.mxu0 %v6420
  %v6876 = vpop.f32.mrf.mxu0
  %v6877 = vadd.f32 0.0, %v6876
  %v6878 = vpop.f32.mrf.mxu0
  %v6879 = vpop.f32.mrf.mxu0
  %v6880 = vadd.f32 0.0, %v6879
  %v6881 = vpop.f32.mrf.mxu0
  %6882 = vmatprep.mubr.bf16.mxu0 %v6425
  %6883 = vmatmul.mubr.bf16.gmra.mxu0 %v6424
  %v6884 = vpop.f32.mrf.mxu0
  %v6885 = vadd.f32 0.0, %v6884
  %v6886 = vpop.f32.mrf.mxu0
  %v6887 = vpop.f32.mrf.mxu0
  %v6888 = vadd.f32 0.0, %v6887
  %v6889 = vpop.f32.mrf.mxu0
  %6890 = vmatprep.mubr.bf16.mxu0 %v6429
  %6891 = vmatmul.mubr.bf16.gmra.mxu0 %v6428
  %v6892 = vpop.f32.mrf.mxu0
  %v6893 = vadd.f32 0.0, %v6892
  %v6894 = vpop.f32.mrf.mxu0
  %v6895 = vpop.f32.mrf.mxu0
  %v6896 = vadd.f32 0.0, %v6895
  %v6897 = vpop.f32.mrf.mxu0
  %6898 = vmatprep.mubr.bf16.mxu0 %v6433
  %6899 = vmatmul.mubr.bf16.gmra.mxu0 %v6432
  %v6900 = vpop.f32.mrf.mxu0
  %v6901 = vadd.f32 0.0, %v6900
  %v6902 = vpop.f32.mrf.mxu0
  %v6903 = vpop.f32.mrf.mxu0
  %v6904 = vadd.f32 0.0, %v6903
  %v6905 = vpop.f32.mrf.mxu0
  %6906 = vmatprep.mubr.bf16.mxu0 %v6437
  %6907 = vmatmul.mubr.bf16.gmra.mxu0 %v6436
  %v6908 = vpop.f32.mrf.mxu0
  %v6909 = vadd.f32 0.0, %v6908
  %v6910 = vpop.f32.mrf.mxu0
  %v6911 = vpop.f32.mrf.mxu0
  %v6912 = vadd.f32 0.0, %v6911
  %v6913 = vpop.f32.mrf.mxu0
  %6914 = vmatprep.mubr.bf16.mxu0 %v6441
  %6915 = vmatmul.mubr.bf16.gmra.mxu0 %v6440
  %v6916 = vpop.f32.mrf.mxu0
  %v6917 = vadd.f32 0.0, %v6916
  %v6918 = vpop.f32.mrf.mxu0
  %v6919 = vpop.f32.mrf.mxu0
  %v6920 = vadd.f32 0.0, %v6919
  %v6921 = vpop.f32.mrf.mxu0
  %6922 = vmatprep.mubr.bf16.mxu0 %v6445
  %6923 = vmatmul.mubr.bf16.gmra.mxu0 %v6444
  %v6924 = vpop.f32.mrf.mxu0
  %v6925 = vadd.f32 0.0, %v6924
  %v6926 = vpop.f32.mrf.mxu0
  %v6927 = vpop.f32.mrf.mxu0
  %v6928 = vadd.f32 0.0, %v6927
  %v6929 = vpop.f32.mrf.mxu0
  %6930 = vmatprep.mubr.bf16.mxu0 %v6449
  %6931 = vmatmul.mubr.bf16.gmra.mxu0 %v6448
  %v6932 = vpop.f32.mrf.mxu0
  %v6933 = vadd.f32 0.0, %v6932
  %v6934 = vpop.f32.mrf.mxu0
  %v6935 = vpop.f32.mrf.mxu0
  %v6936 = vadd.f32 0.0, %v6935
  %v6937 = vpop.f32.mrf.mxu0
  %6938 = vmatprep.mubr.bf16.mxu0 %v6453
  %6939 = vmatmul.mubr.bf16.gmra.mxu0 %v6452
  %v6940 = vpop.f32.mrf.mxu0
  %v6941 = vadd.f32 0.0, %v6940
  %v6942 = vpop.f32.mrf.mxu0
  %v6943 = vpop.f32.mrf.mxu0
  %v6944 = vadd.f32 0.0, %v6943
  %v6945 = vpop.f32.mrf.mxu0
  %6946 = vmatprep.mubr.bf16.mxu0 %v6457
  %6947 = vmatmul.mubr.bf16.gmra.mxu0 %v6456
  %v6948 = vpop.f32.mrf.mxu0
  %v6949 = vadd.f32 0.0, %v6948
  %v6950 = vpop.f32.mrf.mxu0
  %v6951 = vpop.f32.mrf.mxu0
  %v6952 = vadd.f32 0.0, %v6951
  %v6953 = vpop.f32.mrf.mxu0
  %6954 = vmatprep.mubr.bf16.mxu0 %v6461
  %6955 = vmatmul.mubr.bf16.gmra.mxu0 %v6460
  %v6956 = vpop.f32.mrf.mxu0
  %v6957 = vadd.f32 0.0, %v6956
  %v6958 = vpop.f32.mrf.mxu0
  %v6959 = vpop.f32.mrf.mxu0
  %v6960 = vadd.f32 0.0, %v6959
  %v6961 = vpop.f32.mrf.mxu0
  %6962 = vmatprep.mubr.bf16.mxu0 %v6465
  %6963 = vmatmul.mubr.bf16.gmra.mxu0 %v6464
  %v6964 = vpop.f32.mrf.mxu0
  %v6965 = vadd.f32 0.0, %v6964
  %v6966 = vpop.f32.mrf.mxu0
  %v6967 = vpop.f32.mrf.mxu0
  %v6968 = vadd.f32 0.0, %v6967
  %v6969 = vpop.f32.mrf.mxu0
  %6970 = vmatprep.mubr.bf16.mxu0 %v6469
  %6971 = vmatmul.mubr.bf16.gmra.mxu0 %v6468
  %v6972 = vpop.f32.mrf.mxu0
  %v6973 = vadd.f32 0.0, %v6972
  %v6974 = vpop.f32.mrf.mxu0
  %v6975 = vpop.f32.mrf.mxu0
  %v6976 = vadd.f32 0.0, %v6975
  %v6977 = vpop.f32.mrf.mxu0
  %6978 = vmatprep.mubr.bf16.mxu0 %v6473
  %6979 = vmatmul.mubr.bf16.gmra.mxu0 %v6472
  %v6980 = vpop.f32.mrf.mxu0
  %v6981 = vadd.f32 0.0, %v6980
  %v6982 = vpop.f32.mrf.mxu0
  %v6983 = vpop.f32.mrf.mxu0
  %v6984 = vadd.f32 0.0, %v6983
  %v6985 = vpop.f32.mrf.mxu0
  %6986 = vmatprep.mubr.bf16.mxu0 %v6477
  %6987 = vmatmul.mubr.bf16.gmra.mxu0 %v6476
  %v6988 = vpop.f32.mrf.mxu0
  %v6989 = vadd.f32 0.0, %v6988
  %v6990 = vpop.f32.mrf.mxu0
  %v6991 = vpop.f32.mrf.mxu0
  %v6992 = vadd.f32 0.0, %v6991
  %v6993 = vpop.f32.mrf.mxu0
  %6994 = vmatprep.mubr.bf16.mxu0 %v6481
  %6995 = vmatmul.mubr.bf16.gmra.mxu0 %v6480
  %v6996 = vpop.f32.mrf.mxu0
  %v6997 = vadd.f32 0.0, %v6996
  %v6998 = vpop.f32.mrf.mxu0
  %v6999 = vpop.f32.mrf.mxu0
  %v7000 = vadd.f32 0.0, %v6999
  %v7001 = vpop.f32.mrf.mxu0
  %7002 = vmatprep.mubr.bf16.mxu0 %v6485
  %7003 = vmatmul.mubr.bf16.gmra.mxu0 %v6484
  %v7004 = vpop.f32.mrf.mxu0
  %v7005 = vadd.f32 0.0, %v7004
  %v7006 = vpop.f32.mrf.mxu0
  %v7007 = vpop.f32.mrf.mxu0
  %v7008 = vadd.f32 0.0, %v7007
  %v7009 = vpop.f32.mrf.mxu0
  %7010 = vmatprep.mubr.bf16.mxu0 %v6489
  %7011 = vmatmul.mubr.bf16.gmra.mxu0 %v6488
  %v7012 = vpop.f32.mrf.mxu0
  %v7013 = vadd.f32 0.0, %v7012
  %v7014 = vpop.f32.mrf.mxu0
  %v7015 = vpop.f32.mrf.mxu0
  %v7016 = vadd.f32 0.0, %v7015
  %v7017 = vpop.f32.mrf.mxu0
  %7018 = vmatprep.mubr.bf16.mxu0 %v6493
  %7019 = vmatmul.mubr.bf16.gmra.mxu0 %v6492
  %v7020 = vpop.f32.mrf.mxu0
  %v7021 = vadd.f32 0.0, %v7020
  %v7022 = vpop.f32.mrf.mxu0
  %v7023 = vpop.f32.mrf.mxu0
  %v7024 = vadd.f32 0.0, %v7023
  %v7025 = vpop.f32.mrf.mxu0
  %7026 = vmatprep.mubr.bf16.mxu0 %v6497
  %7027 = vmatmul.mubr.bf16.gmra.mxu0 %v6496
  %v7028 = vpop.f32.mrf.mxu0
  %v7029 = vadd.f32 0.0, %v7028
  %v7030 = vpop.f32.mrf.mxu0
  %v7031 = vpop.f32.mrf.mxu0
  %v7032 = vadd.f32 0.0, %v7031
  %v7033 = vpop.f32.mrf.mxu0
  %7034 = vmatprep.mubr.bf16.mxu0 %v6501
  %7035 = vmatmul.mubr.bf16.gmra.mxu0 %v6500
  %v7036 = vpop.f32.mrf.mxu0
  %v7037 = vadd.f32 0.0, %v7036
  %v7038 = vpop.f32.mrf.mxu0
  %v7039 = vpop.f32.mrf.mxu0
  %v7040 = vadd.f32 0.0, %v7039
  %v7041 = vpop.f32.mrf.mxu0
  %7042 = vmatprep.mubr.bf16.mxu0 %v6505
  %7043 = vmatmul.mubr.bf16.gmra.mxu0 %v6504
  %v7044 = vpop.f32.mrf.mxu0
  %v7045 = vadd.f32 0.0, %v7044
  %v7046 = vpop.f32.mrf.mxu0
  %v7047 = vpop.f32.mrf.mxu0
  %v7048 = vadd.f32 0.0, %v7047
  %v7049 = vpop.f32.mrf.mxu0
  %7050 = vmatprep.mubr.bf16.mxu0 %v6509
  %7051 = vmatmul.mubr.bf16.gmra.mxu0 %v6508
  %v7052 = vpop.f32.mrf.mxu0
  %v7053 = vadd.f32 0.0, %v7052
  %v7054 = vpop.f32.mrf.mxu0
  %v7055 = vpop.f32.mrf.mxu0
  %v7056 = vadd.f32 0.0, %v7055
  %v7057 = vpop.f32.mrf.mxu0
  %7058 = vmatprep.mubr.bf16.mxu0 %v6513
  %7059 = vmatmul.mubr.bf16.gmra.mxu0 %v6512
  %v7060 = vpop.f32.mrf.mxu0
  %v7061 = vadd.f32 0.0, %v7060
  %v7062 = vpop.f32.mrf.mxu0
  %v7063 = vpop.f32.mrf.mxu0
  %v7064 = vadd.f32 0.0, %v7063
  %v7065 = vpop.f32.mrf.mxu0
  %7066 = vmatprep.mubr.bf16.mxu0 %v6517
  %7067 = vmatmul.mubr.bf16.gmra.mxu0 %v6516
  %v7068 = vpop.f32.mrf.mxu0
  %v7069 = vadd.f32 0.0, %v7068
  %v7070 = vpop.f32.mrf.mxu0
  %v7071 = vpop.f32.mrf.mxu0
  %v7072 = vadd.f32 0.0, %v7071
  %v7073 = vpop.f32.mrf.mxu0
  %7074 = vmatprep.mubr.bf16.mxu0 %v6521
  %7075 = vmatmul.mubr.bf16.gmra.mxu0 %v6520
  %v7076 = vpop.f32.mrf.mxu0
  %v7077 = vadd.f32 0.0, %v7076
  %v7078 = vpop.f32.mrf.mxu0
  %v7079 = vpop.f32.mrf.mxu0
  %v7080 = vadd.f32 0.0, %v7079
  %v7081 = vpop.f32.mrf.mxu0
  %7082 = vmatprep.mubr.bf16.mxu0 %v6525
  %7083 = vmatmul.mubr.bf16.gmra.mxu0 %v6524
  %v7084 = vpop.f32.mrf.mxu0
  %v7085 = vadd.f32 0.0, %v7084
  %v7086 = vpop.f32.mrf.mxu0
  %v7087 = vpop.f32.mrf.mxu0
  %v7088 = vadd.f32 0.0, %v7087
  %v7089 = vpop.f32.mrf.mxu0
  %7090 = vmatprep.mubr.bf16.mxu0 %v6529
  %7091 = vmatmul.mubr.bf16.gmra.mxu0 %v6528
  %v7092 = vpop.f32.mrf.mxu0
  %v7093 = vadd.f32 0.0, %v7092
  %v7094 = vpop.f32.mrf.mxu0
  %v7095 = vpop.f32.mrf.mxu0
  %v7096 = vadd.f32 0.0, %v7095
  %v7097 = vpop.f32.mrf.mxu0
  %7098 = vmatprep.mubr.bf16.mxu0 %v6533
  %7099 = vmatmul.mubr.bf16.gmra.mxu0 %v6532
  %v7100 = vpop.f32.mrf.mxu0
  %v7101 = vadd.f32 0.0, %v7100
  %v7102 = vpop.f32.mrf.mxu0
  %v7103 = vpop.f32.mrf.mxu0
  %v7104 = vadd.f32 0.0, %v7103
  %v7105 = vpop.f32.mrf.mxu0
  %7106 = vmatprep.mubr.bf16.mxu0 %v6537
  %7107 = vmatmul.mubr.bf16.gmra.mxu0 %v6536
  %v7108 = vpop.f32.mrf.mxu0
  %v7109 = vadd.f32 0.0, %v7108
  %v7110 = vpop.f32.mrf.mxu0
  %v7111 = vpop.f32.mrf.mxu0
  %v7112 = vadd.f32 0.0, %v7111
  %v7113 = vpop.f32.mrf.mxu0
  %7114 = vmatprep.mubr.bf16.mxu0 %v6541
  %7115 = vmatmul.mubr.bf16.gmra.mxu0 %v6540
  %v7116 = vpop.f32.mrf.mxu0
  %v7117 = vadd.f32 0.0, %v7116
  %v7118 = vpop.f32.mrf.mxu0
  %v7119 = vpop.f32.mrf.mxu0
  %v7120 = vadd.f32 0.0, %v7119
  %v7121 = vpop.f32.mrf.mxu0
  %7122 = vmatprep.mubr.bf16.mxu0 %v6545
  %7123 = vmatmul.mubr.bf16.gmra.mxu0 %v6544
  %v7124 = vpop.f32.mrf.mxu0
  %v7125 = vadd.f32 0.0, %v7124
  %v7126 = vpop.f32.mrf.mxu0
  %v7127 = vpop.f32.mrf.mxu0
  %v7128 = vadd.f32 0.0, %v7127
  %v7129 = vpop.f32.mrf.mxu0
  %7130 = vmatprep.mubr.bf16.mxu0 %v6549
  %7131 = vmatmul.mubr.bf16.gmra.mxu0 %v6548
  %v7132 = vpop.f32.mrf.mxu0
  %v7133 = vadd.f32 0.0, %v7132
  %v7134 = vpop.f32.mrf.mxu0
  %v7135 = vpop.f32.mrf.mxu0
  %v7136 = vadd.f32 0.0, %v7135
  %v7137 = vpop.f32.mrf.mxu0
  %7138 = vmatprep.mubr.bf16.mxu0 %v6553
  %7139 = vmatmul.mubr.bf16.gmra.mxu0 %v6552
  %v7140 = vpop.f32.mrf.mxu0
  %v7141 = vadd.f32 0.0, %v7140
  %v7142 = vpop.f32.mrf.mxu0
  %v7143 = vpop.f32.mrf.mxu0
  %v7144 = vadd.f32 0.0, %v7143
  %v7145 = vpop.f32.mrf.mxu0
  %7146 = vmatprep.mubr.bf16.mxu0 %v6557
  %7147 = vmatmul.mubr.bf16.gmra.mxu0 %v6556
  %v7148 = vpop.f32.mrf.mxu0
  %v7149 = vadd.f32 0.0, %v7148
  %v7150 = vpop.f32.mrf.mxu0
  %v7151 = vpop.f32.mrf.mxu0
  %v7152 = vadd.f32 0.0, %v7151
  %v7153 = vpop.f32.mrf.mxu0
  %7154 = vmatprep.mubr.bf16.mxu0 %v6561
  %7155 = vmatmul.mubr.bf16.gmra.mxu0 %v6560
  %v7156 = vpop.f32.mrf.mxu0
  %v7157 = vadd.f32 0.0, %v7156
  %v7158 = vpop.f32.mrf.mxu0
  %v7159 = vpop.f32.mrf.mxu0
  %v7160 = vadd.f32 0.0, %v7159
  %v7161 = vpop.f32.mrf.mxu0
  %7162 = vmatprep.mubr.bf16.mxu0 %v6565
  %7163 = vmatmul.mubr.bf16.gmra.mxu0 %v6564
  %v7164 = vpop.f32.mrf.mxu0
  %v7165 = vadd.f32 0.0, %v7164
  %v7166 = vpop.f32.mrf.mxu0
  %v7167 = vpop.f32.mrf.mxu0
  %v7168 = vadd.f32 0.0, %v7167
  %v7169 = vpop.f32.mrf.mxu0
  %7170 = vmatprep.mubr.bf16.mxu0 %v6569
  %7171 = vmatmul.mubr.bf16.gmra.mxu0 %v6568
  %v7172 = vpop.f32.mrf.mxu0
  %v7173 = vadd.f32 0.0, %v7172
  %v7174 = vpop.f32.mrf.mxu0
  %v7175 = vpop.f32.mrf.mxu0
  %v7176 = vpop.f32.mrf.mxu0
  %7177 = vdwg.mxu0
  %7178 = vmatprep.subr.bf16.mxu0 0
  %7179 = vmatpush1.bf16.msra.mxu0 %v1171
  %7180 = vmatprep.subr.bf16.mxu0 0
  %7181 = vmatpush1.bf16.msra.mxu0 %v1170
  %7182 = vmatprep.subr.bf16.mxu0 0
  %7183 = vmatpush1.bf16.msra.mxu0 %v1169
  %7184 = vmatprep.subr.bf16.mxu0 0
  %7185 = vmatpush1.bf16.msra.mxu0 %v1168
  %7186 = vmatprep.subr.bf16.mxu0 0
  %7187 = vmatpush1.bf16.msra.mxu0 %v1167
  %7188 = vmatprep.subr.bf16.mxu0 0
  %7189 = vmatpush1.bf16.msra.mxu0 %v1166
  %7190 = vmatprep.subr.bf16.mxu0 0
  %7191 = vmatpush1.bf16.msra.mxu0 %v1165
  %7192 = vmatprep.subr.bf16.mxu0 0
  %7193 = vmatpush1.bf16.msra.mxu0 %v1164
  %7194 = vmatprep.subr.bf16.mxu0 0
  %7195 = vmatpush2.bf16.msra.mxu0 0
  %7196 = vmatprep.subr.bf16.mxu0 0
  %7197 = vmatpush2.bf16.msra.mxu0 0
  %7198 = vmatprep.subr.bf16.mxu0 0
  %7199 = vmatpush2.bf16.msra.mxu0 0
  %7200 = vmatprep.subr.bf16.mxu0 0
  %7201 = vmatpush2.bf16.msra.mxu0 0
  %7202 = vmatprep.subr.bf16.mxu0 0
  %7203 = vmatpush2.bf16.msra.mxu0 0
  %7204 = vmatprep.subr.bf16.mxu0 0
  %7205 = vmatpush2.bf16.msra.mxu0 0
  %7206 = vmatprep.subr.bf16.mxu0 0
  %7207 = vmatpush2.bf16.msra.mxu0 0
  %7208 = vmatprep.subr.bf16.mxu0 0
  %7209 = vmatpush2.bf16.msra.mxu0 %v1172
  %7210 = vmatprep.mubr.bf16.mxu0 %v6696
  %7211 = vmatmul.mubr.bf16.gmra.mxu0 %v6410
  %v7212 = vpop.f32.mrf.mxu0
  %v7213 = vadd.f32 %v6853, %v7212
  %v7214 = vpop.f32.mrf.mxu0
  %v7215 = vpop.f32.mrf.mxu0
  %v7216 = vadd.f32 %v6856, %v7215
  %v7217 = vpop.f32.mrf.mxu0
  %7218 = vmatprep.mubr.bf16.mxu0 %v6699
  %7219 = vmatmul.mubr.bf16.gmra.mxu0 %v6414
  %v7220 = vpop.f32.mrf.mxu0
  %v7221 = vadd.f32 %v6861, %v7220
  %v7222 = vpop.f32.mrf.mxu0
  %v7223 = vpop.f32.mrf.mxu0
  %v7224 = vadd.f32 %v6864, %v7223
  %v7225 = vpop.f32.mrf.mxu0
  %7226 = vmatprep.mubr.bf16.mxu0 %v6702
  %7227 = vmatmul.mubr.bf16.gmra.mxu0 %v6418
  %v7228 = vpop.f32.mrf.mxu0
  %v7229 = vadd.f32 %v6869, %v7228
  %v7230 = vpop.f32.mrf.mxu0
  %v7231 = vpop.f32.mrf.mxu0
  %v7232 = vadd.f32 %v6872, %v7231
  %v7233 = vpop.f32.mrf.mxu0
  %7234 = vmatprep.mubr.bf16.mxu0 %v6705
  %7235 = vmatmul.mubr.bf16.gmra.mxu0 %v6422
  %v7236 = vpop.f32.mrf.mxu0
  %v7237 = vadd.f32 %v6877, %v7236
  %v7238 = vpop.f32.mrf.mxu0
  %v7239 = vpop.f32.mrf.mxu0
  %v7240 = vadd.f32 %v6880, %v7239
  %v7241 = vpop.f32.mrf.mxu0
  %7242 = vmatprep.mubr.bf16.mxu0 %v6708
  %7243 = vmatmul.mubr.bf16.gmra.mxu0 %v6426
  %v7244 = vpop.f32.mrf.mxu0
  %v7245 = vadd.f32 %v6885, %v7244
  %v7246 = vpop.f32.mrf.mxu0
  %v7247 = vpop.f32.mrf.mxu0
  %v7248 = vadd.f32 %v6888, %v7247
  %v7249 = vpop.f32.mrf.mxu0
  %7250 = vmatprep.mubr.bf16.mxu0 %v6711
  %7251 = vmatmul.mubr.bf16.gmra.mxu0 %v6430
  %v7252 = vpop.f32.mrf.mxu0
  %v7253 = vadd.f32 %v6893, %v7252
  %v7254 = vpop.f32.mrf.mxu0
  %v7255 = vpop.f32.mrf.mxu0
  %v7256 = vadd.f32 %v6896, %v7255
  %v7257 = vpop.f32.mrf.mxu0
  %7258 = vmatprep.mubr.bf16.mxu0 %v6714
  %7259 = vmatmul.mubr.bf16.gmra.mxu0 %v6434
  %v7260 = vpop.f32.mrf.mxu0
  %v7261 = vadd.f32 %v6901, %v7260
  %v7262 = vpop.f32.mrf.mxu0
  %v7263 = vpop.f32.mrf.mxu0
  %v7264 = vadd.f32 %v6904, %v7263
  %v7265 = vpop.f32.mrf.mxu0
  %7266 = vmatprep.mubr.bf16.mxu0 %v6717
  %7267 = vmatmul.mubr.bf16.gmra.mxu0 %v6438
  %v7268 = vpop.f32.mrf.mxu0
  %v7269 = vadd.f32 %v6909, %v7268
  %v7270 = vpop.f32.mrf.mxu0
  %v7271 = vpop.f32.mrf.mxu0
  %v7272 = vadd.f32 %v6912, %v7271
  %v7273 = vpop.f32.mrf.mxu0
  %7274 = vmatprep.mubr.bf16.mxu0 %v6720
  %7275 = vmatmul.mubr.bf16.gmra.mxu0 %v6442
  %v7276 = vpop.f32.mrf.mxu0
  %v7277 = vadd.f32 %v6917, %v7276
  %v7278 = vpop.f32.mrf.mxu0
  %v7279 = vpop.f32.mrf.mxu0
  %v7280 = vadd.f32 %v6920, %v7279
  %v7281 = vpop.f32.mrf.mxu0
  %7282 = vmatprep.mubr.bf16.mxu0 %v6723
  %7283 = vmatmul.mubr.bf16.gmra.mxu0 %v6446
  %v7284 = vpop.f32.mrf.mxu0
  %v7285 = vadd.f32 %v6925, %v7284
  %v7286 = vpop.f32.mrf.mxu0
  %v7287 = vpop.f32.mrf.mxu0
  %v7288 = vadd.f32 %v6928, %v7287
  %v7289 = vpop.f32.mrf.mxu0
  %7290 = vmatprep.mubr.bf16.mxu0 %v6726
  %7291 = vmatmul.mubr.bf16.gmra.mxu0 %v6450
  %v7292 = vpop.f32.mrf.mxu0
  %v7293 = vadd.f32 %v6933, %v7292
  %v7294 = vpop.f32.mrf.mxu0
  %v7295 = vpop.f32.mrf.mxu0
  %v7296 = vadd.f32 %v6936, %v7295
  %v7297 = vpop.f32.mrf.mxu0
  %7298 = vmatprep.mubr.bf16.mxu0 %v6729
  %7299 = vmatmul.mubr.bf16.gmra.mxu0 %v6454
  %v7300 = vpop.f32.mrf.mxu0
  %v7301 = vadd.f32 %v6941, %v7300
  %v7302 = vpop.f32.mrf.mxu0
  %v7303 = vpop.f32.mrf.mxu0
  %v7304 = vadd.f32 %v6944, %v7303
  %v7305 = vpop.f32.mrf.mxu0
  %7306 = vmatprep.mubr.bf16.mxu0 %v6732
  %7307 = vmatmul.mubr.bf16.gmra.mxu0 %v6458
  %v7308 = vpop.f32.mrf.mxu0
  %v7309 = vadd.f32 %v6949, %v7308
  %v7310 = vpop.f32.mrf.mxu0
  %v7311 = vpop.f32.mrf.mxu0
  %v7312 = vadd.f32 %v6952, %v7311
  %v7313 = vpop.f32.mrf.mxu0
  %7314 = vmatprep.mubr.bf16.mxu0 %v6735
  %7315 = vmatmul.mubr.bf16.gmra.mxu0 %v6462
  %v7316 = vpop.f32.mrf.mxu0
  %v7317 = vadd.f32 %v6957, %v7316
  %v7318 = vpop.f32.mrf.mxu0
  %v7319 = vpop.f32.mrf.mxu0
  %v7320 = vadd.f32 %v6960, %v7319
  %v7321 = vpop.f32.mrf.mxu0
  %7322 = vmatprep.mubr.bf16.mxu0 %v6738
  %7323 = vmatmul.mubr.bf16.gmra.mxu0 %v6466
  %v7324 = vpop.f32.mrf.mxu0
  %v7325 = vadd.f32 %v6965, %v7324
  %v7326 = vpop.f32.mrf.mxu0
  %v7327 = vpop.f32.mrf.mxu0
  %v7328 = vadd.f32 %v6968, %v7327
  %v7329 = vpop.f32.mrf.mxu0
  %7330 = vmatprep.mubr.bf16.mxu0 %v6741
  %7331 = vmatmul.mubr.bf16.gmra.mxu0 %v6470
  %v7332 = vpop.f32.mrf.mxu0
  %v7333 = vadd.f32 %v6973, %v7332
  %v7334 = vpop.f32.mrf.mxu0
  %v7335 = vpop.f32.mrf.mxu0
  %v7336 = vadd.f32 %v6976, %v7335
  %v7337 = vpop.f32.mrf.mxu0
  %7338 = vmatprep.mubr.bf16.mxu0 %v6744
  %7339 = vmatmul.mubr.bf16.gmra.mxu0 %v6474
  %v7340 = vpop.f32.mrf.mxu0
  %v7341 = vadd.f32 %v6981, %v7340
  %v7342 = vpop.f32.mrf.mxu0
  %v7343 = vpop.f32.mrf.mxu0
  %v7344 = vadd.f32 %v6984, %v7343
  %v7345 = vpop.f32.mrf.mxu0
  %7346 = vmatprep.mubr.bf16.mxu0 %v6747
  %7347 = vmatmul.mubr.bf16.gmra.mxu0 %v6478
  %v7348 = vpop.f32.mrf.mxu0
  %v7349 = vadd.f32 %v6989, %v7348
  %v7350 = vpop.f32.mrf.mxu0
  %v7351 = vpop.f32.mrf.mxu0
  %v7352 = vadd.f32 %v6992, %v7351
  %v7353 = vpop.f32.mrf.mxu0
  %7354 = vmatprep.mubr.bf16.mxu0 %v6750
  %7355 = vmatmul.mubr.bf16.gmra.mxu0 %v6482
  %v7356 = vpop.f32.mrf.mxu0
  %v7357 = vadd.f32 %v6997, %v7356
  %v7358 = vpop.f32.mrf.mxu0
  %v7359 = vpop.f32.mrf.mxu0
  %v7360 = vadd.f32 %v7000, %v7359
  %v7361 = vpop.f32.mrf.mxu0
  %7362 = vmatprep.mubr.bf16.mxu0 %v6753
  %7363 = vmatmul.mubr.bf16.gmra.mxu0 %v6486
  %v7364 = vpop.f32.mrf.mxu0
  %v7365 = vadd.f32 %v7005, %v7364
  %v7366 = vpop.f32.mrf.mxu0
  %v7367 = vpop.f32.mrf.mxu0
  %v7368 = vadd.f32 %v7008, %v7367
  %v7369 = vpop.f32.mrf.mxu0
  %7370 = vmatprep.mubr.bf16.mxu0 %v6756
  %7371 = vmatmul.mubr.bf16.gmra.mxu0 %v6490
  %v7372 = vpop.f32.mrf.mxu0
  %v7373 = vadd.f32 %v7013, %v7372
  %v7374 = vpop.f32.mrf.mxu0
  %v7375 = vpop.f32.mrf.mxu0
  %v7376 = vadd.f32 %v7016, %v7375
  %v7377 = vpop.f32.mrf.mxu0
  %7378 = vmatprep.mubr.bf16.mxu0 %v6759
  %7379 = vmatmul.mubr.bf16.gmra.mxu0 %v6494
  %v7380 = vpop.f32.mrf.mxu0
  %v7381 = vadd.f32 %v7021, %v7380
  %v7382 = vpop.f32.mrf.mxu0
  %v7383 = vpop.f32.mrf.mxu0
  %v7384 = vadd.f32 %v7024, %v7383
  %v7385 = vpop.f32.mrf.mxu0
  %7386 = vmatprep.mubr.bf16.mxu0 %v6762
  %7387 = vmatmul.mubr.bf16.gmra.mxu0 %v6498
  %v7388 = vpop.f32.mrf.mxu0
  %v7389 = vadd.f32 %v7029, %v7388
  %v7390 = vpop.f32.mrf.mxu0
  %v7391 = vpop.f32.mrf.mxu0
  %v7392 = vadd.f32 %v7032, %v7391
  %v7393 = vpop.f32.mrf.mxu0
  %7394 = vmatprep.mubr.bf16.mxu0 %v6765
  %7395 = vmatmul.mubr.bf16.gmra.mxu0 %v6502
  %v7396 = vpop.f32.mrf.mxu0
  %v7397 = vadd.f32 %v7037, %v7396
  %v7398 = vpop.f32.mrf.mxu0
  %v7399 = vpop.f32.mrf.mxu0
  %v7400 = vadd.f32 %v7040, %v7399
  %v7401 = vpop.f32.mrf.mxu0
  %7402 = vmatprep.mubr.bf16.mxu0 %v6768
  %7403 = vmatmul.mubr.bf16.gmra.mxu0 %v6506
  %v7404 = vpop.f32.mrf.mxu0
  %v7405 = vadd.f32 %v7045, %v7404
  %v7406 = vpop.f32.mrf.mxu0
  %v7407 = vpop.f32.mrf.mxu0
  %v7408 = vadd.f32 %v7048, %v7407
  %v7409 = vpop.f32.mrf.mxu0
  %7410 = vmatprep.mubr.bf16.mxu0 %v6771
  %7411 = vmatmul.mubr.bf16.gmra.mxu0 %v6510
  %v7412 = vpop.f32.mrf.mxu0
  %v7413 = vadd.f32 %v7053, %v7412
  %v7414 = vpop.f32.mrf.mxu0
  %v7415 = vpop.f32.mrf.mxu0
  %v7416 = vadd.f32 %v7056, %v7415
  %v7417 = vpop.f32.mrf.mxu0
  %7418 = vmatprep.mubr.bf16.mxu0 %v6774
  %7419 = vmatmul.mubr.bf16.gmra.mxu0 %v6514
  %v7420 = vpop.f32.mrf.mxu0
  %v7421 = vadd.f32 %v7061, %v7420
  %v7422 = vpop.f32.mrf.mxu0
  %v7423 = vpop.f32.mrf.mxu0
  %v7424 = vadd.f32 %v7064, %v7423
  %v7425 = vpop.f32.mrf.mxu0
  %7426 = vmatprep.mubr.bf16.mxu0 %v6777
  %7427 = vmatmul.mubr.bf16.gmra.mxu0 %v6518
  %v7428 = vpop.f32.mrf.mxu0
  %v7429 = vadd.f32 %v7069, %v7428
  %v7430 = vpop.f32.mrf.mxu0
  %v7431 = vpop.f32.mrf.mxu0
  %v7432 = vadd.f32 %v7072, %v7431
  %v7433 = vpop.f32.mrf.mxu0
  %7434 = vmatprep.mubr.bf16.mxu0 %v6780
  %7435 = vmatmul.mubr.bf16.gmra.mxu0 %v6522
  %v7436 = vpop.f32.mrf.mxu0
  %v7437 = vadd.f32 %v7077, %v7436
  %v7438 = vpop.f32.mrf.mxu0
  %v7439 = vpop.f32.mrf.mxu0
  %v7440 = vadd.f32 %v7080, %v7439
  %v7441 = vpop.f32.mrf.mxu0
  %7442 = vmatprep.mubr.bf16.mxu0 %v6783
  %7443 = vmatmul.mubr.bf16.gmra.mxu0 %v6526
  %v7444 = vpop.f32.mrf.mxu0
  %v7445 = vadd.f32 %v7085, %v7444
  %v7446 = vpop.f32.mrf.mxu0
  %v7447 = vpop.f32.mrf.mxu0
  %v7448 = vadd.f32 %v7088, %v7447
  %v7449 = vpop.f32.mrf.mxu0
  %7450 = vmatprep.mubr.bf16.mxu0 %v6786
  %7451 = vmatmul.mubr.bf16.gmra.mxu0 %v6530
  %v7452 = vpop.f32.mrf.mxu0
  %v7453 = vadd.f32 %v7093, %v7452
  %v7454 = vpop.f32.mrf.mxu0
  %v7455 = vpop.f32.mrf.mxu0
  %v7456 = vadd.f32 %v7096, %v7455
  %v7457 = vpop.f32.mrf.mxu0
  %7458 = vmatprep.mubr.bf16.mxu0 %v6789
  %7459 = vmatmul.mubr.bf16.gmra.mxu0 %v6534
  %v7460 = vpop.f32.mrf.mxu0
  %v7461 = vadd.f32 %v7101, %v7460
  %v7462 = vpop.f32.mrf.mxu0
  %v7463 = vpop.f32.mrf.mxu0
  %v7464 = vadd.f32 %v7104, %v7463
  %v7465 = vpop.f32.mrf.mxu0
  %7466 = vmatprep.mubr.bf16.mxu0 %v6792
  %7467 = vmatmul.mubr.bf16.gmra.mxu0 %v6538
  %v7468 = vpop.f32.mrf.mxu0
  %v7469 = vadd.f32 %v7109, %v7468
  %v7470 = vpop.f32.mrf.mxu0
  %v7471 = vpop.f32.mrf.mxu0
  %v7472 = vadd.f32 %v7112, %v7471
  %v7473 = vpop.f32.mrf.mxu0
  %7474 = vmatprep.mubr.bf16.mxu0 %v6795
  %7475 = vmatmul.mubr.bf16.gmra.mxu0 %v6542
  %v7476 = vpop.f32.mrf.mxu0
  %v7477 = vadd.f32 %v7117, %v7476
  %v7478 = vpop.f32.mrf.mxu0
  %v7479 = vpop.f32.mrf.mxu0
  %v7480 = vadd.f32 %v7120, %v7479
  %v7481 = vpop.f32.mrf.mxu0
  %7482 = vmatprep.mubr.bf16.mxu0 %v6798
  %7483 = vmatmul.mubr.bf16.gmra.mxu0 %v6546
  %v7484 = vpop.f32.mrf.mxu0
  %v7485 = vadd.f32 %v7125, %v7484
  %v7486 = vpop.f32.mrf.mxu0
  %v7487 = vpop.f32.mrf.mxu0
  %v7488 = vadd.f32 %v7128, %v7487
  %v7489 = vpop.f32.mrf.mxu0
  %7490 = vmatprep.mubr.bf16.mxu0 %v6801
  %7491 = vmatmul.mubr.bf16.gmra.mxu0 %v6550
  %v7492 = vpop.f32.mrf.mxu0
  %v7493 = vadd.f32 %v7133, %v7492
  %v7494 = vpop.f32.mrf.mxu0
  %v7495 = vpop.f32.mrf.mxu0
  %v7496 = vadd.f32 %v7136, %v7495
  %v7497 = vpop.f32.mrf.mxu0
  %7498 = vmatprep.mubr.bf16.mxu0 %v6804
  %7499 = vmatmul.mubr.bf16.gmra.mxu0 %v6554
  %v7500 = vpop.f32.mrf.mxu0
  %v7501 = vadd.f32 %v7141, %v7500
  %v7502 = vpop.f32.mrf.mxu0
  %v7503 = vpop.f32.mrf.mxu0
  %v7504 = vadd.f32 %v7144, %v7503
  %v7505 = vpop.f32.mrf.mxu0
  %7506 = vmatprep.mubr.bf16.mxu0 %v6807
  %7507 = vmatmul.mubr.bf16.gmra.mxu0 %v6558
  %v7508 = vpop.f32.mrf.mxu0
  %v7509 = vadd.f32 %v7149, %v7508
  %v7510 = vpop.f32.mrf.mxu0
  %v7511 = vpop.f32.mrf.mxu0
  %v7512 = vadd.f32 %v7152, %v7511
  %v7513 = vpop.f32.mrf.mxu0
  %7514 = vmatprep.mubr.bf16.mxu0 %v6810
  %7515 = vmatmul.mubr.bf16.gmra.mxu0 %v6562
  %v7516 = vpop.f32.mrf.mxu0
  %v7517 = vadd.f32 %v7157, %v7516
  %v7518 = vpop.f32.mrf.mxu0
  %v7519 = vpop.f32.mrf.mxu0
  %v7520 = vadd.f32 %v7160, %v7519
  %v7521 = vpop.f32.mrf.mxu0
  %7522 = vmatprep.mubr.bf16.mxu0 %v6813
  %7523 = vmatmul.mubr.bf16.gmra.mxu0 %v6566
  %v7524 = vpop.f32.mrf.mxu0
  %v7525 = vadd.f32 %v7165, %v7524
  %v7526 = vpop.f32.mrf.mxu0
  %v7527 = vpop.f32.mrf.mxu0
  %v7528 = vadd.f32 %v7168, %v7527
  %v7529 = vpop.f32.mrf.mxu0
  %7530 = vmatprep.mubr.bf16.mxu0 %v6816
  %7531 = vmatmul.mubr.bf16.gmra.mxu0 %v6570
  %v7532 = vpop.f32.mrf.mxu0
  %v7533 = vadd.f32 %v7173, %v7532
  %v7534 = vpop.f32.mrf.mxu0
  %v7535 = vpop.f32.mrf.mxu0
  %v7536 = vpop.f32.mrf.mxu0
  %7537 = vdwg.mxu0
  %v7538 = vmax.f32 %v5679, %v7213
  %v7539 = vmax.f32 %v5680, %v7216
  %v7540 = vmax.f32 %v5681, %v7221
  %v7541 = vmax.f32 %v5682, %v7224
  %v7542 = vmax.f32 %v5683, %v7229
  %v7543 = vmax.f32 %v5684, %v7232
  %v7544 = vmax.f32 %v5685, %v7237
  %v7545 = vmax.f32 %v5686, %v7240
  %v7546 = vmax.f32 %v5687, %v7245
  %v7547 = vmax.f32 %v5688, %v7248
  %v7548 = vmax.f32 %v5689, %v7253
  %v7549 = vmax.f32 %v5690, %v7256
  %v7550 = vmax.f32 %v5691, %v7261
  %v7551 = vmax.f32 %v5692, %v7264
  %v7552 = vmax.f32 %v5693, %v7269
  %v7553 = vmax.f32 %v5694, %v7272
  %v7554 = vmax.f32 %v5695, %v7277
  %v7555 = vmax.f32 %v5696, %v7280
  %v7556 = vmax.f32 %v5697, %v7285
  %v7557 = vmax.f32 %v5698, %v7288
  %v7558 = vmax.f32 %v5699, %v7293
  %v7559 = vmax.f32 %v5700, %v7296
  %v7560 = vmax.f32 %v5701, %v7301
  %v7561 = vmax.f32 %v5702, %v7304
  %v7562 = vmax.f32 %v5703, %v7309
  %v7563 = vmax.f32 %v5704, %v7312
  %v7564 = vmax.f32 %v5705, %v7317
  %v7565 = vmax.f32 %v5706, %v7320
  %v7566 = vmax.f32 %v5707, %v7325
  %v7567 = vmax.f32 %v5708, %v7328
  %v7568 = vmax.f32 %v5709, %v7333
  %v7569 = vmax.f32 %v5710, %v7336
  %v7570 = vmax.f32 %v5711, %v7341
  %v7571 = vmax.f32 %v5712, %v7344
  %v7572 = vmax.f32 %v5713, %v7349
  %v7573 = vmax.f32 %v5714, %v7352
  %v7574 = vmax.f32 %v5715, %v7357
  %v7575 = vmax.f32 %v5716, %v7360
  %v7576 = vmax.f32 %v5717, %v7365
  %v7577 = vmax.f32 %v5718, %v7368
  %v7578 = vmax.f32 %v5719, %v7373
  %v7579 = vmax.f32 %v5720, %v7376
  %v7580 = vmax.f32 %v5721, %v7381
  %v7581 = vmax.f32 %v5722, %v7384
  %v7582 = vmax.f32 %v5723, %v7389
  %v7583 = vmax.f32 %v5724, %v7392
  %v7584 = vmax.f32 %v5725, %v7397
  %v7585 = vmax.f32 %v5726, %v7400
  %v7586 = vmax.f32 %v5727, %v7405
  %v7587 = vmax.f32 %v5728, %v7408
  %v7588 = vmax.f32 %v5729, %v7413
  %v7589 = vmax.f32 %v5730, %v7416
  %v7590 = vmax.f32 %v5731, %v7421
  %v7591 = vmax.f32 %v5732, %v7424
  %v7592 = vmax.f32 %v5733, %v7429
  %v7593 = vmax.f32 %v5734, %v7432
  %v7594 = vmax.f32 %v5735, %v7437
  %v7595 = vmax.f32 %v5736, %v7440
  %v7596 = vmax.f32 %v5737, %v7445
  %v7597 = vmax.f32 %v5738, %v7448
  %v7598 = vmax.f32 %v5739, %v7453
  %v7599 = vmax.f32 %v5740, %v7456
  %v7600 = vmax.f32 %v5741, %v7461
  %v7601 = vmax.f32 %v5742, %v7464
  %v7602 = vmax.f32 %v5743, %v7469
  %v7603 = vmax.f32 %v5744, %v7472
  %v7604 = vmax.f32 %v5745, %v7477
  %v7605 = vmax.f32 %v5746, %v7480
  %v7606 = vmax.f32 %v5747, %v7485
  %v7607 = vmax.f32 %v5748, %v7488
  %v7608 = vmax.f32 %v5749, %v7493
  %v7609 = vmax.f32 %v5750, %v7496
  %v7610 = vmax.f32 %v5751, %v7501
  %v7611 = vmax.f32 %v5752, %v7504
  %v7612 = vmax.f32 %v5753, %v7509
  %v7613 = vmax.f32 %v5754, %v7512
  %v7614 = vmax.f32 %v5755, %v7517
  %v7615 = vmax.f32 %v5756, %v7520
  %v7616 = vmax.f32 %v5757, %v7525
  %v7617 = vmax.f32 %v5758, %v7528
  %v7618 = vmax.f32 %v5759, %v7533
  %v7619 = vld [vmem:[%s5] sm:$0xff]
  %v7620 = vld [vmem:[%s5 + $0x8] sm:$0xff]
  %v7621 = vld [vmem:[%s5 + $0x10] sm:$0xff]
  %v7622 = vld [vmem:[%s5 + $0x18] sm:$0xff]
  %v7623 = vld [vmem:[%s5 + $0x20] sm:$0xff]
  %v7624 = vld [vmem:[%s5 + $0x28] sm:$0xff]
  %v7625 = vld [vmem:[%s5 + $0x30] sm:$0xff]
  %v7626 = vld [vmem:[%s5 + $0x38] sm:$0xff]
  %v7627 = vld [vmem:[%s5 + $0x40] sm:$0xff]
  %v7628 = vld [vmem:[%s5 + $0x48] sm:$0xff]
  %v7629 = vld [vmem:[%s5 + $0x50] sm:$0xff]
  %v7630 = vld [vmem:[%s5 + $0x58] sm:$0xff]
  %v7631 = vld [vmem:[%s5 + $0x60] sm:$0xff]
  %v7632 = vld [vmem:[%s5 + $0x68] sm:$0xff]
  %v7633 = vld [vmem:[%s5 + $0x70] sm:$0xff]
  %v7634 = vld [vmem:[%s5 + $0x78] sm:$0xff]
  %v7635 = vld [vmem:[%s5 + $0x80] sm:$0xff]
  %v7636 = vld [vmem:[%s5 + $0x88] sm:$0xff]
  %v7637 = vld [vmem:[%s5 + $0x90] sm:$0xff]
  %v7638 = vld [vmem:[%s5 + $0x98] sm:$0xff]
  %v7639 = vld [vmem:[%s5 + $0xa0] sm:$0xff]
  %v7640 = vld [vmem:[%s5 + $0xa8] sm:$0xff]
  %v7641 = vld [vmem:[%s5 + $0xb0] sm:$0xff]
  %v7642 = vld [vmem:[%s5 + $0xb8] sm:$0xff]
  %v7643 = vld [vmem:[%s5 + $0xc0] sm:$0xff]
  %v7644 = vld [vmem:[%s5 + $0xc8] sm:$0xff]
  %v7645 = vld [vmem:[%s5 + $0xd0] sm:$0xff]
  %v7646 = vld [vmem:[%s5 + $0xd8] sm:$0xff]
  %v7647 = vld [vmem:[%s5 + $0xe0] sm:$0xff]
  %v7648 = vld [vmem:[%s5 + $0xe8] sm:$0xff]
  %v7649 = vld [vmem:[%s5 + $0xf0] sm:$0xff]
  %v7650 = vld [vmem:[%s5 + $0xf8] sm:$0xff]
  %v7651 = vld [vmem:[%s5 + $0x100] sm:$0xff]
  %v7652 = vld [vmem:[%s5 + $0x108] sm:$0xff]
  %v7653 = vld [vmem:[%s5 + $0x110] sm:$0xff]
  %v7654 = vld [vmem:[%s5 + $0x118] sm:$0xff]
  %v7655 = vld [vmem:[%s5 + $0x120] sm:$0xff]
  %v7656 = vld [vmem:[%s5 + $0x128] sm:$0xff]
  %v7657 = vld [vmem:[%s5 + $0x130] sm:$0xff]
  %v7658 = vld [vmem:[%s5 + $0x138] sm:$0xff]
  %v7659 = vld [vmem:[%s5 + $0x140] sm:$0xff]
  %v7660 = vld [vmem:[%s5 + $0x148] sm:$0xff]
  %v7661 = vld [vmem:[%s5 + $0x150] sm:$0xff]
  %v7662 = vld [vmem:[%s5 + $0x158] sm:$0xff]
  %v7663 = vld [vmem:[%s5 + $0x160] sm:$0xff]
  %v7664 = vld [vmem:[%s5 + $0x168] sm:$0xff]
  %v7665 = vld [vmem:[%s5 + $0x170] sm:$0xff]
  %v7666 = vld [vmem:[%s5 + $0x178] sm:$0xff]
  %v7667 = vld [vmem:[%s5 + $0x180] sm:$0xff]
  %v7668 = vld [vmem:[%s5 + $0x188] sm:$0xff]
  %v7669 = vld [vmem:[%s5 + $0x190] sm:$0xff]
  %v7670 = vld [vmem:[%s5 + $0x198] sm:$0xff]
  %v7671 = vld [vmem:[%s5 + $0x1a0] sm:$0xff]
  %v7672 = vld [vmem:[%s5 + $0x1a8] sm:$0xff]
  %v7673 = vld [vmem:[%s5 + $0x1b0] sm:$0xff]
  %v7674 = vld [vmem:[%s5 + $0x1b8] sm:$0xff]
  %v7675 = vld [vmem:[%s5 + $0x1c0] sm:$0xff]
  %v7676 = vld [vmem:[%s5 + $0x1c8] sm:$0xff]
  %v7677 = vld [vmem:[%s5 + $0x1d0] sm:$0xff]
  %v7678 = vld [vmem:[%s5 + $0x1d8] sm:$0xff]
  %v7679 = vld [vmem:[%s5 + $0x1e0] sm:$0xff]
  %v7680 = vld [vmem:[%s5 + $0x1e8] sm:$0xff]
  %v7681 = vld [vmem:[%s5 + $0x1f0] sm:$0xff]
  %v7682 = vld [vmem:[%s5 + $0x1f8] sm:$0xff]
  %v7683 = vld [vmem:[%s5 + $0x200] sm:$0xff]
  %v7684 = vld [vmem:[%s5 + $0x208] sm:$0xff]
  %v7685 = vld [vmem:[%s5 + $0x210] sm:$0xff]
  %v7686 = vld [vmem:[%s5 + $0x218] sm:$0xff]
  %v7687 = vld [vmem:[%s5 + $0x220] sm:$0xff]
  %v7688 = vld [vmem:[%s5 + $0x228] sm:$0xff]
  %v7689 = vld [vmem:[%s5 + $0x230] sm:$0xff]
  %v7690 = vld [vmem:[%s5 + $0x238] sm:$0xff]
  %v7691 = vld [vmem:[%s5 + $0x240] sm:$0xff]
  %v7692 = vld [vmem:[%s5 + $0x248] sm:$0xff]
  %v7693 = vld [vmem:[%s5 + $0x250] sm:$0xff]
  %v7694 = vld [vmem:[%s5 + $0x258] sm:$0xff]
  %v7695 = vld [vmem:[%s5 + $0x260] sm:$0xff]
  %v7696 = vld [vmem:[%s5 + $0x268] sm:$0xff]
  %v7697 = vld [vmem:[%s5 + $0x270] sm:$0xff]
  %v7698 = vld [vmem:[%s5 + $0x278] sm:$0xff]
  %v7699 = vld [vmem:[%s5 + $0x280] sm:$0xff]
  %7701 = vset.pattern.permute.xlu0 0
  %7702 = vperm.xlu0 %7701, %v7619
  %v7703 = vpop.permute.xlu0 %7702
  %7706 = vset.pattern.permute.xlu0 0
  %7707 = vperm.xlu0 %7706, %v7620
  %v7708 = vpop.permute.xlu0 %7707
  %7711 = vset.pattern.permute.xlu0 0
  %7712 = vperm.xlu0 %7711, %v7621
  %v7713 = vpop.permute.xlu0 %7712
  %7716 = vset.pattern.permute.xlu0 0
  %7717 = vperm.xlu0 %7716, %v7622
  %v7718 = vpop.permute.xlu0 %7717
  %7721 = vset.pattern.permute.xlu0 0
  %7722 = vperm.xlu0 %7721, %v7623
  %v7723 = vpop.permute.xlu0 %7722
  %7726 = vset.pattern.permute.xlu0 0
  %7727 = vperm.xlu0 %7726, %v7624
  %v7728 = vpop.permute.xlu0 %7727
  %7731 = vset.pattern.permute.xlu0 0
  %7732 = vperm.xlu0 %7731, %v7625
  %v7733 = vpop.permute.xlu0 %7732
  %7736 = vset.pattern.permute.xlu0 0
  %7737 = vperm.xlu0 %7736, %v7626
  %v7738 = vpop.permute.xlu0 %7737
  %7741 = vset.pattern.permute.xlu0 0
  %7742 = vperm.xlu0 %7741, %v7627
  %v7743 = vpop.permute.xlu0 %7742
  %7746 = vset.pattern.permute.xlu0 0
  %7747 = vperm.xlu0 %7746, %v7628
  %v7748 = vpop.permute.xlu0 %7747
  %7751 = vset.pattern.permute.xlu0 0
  %7752 = vperm.xlu0 %7751, %v7629
  %v7753 = vpop.permute.xlu0 %7752
  %7756 = vset.pattern.permute.xlu0 0
  %7757 = vperm.xlu0 %7756, %v7630
  %v7758 = vpop.permute.xlu0 %7757
  %7761 = vset.pattern.permute.xlu0 0
  %7762 = vperm.xlu0 %7761, %v7631
  %v7763 = vpop.permute.xlu0 %7762
  %7766 = vset.pattern.permute.xlu0 0
  %7767 = vperm.xlu0 %7766, %v7632
  %v7768 = vpop.permute.xlu0 %7767
  %7771 = vset.pattern.permute.xlu0 0
  %7772 = vperm.xlu0 %7771, %v7633
  %v7773 = vpop.permute.xlu0 %7772
  %7776 = vset.pattern.permute.xlu0 0
  %7777 = vperm.xlu0 %7776, %v7634
  %v7778 = vpop.permute.xlu0 %7777
  %7781 = vset.pattern.permute.xlu0 0
  %7782 = vperm.xlu0 %7781, %v7635
  %v7783 = vpop.permute.xlu0 %7782
  %7786 = vset.pattern.permute.xlu0 0
  %7787 = vperm.xlu0 %7786, %v7636
  %v7788 = vpop.permute.xlu0 %7787
  %7791 = vset.pattern.permute.xlu0 0
  %7792 = vperm.xlu0 %7791, %v7637
  %v7793 = vpop.permute.xlu0 %7792
  %7796 = vset.pattern.permute.xlu0 0
  %7797 = vperm.xlu0 %7796, %v7638
  %v7798 = vpop.permute.xlu0 %7797
  %7801 = vset.pattern.permute.xlu0 0
  %7802 = vperm.xlu0 %7801, %v7639
  %v7803 = vpop.permute.xlu0 %7802
  %7806 = vset.pattern.permute.xlu0 0
  %7807 = vperm.xlu0 %7806, %v7640
  %v7808 = vpop.permute.xlu0 %7807
  %7811 = vset.pattern.permute.xlu0 0
  %7812 = vperm.xlu0 %7811, %v7641
  %v7813 = vpop.permute.xlu0 %7812
  %7816 = vset.pattern.permute.xlu0 0
  %7817 = vperm.xlu0 %7816, %v7642
  %v7818 = vpop.permute.xlu0 %7817
  %7821 = vset.pattern.permute.xlu0 0
  %7822 = vperm.xlu0 %7821, %v7643
  %v7823 = vpop.permute.xlu0 %7822
  %7826 = vset.pattern.permute.xlu0 0
  %7827 = vperm.xlu0 %7826, %v7644
  %v7828 = vpop.permute.xlu0 %7827
  %7831 = vset.pattern.permute.xlu0 0
  %7832 = vperm.xlu0 %7831, %v7645
  %v7833 = vpop.permute.xlu0 %7832
  %7836 = vset.pattern.permute.xlu0 0
  %7837 = vperm.xlu0 %7836, %v7646
  %v7838 = vpop.permute.xlu0 %7837
  %7841 = vset.pattern.permute.xlu0 0
  %7842 = vperm.xlu0 %7841, %v7647
  %v7843 = vpop.permute.xlu0 %7842
  %7846 = vset.pattern.permute.xlu0 0
  %7847 = vperm.xlu0 %7846, %v7648
  %v7848 = vpop.permute.xlu0 %7847
  %7851 = vset.pattern.permute.xlu0 0
  %7852 = vperm.xlu0 %7851, %v7649
  %v7853 = vpop.permute.xlu0 %7852
  %7856 = vset.pattern.permute.xlu0 0
  %7857 = vperm.xlu0 %7856, %v7650
  %v7858 = vpop.permute.xlu0 %7857
  %7861 = vset.pattern.permute.xlu0 0
  %7862 = vperm.xlu0 %7861, %v7651
  %v7863 = vpop.permute.xlu0 %7862
  %7866 = vset.pattern.permute.xlu0 0
  %7867 = vperm.xlu0 %7866, %v7652
  %v7868 = vpop.permute.xlu0 %7867
  %7871 = vset.pattern.permute.xlu0 0
  %7872 = vperm.xlu0 %7871, %v7653
  %v7873 = vpop.permute.xlu0 %7872
  %7876 = vset.pattern.permute.xlu0 0
  %7877 = vperm.xlu0 %7876, %v7654
  %v7878 = vpop.permute.xlu0 %7877
  %7881 = vset.pattern.permute.xlu0 0
  %7882 = vperm.xlu0 %7881, %v7655
  %v7883 = vpop.permute.xlu0 %7882
  %7886 = vset.pattern.permute.xlu0 0
  %7887 = vperm.xlu0 %7886, %v7656
  %v7888 = vpop.permute.xlu0 %7887
  %7891 = vset.pattern.permute.xlu0 0
  %7892 = vperm.xlu0 %7891, %v7657
  %v7893 = vpop.permute.xlu0 %7892
  %7896 = vset.pattern.permute.xlu0 0
  %7897 = vperm.xlu0 %7896, %v7658
  %v7898 = vpop.permute.xlu0 %7897
  %7901 = vset.pattern.permute.xlu0 0
  %7902 = vperm.xlu0 %7901, %v7659
  %v7903 = vpop.permute.xlu0 %7902
  %7906 = vset.pattern.permute.xlu0 0
  %7907 = vperm.xlu0 %7906, %v7660
  %v7908 = vpop.permute.xlu0 %7907
  %7911 = vset.pattern.permute.xlu0 0
  %7912 = vperm.xlu0 %7911, %v7661
  %v7913 = vpop.permute.xlu0 %7912
  %7916 = vset.pattern.permute.xlu0 0
  %7917 = vperm.xlu0 %7916, %v7662
  %v7918 = vpop.permute.xlu0 %7917
  %7921 = vset.pattern.permute.xlu0 0
  %7922 = vperm.xlu0 %7921, %v7663
  %v7923 = vpop.permute.xlu0 %7922
  %7926 = vset.pattern.permute.xlu0 0
  %7927 = vperm.xlu0 %7926, %v7664
  %v7928 = vpop.permute.xlu0 %7927
  %7931 = vset.pattern.permute.xlu0 0
  %7932 = vperm.xlu0 %7931, %v7665
  %v7933 = vpop.permute.xlu0 %7932
  %7936 = vset.pattern.permute.xlu0 0
  %7937 = vperm.xlu0 %7936, %v7666
  %v7938 = vpop.permute.xlu0 %7937
  %7941 = vset.pattern.permute.xlu0 0
  %7942 = vperm.xlu0 %7941, %v7667
  %v7943 = vpop.permute.xlu0 %7942
  %7946 = vset.pattern.permute.xlu0 0
  %7947 = vperm.xlu0 %7946, %v7668
  %v7948 = vpop.permute.xlu0 %7947
  %7951 = vset.pattern.permute.xlu0 0
  %7952 = vperm.xlu0 %7951, %v7669
  %v7953 = vpop.permute.xlu0 %7952
  %7956 = vset.pattern.permute.xlu0 0
  %7957 = vperm.xlu0 %7956, %v7670
  %v7958 = vpop.permute.xlu0 %7957
  %7961 = vset.pattern.permute.xlu0 0
  %7962 = vperm.xlu0 %7961, %v7671
  %v7963 = vpop.permute.xlu0 %7962
  %7966 = vset.pattern.permute.xlu0 0
  %7967 = vperm.xlu0 %7966, %v7672
  %v7968 = vpop.permute.xlu0 %7967
  %7971 = vset.pattern.permute.xlu0 0
  %7972 = vperm.xlu0 %7971, %v7673
  %v7973 = vpop.permute.xlu0 %7972
  %7976 = vset.pattern.permute.xlu0 0
  %7977 = vperm.xlu0 %7976, %v7674
  %v7978 = vpop.permute.xlu0 %7977
  %7981 = vset.pattern.permute.xlu0 0
  %7982 = vperm.xlu0 %7981, %v7675
  %v7983 = vpop.permute.xlu0 %7982
  %7986 = vset.pattern.permute.xlu0 0
  %7987 = vperm.xlu0 %7986, %v7676
  %v7988 = vpop.permute.xlu0 %7987
  %7991 = vset.pattern.permute.xlu0 0
  %7992 = vperm.xlu0 %7991, %v7677
  %v7993 = vpop.permute.xlu0 %7992
  %7996 = vset.pattern.permute.xlu0 0
  %7997 = vperm.xlu0 %7996, %v7678
  %v7998 = vpop.permute.xlu0 %7997
  %8001 = vset.pattern.permute.xlu0 0
  %8002 = vperm.xlu0 %8001, %v7679
  %v8003 = vpop.permute.xlu0 %8002
  %8006 = vset.pattern.permute.xlu0 0
  %8007 = vperm.xlu0 %8006, %v7680
  %v8008 = vpop.permute.xlu0 %8007
  %8011 = vset.pattern.permute.xlu0 0
  %8012 = vperm.xlu0 %8011, %v7681
  %v8013 = vpop.permute.xlu0 %8012
  %8016 = vset.pattern.permute.xlu0 0
  %8017 = vperm.xlu0 %8016, %v7682
  %v8018 = vpop.permute.xlu0 %8017
  %8021 = vset.pattern.permute.xlu0 0
  %8022 = vperm.xlu0 %8021, %v7683
  %v8023 = vpop.permute.xlu0 %8022
  %8026 = vset.pattern.permute.xlu0 0
  %8027 = vperm.xlu0 %8026, %v7684
  %v8028 = vpop.permute.xlu0 %8027
  %8031 = vset.pattern.permute.xlu0 0
  %8032 = vperm.xlu0 %8031, %v7685
  %v8033 = vpop.permute.xlu0 %8032
  %8036 = vset.pattern.permute.xlu0 0
  %8037 = vperm.xlu0 %8036, %v7686
  %v8038 = vpop.permute.xlu0 %8037
  %8041 = vset.pattern.permute.xlu0 0
  %8042 = vperm.xlu0 %8041, %v7687
  %v8043 = vpop.permute.xlu0 %8042
  %8046 = vset.pattern.permute.xlu0 0
  %8047 = vperm.xlu0 %8046, %v7688
  %v8048 = vpop.permute.xlu0 %8047
  %8051 = vset.pattern.permute.xlu0 0
  %8052 = vperm.xlu0 %8051, %v7689
  %v8053 = vpop.permute.xlu0 %8052
  %8056 = vset.pattern.permute.xlu0 0
  %8057 = vperm.xlu0 %8056, %v7690
  %v8058 = vpop.permute.xlu0 %8057
  %8061 = vset.pattern.permute.xlu0 0
  %8062 = vperm.xlu0 %8061, %v7691
  %v8063 = vpop.permute.xlu0 %8062
  %8066 = vset.pattern.permute.xlu0 0
  %8067 = vperm.xlu0 %8066, %v7692
  %v8068 = vpop.permute.xlu0 %8067
  %8071 = vset.pattern.permute.xlu0 0
  %8072 = vperm.xlu0 %8071, %v7693
  %v8073 = vpop.permute.xlu0 %8072
  %8076 = vset.pattern.permute.xlu0 0
  %8077 = vperm.xlu0 %8076, %v7694
  %v8078 = vpop.permute.xlu0 %8077
  %8081 = vset.pattern.permute.xlu0 0
  %8082 = vperm.xlu0 %8081, %v7695
  %v8083 = vpop.permute.xlu0 %8082
  %8086 = vset.pattern.permute.xlu0 0
  %8087 = vperm.xlu0 %8086, %v7696
  %v8088 = vpop.permute.xlu0 %8087
  %8091 = vset.pattern.permute.xlu0 0
  %8092 = vperm.xlu0 %8091, %v7697
  %v8093 = vpop.permute.xlu0 %8092
  %8096 = vset.pattern.permute.xlu0 0
  %8097 = vperm.xlu0 %8096, %v7698
  %v8098 = vpop.permute.xlu0 %8097
  %8101 = vset.pattern.permute.xlu0 0
  %8102 = vperm.xlu0 %8101, %v7699
  %v8103 = vpop.permute.xlu0 %8102
  %v8105 = vadd.f32 %v7538, %v7703
  %v8106 = vadd.f32 %v7539, %v7708
  %v8107 = vadd.f32 %v7540, %v7713
  %v8108 = vadd.f32 %v7541, %v7718
  %v8109 = vadd.f32 %v7542, %v7723
  %v8110 = vadd.f32 %v7543, %v7728
  %v8111 = vadd.f32 %v7544, %v7733
  %v8112 = vadd.f32 %v7545, %v7738
  %v8113 = vadd.f32 %v7546, %v7743
  %v8114 = vadd.f32 %v7547, %v7748
  %v8115 = vadd.f32 %v7548, %v7753
  %v8116 = vadd.f32 %v7549, %v7758
  %v8117 = vadd.f32 %v7550, %v7763
  %v8118 = vadd.f32 %v7551, %v7768
  %v8119 = vadd.f32 %v7552, %v7773
  %v8120 = vadd.f32 %v7553, %v7778
  %v8121 = vadd.f32 %v7554, %v7783
  %v8122 = vadd.f32 %v7555, %v7788
  %v8123 = vadd.f32 %v7556, %v7793
  %v8124 = vadd.f32 %v7557, %v7798
  %v8125 = vadd.f32 %v7558, %v7803
  %v8126 = vadd.f32 %v7559, %v7808
  %v8127 = vadd.f32 %v7560, %v7813
  %v8128 = vadd.f32 %v7561, %v7818
  %v8129 = vadd.f32 %v7562, %v7823
  %v8130 = vadd.f32 %v7563, %v7828
  %v8131 = vadd.f32 %v7564, %v7833
  %v8132 = vadd.f32 %v7565, %v7838
  %v8133 = vadd.f32 %v7566, %v7843
  %v8134 = vadd.f32 %v7567, %v7848
  %v8135 = vadd.f32 %v7568, %v7853
  %v8136 = vadd.f32 %v7569, %v7858
  %v8137 = vadd.f32 %v7570, %v7863
  %v8138 = vadd.f32 %v7571, %v7868
  %v8139 = vadd.f32 %v7572, %v7873
  %v8140 = vadd.f32 %v7573, %v7878
  %v8141 = vadd.f32 %v7574, %v7883
  %v8142 = vadd.f32 %v7575, %v7888
  %v8143 = vadd.f32 %v7576, %v7893
  %v8144 = vadd.f32 %v7577, %v7898
  %v8145 = vadd.f32 %v7578, %v7903
  %v8146 = vadd.f32 %v7579, %v7908
  %v8147 = vadd.f32 %v7580, %v7913
  %v8148 = vadd.f32 %v7581, %v7918
  %v8149 = vadd.f32 %v7582, %v7923
  %v8150 = vadd.f32 %v7583, %v7928
  %v8151 = vadd.f32 %v7584, %v7933
  %v8152 = vadd.f32 %v7585, %v7938
  %v8153 = vadd.f32 %v7586, %v7943
  %v8154 = vadd.f32 %v7587, %v7948
  %v8155 = vadd.f32 %v7588, %v7953
  %v8156 = vadd.f32 %v7589, %v7958
  %v8157 = vadd.f32 %v7590, %v7963
  %v8158 = vadd.f32 %v7591, %v7968
  %v8159 = vadd.f32 %v7592, %v7973
  %v8160 = vadd.f32 %v7593, %v7978
  %v8161 = vadd.f32 %v7594, %v7983
  %v8162 = vadd.f32 %v7595, %v7988
  %v8163 = vadd.f32 %v7596, %v7993
  %v8164 = vadd.f32 %v7597, %v7998
  %v8165 = vadd.f32 %v7598, %v8003
  %v8166 = vadd.f32 %v7599, %v8008
  %v8167 = vadd.f32 %v7600, %v8013
  %v8168 = vadd.f32 %v7601, %v8018
  %v8169 = vadd.f32 %v7602, %v8023
  %v8170 = vadd.f32 %v7603, %v8028
  %v8171 = vadd.f32 %v7604, %v8033
  %v8172 = vadd.f32 %v7605, %v8038
  %v8173 = vadd.f32 %v7606, %v8043
  %v8174 = vadd.f32 %v7607, %v8048
  %v8175 = vadd.f32 %v7608, %v8053
  %v8176 = vadd.f32 %v7609, %v8058
  %v8177 = vadd.f32 %v7610, %v8063
  %v8178 = vadd.f32 %v7611, %v8068
  %v8179 = vadd.f32 %v7612, %v8073
  %v8180 = vadd.f32 %v7613, %v8078
  %v8181 = vadd.f32 %v7614, %v8083
  %v8182 = vadd.f32 %v7615, %v8088
  %v8183 = vadd.f32 %v7616, %v8093
  %v8184 = vadd.f32 %v7617, %v8098
  %v8185 = vadd.f32 %v7618, %v8103
  %v8186 = vmax.f32 %v8105, 0.0
  %v8187 = vmax.f32 %v8106, 0.0
  %v8188 = vmax.f32 %v8107, 0.0
  %v8189 = vmax.f32 %v8108, 0.0
  %v8190 = vmax.f32 %v8109, 0.0
  %v8191 = vmax.f32 %v8110, 0.0
  %v8192 = vmax.f32 %v8111, 0.0
  %v8193 = vmax.f32 %v8112, 0.0
  %v8194 = vmax.f32 %v8113, 0.0
  %v8195 = vmax.f32 %v8114, 0.0
  %v8196 = vmax.f32 %v8115, 0.0
  %v8197 = vmax.f32 %v8116, 0.0
  %v8198 = vmax.f32 %v8117, 0.0
  %v8199 = vmax.f32 %v8118, 0.0
  %v8200 = vmax.f32 %v8119, 0.0
  %v8201 = vmax.f32 %v8120, 0.0
  %v8202 = vmax.f32 %v8121, 0.0
  %v8203 = vmax.f32 %v8122, 0.0
  %v8204 = vmax.f32 %v8123, 0.0
  %v8205 = vmax.f32 %v8124, 0.0
  %v8206 = vmax.f32 %v8125, 0.0
  %v8207 = vmax.f32 %v8126, 0.0
  %v8208 = vmax.f32 %v8127, 0.0
  %v8209 = vmax.f32 %v8128, 0.0
  %v8210 = vmax.f32 %v8129, 0.0
  %v8211 = vmax.f32 %v8130, 0.0
  %v8212 = vmax.f32 %v8131, 0.0
  %v8213 = vmax.f32 %v8132, 0.0
  %v8214 = vmax.f32 %v8133, 0.0
  %v8215 = vmax.f32 %v8134, 0.0
  %v8216 = vmax.f32 %v8135, 0.0
  %v8217 = vmax.f32 %v8136, 0.0
  %v8218 = vmax.f32 %v8137, 0.0
  %v8219 = vmax.f32 %v8138, 0.0
  %v8220 = vmax.f32 %v8139, 0.0
  %v8221 = vmax.f32 %v8140, 0.0
  %v8222 = vmax.f32 %v8141, 0.0
  %v8223 = vmax.f32 %v8142, 0.0
  %v8224 = vmax.f32 %v8143, 0.0
  %v8225 = vmax.f32 %v8144, 0.0
  %v8226 = vmax.f32 %v8145, 0.0
  %v8227 = vmax.f32 %v8146, 0.0
  %v8228 = vmax.f32 %v8147, 0.0
  %v8229 = vmax.f32 %v8148, 0.0
  %v8230 = vmax.f32 %v8149, 0.0
  %v8231 = vmax.f32 %v8150, 0.0
  %v8232 = vmax.f32 %v8151, 0.0
  %v8233 = vmax.f32 %v8152, 0.0
  %v8234 = vmax.f32 %v8153, 0.0
  %v8235 = vmax.f32 %v8154, 0.0
  %v8236 = vmax.f32 %v8155, 0.0
  %v8237 = vmax.f32 %v8156, 0.0
  %v8238 = vmax.f32 %v8157, 0.0
  %v8239 = vmax.f32 %v8158, 0.0
  %v8240 = vmax.f32 %v8159, 0.0
  %v8241 = vmax.f32 %v8160, 0.0
  %v8242 = vmax.f32 %v8161, 0.0
  %v8243 = vmax.f32 %v8162, 0.0
  %v8244 = vmax.f32 %v8163, 0.0
  %v8245 = vmax.f32 %v8164, 0.0
  %v8246 = vmax.f32 %v8165, 0.0
  %v8247 = vmax.f32 %v8166, 0.0
  %v8248 = vmax.f32 %v8167, 0.0
  %v8249 = vmax.f32 %v8168, 0.0
  %v8250 = vmax.f32 %v8169, 0.0
  %v8251 = vmax.f32 %v8170, 0.0
  %v8252 = vmax.f32 %v8171, 0.0
  %v8253 = vmax.f32 %v8172, 0.0
  %v8254 = vmax.f32 %v8173, 0.0
  %v8255 = vmax.f32 %v8174, 0.0
  %v8256 = vmax.f32 %v8175, 0.0
  %v8257 = vmax.f32 %v8176, 0.0
  %v8258 = vmax.f32 %v8177, 0.0
  %v8259 = vmax.f32 %v8178, 0.0
  %v8260 = vmax.f32 %v8179, 0.0
  %v8261 = vmax.f32 %v8180, 0.0
  %v8262 = vmax.f32 %v8181, 0.0
  %v8263 = vmax.f32 %v8182, 0.0
  %v8264 = vmax.f32 %v8183, 0.0
  %v8265 = vmax.f32 %v8184, 0.0
  %v8266 = vmax.f32 %v8185, 0.0
  %v8267 = vpack.c.bf16 %v8187, %v8186
  %v8268 = vpack.c.bf16 %v8189, %v8188
  %v8269 = vpack.c.bf16 %v8191, %v8190
  %v8270 = vpack.c.bf16 %v8193, %v8192
  %v8271 = vpack.c.bf16 %v8195, %v8194
  %v8272 = vpack.c.bf16 %v8197, %v8196
  %v8273 = vpack.c.bf16 %v8199, %v8198
  %v8274 = vpack.c.bf16 %v8201, %v8200
  %v8275 = vpack.c.bf16 %v8203, %v8202
  %v8276 = vpack.c.bf16 %v8205, %v8204
  %v8277 = vpack.c.bf16 %v8207, %v8206
  %v8278 = vpack.c.bf16 %v8209, %v8208
  %v8279 = vpack.c.bf16 %v8211, %v8210
  %v8280 = vpack.c.bf16 %v8213, %v8212
  %v8281 = vpack.c.bf16 %v8215, %v8214
  %v8282 = vpack.c.bf16 %v8217, %v8216
  %v8283 = vpack.c.bf16 %v8219, %v8218
  %v8284 = vpack.c.bf16 %v8221, %v8220
  %v8285 = vpack.c.bf16 %v8223, %v8222
  %v8286 = vpack.c.bf16 %v8225, %v8224
  %v8287 = vpack.c.bf16 %v8227, %v8226
  %v8288 = vpack.c.bf16 %v8229, %v8228
  %v8289 = vpack.c.bf16 %v8231, %v8230
  %v8290 = vpack.c.bf16 %v8233, %v8232
  %v8291 = vpack.c.bf16 %v8235, %v8234
  %v8292 = vpack.c.bf16 %v8237, %v8236
  %v8293 = vpack.c.bf16 %v8239, %v8238
  %v8294 = vpack.c.bf16 %v8241, %v8240
  %v8295 = vpack.c.bf16 %v8243, %v8242
  %v8296 = vpack.c.bf16 %v8245, %v8244
  %v8297 = vpack.c.bf16 %v8247, %v8246
  %v8298 = vpack.c.bf16 %v8249, %v8248
  %v8299 = vpack.c.bf16 %v8251, %v8250
  %v8300 = vpack.c.bf16 %v8253, %v8252
  %v8301 = vpack.c.bf16 %v8255, %v8254
  %v8302 = vpack.c.bf16 %v8257, %v8256
  %v8303 = vpack.c.bf16 %v8259, %v8258
  %v8304 = vpack.c.bf16 %v8261, %v8260
  %v8305 = vpack.c.bf16 %v8263, %v8262
  %v8306 = vpack.c.bf16 %v8265, %v8264
  %v8307 = vpack.c.bf16 %v8266, %v8266
  %v8308 = vld [vmem:[%s6] sm:$0xff]
  %v8309 = vld [vmem:[%s6 + $0x8] sm:$0xff]
  %v8310 = vld [vmem:[%s6 + $0x10] sm:$0xff]
  %v8311 = vld [vmem:[%s6 + $0x18] sm:$0xff]
  %v8312 = vld [vmem:[%s6 + $0x20] sm:$0xff]
  %v8313 = vld [vmem:[%s6 + $0x28] sm:$0xff]
  %v8314 = vld [vmem:[%s6 + $0x30] sm:$0xff]
  %v8315 = vld [vmem:[%s6 + $0x38] sm:$0xff]
  %v8316 = vld [vmem:[%s6 + $0x40] sm:$0xff]
  %v8317 = vld [vmem:[%s6 + $0x48] sm:$0xff]
  %v8318 = vld [vmem:[%s6 + $0x50] sm:$0xff]
  %v8319 = vld [vmem:[%s6 + $0x58] sm:$0xff]
  %v8320 = vld [vmem:[%s6 + $0x60] sm:$0xff]
  %v8321 = vld [vmem:[%s6 + $0x68] sm:$0xff]
  %v8322 = vld [vmem:[%s6 + $0x70] sm:$0xff]
  %v8323 = vld [vmem:[%s6 + $0x78] sm:$0xff]
  %v8324 = vld [vmem:[%s6 + $0x80] sm:$0xff]
  %v8325 = vld [vmem:[%s6 + $0x88] sm:$0xff]
  %v8326 = vld [vmem:[%s6 + $0x90] sm:$0xff]
  %v8327 = vld [vmem:[%s6 + $0x98] sm:$0xff]
  %v8328 = vld [vmem:[%s6 + $0xa0] sm:$0xff]
  %v8329 = vld [vmem:[%s6 + $0xa8] sm:$0xff]
  %v8330 = vld [vmem:[%s6 + $0xb0] sm:$0xff]
  %v8331 = vld [vmem:[%s6 + $0xb8] sm:$0xff]
  %v8332 = vld [vmem:[%s6 + $0xc0] sm:$0xff]
  %v8333 = vld [vmem:[%s6 + $0xc8] sm:$0xff]
  %v8334 = vld [vmem:[%s6 + $0xd0] sm:$0xff]
  %v8335 = vld [vmem:[%s6 + $0xd8] sm:$0xff]
  %v8336 = vld [vmem:[%s6 + $0xe0] sm:$0xff]
  %v8337 = vld [vmem:[%s6 + $0xe8] sm:$0xff]
  %v8338 = vld [vmem:[%s6 + $0xf0] sm:$0xff]
  %v8339 = vld [vmem:[%s6 + $0xf8] sm:$0xff]
  %v8340 = vld [vmem:[%s6 + $0x100] sm:$0xff]
  %v8341 = vld [vmem:[%s6 + $0x108] sm:$0xff]
  %v8342 = vld [vmem:[%s6 + $0x110] sm:$0xff]
  %v8343 = vld [vmem:[%s6 + $0x118] sm:$0xff]
  %v8344 = vld [vmem:[%s6 + $0x120] sm:$0xff]
  %v8345 = vld [vmem:[%s6 + $0x128] sm:$0xff]
  %v8346 = vld [vmem:[%s6 + $0x130] sm:$0xff]
  %v8347 = vld [vmem:[%s6 + $0x138] sm:$0xff]
  %v8348 = vld [vmem:[%s6 + $0x140] sm:$0xff]
  %v8349 = vld [vmem:[%s6 + $0x148] sm:$0xff]
  %v8350 = vld [vmem:[%s6 + $0x150] sm:$0xff]
  %v8351 = vld [vmem:[%s6 + $0x158] sm:$0xff]
  %v8352 = vld [vmem:[%s6 + $0x160] sm:$0xff]
  %v8353 = vld [vmem:[%s6 + $0x168] sm:$0xff]
  %v8354 = vld [vmem:[%s6 + $0x170] sm:$0xff]
  %v8355 = vld [vmem:[%s6 + $0x178] sm:$0xff]
  %v8356 = vld [vmem:[%s6 + $0x180] sm:$0xff]
  %v8357 = vld [vmem:[%s6 + $0x188] sm:$0xff]
  %v8358 = vld [vmem:[%s6 + $0x190] sm:$0xff]
  %v8359 = vld [vmem:[%s6 + $0x198] sm:$0xff]
  %v8360 = vld [vmem:[%s6 + $0x1a0] sm:$0xff]
  %v8361 = vld [vmem:[%s6 + $0x1a8] sm:$0xff]
  %v8362 = vld [vmem:[%s6 + $0x1b0] sm:$0xff]
  %v8363 = vld [vmem:[%s6 + $0x1b8] sm:$0xff]
  %v8364 = vld [vmem:[%s6 + $0x1c0] sm:$0xff]
  %v8365 = vld [vmem:[%s6 + $0x1c8] sm:$0xff]
  %v8366 = vld [vmem:[%s6 + $0x1d0] sm:$0xff]
  %v8367 = vld [vmem:[%s6 + $0x1d8] sm:$0xff]
  %v8368 = vld [vmem:[%s6 + $0x1e0] sm:$0xff]
  %v8369 = vld [vmem:[%s6 + $0x1e8] sm:$0xff]
  %v8370 = vld [vmem:[%s6 + $0x1f0] sm:$0xff]
  %v8371 = vld [vmem:[%s6 + $0x1f8] sm:$0xff]
  %v8372 = vld [vmem:[%s6 + $0x200] sm:$0xff]
  %v8373 = vld [vmem:[%s6 + $0x208] sm:$0xff]
  %v8374 = vld [vmem:[%s6 + $0x210] sm:$0xff]
  %v8375 = vld [vmem:[%s6 + $0x218] sm:$0xff]
  %v8376 = vld [vmem:[%s6 + $0x220] sm:$0xff]
  %v8377 = vld [vmem:[%s6 + $0x228] sm:$0xff]
  %v8378 = vld [vmem:[%s6 + $0x230] sm:$0xff]
  %v8379 = vld [vmem:[%s6 + $0x238] sm:$0xff]
  %v8380 = vld [vmem:[%s6 + $0x240] sm:$0xff]
  %v8381 = vld [vmem:[%s6 + $0x248] sm:$0xff]
  %v8382 = vld [vmem:[%s6 + $0x250] sm:$0xff]
  %v8383 = vld [vmem:[%s6 + $0x258] sm:$0xff]
  %v8384 = vld [vmem:[%s6 + $0x260] sm:$0xff]
  %v8385 = vld [vmem:[%s6 + $0x268] sm:$0xff]
  %v8386 = vld [vmem:[%s6 + $0x270] sm:$0xff]
  %v8387 = vld [vmem:[%s6 + $0x278] sm:$0xff]
  %v8388 = vld [vmem:[%s6 + $0x280] sm:$0xff]
  %v8389 = vld [vmem:[%s6 + $0x288] sm:$0xff]
  %v8390 = vld [vmem:[%s6 + $0x290] sm:$0xff]
  %v8391 = vld [vmem:[%s6 + $0x298] sm:$0xff]
  %v8392 = vld [vmem:[%s6 + $0x2a0] sm:$0xff]
  %v8393 = vld [vmem:[%s6 + $0x2a8] sm:$0xff]
  %v8394 = vld [vmem:[%s6 + $0x2b0] sm:$0xff]
  %v8395 = vld [vmem:[%s6 + $0x2b8] sm:$0xff]
  %v8396 = vld [vmem:[%s6 + $0x2c0] sm:$0xff]
  %v8397 = vld [vmem:[%s6 + $0x2c8] sm:$0xff]
  %v8398 = vld [vmem:[%s6 + $0x2d0] sm:$0xff]
  %v8399 = vld [vmem:[%s6 + $0x2d8] sm:$0xff]
  %v8400 = vld [vmem:[%s6 + $0x2e0] sm:$0xff]
  %v8401 = vld [vmem:[%s6 + $0x2e8] sm:$0xff]
  %v8402 = vld [vmem:[%s6 + $0x2f0] sm:$0xff]
  %v8403 = vld [vmem:[%s6 + $0x2f8] sm:$0xff]
  %v8500 = vunpack.c.l.b16 %v8308
  %v8501 = vunpack.c.h.b16 %v8308
  %v8502 = vunpack.c.l.b16 %v8309
  %v8503 = vunpack.c.h.b16 %v8309
  %v8504 = vunpack.c.l.b16 %v8310
  %v8505 = vunpack.c.h.b16 %v8310
  %v8506 = vunpack.c.l.b16 %v8311
  %v8507 = vunpack.c.h.b16 %v8311
  %v8508 = vunpack.c.l.b16 %v8312
  %v8509 = vunpack.c.h.b16 %v8312
  %v8510 = vunpack.c.l.b16 %v8313
  %v8511 = vunpack.c.h.b16 %v8313
  %v8512 = vunpack.c.l.b16 %v8314
  %v8513 = vunpack.c.h.b16 %v8314
  %v8514 = vunpack.c.l.b16 %v8315
  %v8515 = vunpack.c.h.b16 %v8315
  %v8516 = vunpack.c.l.b16 %v8316
  %v8517 = vunpack.c.h.b16 %v8316
  %v8518 = vunpack.c.l.b16 %v8317
  %v8519 = vunpack.c.h.b16 %v8317
  %v8520 = vunpack.c.l.b16 %v8318
  %v8521 = vunpack.c.h.b16 %v8318
  %v8522 = vunpack.c.l.b16 %v8319
  %v8523 = vunpack.c.h.b16 %v8319
  %v8524 = vunpack.c.l.b16 %v8320
  %v8525 = vunpack.c.h.b16 %v8320
  %v8526 = vunpack.c.l.b16 %v8321
  %v8527 = vunpack.c.h.b16 %v8321
  %v8528 = vunpack.c.l.b16 %v8322
  %v8529 = vunpack.c.h.b16 %v8322
  %v8530 = vunpack.c.l.b16 %v8323
  %v8531 = vunpack.c.h.b16 %v8323
  %v8532 = vunpack.c.l.b16 %v8324
  %v8533 = vunpack.c.h.b16 %v8324
  %v8534 = vunpack.c.l.b16 %v8325
  %v8535 = vunpack.c.h.b16 %v8325
  %v8536 = vunpack.c.l.b16 %v8326
  %v8537 = vunpack.c.h.b16 %v8326
  %v8538 = vunpack.c.l.b16 %v8327
  %v8539 = vunpack.c.h.b16 %v8327
  %v8540 = vunpack.c.l.b16 %v8328
  %v8541 = vunpack.c.h.b16 %v8328
  %v8542 = vunpack.c.l.b16 %v8329
  %v8543 = vunpack.c.h.b16 %v8329
  %v8544 = vunpack.c.l.b16 %v8330
  %v8545 = vunpack.c.h.b16 %v8330
  %v8546 = vunpack.c.l.b16 %v8331
  %v8547 = vunpack.c.h.b16 %v8331
  %v8548 = vunpack.c.l.b16 %v8332
  %v8549 = vunpack.c.h.b16 %v8332
  %v8550 = vunpack.c.l.b16 %v8333
  %v8551 = vunpack.c.h.b16 %v8333
  %v8552 = vunpack.c.l.b16 %v8334
  %v8553 = vunpack.c.h.b16 %v8334
  %v8554 = vunpack.c.l.b16 %v8335
  %v8555 = vunpack.c.h.b16 %v8335
  %v8556 = vunpack.c.l.b16 %v8336
  %v8557 = vunpack.c.h.b16 %v8336
  %v8558 = vunpack.c.l.b16 %v8337
  %v8559 = vunpack.c.h.b16 %v8337
  %v8560 = vunpack.c.l.b16 %v8338
  %v8561 = vunpack.c.h.b16 %v8338
  %v8562 = vunpack.c.l.b16 %v8339
  %v8563 = vunpack.c.h.b16 %v8339
  %v8564 = vunpack.c.l.b16 %v8340
  %v8565 = vunpack.c.h.b16 %v8340
  %v8566 = vunpack.c.l.b16 %v8341
  %v8567 = vunpack.c.h.b16 %v8341
  %v8568 = vunpack.c.l.b16 %v8342
  %v8569 = vunpack.c.h.b16 %v8342
  %v8570 = vunpack.c.l.b16 %v8343
  %v8571 = vunpack.c.h.b16 %v8343
  %v8572 = vunpack.c.l.b16 %v8344
  %v8573 = vunpack.c.h.b16 %v8344
  %v8574 = vunpack.c.l.b16 %v8345
  %v8575 = vunpack.c.h.b16 %v8345
  %v8576 = vunpack.c.l.b16 %v8346
  %v8577 = vunpack.c.h.b16 %v8346
  %v8578 = vunpack.c.l.b16 %v8347
  %v8579 = vunpack.c.h.b16 %v8347
  %v8580 = vunpack.c.l.b16 %v8348
  %v8581 = vunpack.c.h.b16 %v8348
  %v8582 = vunpack.c.l.b16 %v8349
  %v8583 = vunpack.c.h.b16 %v8349
  %v8584 = vunpack.c.l.b16 %v8350
  %v8585 = vunpack.c.h.b16 %v8350
  %v8586 = vunpack.c.l.b16 %v8351
  %v8587 = vunpack.c.h.b16 %v8351
  %v8588 = vunpack.c.l.b16 %v8352
  %v8589 = vunpack.c.h.b16 %v8352
  %v8590 = vunpack.c.l.b16 %v8353
  %v8591 = vunpack.c.h.b16 %v8353
  %v8592 = vunpack.c.l.b16 %v8354
  %v8593 = vunpack.c.h.b16 %v8354
  %v8594 = vunpack.c.l.b16 %v8355
  %v8595 = vunpack.c.h.b16 %v8355
  %v8596 = vunpack.c.l.b16 %v8356
  %v8597 = vunpack.c.h.b16 %v8356
  %v8598 = vunpack.c.l.b16 %v8357
  %v8599 = vunpack.c.h.b16 %v8357
  %v8600 = vunpack.c.l.b16 %v8358
  %v8601 = vunpack.c.h.b16 %v8358
  %v8602 = vunpack.c.l.b16 %v8359
  %v8603 = vunpack.c.h.b16 %v8359
  %v8604 = vunpack.c.l.b16 %v8360
  %v8605 = vunpack.c.h.b16 %v8360
  %v8606 = vunpack.c.l.b16 %v8361
  %v8607 = vunpack.c.h.b16 %v8361
  %v8608 = vunpack.c.l.b16 %v8362
  %v8609 = vunpack.c.h.b16 %v8362
  %v8610 = vunpack.c.l.b16 %v8363
  %v8611 = vunpack.c.h.b16 %v8363
  %v8612 = vunpack.c.l.b16 %v8364
  %v8613 = vunpack.c.h.b16 %v8364
  %v8614 = vunpack.c.l.b16 %v8365
  %v8615 = vunpack.c.h.b16 %v8365
  %v8616 = vunpack.c.l.b16 %v8366
  %v8617 = vunpack.c.h.b16 %v8366
  %v8618 = vunpack.c.l.b16 %v8367
  %v8619 = vunpack.c.h.b16 %v8367
  %v8620 = vunpack.c.l.b16 %v8368
  %v8621 = vunpack.c.h.b16 %v8368
  %v8622 = vunpack.c.l.b16 %v8369
  %v8623 = vunpack.c.h.b16 %v8369
  %v8624 = vunpack.c.l.b16 %v8370
  %v8625 = vunpack.c.h.b16 %v8370
  %v8626 = vunpack.c.l.b16 %v8371
  %v8627 = vunpack.c.h.b16 %v8371
  %v8628 = vunpack.c.l.b16 %v8372
  %v8629 = vunpack.c.h.b16 %v8372
  %v8630 = vunpack.c.l.b16 %v8373
  %v8631 = vunpack.c.h.b16 %v8373
  %v8632 = vunpack.c.l.b16 %v8374
  %v8633 = vunpack.c.h.b16 %v8374
  %v8634 = vunpack.c.l.b16 %v8375
  %v8635 = vunpack.c.h.b16 %v8375
  %v8636 = vunpack.c.l.b16 %v8376
  %v8637 = vunpack.c.h.b16 %v8376
  %v8638 = vunpack.c.l.b16 %v8377
  %v8639 = vunpack.c.h.b16 %v8377
  %v8640 = vunpack.c.l.b16 %v8378
  %v8641 = vunpack.c.h.b16 %v8378
  %v8642 = vunpack.c.l.b16 %v8379
  %v8643 = vunpack.c.h.b16 %v8379
  %v8644 = vunpack.c.l.b16 %v8380
  %v8645 = vunpack.c.h.b16 %v8380
  %v8646 = vunpack.c.l.b16 %v8381
  %v8647 = vunpack.c.h.b16 %v8381
  %v8648 = vunpack.c.l.b16 %v8382
  %v8649 = vunpack.c.h.b16 %v8382
  %v8650 = vunpack.c.l.b16 %v8383
  %v8651 = vunpack.c.h.b16 %v8383
  %v8652 = vunpack.c.l.b16 %v8384
  %v8653 = vunpack.c.h.b16 %v8384
  %v8654 = vunpack.c.l.b16 %v8385
  %v8655 = vunpack.c.h.b16 %v8385
  %v8656 = vunpack.c.l.b16 %v8386
  %v8657 = vunpack.c.h.b16 %v8386
  %v8658 = vunpack.c.l.b16 %v8387
  %v8659 = vunpack.c.h.b16 %v8387
  %v8660 = vunpack.c.l.b16 %v8388
  %v8661 = vunpack.c.h.b16 %v8388
  %v8662 = vunpack.c.l.b16 %v8389
  %v8663 = vunpack.c.h.b16 %v8389
  %v8664 = vunpack.c.l.b16 %v8390
  %v8665 = vunpack.c.h.b16 %v8390
  %v8666 = vunpack.c.l.b16 %v8391
  %v8667 = vunpack.c.h.b16 %v8391
  %v8668 = vunpack.c.l.b16 %v8392
  %v8669 = vunpack.c.h.b16 %v8392
  %v8670 = vunpack.c.l.b16 %v8393
  %v8671 = vunpack.c.h.b16 %v8393
  %v8672 = vunpack.c.l.b16 %v8394
  %v8673 = vunpack.c.h.b16 %v8394
  %v8674 = vunpack.c.l.b16 %v8395
  %v8675 = vunpack.c.h.b16 %v8395
  %v8676 = vunpack.c.l.b16 %v8396
  %v8677 = vunpack.c.h.b16 %v8396
  %v8678 = vunpack.c.l.b16 %v8397
  %v8679 = vunpack.c.h.b16 %v8397
  %v8680 = vunpack.c.l.b16 %v8398
  %v8681 = vunpack.c.h.b16 %v8398
  %v8682 = vunpack.c.l.b16 %v8399
  %v8683 = vunpack.c.h.b16 %v8399
  %v8684 = vunpack.c.l.b16 %v8400
  %v8685 = vunpack.c.h.b16 %v8400
  %v8686 = vunpack.c.l.b16 %v8401
  %v8687 = vunpack.c.h.b16 %v8401
  %v8688 = vunpack.c.l.b16 %v8402
  %v8689 = vunpack.c.h.b16 %v8402
  %v8690 = vunpack.c.l.b16 %v8403
  %v8691 = vunpack.c.h.b16 %v8403
  %v8692 = vpack.c.b16 %v8506, %v8500
  %v8693 = vpack.c.b16 %v8507, %v8501
  %v8694 = vpack.c.b16 %v8508, %v8502
  %v8695 = vpack.c.b16 %v8509, %v8503
  %v8696 = vpack.c.b16 %v8510, %v8504
  %v8697 = vpack.c.b16 %v8511, %v8505
  %v8698 = vpack.c.b16 %v8518, %v8512
  %v8699 = vpack.c.b16 %v8519, %v8513
  %v8700 = vpack.c.b16 %v8520, %v8514
  %v8701 = vpack.c.b16 %v8521, %v8515
  %v8702 = vpack.c.b16 %v8522, %v8516
  %v8703 = vpack.c.b16 %v8523, %v8517
  %v8704 = vpack.c.b16 %v8530, %v8524
  %v8705 = vpack.c.b16 %v8531, %v8525
  %v8706 = vpack.c.b16 %v8532, %v8526
  %v8707 = vpack.c.b16 %v8533, %v8527
  %v8708 = vpack.c.b16 %v8534, %v8528
  %v8709 = vpack.c.b16 %v8535, %v8529
  %v8710 = vpack.c.b16 %v8542, %v8536
  %v8711 = vpack.c.b16 %v8543, %v8537
  %v8712 = vpack.c.b16 %v8544, %v8538
  %v8713 = vpack.c.b16 %v8545, %v8539
  %v8714 = vpack.c.b16 %v8546, %v8540
  %v8715 = vpack.c.b16 %v8547, %v8541
  %v8716 = vpack.c.b16 %v8554, %v8548
  %v8717 = vpack.c.b16 %v8555, %v8549
  %v8718 = vpack.c.b16 %v8556, %v8550
  %v8719 = vpack.c.b16 %v8557, %v8551
  %v8720 = vpack.c.b16 %v8558, %v8552
  %v8721 = vpack.c.b16 %v8559, %v8553
  %v8722 = vpack.c.b16 %v8566, %v8560
  %v8723 = vpack.c.b16 %v8567, %v8561
  %v8724 = vpack.c.b16 %v8568, %v8562
  %v8725 = vpack.c.b16 %v8569, %v8563
  %v8726 = vpack.c.b16 %v8570, %v8564
  %v8727 = vpack.c.b16 %v8571, %v8565
  %v8728 = vpack.c.b16 %v8578, %v8572
  %v8729 = vpack.c.b16 %v8579, %v8573
  %v8730 = vpack.c.b16 %v8580, %v8574
  %v8731 = vpack.c.b16 %v8581, %v8575
  %v8732 = vpack.c.b16 %v8582, %v8576
  %v8733 = vpack.c.b16 %v8583, %v8577
  %v8734 = vpack.c.b16 %v8590, %v8584
  %v8735 = vpack.c.b16 %v8591, %v8585
  %v8736 = vpack.c.b16 %v8592, %v8586
  %v8737 = vpack.c.b16 %v8593, %v8587
  %v8738 = vpack.c.b16 %v8594, %v8588
  %v8739 = vpack.c.b16 %v8595, %v8589
  %v8740 = vpack.c.b16 %v8602, %v8596
  %v8741 = vpack.c.b16 %v8603, %v8597
  %v8742 = vpack.c.b16 %v8604, %v8598
  %v8743 = vpack.c.b16 %v8605, %v8599
  %v8744 = vpack.c.b16 %v8606, %v8600
  %v8745 = vpack.c.b16 %v8607, %v8601
  %v8746 = vpack.c.b16 %v8614, %v8608
  %v8747 = vpack.c.b16 %v8615, %v8609
  %v8748 = vpack.c.b16 %v8616, %v8610
  %v8749 = vpack.c.b16 %v8617, %v8611
  %v8750 = vpack.c.b16 %v8618, %v8612
  %v8751 = vpack.c.b16 %v8619, %v8613
  %v8752 = vpack.c.b16 %v8626, %v8620
  %v8753 = vpack.c.b16 %v8627, %v8621
  %v8754 = vpack.c.b16 %v8628, %v8622
  %v8755 = vpack.c.b16 %v8629, %v8623
  %v8756 = vpack.c.b16 %v8630, %v8624
  %v8757 = vpack.c.b16 %v8631, %v8625
  %v8758 = vpack.c.b16 %v8638, %v8632
  %v8759 = vpack.c.b16 %v8639, %v8633
  %v8760 = vpack.c.b16 %v8640, %v8634
  %v8761 = vpack.c.b16 %v8641, %v8635
  %v8762 = vpack.c.b16 %v8642, %v8636
  %v8763 = vpack.c.b16 %v8643, %v8637
  %v8764 = vpack.c.b16 %v8650, %v8644
  %v8765 = vpack.c.b16 %v8651, %v8645
  %v8766 = vpack.c.b16 %v8652, %v8646
  %v8767 = vpack.c.b16 %v8653, %v8647
  %v8768 = vpack.c.b16 %v8654, %v8648
  %v8769 = vpack.c.b16 %v8655, %v8649
  %v8770 = vpack.c.b16 %v8662, %v8656
  %v8771 = vpack.c.b16 %v8663, %v8657
  %v8772 = vpack.c.b16 %v8664, %v8658
  %v8773 = vpack.c.b16 %v8665, %v8659
  %v8774 = vpack.c.b16 %v8666, %v8660
  %v8775 = vpack.c.b16 %v8667, %v8661
  %v8776 = vpack.c.b16 %v8674, %v8668
  %v8777 = vpack.c.b16 %v8675, %v8669
  %v8778 = vpack.c.b16 %v8676, %v8670
  %v8779 = vpack.c.b16 %v8677, %v8671
  %v8780 = vpack.c.b16 %v8678, %v8672
  %v8781 = vpack.c.b16 %v8679, %v8673
  %v8782 = vpack.c.b16 %v8686, %v8680
  %v8783 = vpack.c.b16 %v8687, %v8681
  %v8784 = vpack.c.b16 %v8688, %v8682
  %v8785 = vpack.c.b16 %v8689, %v8683
  %v8786 = vpack.c.b16 %v8690, %v8684
  %v8787 = vpack.c.b16 %v8691, %v8685
  %vm8868 = vcmask 64512
  %v8870 = vsel %vm8868, %v8697, 0
  %v8873 = vsel %vm8868, %v8703, 0
  %v8876 = vsel %vm8868, %v8709, 0
  %v8879 = vsel %vm8868, %v8715, 0
  %v8882 = vsel %vm8868, %v8721, 0
  %v8885 = vsel %vm8868, %v8727, 0
  %v8888 = vsel %vm8868, %v8733, 0
  %v8891 = vsel %vm8868, %v8739, 0
  %v8894 = vsel %vm8868, %v8745, 0
  %v8897 = vsel %vm8868, %v8751, 0
  %v8900 = vsel %vm8868, %v8757, 0
  %v8903 = vsel %vm8868, %v8763, 0
  %v8906 = vsel %vm8868, %v8769, 0
  %v8909 = vsel %vm8868, %v8775, 0
  %v8912 = vsel %vm8868, %v8781, 0
  %v8915 = vsel %vm8868, %v8787, 0
  %vm8917 = vcmask 1043456
  %v8919 = vsel %vm8917, %v8307, 0
  %8921 = vmatprep.subr.bf16.mxu0 0
  %8922 = vmatpush1.bf16.msra.mxu0 %v8274
  %8923 = vmatprep.subr.bf16.mxu0 0
  %8924 = vmatpush1.bf16.msra.mxu0 %v8273
  %8925 = vmatprep.subr.bf16.mxu0 0
  %8926 = vmatpush1.bf16.msra.mxu0 %v8272
  %8927 = vmatprep.subr.bf16.mxu0 0
  %8928 = vmatpush1.bf16.msra.mxu0 %v8271
  %8929 = vmatprep.subr.bf16.mxu0 0
  %8930 = vmatpush1.bf16.msra.mxu0 %v8270
  %8931 = vmatprep.subr.bf16.mxu0 0
  %8932 = vmatpush1.bf16.msra.mxu0 %v8269
  %8933 = vmatprep.subr.bf16.mxu0 0
  %8934 = vmatpush1.bf16.msra.mxu0 %v8268
  %8935 = vmatprep.subr.bf16.mxu0 0
  %8936 = vmatpush1.bf16.msra.mxu0 %v8267
  %8937 = vmatprep.subr.bf16.mxu0 0
  %8938 = vmatpush2.bf16.msra.mxu0 %v8282
  %8939 = vmatprep.subr.bf16.mxu0 0
  %8940 = vmatpush2.bf16.msra.mxu0 %v8281
  %8941 = vmatprep.subr.bf16.mxu0 0
  %8942 = vmatpush2.bf16.msra.mxu0 %v8280
  %8943 = vmatprep.subr.bf16.mxu0 0
  %8944 = vmatpush2.bf16.msra.mxu0 %v8279
  %8945 = vmatprep.subr.bf16.mxu0 0
  %8946 = vmatpush2.bf16.msra.mxu0 %v8278
  %8947 = vmatprep.subr.bf16.mxu0 0
  %8948 = vmatpush2.bf16.msra.mxu0 %v8277
  %8949 = vmatprep.subr.bf16.mxu0 0
  %8950 = vmatpush2.bf16.msra.mxu0 %v8276
  %8951 = vmatprep.subr.bf16.mxu0 0
  %8952 = vmatpush2.bf16.msra.mxu0 %v8275
  %8953 = vmatprep.mubr.bf16.mxu0 %v8693
  %8954 = vmatmul.mubr.bf16.gmra.mxu0 %v8692
  %v8955 = vpop.f32.mrf.mxu0
  %v8956 = vadd.f32 0.0, %v8955
  %v8957 = vpop.f32.mrf.mxu0
  %v8958 = vpop.f32.mrf.mxu0
  %v8959 = vadd.f32 0.0, %v8958
  %v8960 = vpop.f32.mrf.mxu0
  %8961 = vmatprep.mubr.bf16.mxu0 %v8699
  %8962 = vmatmul.mubr.bf16.gmra.mxu0 %v8698
  %v8963 = vpop.f32.mrf.mxu0
  %v8964 = vadd.f32 0.0, %v8963
  %v8965 = vpop.f32.mrf.mxu0
  %v8966 = vpop.f32.mrf.mxu0
  %v8967 = vadd.f32 0.0, %v8966
  %v8968 = vpop.f32.mrf.mxu0
  %8969 = vmatprep.mubr.bf16.mxu0 %v8705
  %8970 = vmatmul.mubr.bf16.gmra.mxu0 %v8704
  %v8971 = vpop.f32.mrf.mxu0
  %v8972 = vadd.f32 0.0, %v8971
  %v8973 = vpop.f32.mrf.mxu0
  %v8974 = vpop.f32.mrf.mxu0
  %v8975 = vadd.f32 0.0, %v8974
  %v8976 = vpop.f32.mrf.mxu0
  %8977 = vmatprep.mubr.bf16.mxu0 %v8711
  %8978 = vmatmul.mubr.bf16.gmra.mxu0 %v8710
  %v8979 = vpop.f32.mrf.mxu0
  %v8980 = vadd.f32 0.0, %v8979
  %v8981 = vpop.f32.mrf.mxu0
  %v8982 = vpop.f32.mrf.mxu0
  %v8983 = vadd.f32 0.0, %v8982
  %v8984 = vpop.f32.mrf.mxu0
  %8985 = vmatprep.mubr.bf16.mxu0 %v8717
  %8986 = vmatmul.mubr.bf16.gmra.mxu0 %v8716
  %v8987 = vpop.f32.mrf.mxu0
  %v8988 = vadd.f32 0.0, %v8987
  %v8989 = vpop.f32.mrf.mxu0
  %v8990 = vpop.f32.mrf.mxu0
  %v8991 = vadd.f32 0.0, %v8990
  %v8992 = vpop.f32.mrf.mxu0
  %8993 = vmatprep.mubr.bf16.mxu0 %v8723
  %8994 = vmatmul.mubr.bf16.gmra.mxu0 %v8722
  %v8995 = vpop.f32.mrf.mxu0
  %v8996 = vadd.f32 0.0, %v8995
  %v8997 = vpop.f32.mrf.mxu0
  %v8998 = vpop.f32.mrf.mxu0
  %v8999 = vadd.f32 0.0, %v8998
  %v9000 = vpop.f32.mrf.mxu0
  %9001 = vmatprep.mubr.bf16.mxu0 %v8729
  %9002 = vmatmul.mubr.bf16.gmra.mxu0 %v8728
  %v9003 = vpop.f32.mrf.mxu0
  %v9004 = vadd.f32 0.0, %v9003
  %v9005 = vpop.f32.mrf.mxu0
  %v9006 = vpop.f32.mrf.mxu0
  %v9007 = vadd.f32 0.0, %v9006
  %v9008 = vpop.f32.mrf.mxu0
  %9009 = vmatprep.mubr.bf16.mxu0 %v8735
  %9010 = vmatmul.mubr.bf16.gmra.mxu0 %v8734
  %v9011 = vpop.f32.mrf.mxu0
  %v9012 = vadd.f32 0.0, %v9011
  %v9013 = vpop.f32.mrf.mxu0
  %v9014 = vpop.f32.mrf.mxu0
  %v9015 = vadd.f32 0.0, %v9014
  %v9016 = vpop.f32.mrf.mxu0
  %9017 = vmatprep.mubr.bf16.mxu0 %v8741
  %9018 = vmatmul.mubr.bf16.gmra.mxu0 %v8740
  %v9019 = vpop.f32.mrf.mxu0
  %v9020 = vadd.f32 0.0, %v9019
  %v9021 = vpop.f32.mrf.mxu0
  %v9022 = vpop.f32.mrf.mxu0
  %v9023 = vadd.f32 0.0, %v9022
  %v9024 = vpop.f32.mrf.mxu0
  %9025 = vmatprep.mubr.bf16.mxu0 %v8747
  %9026 = vmatmul.mubr.bf16.gmra.mxu0 %v8746
  %v9027 = vpop.f32.mrf.mxu0
  %v9028 = vadd.f32 0.0, %v9027
  %v9029 = vpop.f32.mrf.mxu0
  %v9030 = vpop.f32.mrf.mxu0
  %v9031 = vadd.f32 0.0, %v9030
  %v9032 = vpop.f32.mrf.mxu0
  %9033 = vmatprep.mubr.bf16.mxu0 %v8753
  %9034 = vmatmul.mubr.bf16.gmra.mxu0 %v8752
  %v9035 = vpop.f32.mrf.mxu0
  %v9036 = vadd.f32 0.0, %v9035
  %v9037 = vpop.f32.mrf.mxu0
  %v9038 = vpop.f32.mrf.mxu0
  %v9039 = vadd.f32 0.0, %v9038
  %v9040 = vpop.f32.mrf.mxu0
  %9041 = vmatprep.mubr.bf16.mxu0 %v8759
  %9042 = vmatmul.mubr.bf16.gmra.mxu0 %v8758
  %v9043 = vpop.f32.mrf.mxu0
  %v9044 = vadd.f32 0.0, %v9043
  %v9045 = vpop.f32.mrf.mxu0
  %v9046 = vpop.f32.mrf.mxu0
  %v9047 = vadd.f32 0.0, %v9046
  %v9048 = vpop.f32.mrf.mxu0
  %9049 = vmatprep.mubr.bf16.mxu0 %v8765
  %9050 = vmatmul.mubr.bf16.gmra.mxu0 %v8764
  %v9051 = vpop.f32.mrf.mxu0
  %v9052 = vadd.f32 0.0, %v9051
  %v9053 = vpop.f32.mrf.mxu0
  %v9054 = vpop.f32.mrf.mxu0
  %v9055 = vadd.f32 0.0, %v9054
  %v9056 = vpop.f32.mrf.mxu0
  %9057 = vmatprep.mubr.bf16.mxu0 %v8771
  %9058 = vmatmul.mubr.bf16.gmra.mxu0 %v8770
  %v9059 = vpop.f32.mrf.mxu0
  %v9060 = vadd.f32 0.0, %v9059
  %v9061 = vpop.f32.mrf.mxu0
  %v9062 = vpop.f32.mrf.mxu0
  %v9063 = vadd.f32 0.0, %v9062
  %v9064 = vpop.f32.mrf.mxu0
  %9065 = vmatprep.mubr.bf16.mxu0 %v8777
  %9066 = vmatmul.mubr.bf16.gmra.mxu0 %v8776
  %v9067 = vpop.f32.mrf.mxu0
  %v9068 = vadd.f32 0.0, %v9067
  %v9069 = vpop.f32.mrf.mxu0
  %v9070 = vpop.f32.mrf.mxu0
  %v9071 = vadd.f32 0.0, %v9070
  %v9072 = vpop.f32.mrf.mxu0
  %9073 = vmatprep.mubr.bf16.mxu0 %v8783
  %9074 = vmatmul.mubr.bf16.gmra.mxu0 %v8782
  %v9075 = vpop.f32.mrf.mxu0
  %v9076 = vadd.f32 0.0, %v9075
  %v9077 = vpop.f32.mrf.mxu0
  %v9078 = vpop.f32.mrf.mxu0
  %v9079 = vadd.f32 0.0, %v9078
  %v9080 = vpop.f32.mrf.mxu0
  %9081 = vdwg.mxu0
  %9082 = vmatprep.subr.bf16.mxu0 0
  %9083 = vmatpush1.bf16.msra.mxu0 %v8290
  %9084 = vmatprep.subr.bf16.mxu0 0
  %9085 = vmatpush1.bf16.msra.mxu0 %v8289
  %9086 = vmatprep.subr.bf16.mxu0 0
  %9087 = vmatpush1.bf16.msra.mxu0 %v8288
  %9088 = vmatprep.subr.bf16.mxu0 0
  %9089 = vmatpush1.bf16.msra.mxu0 %v8287
  %9090 = vmatprep.subr.bf16.mxu0 0
  %9091 = vmatpush1.bf16.msra.mxu0 %v8286
  %9092 = vmatprep.subr.bf16.mxu0 0
  %9093 = vmatpush1.bf16.msra.mxu0 %v8285
  %9094 = vmatprep.subr.bf16.mxu0 0
  %9095 = vmatpush1.bf16.msra.mxu0 %v8284
  %9096 = vmatprep.subr.bf16.mxu0 0
  %9097 = vmatpush1.bf16.msra.mxu0 %v8283
  %9098 = vmatprep.subr.bf16.mxu0 0
  %9099 = vmatpush2.bf16.msra.mxu0 %v8298
  %9100 = vmatprep.subr.bf16.mxu0 0
  %9101 = vmatpush2.bf16.msra.mxu0 %v8297
  %9102 = vmatprep.subr.bf16.mxu0 0
  %9103 = vmatpush2.bf16.msra.mxu0 %v8296
  %9104 = vmatprep.subr.bf16.mxu0 0
  %9105 = vmatpush2.bf16.msra.mxu0 %v8295
  %9106 = vmatprep.subr.bf16.mxu0 0
  %9107 = vmatpush2.bf16.msra.mxu0 %v8294
  %9108 = vmatprep.subr.bf16.mxu0 0
  %9109 = vmatpush2.bf16.msra.mxu0 %v8293
  %9110 = vmatprep.subr.bf16.mxu0 0
  %9111 = vmatpush2.bf16.msra.mxu0 %v8292
  %9112 = vmatprep.subr.bf16.mxu0 0
  %9113 = vmatpush2.bf16.msra.mxu0 %v8291
  %9114 = vmatprep.mubr.bf16.mxu0 %v8695
  %9115 = vmatmul.mubr.bf16.gmra.mxu0 %v8694
  %v9116 = vpop.f32.mrf.mxu0
  %v9117 = vadd.f32 %v8956, %v9116
  %v9118 = vpop.f32.mrf.mxu0
  %v9119 = vpop.f32.mrf.mxu0
  %v9120 = vadd.f32 %v8959, %v9119
  %v9121 = vpop.f32.mrf.mxu0
  %9122 = vmatprep.mubr.bf16.mxu0 %v8701
  %9123 = vmatmul.mubr.bf16.gmra.mxu0 %v8700
  %v9124 = vpop.f32.mrf.mxu0
  %v9125 = vadd.f32 %v8964, %v9124
  %v9126 = vpop.f32.mrf.mxu0
  %v9127 = vpop.f32.mrf.mxu0
  %v9128 = vadd.f32 %v8967, %v9127
  %v9129 = vpop.f32.mrf.mxu0
  %9130 = vmatprep.mubr.bf16.mxu0 %v8707
  %9131 = vmatmul.mubr.bf16.gmra.mxu0 %v8706
  %v9132 = vpop.f32.mrf.mxu0
  %v9133 = vadd.f32 %v8972, %v9132
  %v9134 = vpop.f32.mrf.mxu0
  %v9135 = vpop.f32.mrf.mxu0
  %v9136 = vadd.f32 %v8975, %v9135
  %v9137 = vpop.f32.mrf.mxu0
  %9138 = vmatprep.mubr.bf16.mxu0 %v8713
  %9139 = vmatmul.mubr.bf16.gmra.mxu0 %v8712
  %v9140 = vpop.f32.mrf.mxu0
  %v9141 = vadd.f32 %v8980, %v9140
  %v9142 = vpop.f32.mrf.mxu0
  %v9143 = vpop.f32.mrf.mxu0
  %v9144 = vadd.f32 %v8983, %v9143
  %v9145 = vpop.f32.mrf.mxu0
  %9146 = vmatprep.mubr.bf16.mxu0 %v8719
  %9147 = vmatmul.mubr.bf16.gmra.mxu0 %v8718
  %v9148 = vpop.f32.mrf.mxu0
  %v9149 = vadd.f32 %v8988, %v9148
  %v9150 = vpop.f32.mrf.mxu0
  %v9151 = vpop.f32.mrf.mxu0
  %v9152 = vadd.f32 %v8991, %v9151
  %v9153 = vpop.f32.mrf.mxu0
  %9154 = vmatprep.mubr.bf16.mxu0 %v8725
  %9155 = vmatmul.mubr.bf16.gmra.mxu0 %v8724
  %v9156 = vpop.f32.mrf.mxu0
  %v9157 = vadd.f32 %v8996, %v9156
  %v9158 = vpop.f32.mrf.mxu0
  %v9159 = vpop.f32.mrf.mxu0
  %v9160 = vadd.f32 %v8999, %v9159
  %v9161 = vpop.f32.mrf.mxu0
  %9162 = vmatprep.mubr.bf16.mxu0 %v8731
  %9163 = vmatmul.mubr.bf16.gmra.mxu0 %v8730
  %v9164 = vpop.f32.mrf.mxu0
  %v9165 = vadd.f32 %v9004, %v9164
  %v9166 = vpop.f32.mrf.mxu0
  %v9167 = vpop.f32.mrf.mxu0
  %v9168 = vadd.f32 %v9007, %v9167
  %v9169 = vpop.f32.mrf.mxu0
  %9170 = vmatprep.mubr.bf16.mxu0 %v8737
  %9171 = vmatmul.mubr.bf16.gmra.mxu0 %v8736
  %v9172 = vpop.f32.mrf.mxu0
  %v9173 = vadd.f32 %v9012, %v9172
  %v9174 = vpop.f32.mrf.mxu0
  %v9175 = vpop.f32.mrf.mxu0
  %v9176 = vadd.f32 %v9015, %v9175
  %v9177 = vpop.f32.mrf.mxu0
  %9178 = vmatprep.mubr.bf16.mxu0 %v8743
  %9179 = vmatmul.mubr.bf16.gmra.mxu0 %v8742
  %v9180 = vpop.f32.mrf.mxu0
  %v9181 = vadd.f32 %v9020, %v9180
  %v9182 = vpop.f32.mrf.mxu0
  %v9183 = vpop.f32.mrf.mxu0
  %v9184 = vadd.f32 %v9023, %v9183
  %v9185 = vpop.f32.mrf.mxu0
  %9186 = vmatprep.mubr.bf16.mxu0 %v8749
  %9187 = vmatmul.mubr.bf16.gmra.mxu0 %v8748
  %v9188 = vpop.f32.mrf.mxu0
  %v9189 = vadd.f32 %v9028, %v9188
  %v9190 = vpop.f32.mrf.mxu0
  %v9191 = vpop.f32.mrf.mxu0
  %v9192 = vadd.f32 %v9031, %v9191
  %v9193 = vpop.f32.mrf.mxu0
  %9194 = vmatprep.mubr.bf16.mxu0 %v8755
  %9195 = vmatmul.mubr.bf16.gmra.mxu0 %v8754
  %v9196 = vpop.f32.mrf.mxu0
  %v9197 = vadd.f32 %v9036, %v9196
  %v9198 = vpop.f32.mrf.mxu0
  %v9199 = vpop.f32.mrf.mxu0
  %v9200 = vadd.f32 %v9039, %v9199
  %v9201 = vpop.f32.mrf.mxu0
  %9202 = vmatprep.mubr.bf16.mxu0 %v8761
  %9203 = vmatmul.mubr.bf16.gmra.mxu0 %v8760
  %v9204 = vpop.f32.mrf.mxu0
  %v9205 = vadd.f32 %v9044, %v9204
  %v9206 = vpop.f32.mrf.mxu0
  %v9207 = vpop.f32.mrf.mxu0
  %v9208 = vadd.f32 %v9047, %v9207
  %v9209 = vpop.f32.mrf.mxu0
  %9210 = vmatprep.mubr.bf16.mxu0 %v8767
  %9211 = vmatmul.mubr.bf16.gmra.mxu0 %v8766
  %v9212 = vpop.f32.mrf.mxu0
  %v9213 = vadd.f32 %v9052, %v9212
  %v9214 = vpop.f32.mrf.mxu0
  %v9215 = vpop.f32.mrf.mxu0
  %v9216 = vadd.f32 %v9055, %v9215
  %v9217 = vpop.f32.mrf.mxu0
  %9218 = vmatprep.mubr.bf16.mxu0 %v8773
  %9219 = vmatmul.mubr.bf16.gmra.mxu0 %v8772
  %v9220 = vpop.f32.mrf.mxu0
  %v9221 = vadd.f32 %v9060, %v9220
  %v9222 = vpop.f32.mrf.mxu0
  %v9223 = vpop.f32.mrf.mxu0
  %v9224 = vadd.f32 %v9063, %v9223
  %v9225 = vpop.f32.mrf.mxu0
  %9226 = vmatprep.mubr.bf16.mxu0 %v8779
  %9227 = vmatmul.mubr.bf16.gmra.mxu0 %v8778
  %v9228 = vpop.f32.mrf.mxu0
  %v9229 = vadd.f32 %v9068, %v9228
  %v9230 = vpop.f32.mrf.mxu0
  %v9231 = vpop.f32.mrf.mxu0
  %v9232 = vadd.f32 %v9071, %v9231
  %v9233 = vpop.f32.mrf.mxu0
  %9234 = vmatprep.mubr.bf16.mxu0 %v8785
  %9235 = vmatmul.mubr.bf16.gmra.mxu0 %v8784
  %v9236 = vpop.f32.mrf.mxu0
  %v9237 = vadd.f32 %v9076, %v9236
  %v9238 = vpop.f32.mrf.mxu0
  %v9239 = vpop.f32.mrf.mxu0
  %v9240 = vadd.f32 %v9079, %v9239
  %v9241 = vpop.f32.mrf.mxu0
  %9242 = vdwg.mxu0
  %9243 = vmatprep.subr.bf16.mxu0 0
  %9244 = vmatpush1.bf16.msra.mxu0 %v8306
  %9245 = vmatprep.subr.bf16.mxu0 0
  %9246 = vmatpush1.bf16.msra.mxu0 %v8305
  %9247 = vmatprep.subr.bf16.mxu0 0
  %9248 = vmatpush1.bf16.msra.mxu0 %v8304
  %9249 = vmatprep.subr.bf16.mxu0 0
  %9250 = vmatpush1.bf16.msra.mxu0 %v8303
  %9251 = vmatprep.subr.bf16.mxu0 0
  %9252 = vmatpush1.bf16.msra.mxu0 %v8302
  %9253 = vmatprep.subr.bf16.mxu0 0
  %9254 = vmatpush1.bf16.msra.mxu0 %v8301
  %9255 = vmatprep.subr.bf16.mxu0 0
  %9256 = vmatpush1.bf16.msra.mxu0 %v8300
  %9257 = vmatprep.subr.bf16.mxu0 0
  %9258 = vmatpush1.bf16.msra.mxu0 %v8299
  %9259 = vmatprep.subr.bf16.mxu0 0
  %9260 = vmatpush2.bf16.msra.mxu0 0
  %9261 = vmatprep.subr.bf16.mxu0 0
  %9262 = vmatpush2.bf16.msra.mxu0 0
  %9263 = vmatprep.subr.bf16.mxu0 0
  %9264 = vmatpush2.bf16.msra.mxu0 0
  %9265 = vmatprep.subr.bf16.mxu0 0
  %9266 = vmatpush2.bf16.msra.mxu0 0
  %9267 = vmatprep.subr.bf16.mxu0 0
  %9268 = vmatpush2.bf16.msra.mxu0 0
  %9269 = vmatprep.subr.bf16.mxu0 0
  %9270 = vmatpush2.bf16.msra.mxu0 0
  %9271 = vmatprep.subr.bf16.mxu0 0
  %9272 = vmatpush2.bf16.msra.mxu0 0
  %9273 = vmatprep.subr.bf16.mxu0 0
  %9274 = vmatpush2.bf16.msra.mxu0 %v8919
  %9275 = vmatprep.mubr.bf16.mxu0 %v8870
  %9276 = vmatmul.mubr.bf16.gmra.mxu0 %v8696
  %v9277 = vpop.f32.mrf.mxu0
  %v9278 = vadd.f32 %v9117, %v9277
  %v9279 = vpop.f32.mrf.mxu0
  %v9280 = vpop.f32.mrf.mxu0
  %v9281 = vadd.f32 %v9120, %v9280
  %v9282 = vpop.f32.mrf.mxu0
  %9283 = vmatprep.mubr.bf16.mxu0 %v8873
  %9284 = vmatmul.mubr.bf16.gmra.mxu0 %v8702
  %v9285 = vpop.f32.mrf.mxu0
  %v9286 = vadd.f32 %v9125, %v9285
  %v9287 = vpop.f32.mrf.mxu0
  %v9288 = vpop.f32.mrf.mxu0
  %v9289 = vadd.f32 %v9128, %v9288
  %v9290 = vpop.f32.mrf.mxu0
  %9291 = vmatprep.mubr.bf16.mxu0 %v8876
  %9292 = vmatmul.mubr.bf16.gmra.mxu0 %v8708
  %v9293 = vpop.f32.mrf.mxu0
  %v9294 = vadd.f32 %v9133, %v9293
  %v9295 = vpop.f32.mrf.mxu0
  %v9296 = vpop.f32.mrf.mxu0
  %v9297 = vadd.f32 %v9136, %v9296
  %v9298 = vpop.f32.mrf.mxu0
  %9299 = vmatprep.mubr.bf16.mxu0 %v8879
  %9300 = vmatmul.mubr.bf16.gmra.mxu0 %v8714
  %v9301 = vpop.f32.mrf.mxu0
  %v9302 = vadd.f32 %v9141, %v9301
  %v9303 = vpop.f32.mrf.mxu0
  %v9304 = vpop.f32.mrf.mxu0
  %v9305 = vadd.f32 %v9144, %v9304
  %v9306 = vpop.f32.mrf.mxu0
  %9307 = vmatprep.mubr.bf16.mxu0 %v8882
  %9308 = vmatmul.mubr.bf16.gmra.mxu0 %v8720
  %v9309 = vpop.f32.mrf.mxu0
  %v9310 = vadd.f32 %v9149, %v9309
  %v9311 = vpop.f32.mrf.mxu0
  %v9312 = vpop.f32.mrf.mxu0
  %v9313 = vadd.f32 %v9152, %v9312
  %v9314 = vpop.f32.mrf.mxu0
  %9315 = vmatprep.mubr.bf16.mxu0 %v8885
  %9316 = vmatmul.mubr.bf16.gmra.mxu0 %v8726
  %v9317 = vpop.f32.mrf.mxu0
  %v9318 = vadd.f32 %v9157, %v9317
  %v9319 = vpop.f32.mrf.mxu0
  %v9320 = vpop.f32.mrf.mxu0
  %v9321 = vadd.f32 %v9160, %v9320
  %v9322 = vpop.f32.mrf.mxu0
  %9323 = vmatprep.mubr.bf16.mxu0 %v8888
  %9324 = vmatmul.mubr.bf16.gmra.mxu0 %v8732
  %v9325 = vpop.f32.mrf.mxu0
  %v9326 = vadd.f32 %v9165, %v9325
  %v9327 = vpop.f32.mrf.mxu0
  %v9328 = vpop.f32.mrf.mxu0
  %v9329 = vadd.f32 %v9168, %v9328
  %v9330 = vpop.f32.mrf.mxu0
  %9331 = vmatprep.mubr.bf16.mxu0 %v8891
  %9332 = vmatmul.mubr.bf16.gmra.mxu0 %v8738
  %v9333 = vpop.f32.mrf.mxu0
  %v9334 = vadd.f32 %v9173, %v9333
  %v9335 = vpop.f32.mrf.mxu0
  %v9336 = vpop.f32.mrf.mxu0
  %v9337 = vadd.f32 %v9176, %v9336
  %v9338 = vpop.f32.mrf.mxu0
  %9339 = vmatprep.mubr.bf16.mxu0 %v8894
  %9340 = vmatmul.mubr.bf16.gmra.mxu0 %v8744
  %v9341 = vpop.f32.mrf.mxu0
  %v9342 = vadd.f32 %v9181, %v9341
  %v9343 = vpop.f32.mrf.mxu0
  %v9344 = vpop.f32.mrf.mxu0
  %v9345 = vadd.f32 %v9184, %v9344
  %v9346 = vpop.f32.mrf.mxu0
  %9347 = vmatprep.mubr.bf16.mxu0 %v8897
  %9348 = vmatmul.mubr.bf16.gmra.mxu0 %v8750
  %v9349 = vpop.f32.mrf.mxu0
  %v9350 = vadd.f32 %v9189, %v9349
  %v9351 = vpop.f32.mrf.mxu0
  %v9352 = vpop.f32.mrf.mxu0
  %v9353 = vadd.f32 %v9192, %v9352
  %v9354 = vpop.f32.mrf.mxu0
  %9355 = vmatprep.mubr.bf16.mxu0 %v8900
  %9356 = vmatmul.mubr.bf16.gmra.mxu0 %v8756
  %v9357 = vpop.f32.mrf.mxu0
  %v9358 = vadd.f32 %v9197, %v9357
  %v9359 = vpop.f32.mrf.mxu0
  %v9360 = vpop.f32.mrf.mxu0
  %v9361 = vadd.f32 %v9200, %v9360
  %v9362 = vpop.f32.mrf.mxu0
  %9363 = vmatprep.mubr.bf16.mxu0 %v8903
  %9364 = vmatmul.mubr.bf16.gmra.mxu0 %v8762
  %v9365 = vpop.f32.mrf.mxu0
  %v9366 = vadd.f32 %v9205, %v9365
  %v9367 = vpop.f32.mrf.mxu0
  %v9368 = vpop.f32.mrf.mxu0
  %v9369 = vadd.f32 %v9208, %v9368
  %v9370 = vpop.f32.mrf.mxu0
  %9371 = vmatprep.mubr.bf16.mxu0 %v8906
  %9372 = vmatmul.mubr.bf16.gmra.mxu0 %v8768
  %v9373 = vpop.f32.mrf.mxu0
  %v9374 = vadd.f32 %v9213, %v9373
  %v9375 = vpop.f32.mrf.mxu0
  %v9376 = vpop.f32.mrf.mxu0
  %v9377 = vadd.f32 %v9216, %v9376
  %v9378 = vpop.f32.mrf.mxu0
  %9379 = vmatprep.mubr.bf16.mxu0 %v8909
  %9380 = vmatmul.mubr.bf16.gmra.mxu0 %v8774
  %v9381 = vpop.f32.mrf.mxu0
  %v9382 = vadd.f32 %v9221, %v9381
  %v9383 = vpop.f32.mrf.mxu0
  %v9384 = vpop.f32.mrf.mxu0
  %v9385 = vadd.f32 %v9224, %v9384
  %v9386 = vpop.f32.mrf.mxu0
  %9387 = vmatprep.mubr.bf16.mxu0 %v8912
  %9388 = vmatmul.mubr.bf16.gmra.mxu0 %v8780
  %v9389 = vpop.f32.mrf.mxu0
  %v9390 = vadd.f32 %v9229, %v9389
  %v9391 = vpop.f32.mrf.mxu0
  %v9392 = vpop.f32.mrf.mxu0
  %v9393 = vadd.f32 %v9232, %v9392
  %v9394 = vpop.f32.mrf.mxu0
  %9395 = vmatprep.mubr.bf16.mxu0 %v8915
  %9396 = vmatmul.mubr.bf16.gmra.mxu0 %v8786
  %v9397 = vpop.f32.mrf.mxu0
  %v9398 = vadd.f32 %v9237, %v9397
  %v9399 = vpop.f32.mrf.mxu0
  %v9400 = vpop.f32.mrf.mxu0
  %v9401 = vadd.f32 %v9240, %v9400
  %v9402 = vpop.f32.mrf.mxu0
  %9403 = vdwg.mxu0
  %v9404 = vld [vmem:[%s7] sm:$0xff]
  %v9405 = vld [vmem:[%s7 + $0x8] sm:$0xff]
  %v9406 = vld [vmem:[%s7 + $0x10] sm:$0xff]
  %v9407 = vld [vmem:[%s7 + $0x18] sm:$0xff]
  %v9408 = vld [vmem:[%s7 + $0x20] sm:$0xff]
  %v9409 = vld [vmem:[%s7 + $0x28] sm:$0xff]
  %v9410 = vld [vmem:[%s7 + $0x30] sm:$0xff]
  %v9411 = vld [vmem:[%s7 + $0x38] sm:$0xff]
  %v9412 = vld [vmem:[%s7 + $0x40] sm:$0xff]
  %v9413 = vld [vmem:[%s7 + $0x48] sm:$0xff]
  %v9414 = vld [vmem:[%s7 + $0x50] sm:$0xff]
  %v9415 = vld [vmem:[%s7 + $0x58] sm:$0xff]
  %v9416 = vld [vmem:[%s7 + $0x60] sm:$0xff]
  %v9417 = vld [vmem:[%s7 + $0x68] sm:$0xff]
  %v9418 = vld [vmem:[%s7 + $0x70] sm:$0xff]
  %v9419 = vld [vmem:[%s7 + $0x78] sm:$0xff]
  %v9420 = vld [vmem:[%s7 + $0x80] sm:$0xff]
  %v9421 = vld [vmem:[%s7 + $0x88] sm:$0xff]
  %v9422 = vld [vmem:[%s7 + $0x90] sm:$0xff]
  %v9423 = vld [vmem:[%s7 + $0x98] sm:$0xff]
  %v9424 = vld [vmem:[%s7 + $0xa0] sm:$0xff]
  %v9425 = vld [vmem:[%s7 + $0xa8] sm:$0xff]
  %v9426 = vld [vmem:[%s7 + $0xb0] sm:$0xff]
  %v9427 = vld [vmem:[%s7 + $0xb8] sm:$0xff]
  %v9428 = vld [vmem:[%s7 + $0xc0] sm:$0xff]
  %v9429 = vld [vmem:[%s7 + $0xc8] sm:$0xff]
  %v9430 = vld [vmem:[%s7 + $0xd0] sm:$0xff]
  %v9431 = vld [vmem:[%s7 + $0xd8] sm:$0xff]
  %v9432 = vld [vmem:[%s7 + $0xe0] sm:$0xff]
  %v9433 = vld [vmem:[%s7 + $0xe8] sm:$0xff]
  %v9434 = vld [vmem:[%s7 + $0xf0] sm:$0xff]
  %v9435 = vld [vmem:[%s7 + $0xf8] sm:$0xff]
  %v9436 = vld [vmem:[%s7 + $0x100] sm:$0xff]
  %v9437 = vld [vmem:[%s7 + $0x108] sm:$0xff]
  %v9438 = vld [vmem:[%s7 + $0x110] sm:$0xff]
  %v9439 = vld [vmem:[%s7 + $0x118] sm:$0xff]
  %v9440 = vld [vmem:[%s7 + $0x120] sm:$0xff]
  %v9441 = vld [vmem:[%s7 + $0x128] sm:$0xff]
  %v9442 = vld [vmem:[%s7 + $0x130] sm:$0xff]
  %v9443 = vld [vmem:[%s7 + $0x138] sm:$0xff]
  %v9444 = vld [vmem:[%s7 + $0x140] sm:$0xff]
  %v9445 = vld [vmem:[%s7 + $0x148] sm:$0xff]
  %v9446 = vld [vmem:[%s7 + $0x150] sm:$0xff]
  %v9447 = vld [vmem:[%s7 + $0x158] sm:$0xff]
  %v9448 = vld [vmem:[%s7 + $0x160] sm:$0xff]
  %v9449 = vld [vmem:[%s7 + $0x168] sm:$0xff]
  %v9450 = vld [vmem:[%s7 + $0x170] sm:$0xff]
  %v9451 = vld [vmem:[%s7 + $0x178] sm:$0xff]
  %v9452 = vld [vmem:[%s7 + $0x180] sm:$0xff]
  %v9453 = vld [vmem:[%s7 + $0x188] sm:$0xff]
  %v9454 = vld [vmem:[%s7 + $0x190] sm:$0xff]
  %v9455 = vld [vmem:[%s7 + $0x198] sm:$0xff]
  %v9456 = vld [vmem:[%s7 + $0x1a0] sm:$0xff]
  %v9457 = vld [vmem:[%s7 + $0x1a8] sm:$0xff]
  %v9458 = vld [vmem:[%s7 + $0x1b0] sm:$0xff]
  %v9459 = vld [vmem:[%s7 + $0x1b8] sm:$0xff]
  %v9460 = vld [vmem:[%s7 + $0x1c0] sm:$0xff]
  %v9461 = vld [vmem:[%s7 + $0x1c8] sm:$0xff]
  %v9462 = vld [vmem:[%s7 + $0x1d0] sm:$0xff]
  %v9463 = vld [vmem:[%s7 + $0x1d8] sm:$0xff]
  %v9464 = vld [vmem:[%s7 + $0x1e0] sm:$0xff]
  %v9465 = vld [vmem:[%s7 + $0x1e8] sm:$0xff]
  %v9466 = vld [vmem:[%s7 + $0x1f0] sm:$0xff]
  %v9467 = vld [vmem:[%s7 + $0x1f8] sm:$0xff]
  %v9468 = vld [vmem:[%s7 + $0x200] sm:$0xff]
  %v9469 = vld [vmem:[%s7 + $0x208] sm:$0xff]
  %v9470 = vld [vmem:[%s7 + $0x210] sm:$0xff]
  %v9471 = vld [vmem:[%s7 + $0x218] sm:$0xff]
  %v9472 = vld [vmem:[%s7 + $0x220] sm:$0xff]
  %v9473 = vld [vmem:[%s7 + $0x228] sm:$0xff]
  %v9474 = vld [vmem:[%s7 + $0x230] sm:$0xff]
  %v9475 = vld [vmem:[%s7 + $0x238] sm:$0xff]
  %v9476 = vld [vmem:[%s7 + $0x240] sm:$0xff]
  %v9477 = vld [vmem:[%s7 + $0x248] sm:$0xff]
  %v9478 = vld [vmem:[%s7 + $0x250] sm:$0xff]
  %v9479 = vld [vmem:[%s7 + $0x258] sm:$0xff]
  %v9480 = vld [vmem:[%s7 + $0x260] sm:$0xff]
  %v9481 = vld [vmem:[%s7 + $0x268] sm:$0xff]
  %v9482 = vld [vmem:[%s7 + $0x270] sm:$0xff]
  %v9483 = vld [vmem:[%s7 + $0x278] sm:$0xff]
  %v9484 = vld [vmem:[%s7 + $0x280] sm:$0xff]
  %v9485 = vld [vmem:[%s7 + $0x288] sm:$0xff]
  %v9486 = vld [vmem:[%s7 + $0x290] sm:$0xff]
  %v9487 = vld [vmem:[%s7 + $0x298] sm:$0xff]
  %v9488 = vld [vmem:[%s7 + $0x2a0] sm:$0xff]
  %v9489 = vld [vmem:[%s7 + $0x2a8] sm:$0xff]
  %v9490 = vld [vmem:[%s7 + $0x2b0] sm:$0xff]
  %v9491 = vld [vmem:[%s7 + $0x2b8] sm:$0xff]
  %v9492 = vld [vmem:[%s7 + $0x2c0] sm:$0xff]
  %v9493 = vld [vmem:[%s7 + $0x2c8] sm:$0xff]
  %v9494 = vld [vmem:[%s7 + $0x2d0] sm:$0xff]
  %v9495 = vld [vmem:[%s7 + $0x2d8] sm:$0xff]
  %v9496 = vld [vmem:[%s7 + $0x2e0] sm:$0xff]
  %v9497 = vld [vmem:[%s7 + $0x2e8] sm:$0xff]
  %v9498 = vld [vmem:[%s7 + $0x2f0] sm:$0xff]
  %v9499 = vld [vmem:[%s7 + $0x2f8] sm:$0xff]
  %v9596 = vunpack.c.l.b16 %v9404
  %v9597 = vunpack.c.h.b16 %v9404
  %v9598 = vunpack.c.l.b16 %v9405
  %v9599 = vunpack.c.h.b16 %v9405
  %v9600 = vunpack.c.l.b16 %v9406
  %v9601 = vunpack.c.h.b16 %v9406
  %v9602 = vunpack.c.l.b16 %v9407
  %v9603 = vunpack.c.h.b16 %v9407
  %v9604 = vunpack.c.l.b16 %v9408
  %v9605 = vunpack.c.h.b16 %v9408
  %v9606 = vunpack.c.l.b16 %v9409
  %v9607 = vunpack.c.h.b16 %v9409
  %v9608 = vunpack.c.l.b16 %v9410
  %v9609 = vunpack.c.h.b16 %v9410
  %v9610 = vunpack.c.l.b16 %v9411
  %v9611 = vunpack.c.h.b16 %v9411
  %v9612 = vunpack.c.l.b16 %v9412
  %v9613 = vunpack.c.h.b16 %v9412
  %v9614 = vunpack.c.l.b16 %v9413
  %v9615 = vunpack.c.h.b16 %v9413
  %v9616 = vunpack.c.l.b16 %v9414
  %v9617 = vunpack.c.h.b16 %v9414
  %v9618 = vunpack.c.l.b16 %v9415
  %v9619 = vunpack.c.h.b16 %v9415
  %v9620 = vunpack.c.l.b16 %v9416
  %v9621 = vunpack.c.h.b16 %v9416
  %v9622 = vunpack.c.l.b16 %v9417
  %v9623 = vunpack.c.h.b16 %v9417
  %v9624 = vunpack.c.l.b16 %v9418
  %v9625 = vunpack.c.h.b16 %v9418
  %v9626 = vunpack.c.l.b16 %v9419
  %v9627 = vunpack.c.h.b16 %v9419
  %v9628 = vunpack.c.l.b16 %v9420
  %v9629 = vunpack.c.h.b16 %v9420
  %v9630 = vunpack.c.l.b16 %v9421
  %v9631 = vunpack.c.h.b16 %v9421
  %v9632 = vunpack.c.l.b16 %v9422
  %v9633 = vunpack.c.h.b16 %v9422
  %v9634 = vunpack.c.l.b16 %v9423
  %v9635 = vunpack.c.h.b16 %v9423
  %v9636 = vunpack.c.l.b16 %v9424
  %v9637 = vunpack.c.h.b16 %v9424
  %v9638 = vunpack.c.l.b16 %v9425
  %v9639 = vunpack.c.h.b16 %v9425
  %v9640 = vunpack.c.l.b16 %v9426
  %v9641 = vunpack.c.h.b16 %v9426
  %v9642 = vunpack.c.l.b16 %v9427
  %v9643 = vunpack.c.h.b16 %v9427
  %v9644 = vunpack.c.l.b16 %v9428
  %v9645 = vunpack.c.h.b16 %v9428
  %v9646 = vunpack.c.l.b16 %v9429
  %v9647 = vunpack.c.h.b16 %v9429
  %v9648 = vunpack.c.l.b16 %v9430
  %v9649 = vunpack.c.h.b16 %v9430
  %v9650 = vunpack.c.l.b16 %v9431
  %v9651 = vunpack.c.h.b16 %v9431
  %v9652 = vunpack.c.l.b16 %v9432
  %v9653 = vunpack.c.h.b16 %v9432
  %v9654 = vunpack.c.l.b16 %v9433
  %v9655 = vunpack.c.h.b16 %v9433
  %v9656 = vunpack.c.l.b16 %v9434
  %v9657 = vunpack.c.h.b16 %v9434
  %v9658 = vunpack.c.l.b16 %v9435
  %v9659 = vunpack.c.h.b16 %v9435
  %v9660 = vunpack.c.l.b16 %v9436
  %v9661 = vunpack.c.h.b16 %v9436
  %v9662 = vunpack.c.l.b16 %v9437
  %v9663 = vunpack.c.h.b16 %v9437
  %v9664 = vunpack.c.l.b16 %v9438
  %v9665 = vunpack.c.h.b16 %v9438
  %v9666 = vunpack.c.l.b16 %v9439
  %v9667 = vunpack.c.h.b16 %v9439
  %v9668 = vunpack.c.l.b16 %v9440
  %v9669 = vunpack.c.h.b16 %v9440
  %v9670 = vunpack.c.l.b16 %v9441
  %v9671 = vunpack.c.h.b16 %v9441
  %v9672 = vunpack.c.l.b16 %v9442
  %v9673 = vunpack.c.h.b16 %v9442
  %v9674 = vunpack.c.l.b16 %v9443
  %v9675 = vunpack.c.h.b16 %v9443
  %v9676 = vunpack.c.l.b16 %v9444
  %v9677 = vunpack.c.h.b16 %v9444
  %v9678 = vunpack.c.l.b16 %v9445
  %v9679 = vunpack.c.h.b16 %v9445
  %v9680 = vunpack.c.l.b16 %v9446
  %v9681 = vunpack.c.h.b16 %v9446
  %v9682 = vunpack.c.l.b16 %v9447
  %v9683 = vunpack.c.h.b16 %v9447
  %v9684 = vunpack.c.l.b16 %v9448
  %v9685 = vunpack.c.h.b16 %v9448
  %v9686 = vunpack.c.l.b16 %v9449
  %v9687 = vunpack.c.h.b16 %v9449
  %v9688 = vunpack.c.l.b16 %v9450
  %v9689 = vunpack.c.h.b16 %v9450
  %v9690 = vunpack.c.l.b16 %v9451
  %v9691 = vunpack.c.h.b16 %v9451
  %v9692 = vunpack.c.l.b16 %v9452
  %v9693 = vunpack.c.h.b16 %v9452
  %v9694 = vunpack.c.l.b16 %v9453
  %v9695 = vunpack.c.h.b16 %v9453
  %v9696 = vunpack.c.l.b16 %v9454
  %v9697 = vunpack.c.h.b16 %v9454
  %v9698 = vunpack.c.l.b16 %v9455
  %v9699 = vunpack.c.h.b16 %v9455
  %v9700 = vunpack.c.l.b16 %v9456
  %v9701 = vunpack.c.h.b16 %v9456
  %v9702 = vunpack.c.l.b16 %v9457
  %v9703 = vunpack.c.h.b16 %v9457
  %v9704 = vunpack.c.l.b16 %v9458
  %v9705 = vunpack.c.h.b16 %v9458
  %v9706 = vunpack.c.l.b16 %v9459
  %v9707 = vunpack.c.h.b16 %v9459
  %v9708 = vunpack.c.l.b16 %v9460
  %v9709 = vunpack.c.h.b16 %v9460
  %v9710 = vunpack.c.l.b16 %v9461
  %v9711 = vunpack.c.h.b16 %v9461
  %v9712 = vunpack.c.l.b16 %v9462
  %v9713 = vunpack.c.h.b16 %v9462
  %v9714 = vunpack.c.l.b16 %v9463
  %v9715 = vunpack.c.h.b16 %v9463
  %v9716 = vunpack.c.l.b16 %v9464
  %v9717 = vunpack.c.h.b16 %v9464
  %v9718 = vunpack.c.l.b16 %v9465
  %v9719 = vunpack.c.h.b16 %v9465
  %v9720 = vunpack.c.l.b16 %v9466
  %v9721 = vunpack.c.h.b16 %v9466
  %v9722 = vunpack.c.l.b16 %v9467
  %v9723 = vunpack.c.h.b16 %v9467
  %v9724 = vunpack.c.l.b16 %v9468
  %v9725 = vunpack.c.h.b16 %v9468
  %v9726 = vunpack.c.l.b16 %v9469
  %v9727 = vunpack.c.h.b16 %v9469
  %v9728 = vunpack.c.l.b16 %v9470
  %v9729 = vunpack.c.h.b16 %v9470
  %v9730 = vunpack.c.l.b16 %v9471
  %v9731 = vunpack.c.h.b16 %v9471
  %v9732 = vunpack.c.l.b16 %v9472
  %v9733 = vunpack.c.h.b16 %v9472
  %v9734 = vunpack.c.l.b16 %v9473
  %v9735 = vunpack.c.h.b16 %v9473
  %v9736 = vunpack.c.l.b16 %v9474
  %v9737 = vunpack.c.h.b16 %v9474
  %v9738 = vunpack.c.l.b16 %v9475
  %v9739 = vunpack.c.h.b16 %v9475
  %v9740 = vunpack.c.l.b16 %v9476
  %v9741 = vunpack.c.h.b16 %v9476
  %v9742 = vunpack.c.l.b16 %v9477
  %v9743 = vunpack.c.h.b16 %v9477
  %v9744 = vunpack.c.l.b16 %v9478
  %v9745 = vunpack.c.h.b16 %v9478
  %v9746 = vunpack.c.l.b16 %v9479
  %v9747 = vunpack.c.h.b16 %v9479
  %v9748 = vunpack.c.l.b16 %v9480
  %v9749 = vunpack.c.h.b16 %v9480
  %v9750 = vunpack.c.l.b16 %v9481
  %v9751 = vunpack.c.h.b16 %v9481
  %v9752 = vunpack.c.l.b16 %v9482
  %v9753 = vunpack.c.h.b16 %v9482
  %v9754 = vunpack.c.l.b16 %v9483
  %v9755 = vunpack.c.h.b16 %v9483
  %v9756 = vunpack.c.l.b16 %v9484
  %v9757 = vunpack.c.h.b16 %v9484
  %v9758 = vunpack.c.l.b16 %v9485
  %v9759 = vunpack.c.h.b16 %v9485
  %v9760 = vunpack.c.l.b16 %v9486
  %v9761 = vunpack.c.h.b16 %v9486
  %v9762 = vunpack.c.l.b16 %v9487
  %v9763 = vunpack.c.h.b16 %v9487
  %v9764 = vunpack.c.l.b16 %v9488
  %v9765 = vunpack.c.h.b16 %v9488
  %v9766 = vunpack.c.l.b16 %v9489
  %v9767 = vunpack.c.h.b16 %v9489
  %v9768 = vunpack.c.l.b16 %v9490
  %v9769 = vunpack.c.h.b16 %v9490
  %v9770 = vunpack.c.l.b16 %v9491
  %v9771 = vunpack.c.h.b16 %v9491
  %v9772 = vunpack.c.l.b16 %v9492
  %v9773 = vunpack.c.h.b16 %v9492
  %v9774 = vunpack.c.l.b16 %v9493
  %v9775 = vunpack.c.h.b16 %v9493
  %v9776 = vunpack.c.l.b16 %v9494
  %v9777 = vunpack.c.h.b16 %v9494
  %v9778 = vunpack.c.l.b16 %v9495
  %v9779 = vunpack.c.h.b16 %v9495
  %v9780 = vunpack.c.l.b16 %v9496
  %v9781 = vunpack.c.h.b16 %v9496
  %v9782 = vunpack.c.l.b16 %v9497
  %v9783 = vunpack.c.h.b16 %v9497
  %v9784 = vunpack.c.l.b16 %v9498
  %v9785 = vunpack.c.h.b16 %v9498
  %v9786 = vunpack.c.l.b16 %v9499
  %v9787 = vunpack.c.h.b16 %v9499
  %v9788 = vpack.c.b16 %v9602, %v9596
  %v9789 = vpack.c.b16 %v9603, %v9597
  %v9790 = vpack.c.b16 %v9604, %v9598
  %v9791 = vpack.c.b16 %v9605, %v9599
  %v9792 = vpack.c.b16 %v9606, %v9600
  %v9793 = vpack.c.b16 %v9607, %v9601
  %v9794 = vpack.c.b16 %v9614, %v9608
  %v9795 = vpack.c.b16 %v9615, %v9609
  %v9796 = vpack.c.b16 %v9616, %v9610
  %v9797 = vpack.c.b16 %v9617, %v9611
  %v9798 = vpack.c.b16 %v9618, %v9612
  %v9799 = vpack.c.b16 %v9619, %v9613
  %v9800 = vpack.c.b16 %v9626, %v9620
  %v9801 = vpack.c.b16 %v9627, %v9621
  %v9802 = vpack.c.b16 %v9628, %v9622
  %v9803 = vpack.c.b16 %v9629, %v9623
  %v9804 = vpack.c.b16 %v9630, %v9624
  %v9805 = vpack.c.b16 %v9631, %v9625
  %v9806 = vpack.c.b16 %v9638, %v9632
  %v9807 = vpack.c.b16 %v9639, %v9633
  %v9808 = vpack.c.b16 %v9640, %v9634
  %v9809 = vpack.c.b16 %v9641, %v9635
  %v9810 = vpack.c.b16 %v9642, %v9636
  %v9811 = vpack.c.b16 %v9643, %v9637
  %v9812 = vpack.c.b16 %v9650, %v9644
  %v9813 = vpack.c.b16 %v9651, %v9645
  %v9814 = vpack.c.b16 %v9652, %v9646
  %v9815 = vpack.c.b16 %v9653, %v9647
  %v9816 = vpack.c.b16 %v9654, %v9648
  %v9817 = vpack.c.b16 %v9655, %v9649
  %v9818 = vpack.c.b16 %v9662, %v9656
  %v9819 = vpack.c.b16 %v9663, %v9657
  %v9820 = vpack.c.b16 %v9664, %v9658
  %v9821 = vpack.c.b16 %v9665, %v9659
  %v9822 = vpack.c.b16 %v9666, %v9660
  %v9823 = vpack.c.b16 %v9667, %v9661
  %v9824 = vpack.c.b16 %v9674, %v9668
  %v9825 = vpack.c.b16 %v9675, %v9669
  %v9826 = vpack.c.b16 %v9676, %v9670
  %v9827 = vpack.c.b16 %v9677, %v9671
  %v9828 = vpack.c.b16 %v9678, %v9672
  %v9829 = vpack.c.b16 %v9679, %v9673
  %v9830 = vpack.c.b16 %v9686, %v9680
  %v9831 = vpack.c.b16 %v9687, %v9681
  %v9832 = vpack.c.b16 %v9688, %v9682
  %v9833 = vpack.c.b16 %v9689, %v9683
  %v9834 = vpack.c.b16 %v9690, %v9684
  %v9835 = vpack.c.b16 %v9691, %v9685
  %v9836 = vpack.c.b16 %v9698, %v9692
  %v9837 = vpack.c.b16 %v9699, %v9693
  %v9838 = vpack.c.b16 %v9700, %v9694
  %v9839 = vpack.c.b16 %v9701, %v9695
  %v9840 = vpack.c.b16 %v9702, %v9696
  %v9841 = vpack.c.b16 %v9703, %v9697
  %v9842 = vpack.c.b16 %v9710, %v9704
  %v9843 = vpack.c.b16 %v9711, %v9705
  %v9844 = vpack.c.b16 %v9712, %v9706
  %v9845 = vpack.c.b16 %v9713, %v9707
  %v9846 = vpack.c.b16 %v9714, %v9708
  %v9847 = vpack.c.b16 %v9715, %v9709
  %v9848 = vpack.c.b16 %v9722, %v9716
  %v9849 = vpack.c.b16 %v9723, %v9717
  %v9850 = vpack.c.b16 %v9724, %v9718
  %v9851 = vpack.c.b16 %v9725, %v9719
  %v9852 = vpack.c.b16 %v9726, %v9720
  %v9853 = vpack.c.b16 %v9727, %v9721
  %v9854 = vpack.c.b16 %v9734, %v9728
  %v9855 = vpack.c.b16 %v9735, %v9729
  %v9856 = vpack.c.b16 %v9736, %v9730
  %v9857 = vpack.c.b16 %v9737, %v9731
  %v9858 = vpack.c.b16 %v9738, %v9732
  %v9859 = vpack.c.b16 %v9739, %v9733
  %v9860 = vpack.c.b16 %v9746, %v9740
  %v9861 = vpack.c.b16 %v9747, %v9741
  %v9862 = vpack.c.b16 %v9748, %v9742
  %v9863 = vpack.c.b16 %v9749, %v9743
  %v9864 = vpack.c.b16 %v9750, %v9744
  %v9865 = vpack.c.b16 %v9751, %v9745
  %v9866 = vpack.c.b16 %v9758, %v9752
  %v9867 = vpack.c.b16 %v9759, %v9753
  %v9868 = vpack.c.b16 %v9760, %v9754
  %v9869 = vpack.c.b16 %v9761, %v9755
  %v9870 = vpack.c.b16 %v9762, %v9756
  %v9871 = vpack.c.b16 %v9763, %v9757
  %v9872 = vpack.c.b16 %v9770, %v9764
  %v9873 = vpack.c.b16 %v9771, %v9765
  %v9874 = vpack.c.b16 %v9772, %v9766
  %v9875 = vpack.c.b16 %v9773, %v9767
  %v9876 = vpack.c.b16 %v9774, %v9768
  %v9877 = vpack.c.b16 %v9775, %v9769
  %v9878 = vpack.c.b16 %v9782, %v9776
  %v9879 = vpack.c.b16 %v9783, %v9777
  %v9880 = vpack.c.b16 %v9784, %v9778
  %v9881 = vpack.c.b16 %v9785, %v9779
  %v9882 = vpack.c.b16 %v9786, %v9780
  %v9883 = vpack.c.b16 %v9787, %v9781
  %v9965 = vsel %vm8868, %v9793, 0
  %v9968 = vsel %vm8868, %v9799, 0
  %v9971 = vsel %vm8868, %v9805, 0
  %v9974 = vsel %vm8868, %v9811, 0
  %v9977 = vsel %vm8868, %v9817, 0
  %v9980 = vsel %vm8868, %v9823, 0
  %v9983 = vsel %vm8868, %v9829, 0
  %v9986 = vsel %vm8868, %v9835, 0
  %v9989 = vsel %vm8868, %v9841, 0
  %v9992 = vsel %vm8868, %v9847, 0
  %v9995 = vsel %vm8868, %v9853, 0
  %v9998 = vsel %vm8868, %v9859, 0
  %v10001 = vsel %vm8868, %v9865, 0
  %v10004 = vsel %vm8868, %v9871, 0
  %v10007 = vsel %vm8868, %v9877, 0
  %v10010 = vsel %vm8868, %v9883, 0
  %10012 = vmatprep.subr.bf16.mxu0 0
  %10013 = vmatpush1.bf16.msra.mxu0 %v8274
  %10014 = vmatprep.subr.bf16.mxu0 0
  %10015 = vmatpush1.bf16.msra.mxu0 %v8273
  %10016 = vmatprep.subr.bf16.mxu0 0
  %10017 = vmatpush1.bf16.msra.mxu0 %v8272
  %10018 = vmatprep.subr.bf16.mxu0 0
  %10019 = vmatpush1.bf16.msra.mxu0 %v8271
  %10020 = vmatprep.subr.bf16.mxu0 0
  %10021 = vmatpush1.bf16.msra.mxu0 %v8270
  %10022 = vmatprep.subr.bf16.mxu0 0
  %10023 = vmatpush1.bf16.msra.mxu0 %v8269
  %10024 = vmatprep.subr.bf16.mxu0 0
  %10025 = vmatpush1.bf16.msra.mxu0 %v8268
  %10026 = vmatprep.subr.bf16.mxu0 0
  %10027 = vmatpush1.bf16.msra.mxu0 %v8267
  %10028 = vmatprep.subr.bf16.mxu0 0
  %10029 = vmatpush2.bf16.msra.mxu0 %v8282
  %10030 = vmatprep.subr.bf16.mxu0 0
  %10031 = vmatpush2.bf16.msra.mxu0 %v8281
  %10032 = vmatprep.subr.bf16.mxu0 0
  %10033 = vmatpush2.bf16.msra.mxu0 %v8280
  %10034 = vmatprep.subr.bf16.mxu0 0
  %10035 = vmatpush2.bf16.msra.mxu0 %v8279
  %10036 = vmatprep.subr.bf16.mxu0 0
  %10037 = vmatpush2.bf16.msra.mxu0 %v8278
  %10038 = vmatprep.subr.bf16.mxu0 0
  %10039 = vmatpush2.bf16.msra.mxu0 %v8277
  %10040 = vmatprep.subr.bf16.mxu0 0
  %10041 = vmatpush2.bf16.msra.mxu0 %v8276
  %10042 = vmatprep.subr.bf16.mxu0 0
  %10043 = vmatpush2.bf16.msra.mxu0 %v8275
  %10044 = vmatprep.mubr.bf16.mxu0 %v9789
  %10045 = vmatmul.mubr.bf16.gmra.mxu0 %v9788
  %v10046 = vpop.f32.mrf.mxu0
  %v10047 = vadd.f32 0.0, %v10046
  %v10048 = vpop.f32.mrf.mxu0
  %v10049 = vpop.f32.mrf.mxu0
  %v10050 = vadd.f32 0.0, %v10049
  %v10051 = vpop.f32.mrf.mxu0
  %10052 = vmatprep.mubr.bf16.mxu0 %v9795
  %10053 = vmatmul.mubr.bf16.gmra.mxu0 %v9794
  %v10054 = vpop.f32.mrf.mxu0
  %v10055 = vadd.f32 0.0, %v10054
  %v10056 = vpop.f32.mrf.mxu0
  %v10057 = vpop.f32.mrf.mxu0
  %v10058 = vadd.f32 0.0, %v10057
  %v10059 = vpop.f32.mrf.mxu0
  %10060 = vmatprep.mubr.bf16.mxu0 %v9801
  %10061 = vmatmul.mubr.bf16.gmra.mxu0 %v9800
  %v10062 = vpop.f32.mrf.mxu0
  %v10063 = vadd.f32 0.0, %v10062
  %v10064 = vpop.f32.mrf.mxu0
  %v10065 = vpop.f32.mrf.mxu0
  %v10066 = vadd.f32 0.0, %v10065
  %v10067 = vpop.f32.mrf.mxu0
  %10068 = vmatprep.mubr.bf16.mxu0 %v9807
  %10069 = vmatmul.mubr.bf16.gmra.mxu0 %v9806
  %v10070 = vpop.f32.mrf.mxu0
  %v10071 = vadd.f32 0.0, %v10070
  %v10072 = vpop.f32.mrf.mxu0
  %v10073 = vpop.f32.mrf.mxu0
  %v10074 = vadd.f32 0.0, %v10073
  %v10075 = vpop.f32.mrf.mxu0
  %10076 = vmatprep.mubr.bf16.mxu0 %v9813
  %10077 = vmatmul.mubr.bf16.gmra.mxu0 %v9812
  %v10078 = vpop.f32.mrf.mxu0
  %v10079 = vadd.f32 0.0, %v10078
  %v10080 = vpop.f32.mrf.mxu0
  %v10081 = vpop.f32.mrf.mxu0
  %v10082 = vadd.f32 0.0, %v10081
  %v10083 = vpop.f32.mrf.mxu0
  %10084 = vmatprep.mubr.bf16.mxu0 %v9819
  %10085 = vmatmul.mubr.bf16.gmra.mxu0 %v9818
  %v10086 = vpop.f32.mrf.mxu0
  %v10087 = vadd.f32 0.0, %v10086
  %v10088 = vpop.f32.mrf.mxu0
  %v10089 = vpop.f32.mrf.mxu0
  %v10090 = vadd.f32 0.0, %v10089
  %v10091 = vpop.f32.mrf.mxu0
  %10092 = vmatprep.mubr.bf16.mxu0 %v9825
  %10093 = vmatmul.mubr.bf16.gmra.mxu0 %v9824
  %v10094 = vpop.f32.mrf.mxu0
  %v10095 = vadd.f32 0.0, %v10094
  %v10096 = vpop.f32.mrf.mxu0
  %v10097 = vpop.f32.mrf.mxu0
  %v10098 = vadd.f32 0.0, %v10097
  %v10099 = vpop.f32.mrf.mxu0
  %10100 = vmatprep.mubr.bf16.mxu0 %v9831
  %10101 = vmatmul.mubr.bf16.gmra.mxu0 %v9830
  %v10102 = vpop.f32.mrf.mxu0
  %v10103 = vadd.f32 0.0, %v10102
  %v10104 = vpop.f32.mrf.mxu0
  %v10105 = vpop.f32.mrf.mxu0
  %v10106 = vadd.f32 0.0, %v10105
  %v10107 = vpop.f32.mrf.mxu0
  %10108 = vmatprep.mubr.bf16.mxu0 %v9837
  %10109 = vmatmul.mubr.bf16.gmra.mxu0 %v9836
  %v10110 = vpop.f32.mrf.mxu0
  %v10111 = vadd.f32 0.0, %v10110
  %v10112 = vpop.f32.mrf.mxu0
  %v10113 = vpop.f32.mrf.mxu0
  %v10114 = vadd.f32 0.0, %v10113
  %v10115 = vpop.f32.mrf.mxu0
  %10116 = vmatprep.mubr.bf16.mxu0 %v9843
  %10117 = vmatmul.mubr.bf16.gmra.mxu0 %v9842
  %v10118 = vpop.f32.mrf.mxu0
  %v10119 = vadd.f32 0.0, %v10118
  %v10120 = vpop.f32.mrf.mxu0
  %v10121 = vpop.f32.mrf.mxu0
  %v10122 = vadd.f32 0.0, %v10121
  %v10123 = vpop.f32.mrf.mxu0
  %10124 = vmatprep.mubr.bf16.mxu0 %v9849
  %10125 = vmatmul.mubr.bf16.gmra.mxu0 %v9848
  %v10126 = vpop.f32.mrf.mxu0
  %v10127 = vadd.f32 0.0, %v10126
  %v10128 = vpop.f32.mrf.mxu0
  %v10129 = vpop.f32.mrf.mxu0
  %v10130 = vadd.f32 0.0, %v10129
  %v10131 = vpop.f32.mrf.mxu0
  %10132 = vmatprep.mubr.bf16.mxu0 %v9855
  %10133 = vmatmul.mubr.bf16.gmra.mxu0 %v9854
  %v10134 = vpop.f32.mrf.mxu0
  %v10135 = vadd.f32 0.0, %v10134
  %v10136 = vpop.f32.mrf.mxu0
  %v10137 = vpop.f32.mrf.mxu0
  %v10138 = vadd.f32 0.0, %v10137
  %v10139 = vpop.f32.mrf.mxu0
  %10140 = vmatprep.mubr.bf16.mxu0 %v9861
  %10141 = vmatmul.mubr.bf16.gmra.mxu0 %v9860
  %v10142 = vpop.f32.mrf.mxu0
  %v10143 = vadd.f32 0.0, %v10142
  %v10144 = vpop.f32.mrf.mxu0
  %v10145 = vpop.f32.mrf.mxu0
  %v10146 = vadd.f32 0.0, %v10145
  %v10147 = vpop.f32.mrf.mxu0
  %10148 = vmatprep.mubr.bf16.mxu0 %v9867
  %10149 = vmatmul.mubr.bf16.gmra.mxu0 %v9866
  %v10150 = vpop.f32.mrf.mxu0
  %v10151 = vadd.f32 0.0, %v10150
  %v10152 = vpop.f32.mrf.mxu0
  %v10153 = vpop.f32.mrf.mxu0
  %v10154 = vadd.f32 0.0, %v10153
  %v10155 = vpop.f32.mrf.mxu0
  %10156 = vmatprep.mubr.bf16.mxu0 %v9873
  %10157 = vmatmul.mubr.bf16.gmra.mxu0 %v9872
  %v10158 = vpop.f32.mrf.mxu0
  %v10159 = vadd.f32 0.0, %v10158
  %v10160 = vpop.f32.mrf.mxu0
  %v10161 = vpop.f32.mrf.mxu0
  %v10162 = vadd.f32 0.0, %v10161
  %v10163 = vpop.f32.mrf.mxu0
  %10164 = vmatprep.mubr.bf16.mxu0 %v9879
  %10165 = vmatmul.mubr.bf16.gmra.mxu0 %v9878
  %v10166 = vpop.f32.mrf.mxu0
  %v10167 = vadd.f32 0.0, %v10166
  %v10168 = vpop.f32.mrf.mxu0
  %v10169 = vpop.f32.mrf.mxu0
  %v10170 = vadd.f32 0.0, %v10169
  %v10171 = vpop.f32.mrf.mxu0
  %10172 = vdwg.mxu0
  %10173 = vmatprep.subr.bf16.mxu0 0
  %10174 = vmatpush1.bf16.msra.mxu0 %v8290
  %10175 = vmatprep.subr.bf16.mxu0 0
  %10176 = vmatpush1.bf16.msra.mxu0 %v8289
  %10177 = vmatprep.subr.bf16.mxu0 0
  %10178 = vmatpush1.bf16.msra.mxu0 %v8288
  %10179 = vmatprep.subr.bf16.mxu0 0
  %10180 = vmatpush1.bf16.msra.mxu0 %v8287
  %10181 = vmatprep.subr.bf16.mxu0 0
  %10182 = vmatpush1.bf16.msra.mxu0 %v8286
  %10183 = vmatprep.subr.bf16.mxu0 0
  %10184 = vmatpush1.bf16.msra.mxu0 %v8285
  %10185 = vmatprep.subr.bf16.mxu0 0
  %10186 = vmatpush1.bf16.msra.mxu0 %v8284
  %10187 = vmatprep.subr.bf16.mxu0 0
  %10188 = vmatpush1.bf16.msra.mxu0 %v8283
  %10189 = vmatprep.subr.bf16.mxu0 0
  %10190 = vmatpush2.bf16.msra.mxu0 %v8298
  %10191 = vmatprep.subr.bf16.mxu0 0
  %10192 = vmatpush2.bf16.msra.mxu0 %v8297
  %10193 = vmatprep.subr.bf16.mxu0 0
  %10194 = vmatpush2.bf16.msra.mxu0 %v8296
  %10195 = vmatprep.subr.bf16.mxu0 0
  %10196 = vmatpush2.bf16.msra.mxu0 %v8295
  %10197 = vmatprep.subr.bf16.mxu0 0
  %10198 = vmatpush2.bf16.msra.mxu0 %v8294
  %10199 = vmatprep.subr.bf16.mxu0 0
  %10200 = vmatpush2.bf16.msra.mxu0 %v8293
  %10201 = vmatprep.subr.bf16.mxu0 0
  %10202 = vmatpush2.bf16.msra.mxu0 %v8292
  %10203 = vmatprep.subr.bf16.mxu0 0
  %10204 = vmatpush2.bf16.msra.mxu0 %v8291
  %10205 = vmatprep.mubr.bf16.mxu0 %v9791
  %10206 = vmatmul.mubr.bf16.gmra.mxu0 %v9790
  %v10207 = vpop.f32.mrf.mxu0
  %v10208 = vadd.f32 %v10047, %v10207
  %v10209 = vpop.f32.mrf.mxu0
  %v10210 = vpop.f32.mrf.mxu0
  %v10211 = vadd.f32 %v10050, %v10210
  %v10212 = vpop.f32.mrf.mxu0
  %10213 = vmatprep.mubr.bf16.mxu0 %v9797
  %10214 = vmatmul.mubr.bf16.gmra.mxu0 %v9796
  %v10215 = vpop.f32.mrf.mxu0
  %v10216 = vadd.f32 %v10055, %v10215
  %v10217 = vpop.f32.mrf.mxu0
  %v10218 = vpop.f32.mrf.mxu0
  %v10219 = vadd.f32 %v10058, %v10218
  %v10220 = vpop.f32.mrf.mxu0
  %10221 = vmatprep.mubr.bf16.mxu0 %v9803
  %10222 = vmatmul.mubr.bf16.gmra.mxu0 %v9802
  %v10223 = vpop.f32.mrf.mxu0
  %v10224 = vadd.f32 %v10063, %v10223
  %v10225 = vpop.f32.mrf.mxu0
  %v10226 = vpop.f32.mrf.mxu0
  %v10227 = vadd.f32 %v10066, %v10226
  %v10228 = vpop.f32.mrf.mxu0
  %10229 = vmatprep.mubr.bf16.mxu0 %v9809
  %10230 = vmatmul.mubr.bf16.gmra.mxu0 %v9808
  %v10231 = vpop.f32.mrf.mxu0
  %v10232 = vadd.f32 %v10071, %v10231
  %v10233 = vpop.f32.mrf.mxu0
  %v10234 = vpop.f32.mrf.mxu0
  %v10235 = vadd.f32 %v10074, %v10234
  %v10236 = vpop.f32.mrf.mxu0
  %10237 = vmatprep.mubr.bf16.mxu0 %v9815
  %10238 = vmatmul.mubr.bf16.gmra.mxu0 %v9814
  %v10239 = vpop.f32.mrf.mxu0
  %v10240 = vadd.f32 %v10079, %v10239
  %v10241 = vpop.f32.mrf.mxu0
  %v10242 = vpop.f32.mrf.mxu0
  %v10243 = vadd.f32 %v10082, %v10242
  %v10244 = vpop.f32.mrf.mxu0
  %10245 = vmatprep.mubr.bf16.mxu0 %v9821
  %10246 = vmatmul.mubr.bf16.gmra.mxu0 %v9820
  %v10247 = vpop.f32.mrf.mxu0
  %v10248 = vadd.f32 %v10087, %v10247
  %v10249 = vpop.f32.mrf.mxu0
  %v10250 = vpop.f32.mrf.mxu0
  %v10251 = vadd.f32 %v10090, %v10250
  %v10252 = vpop.f32.mrf.mxu0
  %10253 = vmatprep.mubr.bf16.mxu0 %v9827
  %10254 = vmatmul.mubr.bf16.gmra.mxu0 %v9826
  %v10255 = vpop.f32.mrf.mxu0
  %v10256 = vadd.f32 %v10095, %v10255
  %v10257 = vpop.f32.mrf.mxu0
  %v10258 = vpop.f32.mrf.mxu0
  %v10259 = vadd.f32 %v10098, %v10258
  %v10260 = vpop.f32.mrf.mxu0
  %10261 = vmatprep.mubr.bf16.mxu0 %v9833
  %10262 = vmatmul.mubr.bf16.gmra.mxu0 %v9832
  %v10263 = vpop.f32.mrf.mxu0
  %v10264 = vadd.f32 %v10103, %v10263
  %v10265 = vpop.f32.mrf.mxu0
  %v10266 = vpop.f32.mrf.mxu0
  %v10267 = vadd.f32 %v10106, %v10266
  %v10268 = vpop.f32.mrf.mxu0
  %10269 = vmatprep.mubr.bf16.mxu0 %v9839
  %10270 = vmatmul.mubr.bf16.gmra.mxu0 %v9838
  %v10271 = vpop.f32.mrf.mxu0
  %v10272 = vadd.f32 %v10111, %v10271
  %v10273 = vpop.f32.mrf.mxu0
  %v10274 = vpop.f32.mrf.mxu0
  %v10275 = vadd.f32 %v10114, %v10274
  %v10276 = vpop.f32.mrf.mxu0
  %10277 = vmatprep.mubr.bf16.mxu0 %v9845
  %10278 = vmatmul.mubr.bf16.gmra.mxu0 %v9844
  %v10279 = vpop.f32.mrf.mxu0
  %v10280 = vadd.f32 %v10119, %v10279
  %v10281 = vpop.f32.mrf.mxu0
  %v10282 = vpop.f32.mrf.mxu0
  %v10283 = vadd.f32 %v10122, %v10282
  %v10284 = vpop.f32.mrf.mxu0
  %10285 = vmatprep.mubr.bf16.mxu0 %v9851
  %10286 = vmatmul.mubr.bf16.gmra.mxu0 %v9850
  %v10287 = vpop.f32.mrf.mxu0
  %v10288 = vadd.f32 %v10127, %v10287
  %v10289 = vpop.f32.mrf.mxu0
  %v10290 = vpop.f32.mrf.mxu0
  %v10291 = vadd.f32 %v10130, %v10290
  %v10292 = vpop.f32.mrf.mxu0
  %10293 = vmatprep.mubr.bf16.mxu0 %v9857
  %10294 = vmatmul.mubr.bf16.gmra.mxu0 %v9856
  %v10295 = vpop.f32.mrf.mxu0
  %v10296 = vadd.f32 %v10135, %v10295
  %v10297 = vpop.f32.mrf.mxu0
  %v10298 = vpop.f32.mrf.mxu0
  %v10299 = vadd.f32 %v10138, %v10298
  %v10300 = vpop.f32.mrf.mxu0
  %10301 = vmatprep.mubr.bf16.mxu0 %v9863
  %10302 = vmatmul.mubr.bf16.gmra.mxu0 %v9862
  %v10303 = vpop.f32.mrf.mxu0
  %v10304 = vadd.f32 %v10143, %v10303
  %v10305 = vpop.f32.mrf.mxu0
  %v10306 = vpop.f32.mrf.mxu0
  %v10307 = vadd.f32 %v10146, %v10306
  %v10308 = vpop.f32.mrf.mxu0
  %10309 = vmatprep.mubr.bf16.mxu0 %v9869
  %10310 = vmatmul.mubr.bf16.gmra.mxu0 %v9868
  %v10311 = vpop.f32.mrf.mxu0
  %v10312 = vadd.f32 %v10151, %v10311
  %v10313 = vpop.f32.mrf.mxu0
  %v10314 = vpop.f32.mrf.mxu0
  %v10315 = vadd.f32 %v10154, %v10314
  %v10316 = vpop.f32.mrf.mxu0
  %10317 = vmatprep.mubr.bf16.mxu0 %v9875
  %10318 = vmatmul.mubr.bf16.gmra.mxu0 %v9874
  %v10319 = vpop.f32.mrf.mxu0
  %v10320 = vadd.f32 %v10159, %v10319
  %v10321 = vpop.f32.mrf.mxu0
  %v10322 = vpop.f32.mrf.mxu0
  %v10323 = vadd.f32 %v10162, %v10322
  %v10324 = vpop.f32.mrf.mxu0
  %10325 = vmatprep.mubr.bf16.mxu0 %v9881
  %10326 = vmatmul.mubr.bf16.gmra.mxu0 %v9880
  %v10327 = vpop.f32.mrf.mxu0
  %v10328 = vadd.f32 %v10167, %v10327
  %v10329 = vpop.f32.mrf.mxu0
  %v10330 = vpop.f32.mrf.mxu0
  %v10331 = vadd.f32 %v10170, %v10330
  %v10332 = vpop.f32.mrf.mxu0
  %10333 = vdwg.mxu0
  %10334 = vmatprep.subr.bf16.mxu0 0
  %10335 = vmatpush1.bf16.msra.mxu0 %v8306
  %10336 = vmatprep.subr.bf16.mxu0 0
  %10337 = vmatpush1.bf16.msra.mxu0 %v8305
  %10338 = vmatprep.subr.bf16.mxu0 0
  %10339 = vmatpush1.bf16.msra.mxu0 %v8304
  %10340 = vmatprep.subr.bf16.mxu0 0
  %10341 = vmatpush1.bf16.msra.mxu0 %v8303
  %10342 = vmatprep.subr.bf16.mxu0 0
  %10343 = vmatpush1.bf16.msra.mxu0 %v8302
  %10344 = vmatprep.subr.bf16.mxu0 0
  %10345 = vmatpush1.bf16.msra.mxu0 %v8301
  %10346 = vmatprep.subr.bf16.mxu0 0
  %10347 = vmatpush1.bf16.msra.mxu0 %v8300
  %10348 = vmatprep.subr.bf16.mxu0 0
  %10349 = vmatpush1.bf16.msra.mxu0 %v8299
  %10350 = vmatprep.subr.bf16.mxu0 0
  %10351 = vmatpush2.bf16.msra.mxu0 0
  %10352 = vmatprep.subr.bf16.mxu0 0
  %10353 = vmatpush2.bf16.msra.mxu0 0
  %10354 = vmatprep.subr.bf16.mxu0 0
  %10355 = vmatpush2.bf16.msra.mxu0 0
  %10356 = vmatprep.subr.bf16.mxu0 0
  %10357 = vmatpush2.bf16.msra.mxu0 0
  %10358 = vmatprep.subr.bf16.mxu0 0
  %10359 = vmatpush2.bf16.msra.mxu0 0
  %10360 = vmatprep.subr.bf16.mxu0 0
  %10361 = vmatpush2.bf16.msra.mxu0 0
  %10362 = vmatprep.subr.bf16.mxu0 0
  %10363 = vmatpush2.bf16.msra.mxu0 0
  %10364 = vmatprep.subr.bf16.mxu0 0
  %10365 = vmatpush2.bf16.msra.mxu0 %v8919
  %10366 = vmatprep.mubr.bf16.mxu0 %v9965
  %10367 = vmatmul.mubr.bf16.gmra.mxu0 %v9792
  %v10368 = vpop.f32.mrf.mxu0
  %v10369 = vadd.f32 %v10208, %v10368
  %v10370 = vpop.f32.mrf.mxu0
  %v10371 = vpop.f32.mrf.mxu0
  %v10372 = vadd.f32 %v10211, %v10371
  %v10373 = vpop.f32.mrf.mxu0
  %10374 = vmatprep.mubr.bf16.mxu0 %v9968
  %10375 = vmatmul.mubr.bf16.gmra.mxu0 %v9798
  %v10376 = vpop.f32.mrf.mxu0
  %v10377 = vadd.f32 %v10216, %v10376
  %v10378 = vpop.f32.mrf.mxu0
  %v10379 = vpop.f32.mrf.mxu0
  %v10380 = vadd.f32 %v10219, %v10379
  %v10381 = vpop.f32.mrf.mxu0
  %10382 = vmatprep.mubr.bf16.mxu0 %v9971
  %10383 = vmatmul.mubr.bf16.gmra.mxu0 %v9804
  %v10384 = vpop.f32.mrf.mxu0
  %v10385 = vadd.f32 %v10224, %v10384
  %v10386 = vpop.f32.mrf.mxu0
  %v10387 = vpop.f32.mrf.mxu0
  %v10388 = vadd.f32 %v10227, %v10387
  %v10389 = vpop.f32.mrf.mxu0
  %10390 = vmatprep.mubr.bf16.mxu0 %v9974
  %10391 = vmatmul.mubr.bf16.gmra.mxu0 %v9810
  %v10392 = vpop.f32.mrf.mxu0
  %v10393 = vadd.f32 %v10232, %v10392
  %v10394 = vpop.f32.mrf.mxu0
  %v10395 = vpop.f32.mrf.mxu0
  %v10396 = vadd.f32 %v10235, %v10395
  %v10397 = vpop.f32.mrf.mxu0
  %10398 = vmatprep.mubr.bf16.mxu0 %v9977
  %10399 = vmatmul.mubr.bf16.gmra.mxu0 %v9816
  %v10400 = vpop.f32.mrf.mxu0
  %v10401 = vadd.f32 %v10240, %v10400
  %v10402 = vpop.f32.mrf.mxu0
  %v10403 = vpop.f32.mrf.mxu0
  %v10404 = vadd.f32 %v10243, %v10403
  %v10405 = vpop.f32.mrf.mxu0
  %10406 = vmatprep.mubr.bf16.mxu0 %v9980
  %10407 = vmatmul.mubr.bf16.gmra.mxu0 %v9822
  %v10408 = vpop.f32.mrf.mxu0
  %v10409 = vadd.f32 %v10248, %v10408
  %v10410 = vpop.f32.mrf.mxu0
  %v10411 = vpop.f32.mrf.mxu0
  %v10412 = vadd.f32 %v10251, %v10411
  %v10413 = vpop.f32.mrf.mxu0
  %10414 = vmatprep.mubr.bf16.mxu0 %v9983
  %10415 = vmatmul.mubr.bf16.gmra.mxu0 %v9828
  %v10416 = vpop.f32.mrf.mxu0
  %v10417 = vadd.f32 %v10256, %v10416
  %v10418 = vpop.f32.mrf.mxu0
  %v10419 = vpop.f32.mrf.mxu0
  %v10420 = vadd.f32 %v10259, %v10419
  %v10421 = vpop.f32.mrf.mxu0
  %10422 = vmatprep.mubr.bf16.mxu0 %v9986
  %10423 = vmatmul.mubr.bf16.gmra.mxu0 %v9834
  %v10424 = vpop.f32.mrf.mxu0
  %v10425 = vadd.f32 %v10264, %v10424
  %v10426 = vpop.f32.mrf.mxu0
  %v10427 = vpop.f32.mrf.mxu0
  %v10428 = vadd.f32 %v10267, %v10427
  %v10429 = vpop.f32.mrf.mxu0
  %10430 = vmatprep.mubr.bf16.mxu0 %v9989
  %10431 = vmatmul.mubr.bf16.gmra.mxu0 %v9840
  %v10432 = vpop.f32.mrf.mxu0
  %v10433 = vadd.f32 %v10272, %v10432
  %v10434 = vpop.f32.mrf.mxu0
  %v10435 = vpop.f32.mrf.mxu0
  %v10436 = vadd.f32 %v10275, %v10435
  %v10437 = vpop.f32.mrf.mxu0
  %10438 = vmatprep.mubr.bf16.mxu0 %v9992
  %10439 = vmatmul.mubr.bf16.gmra.mxu0 %v9846
  %v10440 = vpop.f32.mrf.mxu0
  %v10441 = vadd.f32 %v10280, %v10440
  %v10442 = vpop.f32.mrf.mxu0
  %v10443 = vpop.f32.mrf.mxu0
  %v10444 = vadd.f32 %v10283, %v10443
  %v10445 = vpop.f32.mrf.mxu0
  %10446 = vmatprep.mubr.bf16.mxu0 %v9995
  %10447 = vmatmul.mubr.bf16.gmra.mxu0 %v9852
  %v10448 = vpop.f32.mrf.mxu0
  %v10449 = vadd.f32 %v10288, %v10448
  %v10450 = vpop.f32.mrf.mxu0
  %v10451 = vpop.f32.mrf.mxu0
  %v10452 = vadd.f32 %v10291, %v10451
  %v10453 = vpop.f32.mrf.mxu0
  %10454 = vmatprep.mubr.bf16.mxu0 %v9998
  %10455 = vmatmul.mubr.bf16.gmra.mxu0 %v9858
  %v10456 = vpop.f32.mrf.mxu0
  %v10457 = vadd.f32 %v10296, %v10456
  %v10458 = vpop.f32.mrf.mxu0
  %v10459 = vpop.f32.mrf.mxu0
  %v10460 = vadd.f32 %v10299, %v10459
  %v10461 = vpop.f32.mrf.mxu0
  %10462 = vmatprep.mubr.bf16.mxu0 %v10001
  %10463 = vmatmul.mubr.bf16.gmra.mxu0 %v9864
  %v10464 = vpop.f32.mrf.mxu0
  %v10465 = vadd.f32 %v10304, %v10464
  %v10466 = vpop.f32.mrf.mxu0
  %v10467 = vpop.f32.mrf.mxu0
  %v10468 = vadd.f32 %v10307, %v10467
  %v10469 = vpop.f32.mrf.mxu0
  %10470 = vmatprep.mubr.bf16.mxu0 %v10004
  %10471 = vmatmul.mubr.bf16.gmra.mxu0 %v9870
  %v10472 = vpop.f32.mrf.mxu0
  %v10473 = vadd.f32 %v10312, %v10472
  %v10474 = vpop.f32.mrf.mxu0
  %v10475 = vpop.f32.mrf.mxu0
  %v10476 = vadd.f32 %v10315, %v10475
  %v10477 = vpop.f32.mrf.mxu0
  %10478 = vmatprep.mubr.bf16.mxu0 %v10007
  %10479 = vmatmul.mubr.bf16.gmra.mxu0 %v9876
  %v10480 = vpop.f32.mrf.mxu0
  %v10481 = vadd.f32 %v10320, %v10480
  %v10482 = vpop.f32.mrf.mxu0
  %v10483 = vpop.f32.mrf.mxu0
  %v10484 = vadd.f32 %v10323, %v10483
  %v10485 = vpop.f32.mrf.mxu0
  %10486 = vmatprep.mubr.bf16.mxu0 %v10010
  %10487 = vmatmul.mubr.bf16.gmra.mxu0 %v9882
  %v10488 = vpop.f32.mrf.mxu0
  %v10489 = vadd.f32 %v10328, %v10488
  %v10490 = vpop.f32.mrf.mxu0
  %v10491 = vpop.f32.mrf.mxu0
  %v10492 = vadd.f32 %v10331, %v10491
  %v10493 = vpop.f32.mrf.mxu0
  %10494 = vdwg.mxu0
  %v10495 = vmax.f32 %v9278, %v10369
  %v10496 = vmax.f32 %v9281, %v10372
  %v10497 = vmax.f32 %v9286, %v10377
  %v10498 = vmax.f32 %v9289, %v10380
  %v10499 = vmax.f32 %v9294, %v10385
  %v10500 = vmax.f32 %v9297, %v10388
  %v10501 = vmax.f32 %v9302, %v10393
  %v10502 = vmax.f32 %v9305, %v10396
  %v10503 = vmax.f32 %v9310, %v10401
  %v10504 = vmax.f32 %v9313, %v10404
  %v10505 = vmax.f32 %v9318, %v10409
  %v10506 = vmax.f32 %v9321, %v10412
  %v10507 = vmax.f32 %v9326, %v10417
  %v10508 = vmax.f32 %v9329, %v10420
  %v10509 = vmax.f32 %v9334, %v10425
  %v10510 = vmax.f32 %v9337, %v10428
  %v10511 = vmax.f32 %v9342, %v10433
  %v10512 = vmax.f32 %v9345, %v10436
  %v10513 = vmax.f32 %v9350, %v10441
  %v10514 = vmax.f32 %v9353, %v10444
  %v10515 = vmax.f32 %v9358, %v10449
  %v10516 = vmax.f32 %v9361, %v10452
  %v10517 = vmax.f32 %v9366, %v10457
  %v10518 = vmax.f32 %v9369, %v10460
  %v10519 = vmax.f32 %v9374, %v10465
  %v10520 = vmax.f32 %v9377, %v10468
  %v10521 = vmax.f32 %v9382, %v10473
  %v10522 = vmax.f32 %v9385, %v10476
  %v10523 = vmax.f32 %v9390, %v10481
  %v10524 = vmax.f32 %v9393, %v10484
  %v10525 = vmax.f32 %v9398, %v10489
  %v10526 = vmax.f32 %v9401, %v10492
  %v10527 = vld [vmem:[%s8] sm:$0xff]
  %v10528 = vld [vmem:[%s8 + $0x8] sm:$0xff]
  %v10529 = vld [vmem:[%s8 + $0x10] sm:$0xff]
  %v10530 = vld [vmem:[%s8 + $0x18] sm:$0xff]
  %v10531 = vld [vmem:[%s8 + $0x20] sm:$0xff]
  %v10532 = vld [vmem:[%s8 + $0x28] sm:$0xff]
  %v10533 = vld [vmem:[%s8 + $0x30] sm:$0xff]
  %v10534 = vld [vmem:[%s8 + $0x38] sm:$0xff]
  %v10535 = vld [vmem:[%s8 + $0x40] sm:$0xff]
  %v10536 = vld [vmem:[%s8 + $0x48] sm:$0xff]
  %v10537 = vld [vmem:[%s8 + $0x50] sm:$0xff]
  %v10538 = vld [vmem:[%s8 + $0x58] sm:$0xff]
  %v10539 = vld [vmem:[%s8 + $0x60] sm:$0xff]
  %v10540 = vld [vmem:[%s8 + $0x68] sm:$0xff]
  %v10541 = vld [vmem:[%s8 + $0x70] sm:$0xff]
  %v10542 = vld [vmem:[%s8 + $0x78] sm:$0xff]
  %v10543 = vld [vmem:[%s8 + $0x80] sm:$0xff]
  %v10544 = vld [vmem:[%s8 + $0x88] sm:$0xff]
  %v10545 = vld [vmem:[%s8 + $0x90] sm:$0xff]
  %v10546 = vld [vmem:[%s8 + $0x98] sm:$0xff]
  %v10547 = vld [vmem:[%s8 + $0xa0] sm:$0xff]
  %v10548 = vld [vmem:[%s8 + $0xa8] sm:$0xff]
  %v10549 = vld [vmem:[%s8 + $0xb0] sm:$0xff]
  %v10550 = vld [vmem:[%s8 + $0xb8] sm:$0xff]
  %v10551 = vld [vmem:[%s8 + $0xc0] sm:$0xff]
  %v10552 = vld [vmem:[%s8 + $0xc8] sm:$0xff]
  %v10553 = vld [vmem:[%s8 + $0xd0] sm:$0xff]
  %v10554 = vld [vmem:[%s8 + $0xd8] sm:$0xff]
  %v10555 = vld [vmem:[%s8 + $0xe0] sm:$0xff]
  %v10556 = vld [vmem:[%s8 + $0xe8] sm:$0xff]
  %v10557 = vld [vmem:[%s8 + $0xf0] sm:$0xff]
  %v10558 = vld [vmem:[%s8 + $0xf8] sm:$0xff]
  %v10559 = vld [vmem:[%s8 + $0x100] sm:$0xff]
  %v10560 = vld [vmem:[%s8 + $0x108] sm:$0xff]
  %v10561 = vld [vmem:[%s8 + $0x110] sm:$0xff]
  %v10562 = vld [vmem:[%s8 + $0x118] sm:$0xff]
  %v10563 = vld [vmem:[%s8 + $0x120] sm:$0xff]
  %v10564 = vld [vmem:[%s8 + $0x128] sm:$0xff]
  %v10565 = vld [vmem:[%s8 + $0x130] sm:$0xff]
  %v10566 = vld [vmem:[%s8 + $0x138] sm:$0xff]
  %v10567 = vld [vmem:[%s8 + $0x140] sm:$0xff]
  %v10568 = vld [vmem:[%s8 + $0x148] sm:$0xff]
  %v10569 = vld [vmem:[%s8 + $0x150] sm:$0xff]
  %v10570 = vld [vmem:[%s8 + $0x158] sm:$0xff]
  %v10571 = vld [vmem:[%s8 + $0x160] sm:$0xff]
  %v10572 = vld [vmem:[%s8 + $0x168] sm:$0xff]
  %v10573 = vld [vmem:[%s8 + $0x170] sm:$0xff]
  %v10574 = vld [vmem:[%s8 + $0x178] sm:$0xff]
  %v10575 = vld [vmem:[%s8 + $0x180] sm:$0xff]
  %v10576 = vld [vmem:[%s8 + $0x188] sm:$0xff]
  %v10577 = vld [vmem:[%s8 + $0x190] sm:$0xff]
  %v10578 = vld [vmem:[%s8 + $0x198] sm:$0xff]
  %v10579 = vld [vmem:[%s8 + $0x1a0] sm:$0xff]
  %v10580 = vld [vmem:[%s8 + $0x1a8] sm:$0xff]
  %v10581 = vld [vmem:[%s8 + $0x1b0] sm:$0xff]
  %v10582 = vld [vmem:[%s8 + $0x1b8] sm:$0xff]
  %v10583 = vld [vmem:[%s8 + $0x1c0] sm:$0xff]
  %v10584 = vld [vmem:[%s8 + $0x1c8] sm:$0xff]
  %v10585 = vld [vmem:[%s8 + $0x1d0] sm:$0xff]
  %v10586 = vld [vmem:[%s8 + $0x1d8] sm:$0xff]
  %v10587 = vld [vmem:[%s8 + $0x1e0] sm:$0xff]
  %v10588 = vld [vmem:[%s8 + $0x1e8] sm:$0xff]
  %v10589 = vld [vmem:[%s8 + $0x1f0] sm:$0xff]
  %v10590 = vld [vmem:[%s8 + $0x1f8] sm:$0xff]
  %v10591 = vld [vmem:[%s8 + $0x200] sm:$0xff]
  %v10592 = vld [vmem:[%s8 + $0x208] sm:$0xff]
  %v10593 = vld [vmem:[%s8 + $0x210] sm:$0xff]
  %v10594 = vld [vmem:[%s8 + $0x218] sm:$0xff]
  %v10595 = vld [vmem:[%s8 + $0x220] sm:$0xff]
  %v10596 = vld [vmem:[%s8 + $0x228] sm:$0xff]
  %v10597 = vld [vmem:[%s8 + $0x230] sm:$0xff]
  %v10598 = vld [vmem:[%s8 + $0x238] sm:$0xff]
  %v10599 = vld [vmem:[%s8 + $0x240] sm:$0xff]
  %v10600 = vld [vmem:[%s8 + $0x248] sm:$0xff]
  %v10601 = vld [vmem:[%s8 + $0x250] sm:$0xff]
  %v10602 = vld [vmem:[%s8 + $0x258] sm:$0xff]
  %v10603 = vld [vmem:[%s8 + $0x260] sm:$0xff]
  %v10604 = vld [vmem:[%s8 + $0x268] sm:$0xff]
  %v10605 = vld [vmem:[%s8 + $0x270] sm:$0xff]
  %v10606 = vld [vmem:[%s8 + $0x278] sm:$0xff]
  %v10607 = vld [vmem:[%s8 + $0x280] sm:$0xff]
  %v10608 = vld [vmem:[%s8 + $0x288] sm:$0xff]
  %v10609 = vld [vmem:[%s8 + $0x290] sm:$0xff]
  %v10610 = vld [vmem:[%s8 + $0x298] sm:$0xff]
  %v10611 = vld [vmem:[%s8 + $0x2a0] sm:$0xff]
  %v10612 = vld [vmem:[%s8 + $0x2a8] sm:$0xff]
  %v10613 = vld [vmem:[%s8 + $0x2b0] sm:$0xff]
  %v10614 = vld [vmem:[%s8 + $0x2b8] sm:$0xff]
  %v10615 = vld [vmem:[%s8 + $0x2c0] sm:$0xff]
  %v10616 = vld [vmem:[%s8 + $0x2c8] sm:$0xff]
  %v10617 = vld [vmem:[%s8 + $0x2d0] sm:$0xff]
  %v10618 = vld [vmem:[%s8 + $0x2d8] sm:$0xff]
  %v10619 = vld [vmem:[%s8 + $0x2e0] sm:$0xff]
  %v10620 = vld [vmem:[%s8 + $0x2e8] sm:$0xff]
  %v10621 = vld [vmem:[%s8 + $0x2f0] sm:$0xff]
  %v10622 = vld [vmem:[%s8 + $0x2f8] sm:$0xff]
  %v10719 = vunpack.c.l.b16 %v10527
  %v10720 = vunpack.c.h.b16 %v10527
  %v10721 = vunpack.c.l.b16 %v10528
  %v10722 = vunpack.c.h.b16 %v10528
  %v10723 = vunpack.c.l.b16 %v10529
  %v10724 = vunpack.c.h.b16 %v10529
  %v10725 = vunpack.c.l.b16 %v10530
  %v10726 = vunpack.c.h.b16 %v10530
  %v10727 = vunpack.c.l.b16 %v10531
  %v10728 = vunpack.c.h.b16 %v10531
  %v10729 = vunpack.c.l.b16 %v10532
  %v10730 = vunpack.c.h.b16 %v10532
  %v10731 = vunpack.c.l.b16 %v10533
  %v10732 = vunpack.c.h.b16 %v10533
  %v10733 = vunpack.c.l.b16 %v10534
  %v10734 = vunpack.c.h.b16 %v10534
  %v10735 = vunpack.c.l.b16 %v10535
  %v10736 = vunpack.c.h.b16 %v10535
  %v10737 = vunpack.c.l.b16 %v10536
  %v10738 = vunpack.c.h.b16 %v10536
  %v10739 = vunpack.c.l.b16 %v10537
  %v10740 = vunpack.c.h.b16 %v10537
  %v10741 = vunpack.c.l.b16 %v10538
  %v10742 = vunpack.c.h.b16 %v10538
  %v10743 = vunpack.c.l.b16 %v10539
  %v10744 = vunpack.c.h.b16 %v10539
  %v10745 = vunpack.c.l.b16 %v10540
  %v10746 = vunpack.c.h.b16 %v10540
  %v10747 = vunpack.c.l.b16 %v10541
  %v10748 = vunpack.c.h.b16 %v10541
  %v10749 = vunpack.c.l.b16 %v10542
  %v10750 = vunpack.c.h.b16 %v10542
  %v10751 = vunpack.c.l.b16 %v10543
  %v10752 = vunpack.c.h.b16 %v10543
  %v10753 = vunpack.c.l.b16 %v10544
  %v10754 = vunpack.c.h.b16 %v10544
  %v10755 = vunpack.c.l.b16 %v10545
  %v10756 = vunpack.c.h.b16 %v10545
  %v10757 = vunpack.c.l.b16 %v10546
  %v10758 = vunpack.c.h.b16 %v10546
  %v10759 = vunpack.c.l.b16 %v10547
  %v10760 = vunpack.c.h.b16 %v10547
  %v10761 = vunpack.c.l.b16 %v10548
  %v10762 = vunpack.c.h.b16 %v10548
  %v10763 = vunpack.c.l.b16 %v10549
  %v10764 = vunpack.c.h.b16 %v10549
  %v10765 = vunpack.c.l.b16 %v10550
  %v10766 = vunpack.c.h.b16 %v10550
  %v10767 = vunpack.c.l.b16 %v10551
  %v10768 = vunpack.c.h.b16 %v10551
  %v10769 = vunpack.c.l.b16 %v10552
  %v10770 = vunpack.c.h.b16 %v10552
  %v10771 = vunpack.c.l.b16 %v10553
  %v10772 = vunpack.c.h.b16 %v10553
  %v10773 = vunpack.c.l.b16 %v10554
  %v10774 = vunpack.c.h.b16 %v10554
  %v10775 = vunpack.c.l.b16 %v10555
  %v10776 = vunpack.c.h.b16 %v10555
  %v10777 = vunpack.c.l.b16 %v10556
  %v10778 = vunpack.c.h.b16 %v10556
  %v10779 = vunpack.c.l.b16 %v10557
  %v10780 = vunpack.c.h.b16 %v10557
  %v10781 = vunpack.c.l.b16 %v10558
  %v10782 = vunpack.c.h.b16 %v10558
  %v10783 = vunpack.c.l.b16 %v10559
  %v10784 = vunpack.c.h.b16 %v10559
  %v10785 = vunpack.c.l.b16 %v10560
  %v10786 = vunpack.c.h.b16 %v10560
  %v10787 = vunpack.c.l.b16 %v10561
  %v10788 = vunpack.c.h.b16 %v10561
  %v10789 = vunpack.c.l.b16 %v10562
  %v10790 = vunpack.c.h.b16 %v10562
  %v10791 = vunpack.c.l.b16 %v10563
  %v10792 = vunpack.c.h.b16 %v10563
  %v10793 = vunpack.c.l.b16 %v10564
  %v10794 = vunpack.c.h.b16 %v10564
  %v10795 = vunpack.c.l.b16 %v10565
  %v10796 = vunpack.c.h.b16 %v10565
  %v10797 = vunpack.c.l.b16 %v10566
  %v10798 = vunpack.c.h.b16 %v10566
  %v10799 = vunpack.c.l.b16 %v10567
  %v10800 = vunpack.c.h.b16 %v10567
  %v10801 = vunpack.c.l.b16 %v10568
  %v10802 = vunpack.c.h.b16 %v10568
  %v10803 = vunpack.c.l.b16 %v10569
  %v10804 = vunpack.c.h.b16 %v10569
  %v10805 = vunpack.c.l.b16 %v10570
  %v10806 = vunpack.c.h.b16 %v10570
  %v10807 = vunpack.c.l.b16 %v10571
  %v10808 = vunpack.c.h.b16 %v10571
  %v10809 = vunpack.c.l.b16 %v10572
  %v10810 = vunpack.c.h.b16 %v10572
  %v10811 = vunpack.c.l.b16 %v10573
  %v10812 = vunpack.c.h.b16 %v10573
  %v10813 = vunpack.c.l.b16 %v10574
  %v10814 = vunpack.c.h.b16 %v10574
  %v10815 = vunpack.c.l.b16 %v10575
  %v10816 = vunpack.c.h.b16 %v10575
  %v10817 = vunpack.c.l.b16 %v10576
  %v10818 = vunpack.c.h.b16 %v10576
  %v10819 = vunpack.c.l.b16 %v10577
  %v10820 = vunpack.c.h.b16 %v10577
  %v10821 = vunpack.c.l.b16 %v10578
  %v10822 = vunpack.c.h.b16 %v10578
  %v10823 = vunpack.c.l.b16 %v10579
  %v10824 = vunpack.c.h.b16 %v10579
  %v10825 = vunpack.c.l.b16 %v10580
  %v10826 = vunpack.c.h.b16 %v10580
  %v10827 = vunpack.c.l.b16 %v10581
  %v10828 = vunpack.c.h.b16 %v10581
  %v10829 = vunpack.c.l.b16 %v10582
  %v10830 = vunpack.c.h.b16 %v10582
  %v10831 = vunpack.c.l.b16 %v10583
  %v10832 = vunpack.c.h.b16 %v10583
  %v10833 = vunpack.c.l.b16 %v10584
  %v10834 = vunpack.c.h.b16 %v10584
  %v10835 = vunpack.c.l.b16 %v10585
  %v10836 = vunpack.c.h.b16 %v10585
  %v10837 = vunpack.c.l.b16 %v10586
  %v10838 = vunpack.c.h.b16 %v10586
  %v10839 = vunpack.c.l.b16 %v10587
  %v10840 = vunpack.c.h.b16 %v10587
  %v10841 = vunpack.c.l.b16 %v10588
  %v10842 = vunpack.c.h.b16 %v10588
  %v10843 = vunpack.c.l.b16 %v10589
  %v10844 = vunpack.c.h.b16 %v10589
  %v10845 = vunpack.c.l.b16 %v10590
  %v10846 = vunpack.c.h.b16 %v10590
  %v10847 = vunpack.c.l.b16 %v10591
  %v10848 = vunpack.c.h.b16 %v10591
  %v10849 = vunpack.c.l.b16 %v10592
  %v10850 = vunpack.c.h.b16 %v10592
  %v10851 = vunpack.c.l.b16 %v10593
  %v10852 = vunpack.c.h.b16 %v10593
  %v10853 = vunpack.c.l.b16 %v10594
  %v10854 = vunpack.c.h.b16 %v10594
  %v10855 = vunpack.c.l.b16 %v10595
  %v10856 = vunpack.c.h.b16 %v10595
  %v10857 = vunpack.c.l.b16 %v10596
  %v10858 = vunpack.c.h.b16 %v10596
  %v10859 = vunpack.c.l.b16 %v10597
  %v10860 = vunpack.c.h.b16 %v10597
  %v10861 = vunpack.c.l.b16 %v10598
  %v10862 = vunpack.c.h.b16 %v10598
  %v10863 = vunpack.c.l.b16 %v10599
  %v10864 = vunpack.c.h.b16 %v10599
  %v10865 = vunpack.c.l.b16 %v10600
  %v10866 = vunpack.c.h.b16 %v10600
  %v10867 = vunpack.c.l.b16 %v10601
  %v10868 = vunpack.c.h.b16 %v10601
  %v10869 = vunpack.c.l.b16 %v10602
  %v10870 = vunpack.c.h.b16 %v10602
  %v10871 = vunpack.c.l.b16 %v10603
  %v10872 = vunpack.c.h.b16 %v10603
  %v10873 = vunpack.c.l.b16 %v10604
  %v10874 = vunpack.c.h.b16 %v10604
  %v10875 = vunpack.c.l.b16 %v10605
  %v10876 = vunpack.c.h.b16 %v10605
  %v10877 = vunpack.c.l.b16 %v10606
  %v10878 = vunpack.c.h.b16 %v10606
  %v10879 = vunpack.c.l.b16 %v10607
  %v10880 = vunpack.c.h.b16 %v10607
  %v10881 = vunpack.c.l.b16 %v10608
  %v10882 = vunpack.c.h.b16 %v10608
  %v10883 = vunpack.c.l.b16 %v10609
  %v10884 = vunpack.c.h.b16 %v10609
  %v10885 = vunpack.c.l.b16 %v10610
  %v10886 = vunpack.c.h.b16 %v10610
  %v10887 = vunpack.c.l.b16 %v10611
  %v10888 = vunpack.c.h.b16 %v10611
  %v10889 = vunpack.c.l.b16 %v10612
  %v10890 = vunpack.c.h.b16 %v10612
  %v10891 = vunpack.c.l.b16 %v10613
  %v10892 = vunpack.c.h.b16 %v10613
  %v10893 = vunpack.c.l.b16 %v10614
  %v10894 = vunpack.c.h.b16 %v10614
  %v10895 = vunpack.c.l.b16 %v10615
  %v10896 = vunpack.c.h.b16 %v10615
  %v10897 = vunpack.c.l.b16 %v10616
  %v10898 = vunpack.c.h.b16 %v10616
  %v10899 = vunpack.c.l.b16 %v10617
  %v10900 = vunpack.c.h.b16 %v10617
  %v10901 = vunpack.c.l.b16 %v10618
  %v10902 = vunpack.c.h.b16 %v10618
  %v10903 = vunpack.c.l.b16 %v10619
  %v10904 = vunpack.c.h.b16 %v10619
  %v10905 = vunpack.c.l.b16 %v10620
  %v10906 = vunpack.c.h.b16 %v10620
  %v10907 = vunpack.c.l.b16 %v10621
  %v10908 = vunpack.c.h.b16 %v10621
  %v10909 = vunpack.c.l.b16 %v10622
  %v10910 = vunpack.c.h.b16 %v10622
  %v10911 = vpack.c.b16 %v10725, %v10719
  %v10912 = vpack.c.b16 %v10726, %v10720
  %v10913 = vpack.c.b16 %v10727, %v10721
  %v10914 = vpack.c.b16 %v10728, %v10722
  %v10915 = vpack.c.b16 %v10729, %v10723
  %v10916 = vpack.c.b16 %v10730, %v10724
  %v10917 = vpack.c.b16 %v10737, %v10731
  %v10918 = vpack.c.b16 %v10738, %v10732
  %v10919 = vpack.c.b16 %v10739, %v10733
  %v10920 = vpack.c.b16 %v10740, %v10734
  %v10921 = vpack.c.b16 %v10741, %v10735
  %v10922 = vpack.c.b16 %v10742, %v10736
  %v10923 = vpack.c.b16 %v10749, %v10743
  %v10924 = vpack.c.b16 %v10750, %v10744
  %v10925 = vpack.c.b16 %v10751, %v10745
  %v10926 = vpack.c.b16 %v10752, %v10746
  %v10927 = vpack.c.b16 %v10753, %v10747
  %v10928 = vpack.c.b16 %v10754, %v10748
  %v10929 = vpack.c.b16 %v10761, %v10755
  %v10930 = vpack.c.b16 %v10762, %v10756
  %v10931 = vpack.c.b16 %v10763, %v10757
  %v10932 = vpack.c.b16 %v10764, %v10758
  %v10933 = vpack.c.b16 %v10765, %v10759
  %v10934 = vpack.c.b16 %v10766, %v10760
  %v10935 = vpack.c.b16 %v10773, %v10767
  %v10936 = vpack.c.b16 %v10774, %v10768
  %v10937 = vpack.c.b16 %v10775, %v10769
  %v10938 = vpack.c.b16 %v10776, %v10770
  %v10939 = vpack.c.b16 %v10777, %v10771
  %v10940 = vpack.c.b16 %v10778, %v10772
  %v10941 = vpack.c.b16 %v10785, %v10779
  %v10942 = vpack.c.b16 %v10786, %v10780
  %v10943 = vpack.c.b16 %v10787, %v10781
  %v10944 = vpack.c.b16 %v10788, %v10782
  %v10945 = vpack.c.b16 %v10789, %v10783
  %v10946 = vpack.c.b16 %v10790, %v10784
  %v10947 = vpack.c.b16 %v10797, %v10791
  %v10948 = vpack.c.b16 %v10798, %v10792
  %v10949 = vpack.c.b16 %v10799, %v10793
  %v10950 = vpack.c.b16 %v10800, %v10794
  %v10951 = vpack.c.b16 %v10801, %v10795
  %v10952 = vpack.c.b16 %v10802, %v10796
  %v10953 = vpack.c.b16 %v10809, %v10803
  %v10954 = vpack.c.b16 %v10810, %v10804
  %v10955 = vpack.c.b16 %v10811, %v10805
  %v10956 = vpack.c.b16 %v10812, %v10806
  %v10957 = vpack.c.b16 %v10813, %v10807
  %v10958 = vpack.c.b16 %v10814, %v10808
  %v10959 = vpack.c.b16 %v10821, %v10815
  %v10960 = vpack.c.b16 %v10822, %v10816
  %v10961 = vpack.c.b16 %v10823, %v10817
  %v10962 = vpack.c.b16 %v10824, %v10818
  %v10963 = vpack.c.b16 %v10825, %v10819
  %v10964 = vpack.c.b16 %v10826, %v10820
  %v10965 = vpack.c.b16 %v10833, %v10827
  %v10966 = vpack.c.b16 %v10834, %v10828
  %v10967 = vpack.c.b16 %v10835, %v10829
  %v10968 = vpack.c.b16 %v10836, %v10830
  %v10969 = vpack.c.b16 %v10837, %v10831
  %v10970 = vpack.c.b16 %v10838, %v10832
  %v10971 = vpack.c.b16 %v10845, %v10839
  %v10972 = vpack.c.b16 %v10846, %v10840
  %v10973 = vpack.c.b16 %v10847, %v10841
  %v10974 = vpack.c.b16 %v10848, %v10842
  %v10975 = vpack.c.b16 %v10849, %v10843
  %v10976 = vpack.c.b16 %v10850, %v10844
  %v10977 = vpack.c.b16 %v10857, %v10851
  %v10978 = vpack.c.b16 %v10858, %v10852
  %v10979 = vpack.c.b16 %v10859, %v10853
  %v10980 = vpack.c.b16 %v10860, %v10854
  %v10981 = vpack.c.b16 %v10861, %v10855
  %v10982 = vpack.c.b16 %v10862, %v10856
  %v10983 = vpack.c.b16 %v10869, %v10863
  %v10984 = vpack.c.b16 %v10870, %v10864
  %v10985 = vpack.c.b16 %v10871, %v10865
  %v10986 = vpack.c.b16 %v10872, %v10866
  %v10987 = vpack.c.b16 %v10873, %v10867
  %v10988 = vpack.c.b16 %v10874, %v10868
  %v10989 = vpack.c.b16 %v10881, %v10875
  %v10990 = vpack.c.b16 %v10882, %v10876
  %v10991 = vpack.c.b16 %v10883, %v10877
  %v10992 = vpack.c.b16 %v10884, %v10878
  %v10993 = vpack.c.b16 %v10885, %v10879
  %v10994 = vpack.c.b16 %v10886, %v10880
  %v10995 = vpack.c.b16 %v10893, %v10887
  %v10996 = vpack.c.b16 %v10894, %v10888
  %v10997 = vpack.c.b16 %v10895, %v10889
  %v10998 = vpack.c.b16 %v10896, %v10890
  %v10999 = vpack.c.b16 %v10897, %v10891
  %v11000 = vpack.c.b16 %v10898, %v10892
  %v11001 = vpack.c.b16 %v10905, %v10899
  %v11002 = vpack.c.b16 %v10906, %v10900
  %v11003 = vpack.c.b16 %v10907, %v10901
  %v11004 = vpack.c.b16 %v10908, %v10902
  %v11005 = vpack.c.b16 %v10909, %v10903
  %v11006 = vpack.c.b16 %v10910, %v10904
  %v11088 = vsel %vm8868, %v10916, 0
  %v11091 = vsel %vm8868, %v10922, 0
  %v11094 = vsel %vm8868, %v10928, 0
  %v11097 = vsel %vm8868, %v10934, 0
  %v11100 = vsel %vm8868, %v10940, 0
  %v11103 = vsel %vm8868, %v10946, 0
  %v11106 = vsel %vm8868, %v10952, 0
  %v11109 = vsel %vm8868, %v10958, 0
  %v11112 = vsel %vm8868, %v10964, 0
  %v11115 = vsel %vm8868, %v10970, 0
  %v11118 = vsel %vm8868, %v10976, 0
  %v11121 = vsel %vm8868, %v10982, 0
  %v11124 = vsel %vm8868, %v10988, 0
  %v11127 = vsel %vm8868, %v10994, 0
  %v11130 = vsel %vm8868, %v11000, 0
  %v11133 = vsel %vm8868, %v11006, 0
  %11135 = vmatprep.subr.bf16.mxu0 0
  %11136 = vmatpush1.bf16.msra.mxu0 %v8274
  %11137 = vmatprep.subr.bf16.mxu0 0
  %11138 = vmatpush1.bf16.msra.mxu0 %v8273
  %11139 = vmatprep.subr.bf16.mxu0 0
  %11140 = vmatpush1.bf16.msra.mxu0 %v8272
  %11141 = vmatprep.subr.bf16.mxu0 0
  %11142 = vmatpush1.bf16.msra.mxu0 %v8271
  %11143 = vmatprep.subr.bf16.mxu0 0
  %11144 = vmatpush1.bf16.msra.mxu0 %v8270
  %11145 = vmatprep.subr.bf16.mxu0 0
  %11146 = vmatpush1.bf16.msra.mxu0 %v8269
  %11147 = vmatprep.subr.bf16.mxu0 0
  %11148 = vmatpush1.bf16.msra.mxu0 %v8268
  %11149 = vmatprep.subr.bf16.mxu0 0
  %11150 = vmatpush1.bf16.msra.mxu0 %v8267
  %11151 = vmatprep.subr.bf16.mxu0 0
  %11152 = vmatpush2.bf16.msra.mxu0 %v8282
  %11153 = vmatprep.subr.bf16.mxu0 0
  %11154 = vmatpush2.bf16.msra.mxu0 %v8281
  %11155 = vmatprep.subr.bf16.mxu0 0
  %11156 = vmatpush2.bf16.msra.mxu0 %v8280
  %11157 = vmatprep.subr.bf16.mxu0 0
  %11158 = vmatpush2.bf16.msra.mxu0 %v8279
  %11159 = vmatprep.subr.bf16.mxu0 0
  %11160 = vmatpush2.bf16.msra.mxu0 %v8278
  %11161 = vmatprep.subr.bf16.mxu0 0
  %11162 = vmatpush2.bf16.msra.mxu0 %v8277
  %11163 = vmatprep.subr.bf16.mxu0 0
  %11164 = vmatpush2.bf16.msra.mxu0 %v8276
  %11165 = vmatprep.subr.bf16.mxu0 0
  %11166 = vmatpush2.bf16.msra.mxu0 %v8275
  %11167 = vmatprep.mubr.bf16.mxu0 %v10912
  %11168 = vmatmul.mubr.bf16.gmra.mxu0 %v10911
  %v11169 = vpop.f32.mrf.mxu0
  %v11170 = vadd.f32 0.0, %v11169
  %v11171 = vpop.f32.mrf.mxu0
  %v11172 = vpop.f32.mrf.mxu0
  %v11173 = vadd.f32 0.0, %v11172
  %v11174 = vpop.f32.mrf.mxu0
  %11175 = vmatprep.mubr.bf16.mxu0 %v10918
  %11176 = vmatmul.mubr.bf16.gmra.mxu0 %v10917
  %v11177 = vpop.f32.mrf.mxu0
  %v11178 = vadd.f32 0.0, %v11177
  %v11179 = vpop.f32.mrf.mxu0
  %v11180 = vpop.f32.mrf.mxu0
  %v11181 = vadd.f32 0.0, %v11180
  %v11182 = vpop.f32.mrf.mxu0
  %11183 = vmatprep.mubr.bf16.mxu0 %v10924
  %11184 = vmatmul.mubr.bf16.gmra.mxu0 %v10923
  %v11185 = vpop.f32.mrf.mxu0
  %v11186 = vadd.f32 0.0, %v11185
  %v11187 = vpop.f32.mrf.mxu0
  %v11188 = vpop.f32.mrf.mxu0
  %v11189 = vadd.f32 0.0, %v11188
  %v11190 = vpop.f32.mrf.mxu0
  %11191 = vmatprep.mubr.bf16.mxu0 %v10930
  %11192 = vmatmul.mubr.bf16.gmra.mxu0 %v10929
  %v11193 = vpop.f32.mrf.mxu0
  %v11194 = vadd.f32 0.0, %v11193
  %v11195 = vpop.f32.mrf.mxu0
  %v11196 = vpop.f32.mrf.mxu0
  %v11197 = vadd.f32 0.0, %v11196
  %v11198 = vpop.f32.mrf.mxu0
  %11199 = vmatprep.mubr.bf16.mxu0 %v10936
  %11200 = vmatmul.mubr.bf16.gmra.mxu0 %v10935
  %v11201 = vpop.f32.mrf.mxu0
  %v11202 = vadd.f32 0.0, %v11201
  %v11203 = vpop.f32.mrf.mxu0
  %v11204 = vpop.f32.mrf.mxu0
  %v11205 = vadd.f32 0.0, %v11204
  %v11206 = vpop.f32.mrf.mxu0
  %11207 = vmatprep.mubr.bf16.mxu0 %v10942
  %11208 = vmatmul.mubr.bf16.gmra.mxu0 %v10941
  %v11209 = vpop.f32.mrf.mxu0
  %v11210 = vadd.f32 0.0, %v11209
  %v11211 = vpop.f32.mrf.mxu0
  %v11212 = vpop.f32.mrf.mxu0
  %v11213 = vadd.f32 0.0, %v11212
  %v11214 = vpop.f32.mrf.mxu0
  %11215 = vmatprep.mubr.bf16.mxu0 %v10948
  %11216 = vmatmul.mubr.bf16.gmra.mxu0 %v10947
  %v11217 = vpop.f32.mrf.mxu0
  %v11218 = vadd.f32 0.0, %v11217
  %v11219 = vpop.f32.mrf.mxu0
  %v11220 = vpop.f32.mrf.mxu0
  %v11221 = vadd.f32 0.0, %v11220
  %v11222 = vpop.f32.mrf.mxu0
  %11223 = vmatprep.mubr.bf16.mxu0 %v10954
  %11224 = vmatmul.mubr.bf16.gmra.mxu0 %v10953
  %v11225 = vpop.f32.mrf.mxu0
  %v11226 = vadd.f32 0.0, %v11225
  %v11227 = vpop.f32.mrf.mxu0
  %v11228 = vpop.f32.mrf.mxu0
  %v11229 = vadd.f32 0.0, %v11228
  %v11230 = vpop.f32.mrf.mxu0
  %11231 = vmatprep.mubr.bf16.mxu0 %v10960
  %11232 = vmatmul.mubr.bf16.gmra.mxu0 %v10959
  %v11233 = vpop.f32.mrf.mxu0
  %v11234 = vadd.f32 0.0, %v11233
  %v11235 = vpop.f32.mrf.mxu0
  %v11236 = vpop.f32.mrf.mxu0
  %v11237 = vadd.f32 0.0, %v11236
  %v11238 = vpop.f32.mrf.mxu0
  %11239 = vmatprep.mubr.bf16.mxu0 %v10966
  %11240 = vmatmul.mubr.bf16.gmra.mxu0 %v10965
  %v11241 = vpop.f32.mrf.mxu0
  %v11242 = vadd.f32 0.0, %v11241
  %v11243 = vpop.f32.mrf.mxu0
  %v11244 = vpop.f32.mrf.mxu0
  %v11245 = vadd.f32 0.0, %v11244
  %v11246 = vpop.f32.mrf.mxu0
  %11247 = vmatprep.mubr.bf16.mxu0 %v10972
  %11248 = vmatmul.mubr.bf16.gmra.mxu0 %v10971
  %v11249 = vpop.f32.mrf.mxu0
  %v11250 = vadd.f32 0.0, %v11249
  %v11251 = vpop.f32.mrf.mxu0
  %v11252 = vpop.f32.mrf.mxu0
  %v11253 = vadd.f32 0.0, %v11252
  %v11254 = vpop.f32.mrf.mxu0
  %11255 = vmatprep.mubr.bf16.mxu0 %v10978
  %11256 = vmatmul.mubr.bf16.gmra.mxu0 %v10977
  %v11257 = vpop.f32.mrf.mxu0
  %v11258 = vadd.f32 0.0, %v11257
  %v11259 = vpop.f32.mrf.mxu0
  %v11260 = vpop.f32.mrf.mxu0
  %v11261 = vadd.f32 0.0, %v11260
  %v11262 = vpop.f32.mrf.mxu0
  %11263 = vmatprep.mubr.bf16.mxu0 %v10984
  %11264 = vmatmul.mubr.bf16.gmra.mxu0 %v10983
  %v11265 = vpop.f32.mrf.mxu0
  %v11266 = vadd.f32 0.0, %v11265
  %v11267 = vpop.f32.mrf.mxu0
  %v11268 = vpop.f32.mrf.mxu0
  %v11269 = vadd.f32 0.0, %v11268
  %v11270 = vpop.f32.mrf.mxu0
  %11271 = vmatprep.mubr.bf16.mxu0 %v10990
  %11272 = vmatmul.mubr.bf16.gmra.mxu0 %v10989
  %v11273 = vpop.f32.mrf.mxu0
  %v11274 = vadd.f32 0.0, %v11273
  %v11275 = vpop.f32.mrf.mxu0
  %v11276 = vpop.f32.mrf.mxu0
  %v11277 = vadd.f32 0.0, %v11276
  %v11278 = vpop.f32.mrf.mxu0
  %11279 = vmatprep.mubr.bf16.mxu0 %v10996
  %11280 = vmatmul.mubr.bf16.gmra.mxu0 %v10995
  %v11281 = vpop.f32.mrf.mxu0
  %v11282 = vadd.f32 0.0, %v11281
  %v11283 = vpop.f32.mrf.mxu0
  %v11284 = vpop.f32.mrf.mxu0
  %v11285 = vadd.f32 0.0, %v11284
  %v11286 = vpop.f32.mrf.mxu0
  %11287 = vmatprep.mubr.bf16.mxu0 %v11002
  %11288 = vmatmul.mubr.bf16.gmra.mxu0 %v11001
  %v11289 = vpop.f32.mrf.mxu0
  %v11290 = vadd.f32 0.0, %v11289
  %v11291 = vpop.f32.mrf.mxu0
  %v11292 = vpop.f32.mrf.mxu0
  %v11293 = vadd.f32 0.0, %v11292
  %v11294 = vpop.f32.mrf.mxu0
  %11295 = vdwg.mxu0
  %11296 = vmatprep.subr.bf16.mxu0 0
  %11297 = vmatpush1.bf16.msra.mxu0 %v8290
  %11298 = vmatprep.subr.bf16.mxu0 0
  %11299 = vmatpush1.bf16.msra.mxu0 %v8289
  %11300 = vmatprep.subr.bf16.mxu0 0
  %11301 = vmatpush1.bf16.msra.mxu0 %v8288
  %11302 = vmatprep.subr.bf16.mxu0 0
  %11303 = vmatpush1.bf16.msra.mxu0 %v8287
  %11304 = vmatprep.subr.bf16.mxu0 0
  %11305 = vmatpush1.bf16.msra.mxu0 %v8286
  %11306 = vmatprep.subr.bf16.mxu0 0
  %11307 = vmatpush1.bf16.msra.mxu0 %v8285
  %11308 = vmatprep.subr.bf16.mxu0 0
  %11309 = vmatpush1.bf16.msra.mxu0 %v8284
  %11310 = vmatprep.subr.bf16.mxu0 0
  %11311 = vmatpush1.bf16.msra.mxu0 %v8283
  %11312 = vmatprep.subr.bf16.mxu0 0
  %11313 = vmatpush2.bf16.msra.mxu0 %v8298
  %11314 = vmatprep.subr.bf16.mxu0 0
  %11315 = vmatpush2.bf16.msra.mxu0 %v8297
  %11316 = vmatprep.subr.bf16.mxu0 0
  %11317 = vmatpush2.bf16.msra.mxu0 %v8296
  %11318 = vmatprep.subr.bf16.mxu0 0
  %11319 = vmatpush2.bf16.msra.mxu0 %v8295
  %11320 = vmatprep.subr.bf16.mxu0 0
  %11321 = vmatpush2.bf16.msra.mxu0 %v8294
  %11322 = vmatprep.subr.bf16.mxu0 0
  %11323 = vmatpush2.bf16.msra.mxu0 %v8293
  %11324 = vmatprep.subr.bf16.mxu0 0
  %11325 = vmatpush2.bf16.msra.mxu0 %v8292
  %11326 = vmatprep.subr.bf16.mxu0 0
  %11327 = vmatpush2.bf16.msra.mxu0 %v8291
  %11328 = vmatprep.mubr.bf16.mxu0 %v10914
  %11329 = vmatmul.mubr.bf16.gmra.mxu0 %v10913
  %v11330 = vpop.f32.mrf.mxu0
  %v11331 = vadd.f32 %v11170, %v11330
  %v11332 = vpop.f32.mrf.mxu0
  %v11333 = vpop.f32.mrf.mxu0
  %v11334 = vadd.f32 %v11173, %v11333
  %v11335 = vpop.f32.mrf.mxu0
  %11336 = vmatprep.mubr.bf16.mxu0 %v10920
  %11337 = vmatmul.mubr.bf16.gmra.mxu0 %v10919
  %v11338 = vpop.f32.mrf.mxu0
  %v11339 = vadd.f32 %v11178, %v11338
  %v11340 = vpop.f32.mrf.mxu0
  %v11341 = vpop.f32.mrf.mxu0
  %v11342 = vadd.f32 %v11181, %v11341
  %v11343 = vpop.f32.mrf.mxu0
  %11344 = vmatprep.mubr.bf16.mxu0 %v10926
  %11345 = vmatmul.mubr.bf16.gmra.mxu0 %v10925
  %v11346 = vpop.f32.mrf.mxu0
  %v11347 = vadd.f32 %v11186, %v11346
  %v11348 = vpop.f32.mrf.mxu0
  %v11349 = vpop.f32.mrf.mxu0
  %v11350 = vadd.f32 %v11189, %v11349
  %v11351 = vpop.f32.mrf.mxu0
  %11352 = vmatprep.mubr.bf16.mxu0 %v10932
  %11353 = vmatmul.mubr.bf16.gmra.mxu0 %v10931
  %v11354 = vpop.f32.mrf.mxu0
  %v11355 = vadd.f32 %v11194, %v11354
  %v11356 = vpop.f32.mrf.mxu0
  %v11357 = vpop.f32.mrf.mxu0
  %v11358 = vadd.f32 %v11197, %v11357
  %v11359 = vpop.f32.mrf.mxu0
  %11360 = vmatprep.mubr.bf16.mxu0 %v10938
  %11361 = vmatmul.mubr.bf16.gmra.mxu0 %v10937
  %v11362 = vpop.f32.mrf.mxu0
  %v11363 = vadd.f32 %v11202, %v11362
  %v11364 = vpop.f32.mrf.mxu0
  %v11365 = vpop.f32.mrf.mxu0
  %v11366 = vadd.f32 %v11205, %v11365
  %v11367 = vpop.f32.mrf.mxu0
  %11368 = vmatprep.mubr.bf16.mxu0 %v10944
  %11369 = vmatmul.mubr.bf16.gmra.mxu0 %v10943
  %v11370 = vpop.f32.mrf.mxu0
  %v11371 = vadd.f32 %v11210, %v11370
  %v11372 = vpop.f32.mrf.mxu0
  %v11373 = vpop.f32.mrf.mxu0
  %v11374 = vadd.f32 %v11213, %v11373
  %v11375 = vpop.f32.mrf.mxu0
  %11376 = vmatprep.mubr.bf16.mxu0 %v10950
  %11377 = vmatmul.mubr.bf16.gmra.mxu0 %v10949
  %v11378 = vpop.f32.mrf.mxu0
  %v11379 = vadd.f32 %v11218, %v11378
  %v11380 = vpop.f32.mrf.mxu0
  %v11381 = vpop.f32.mrf.mxu0
  %v11382 = vadd.f32 %v11221, %v11381
  %v11383 = vpop.f32.mrf.mxu0
  %11384 = vmatprep.mubr.bf16.mxu0 %v10956
  %11385 = vmatmul.mubr.bf16.gmra.mxu0 %v10955
  %v11386 = vpop.f32.mrf.mxu0
  %v11387 = vadd.f32 %v11226, %v11386
  %v11388 = vpop.f32.mrf.mxu0
  %v11389 = vpop.f32.mrf.mxu0
  %v11390 = vadd.f32 %v11229, %v11389
  %v11391 = vpop.f32.mrf.mxu0
  %11392 = vmatprep.mubr.bf16.mxu0 %v10962
  %11393 = vmatmul.mubr.bf16.gmra.mxu0 %v10961
  %v11394 = vpop.f32.mrf.mxu0
  %v11395 = vadd.f32 %v11234, %v11394
  %v11396 = vpop.f32.mrf.mxu0
  %v11397 = vpop.f32.mrf.mxu0
  %v11398 = vadd.f32 %v11237, %v11397
  %v11399 = vpop.f32.mrf.mxu0
  %11400 = vmatprep.mubr.bf16.mxu0 %v10968
  %11401 = vmatmul.mubr.bf16.gmra.mxu0 %v10967
  %v11402 = vpop.f32.mrf.mxu0
  %v11403 = vadd.f32 %v11242, %v11402
  %v11404 = vpop.f32.mrf.mxu0
  %v11405 = vpop.f32.mrf.mxu0
  %v11406 = vadd.f32 %v11245, %v11405
  %v11407 = vpop.f32.mrf.mxu0
  %11408 = vmatprep.mubr.bf16.mxu0 %v10974
  %11409 = vmatmul.mubr.bf16.gmra.mxu0 %v10973
  %v11410 = vpop.f32.mrf.mxu0
  %v11411 = vadd.f32 %v11250, %v11410
  %v11412 = vpop.f32.mrf.mxu0
  %v11413 = vpop.f32.mrf.mxu0
  %v11414 = vadd.f32 %v11253, %v11413
  %v11415 = vpop.f32.mrf.mxu0
  %11416 = vmatprep.mubr.bf16.mxu0 %v10980
  %11417 = vmatmul.mubr.bf16.gmra.mxu0 %v10979
  %v11418 = vpop.f32.mrf.mxu0
  %v11419 = vadd.f32 %v11258, %v11418
  %v11420 = vpop.f32.mrf.mxu0
  %v11421 = vpop.f32.mrf.mxu0
  %v11422 = vadd.f32 %v11261, %v11421
  %v11423 = vpop.f32.mrf.mxu0
  %11424 = vmatprep.mubr.bf16.mxu0 %v10986
  %11425 = vmatmul.mubr.bf16.gmra.mxu0 %v10985
  %v11426 = vpop.f32.mrf.mxu0
  %v11427 = vadd.f32 %v11266, %v11426
  %v11428 = vpop.f32.mrf.mxu0
  %v11429 = vpop.f32.mrf.mxu0
  %v11430 = vadd.f32 %v11269, %v11429
  %v11431 = vpop.f32.mrf.mxu0
  %11432 = vmatprep.mubr.bf16.mxu0 %v10992
  %11433 = vmatmul.mubr.bf16.gmra.mxu0 %v10991
  %v11434 = vpop.f32.mrf.mxu0
  %v11435 = vadd.f32 %v11274, %v11434
  %v11436 = vpop.f32.mrf.mxu0
  %v11437 = vpop.f32.mrf.mxu0
  %v11438 = vadd.f32 %v11277, %v11437
  %v11439 = vpop.f32.mrf.mxu0
  %11440 = vmatprep.mubr.bf16.mxu0 %v10998
  %11441 = vmatmul.mubr.bf16.gmra.mxu0 %v10997
  %v11442 = vpop.f32.mrf.mxu0
  %v11443 = vadd.f32 %v11282, %v11442
  %v11444 = vpop.f32.mrf.mxu0
  %v11445 = vpop.f32.mrf.mxu0
  %v11446 = vadd.f32 %v11285, %v11445
  %v11447 = vpop.f32.mrf.mxu0
  %11448 = vmatprep.mubr.bf16.mxu0 %v11004
  %11449 = vmatmul.mubr.bf16.gmra.mxu0 %v11003
  %v11450 = vpop.f32.mrf.mxu0
  %v11451 = vadd.f32 %v11290, %v11450
  %v11452 = vpop.f32.mrf.mxu0
  %v11453 = vpop.f32.mrf.mxu0
  %v11454 = vadd.f32 %v11293, %v11453
  %v11455 = vpop.f32.mrf.mxu0
  %11456 = vdwg.mxu0
  %11457 = vmatprep.subr.bf16.mxu0 0
  %11458 = vmatpush1.bf16.msra.mxu0 %v8306
  %11459 = vmatprep.subr.bf16.mxu0 0
  %11460 = vmatpush1.bf16.msra.mxu0 %v8305
  %11461 = vmatprep.subr.bf16.mxu0 0
  %11462 = vmatpush1.bf16.msra.mxu0 %v8304
  %11463 = vmatprep.subr.bf16.mxu0 0
  %11464 = vmatpush1.bf16.msra.mxu0 %v8303
  %11465 = vmatprep.subr.bf16.mxu0 0
  %11466 = vmatpush1.bf16.msra.mxu0 %v8302
  %11467 = vmatprep.subr.bf16.mxu0 0
  %11468 = vmatpush1.bf16.msra.mxu0 %v8301
  %11469 = vmatprep.subr.bf16.mxu0 0
  %11470 = vmatpush1.bf16.msra.mxu0 %v8300
  %11471 = vmatprep.subr.bf16.mxu0 0
  %11472 = vmatpush1.bf16.msra.mxu0 %v8299
  %11473 = vmatprep.subr.bf16.mxu0 0
  %11474 = vmatpush2.bf16.msra.mxu0 0
  %11475 = vmatprep.subr.bf16.mxu0 0
  %11476 = vmatpush2.bf16.msra.mxu0 0
  %11477 = vmatprep.subr.bf16.mxu0 0
  %11478 = vmatpush2.bf16.msra.mxu0 0
  %11479 = vmatprep.subr.bf16.mxu0 0
  %11480 = vmatpush2.bf16.msra.mxu0 0
  %11481 = vmatprep.subr.bf16.mxu0 0
  %11482 = vmatpush2.bf16.msra.mxu0 0
  %11483 = vmatprep.subr.bf16.mxu0 0
  %11484 = vmatpush2.bf16.msra.mxu0 0
  %11485 = vmatprep.subr.bf16.mxu0 0
  %11486 = vmatpush2.bf16.msra.mxu0 0
  %11487 = vmatprep.subr.bf16.mxu0 0
  %11488 = vmatpush2.bf16.msra.mxu0 %v8919
  %11489 = vmatprep.mubr.bf16.mxu0 %v11088
  %11490 = vmatmul.mubr.bf16.gmra.mxu0 %v10915
  %v11491 = vpop.f32.mrf.mxu0
  %v11492 = vadd.f32 %v11331, %v11491
  %v11493 = vpop.f32.mrf.mxu0
  %v11494 = vpop.f32.mrf.mxu0
  %v11495 = vadd.f32 %v11334, %v11494
  %v11496 = vpop.f32.mrf.mxu0
  %11497 = vmatprep.mubr.bf16.mxu0 %v11091
  %11498 = vmatmul.mubr.bf16.gmra.mxu0 %v10921
  %v11499 = vpop.f32.mrf.mxu0
  %v11500 = vadd.f32 %v11339, %v11499
  %v11501 = vpop.f32.mrf.mxu0
  %v11502 = vpop.f32.mrf.mxu0
  %v11503 = vadd.f32 %v11342, %v11502
  %v11504 = vpop.f32.mrf.mxu0
  %11505 = vmatprep.mubr.bf16.mxu0 %v11094
  %11506 = vmatmul.mubr.bf16.gmra.mxu0 %v10927
  %v11507 = vpop.f32.mrf.mxu0
  %v11508 = vadd.f32 %v11347, %v11507
  %v11509 = vpop.f32.mrf.mxu0
  %v11510 = vpop.f32.mrf.mxu0
  %v11511 = vadd.f32 %v11350, %v11510
  %v11512 = vpop.f32.mrf.mxu0
  %11513 = vmatprep.mubr.bf16.mxu0 %v11097
  %11514 = vmatmul.mubr.bf16.gmra.mxu0 %v10933
  %v11515 = vpop.f32.mrf.mxu0
  %v11516 = vadd.f32 %v11355, %v11515
  %v11517 = vpop.f32.mrf.mxu0
  %v11518 = vpop.f32.mrf.mxu0
  %v11519 = vadd.f32 %v11358, %v11518
  %v11520 = vpop.f32.mrf.mxu0
  %11521 = vmatprep.mubr.bf16.mxu0 %v11100
  %11522 = vmatmul.mubr.bf16.gmra.mxu0 %v10939
  %v11523 = vpop.f32.mrf.mxu0
  %v11524 = vadd.f32 %v11363, %v11523
  %v11525 = vpop.f32.mrf.mxu0
  %v11526 = vpop.f32.mrf.mxu0
  %v11527 = vadd.f32 %v11366, %v11526
  %v11528 = vpop.f32.mrf.mxu0
  %11529 = vmatprep.mubr.bf16.mxu0 %v11103
  %11530 = vmatmul.mubr.bf16.gmra.mxu0 %v10945
  %v11531 = vpop.f32.mrf.mxu0
  %v11532 = vadd.f32 %v11371, %v11531
  %v11533 = vpop.f32.mrf.mxu0
  %v11534 = vpop.f32.mrf.mxu0
  %v11535 = vadd.f32 %v11374, %v11534
  %v11536 = vpop.f32.mrf.mxu0
  %11537 = vmatprep.mubr.bf16.mxu0 %v11106
  %11538 = vmatmul.mubr.bf16.gmra.mxu0 %v10951
  %v11539 = vpop.f32.mrf.mxu0
  %v11540 = vadd.f32 %v11379, %v11539
  %v11541 = vpop.f32.mrf.mxu0
  %v11542 = vpop.f32.mrf.mxu0
  %v11543 = vadd.f32 %v11382, %v11542
  %v11544 = vpop.f32.mrf.mxu0
  %11545 = vmatprep.mubr.bf16.mxu0 %v11109
  %11546 = vmatmul.mubr.bf16.gmra.mxu0 %v10957
  %v11547 = vpop.f32.mrf.mxu0
  %v11548 = vadd.f32 %v11387, %v11547
  %v11549 = vpop.f32.mrf.mxu0
  %v11550 = vpop.f32.mrf.mxu0
  %v11551 = vadd.f32 %v11390, %v11550
  %v11552 = vpop.f32.mrf.mxu0
  %11553 = vmatprep.mubr.bf16.mxu0 %v11112
  %11554 = vmatmul.mubr.bf16.gmra.mxu0 %v10963
  %v11555 = vpop.f32.mrf.mxu0
  %v11556 = vadd.f32 %v11395, %v11555
  %v11557 = vpop.f32.mrf.mxu0
  %v11558 = vpop.f32.mrf.mxu0
  %v11559 = vadd.f32 %v11398, %v11558
  %v11560 = vpop.f32.mrf.mxu0
  %11561 = vmatprep.mubr.bf16.mxu0 %v11115
  %11562 = vmatmul.mubr.bf16.gmra.mxu0 %v10969
  %v11563 = vpop.f32.mrf.mxu0
  %v11564 = vadd.f32 %v11403, %v11563
  %v11565 = vpop.f32.mrf.mxu0
  %v11566 = vpop.f32.mrf.mxu0
  %v11567 = vadd.f32 %v11406, %v11566
  %v11568 = vpop.f32.mrf.mxu0
  %11569 = vmatprep.mubr.bf16.mxu0 %v11118
  %11570 = vmatmul.mubr.bf16.gmra.mxu0 %v10975
  %v11571 = vpop.f32.mrf.mxu0
  %v11572 = vadd.f32 %v11411, %v11571
  %v11573 = vpop.f32.mrf.mxu0
  %v11574 = vpop.f32.mrf.mxu0
  %v11575 = vadd.f32 %v11414, %v11574
  %v11576 = vpop.f32.mrf.mxu0
  %11577 = vmatprep.mubr.bf16.mxu0 %v11121
  %11578 = vmatmul.mubr.bf16.gmra.mxu0 %v10981
  %v11579 = vpop.f32.mrf.mxu0
  %v11580 = vadd.f32 %v11419, %v11579
  %v11581 = vpop.f32.mrf.mxu0
  %v11582 = vpop.f32.mrf.mxu0
  %v11583 = vadd.f32 %v11422, %v11582
  %v11584 = vpop.f32.mrf.mxu0
  %11585 = vmatprep.mubr.bf16.mxu0 %v11124
  %11586 = vmatmul.mubr.bf16.gmra.mxu0 %v10987
  %v11587 = vpop.f32.mrf.mxu0
  %v11588 = vadd.f32 %v11427, %v11587
  %v11589 = vpop.f32.mrf.mxu0
  %v11590 = vpop.f32.mrf.mxu0
  %v11591 = vadd.f32 %v11430, %v11590
  %v11592 = vpop.f32.mrf.mxu0
  %11593 = vmatprep.mubr.bf16.mxu0 %v11127
  %11594 = vmatmul.mubr.bf16.gmra.mxu0 %v10993
  %v11595 = vpop.f32.mrf.mxu0
  %v11596 = vadd.f32 %v11435, %v11595
  %v11597 = vpop.f32.mrf.mxu0
  %v11598 = vpop.f32.mrf.mxu0
  %v11599 = vadd.f32 %v11438, %v11598
  %v11600 = vpop.f32.mrf.mxu0
  %11601 = vmatprep.mubr.bf16.mxu0 %v11130
  %11602 = vmatmul.mubr.bf16.gmra.mxu0 %v10999
  %v11603 = vpop.f32.mrf.mxu0
  %v11604 = vadd.f32 %v11443, %v11603
  %v11605 = vpop.f32.mrf.mxu0
  %v11606 = vpop.f32.mrf.mxu0
  %v11607 = vadd.f32 %v11446, %v11606
  %v11608 = vpop.f32.mrf.mxu0
  %11609 = vmatprep.mubr.bf16.mxu0 %v11133
  %11610 = vmatmul.mubr.bf16.gmra.mxu0 %v11005
  %v11611 = vpop.f32.mrf.mxu0
  %v11612 = vadd.f32 %v11451, %v11611
  %v11613 = vpop.f32.mrf.mxu0
  %v11614 = vpop.f32.mrf.mxu0
  %v11615 = vadd.f32 %v11454, %v11614
  %v11616 = vpop.f32.mrf.mxu0
  %11617 = vdwg.mxu0
  %v11618 = vmax.f32 %v10495, %v11492
  %v11619 = vmax.f32 %v10496, %v11495
  %v11620 = vmax.f32 %v10497, %v11500
  %v11621 = vmax.f32 %v10498, %v11503
  %v11622 = vmax.f32 %v10499, %v11508
  %v11623 = vmax.f32 %v10500, %v11511
  %v11624 = vmax.f32 %v10501, %v11516
  %v11625 = vmax.f32 %v10502, %v11519
  %v11626 = vmax.f32 %v10503, %v11524
  %v11627 = vmax.f32 %v10504, %v11527
  %v11628 = vmax.f32 %v10505, %v11532
  %v11629 = vmax.f32 %v10506, %v11535
  %v11630 = vmax.f32 %v10507, %v11540
  %v11631 = vmax.f32 %v10508, %v11543
  %v11632 = vmax.f32 %v10509, %v11548
  %v11633 = vmax.f32 %v10510, %v11551
  %v11634 = vmax.f32 %v10511, %v11556
  %v11635 = vmax.f32 %v10512, %v11559
  %v11636 = vmax.f32 %v10513, %v11564
  %v11637 = vmax.f32 %v10514, %v11567
  %v11638 = vmax.f32 %v10515, %v11572
  %v11639 = vmax.f32 %v10516, %v11575
  %v11640 = vmax.f32 %v10517, %v11580
  %v11641 = vmax.f32 %v10518, %v11583
  %v11642 = vmax.f32 %v10519, %v11588
  %v11643 = vmax.f32 %v10520, %v11591
  %v11644 = vmax.f32 %v10521, %v11596
  %v11645 = vmax.f32 %v10522, %v11599
  %v11646 = vmax.f32 %v10523, %v11604
  %v11647 = vmax.f32 %v10524, %v11607
  %v11648 = vmax.f32 %v10525, %v11612
  %v11649 = vmax.f32 %v10526, %v11615
  %v11650 = vld [vmem:[%s9] sm:$0xff]
  %v11651 = vld [vmem:[%s9 + $0x8] sm:$0xff]
  %v11652 = vld [vmem:[%s9 + $0x10] sm:$0xff]
  %v11653 = vld [vmem:[%s9 + $0x18] sm:$0xff]
  %v11654 = vld [vmem:[%s9 + $0x20] sm:$0xff]
  %v11655 = vld [vmem:[%s9 + $0x28] sm:$0xff]
  %v11656 = vld [vmem:[%s9 + $0x30] sm:$0xff]
  %v11657 = vld [vmem:[%s9 + $0x38] sm:$0xff]
  %v11658 = vld [vmem:[%s9 + $0x40] sm:$0xff]
  %v11659 = vld [vmem:[%s9 + $0x48] sm:$0xff]
  %v11660 = vld [vmem:[%s9 + $0x50] sm:$0xff]
  %v11661 = vld [vmem:[%s9 + $0x58] sm:$0xff]
  %v11662 = vld [vmem:[%s9 + $0x60] sm:$0xff]
  %v11663 = vld [vmem:[%s9 + $0x68] sm:$0xff]
  %v11664 = vld [vmem:[%s9 + $0x70] sm:$0xff]
  %v11665 = vld [vmem:[%s9 + $0x78] sm:$0xff]
  %v11666 = vld [vmem:[%s9 + $0x80] sm:$0xff]
  %v11667 = vld [vmem:[%s9 + $0x88] sm:$0xff]
  %v11668 = vld [vmem:[%s9 + $0x90] sm:$0xff]
  %v11669 = vld [vmem:[%s9 + $0x98] sm:$0xff]
  %v11670 = vld [vmem:[%s9 + $0xa0] sm:$0xff]
  %v11671 = vld [vmem:[%s9 + $0xa8] sm:$0xff]
  %v11672 = vld [vmem:[%s9 + $0xb0] sm:$0xff]
  %v11673 = vld [vmem:[%s9 + $0xb8] sm:$0xff]
  %v11674 = vld [vmem:[%s9 + $0xc0] sm:$0xff]
  %v11675 = vld [vmem:[%s9 + $0xc8] sm:$0xff]
  %v11676 = vld [vmem:[%s9 + $0xd0] sm:$0xff]
  %v11677 = vld [vmem:[%s9 + $0xd8] sm:$0xff]
  %v11678 = vld [vmem:[%s9 + $0xe0] sm:$0xff]
  %v11679 = vld [vmem:[%s9 + $0xe8] sm:$0xff]
  %v11680 = vld [vmem:[%s9 + $0xf0] sm:$0xff]
  %v11681 = vld [vmem:[%s9 + $0xf8] sm:$0xff]
  %v11682 = vld [vmem:[%s9 + $0x100] sm:$0xff]
  %v11683 = vld [vmem:[%s9 + $0x108] sm:$0xff]
  %v11684 = vld [vmem:[%s9 + $0x110] sm:$0xff]
  %v11685 = vld [vmem:[%s9 + $0x118] sm:$0xff]
  %v11686 = vld [vmem:[%s9 + $0x120] sm:$0xff]
  %v11687 = vld [vmem:[%s9 + $0x128] sm:$0xff]
  %v11688 = vld [vmem:[%s9 + $0x130] sm:$0xff]
  %v11689 = vld [vmem:[%s9 + $0x138] sm:$0xff]
  %v11690 = vld [vmem:[%s9 + $0x140] sm:$0xff]
  %v11691 = vld [vmem:[%s9 + $0x148] sm:$0xff]
  %v11692 = vld [vmem:[%s9 + $0x150] sm:$0xff]
  %v11693 = vld [vmem:[%s9 + $0x158] sm:$0xff]
  %v11694 = vld [vmem:[%s9 + $0x160] sm:$0xff]
  %v11695 = vld [vmem:[%s9 + $0x168] sm:$0xff]
  %v11696 = vld [vmem:[%s9 + $0x170] sm:$0xff]
  %v11697 = vld [vmem:[%s9 + $0x178] sm:$0xff]
  %v11698 = vld [vmem:[%s9 + $0x180] sm:$0xff]
  %v11699 = vld [vmem:[%s9 + $0x188] sm:$0xff]
  %v11700 = vld [vmem:[%s9 + $0x190] sm:$0xff]
  %v11701 = vld [vmem:[%s9 + $0x198] sm:$0xff]
  %v11702 = vld [vmem:[%s9 + $0x1a0] sm:$0xff]
  %v11703 = vld [vmem:[%s9 + $0x1a8] sm:$0xff]
  %v11704 = vld [vmem:[%s9 + $0x1b0] sm:$0xff]
  %v11705 = vld [vmem:[%s9 + $0x1b8] sm:$0xff]
  %v11706 = vld [vmem:[%s9 + $0x1c0] sm:$0xff]
  %v11707 = vld [vmem:[%s9 + $0x1c8] sm:$0xff]
  %v11708 = vld [vmem:[%s9 + $0x1d0] sm:$0xff]
  %v11709 = vld [vmem:[%s9 + $0x1d8] sm:$0xff]
  %v11710 = vld [vmem:[%s9 + $0x1e0] sm:$0xff]
  %v11711 = vld [vmem:[%s9 + $0x1e8] sm:$0xff]
  %v11712 = vld [vmem:[%s9 + $0x1f0] sm:$0xff]
  %v11713 = vld [vmem:[%s9 + $0x1f8] sm:$0xff]
  %v11714 = vld [vmem:[%s9 + $0x200] sm:$0xff]
  %v11715 = vld [vmem:[%s9 + $0x208] sm:$0xff]
  %v11716 = vld [vmem:[%s9 + $0x210] sm:$0xff]
  %v11717 = vld [vmem:[%s9 + $0x218] sm:$0xff]
  %v11718 = vld [vmem:[%s9 + $0x220] sm:$0xff]
  %v11719 = vld [vmem:[%s9 + $0x228] sm:$0xff]
  %v11720 = vld [vmem:[%s9 + $0x230] sm:$0xff]
  %v11721 = vld [vmem:[%s9 + $0x238] sm:$0xff]
  %v11722 = vld [vmem:[%s9 + $0x240] sm:$0xff]
  %v11723 = vld [vmem:[%s9 + $0x248] sm:$0xff]
  %v11724 = vld [vmem:[%s9 + $0x250] sm:$0xff]
  %v11725 = vld [vmem:[%s9 + $0x258] sm:$0xff]
  %v11726 = vld [vmem:[%s9 + $0x260] sm:$0xff]
  %v11727 = vld [vmem:[%s9 + $0x268] sm:$0xff]
  %v11728 = vld [vmem:[%s9 + $0x270] sm:$0xff]
  %v11729 = vld [vmem:[%s9 + $0x278] sm:$0xff]
  %v11730 = vld [vmem:[%s9 + $0x280] sm:$0xff]
  %v11731 = vld [vmem:[%s9 + $0x288] sm:$0xff]
  %v11732 = vld [vmem:[%s9 + $0x290] sm:$0xff]
  %v11733 = vld [vmem:[%s9 + $0x298] sm:$0xff]
  %v11734 = vld [vmem:[%s9 + $0x2a0] sm:$0xff]
  %v11735 = vld [vmem:[%s9 + $0x2a8] sm:$0xff]
  %v11736 = vld [vmem:[%s9 + $0x2b0] sm:$0xff]
  %v11737 = vld [vmem:[%s9 + $0x2b8] sm:$0xff]
  %v11738 = vld [vmem:[%s9 + $0x2c0] sm:$0xff]
  %v11739 = vld [vmem:[%s9 + $0x2c8] sm:$0xff]
  %v11740 = vld [vmem:[%s9 + $0x2d0] sm:$0xff]
  %v11741 = vld [vmem:[%s9 + $0x2d8] sm:$0xff]
  %v11742 = vld [vmem:[%s9 + $0x2e0] sm:$0xff]
  %v11743 = vld [vmem:[%s9 + $0x2e8] sm:$0xff]
  %v11744 = vld [vmem:[%s9 + $0x2f0] sm:$0xff]
  %v11745 = vld [vmem:[%s9 + $0x2f8] sm:$0xff]
  %v11842 = vunpack.c.l.b16 %v11650
  %v11843 = vunpack.c.h.b16 %v11650
  %v11844 = vunpack.c.l.b16 %v11651
  %v11845 = vunpack.c.h.b16 %v11651
  %v11846 = vunpack.c.l.b16 %v11652
  %v11847 = vunpack.c.h.b16 %v11652
  %v11848 = vunpack.c.l.b16 %v11653
  %v11849 = vunpack.c.h.b16 %v11653
  %v11850 = vunpack.c.l.b16 %v11654
  %v11851 = vunpack.c.h.b16 %v11654
  %v11852 = vunpack.c.l.b16 %v11655
  %v11853 = vunpack.c.h.b16 %v11655
  %v11854 = vunpack.c.l.b16 %v11656
  %v11855 = vunpack.c.h.b16 %v11656
  %v11856 = vunpack.c.l.b16 %v11657
  %v11857 = vunpack.c.h.b16 %v11657
  %v11858 = vunpack.c.l.b16 %v11658
  %v11859 = vunpack.c.h.b16 %v11658
  %v11860 = vunpack.c.l.b16 %v11659
  %v11861 = vunpack.c.h.b16 %v11659
  %v11862 = vunpack.c.l.b16 %v11660
  %v11863 = vunpack.c.h.b16 %v11660
  %v11864 = vunpack.c.l.b16 %v11661
  %v11865 = vunpack.c.h.b16 %v11661
  %v11866 = vunpack.c.l.b16 %v11662
  %v11867 = vunpack.c.h.b16 %v11662
  %v11868 = vunpack.c.l.b16 %v11663
  %v11869 = vunpack.c.h.b16 %v11663
  %v11870 = vunpack.c.l.b16 %v11664
  %v11871 = vunpack.c.h.b16 %v11664
  %v11872 = vunpack.c.l.b16 %v11665
  %v11873 = vunpack.c.h.b16 %v11665
  %v11874 = vunpack.c.l.b16 %v11666
  %v11875 = vunpack.c.h.b16 %v11666
  %v11876 = vunpack.c.l.b16 %v11667
  %v11877 = vunpack.c.h.b16 %v11667
  %v11878 = vunpack.c.l.b16 %v11668
  %v11879 = vunpack.c.h.b16 %v11668
  %v11880 = vunpack.c.l.b16 %v11669
  %v11881 = vunpack.c.h.b16 %v11669
  %v11882 = vunpack.c.l.b16 %v11670
  %v11883 = vunpack.c.h.b16 %v11670
  %v11884 = vunpack.c.l.b16 %v11671
  %v11885 = vunpack.c.h.b16 %v11671
  %v11886 = vunpack.c.l.b16 %v11672
  %v11887 = vunpack.c.h.b16 %v11672
  %v11888 = vunpack.c.l.b16 %v11673
  %v11889 = vunpack.c.h.b16 %v11673
  %v11890 = vunpack.c.l.b16 %v11674
  %v11891 = vunpack.c.h.b16 %v11674
  %v11892 = vunpack.c.l.b16 %v11675
  %v11893 = vunpack.c.h.b16 %v11675
  %v11894 = vunpack.c.l.b16 %v11676
  %v11895 = vunpack.c.h.b16 %v11676
  %v11896 = vunpack.c.l.b16 %v11677
  %v11897 = vunpack.c.h.b16 %v11677
  %v11898 = vunpack.c.l.b16 %v11678
  %v11899 = vunpack.c.h.b16 %v11678
  %v11900 = vunpack.c.l.b16 %v11679
  %v11901 = vunpack.c.h.b16 %v11679
  %v11902 = vunpack.c.l.b16 %v11680
  %v11903 = vunpack.c.h.b16 %v11680
  %v11904 = vunpack.c.l.b16 %v11681
  %v11905 = vunpack.c.h.b16 %v11681
  %v11906 = vunpack.c.l.b16 %v11682
  %v11907 = vunpack.c.h.b16 %v11682
  %v11908 = vunpack.c.l.b16 %v11683
  %v11909 = vunpack.c.h.b16 %v11683
  %v11910 = vunpack.c.l.b16 %v11684
  %v11911 = vunpack.c.h.b16 %v11684
  %v11912 = vunpack.c.l.b16 %v11685
  %v11913 = vunpack.c.h.b16 %v11685
  %v11914 = vunpack.c.l.b16 %v11686
  %v11915 = vunpack.c.h.b16 %v11686
  %v11916 = vunpack.c.l.b16 %v11687
  %v11917 = vunpack.c.h.b16 %v11687
  %v11918 = vunpack.c.l.b16 %v11688
  %v11919 = vunpack.c.h.b16 %v11688
  %v11920 = vunpack.c.l.b16 %v11689
  %v11921 = vunpack.c.h.b16 %v11689
  %v11922 = vunpack.c.l.b16 %v11690
  %v11923 = vunpack.c.h.b16 %v11690
  %v11924 = vunpack.c.l.b16 %v11691
  %v11925 = vunpack.c.h.b16 %v11691
  %v11926 = vunpack.c.l.b16 %v11692
  %v11927 = vunpack.c.h.b16 %v11692
  %v11928 = vunpack.c.l.b16 %v11693
  %v11929 = vunpack.c.h.b16 %v11693
  %v11930 = vunpack.c.l.b16 %v11694
  %v11931 = vunpack.c.h.b16 %v11694
  %v11932 = vunpack.c.l.b16 %v11695
  %v11933 = vunpack.c.h.b16 %v11695
  %v11934 = vunpack.c.l.b16 %v11696
  %v11935 = vunpack.c.h.b16 %v11696
  %v11936 = vunpack.c.l.b16 %v11697
  %v11937 = vunpack.c.h.b16 %v11697
  %v11938 = vunpack.c.l.b16 %v11698
  %v11939 = vunpack.c.h.b16 %v11698
  %v11940 = vunpack.c.l.b16 %v11699
  %v11941 = vunpack.c.h.b16 %v11699
  %v11942 = vunpack.c.l.b16 %v11700
  %v11943 = vunpack.c.h.b16 %v11700
  %v11944 = vunpack.c.l.b16 %v11701
  %v11945 = vunpack.c.h.b16 %v11701
  %v11946 = vunpack.c.l.b16 %v11702
  %v11947 = vunpack.c.h.b16 %v11702
  %v11948 = vunpack.c.l.b16 %v11703
  %v11949 = vunpack.c.h.b16 %v11703
  %v11950 = vunpack.c.l.b16 %v11704
  %v11951 = vunpack.c.h.b16 %v11704
  %v11952 = vunpack.c.l.b16 %v11705
  %v11953 = vunpack.c.h.b16 %v11705
  %v11954 = vunpack.c.l.b16 %v11706
  %v11955 = vunpack.c.h.b16 %v11706
  %v11956 = vunpack.c.l.b16 %v11707
  %v11957 = vunpack.c.h.b16 %v11707
  %v11958 = vunpack.c.l.b16 %v11708
  %v11959 = vunpack.c.h.b16 %v11708
  %v11960 = vunpack.c.l.b16 %v11709
  %v11961 = vunpack.c.h.b16 %v11709
  %v11962 = vunpack.c.l.b16 %v11710
  %v11963 = vunpack.c.h.b16 %v11710
  %v11964 = vunpack.c.l.b16 %v11711
  %v11965 = vunpack.c.h.b16 %v11711
  %v11966 = vunpack.c.l.b16 %v11712
  %v11967 = vunpack.c.h.b16 %v11712
  %v11968 = vunpack.c.l.b16 %v11713
  %v11969 = vunpack.c.h.b16 %v11713
  %v11970 = vunpack.c.l.b16 %v11714
  %v11971 = vunpack.c.h.b16 %v11714
  %v11972 = vunpack.c.l.b16 %v11715
  %v11973 = vunpack.c.h.b16 %v11715
  %v11974 = vunpack.c.l.b16 %v11716
  %v11975 = vunpack.c.h.b16 %v11716
  %v11976 = vunpack.c.l.b16 %v11717
  %v11977 = vunpack.c.h.b16 %v11717
  %v11978 = vunpack.c.l.b16 %v11718
  %v11979 = vunpack.c.h.b16 %v11718
  %v11980 = vunpack.c.l.b16 %v11719
  %v11981 = vunpack.c.h.b16 %v11719
  %v11982 = vunpack.c.l.b16 %v11720
  %v11983 = vunpack.c.h.b16 %v11720
  %v11984 = vunpack.c.l.b16 %v11721
  %v11985 = vunpack.c.h.b16 %v11721
  %v11986 = vunpack.c.l.b16 %v11722
  %v11987 = vunpack.c.h.b16 %v11722
  %v11988 = vunpack.c.l.b16 %v11723
  %v11989 = vunpack.c.h.b16 %v11723
  %v11990 = vunpack.c.l.b16 %v11724
  %v11991 = vunpack.c.h.b16 %v11724
  %v11992 = vunpack.c.l.b16 %v11725
  %v11993 = vunpack.c.h.b16 %v11725
  %v11994 = vunpack.c.l.b16 %v11726
  %v11995 = vunpack.c.h.b16 %v11726
  %v11996 = vunpack.c.l.b16 %v11727
  %v11997 = vunpack.c.h.b16 %v11727
  %v11998 = vunpack.c.l.b16 %v11728
  %v11999 = vunpack.c.h.b16 %v11728
  %v12000 = vunpack.c.l.b16 %v11729
  %v12001 = vunpack.c.h.b16 %v11729
  %v12002 = vunpack.c.l.b16 %v11730
  %v12003 = vunpack.c.h.b16 %v11730
  %v12004 = vunpack.c.l.b16 %v11731
  %v12005 = vunpack.c.h.b16 %v11731
  %v12006 = vunpack.c.l.b16 %v11732
  %v12007 = vunpack.c.h.b16 %v11732
  %v12008 = vunpack.c.l.b16 %v11733
  %v12009 = vunpack.c.h.b16 %v11733
  %v12010 = vunpack.c.l.b16 %v11734
  %v12011 = vunpack.c.h.b16 %v11734
  %v12012 = vunpack.c.l.b16 %v11735
  %v12013 = vunpack.c.h.b16 %v11735
  %v12014 = vunpack.c.l.b16 %v11736
  %v12015 = vunpack.c.h.b16 %v11736
  %v12016 = vunpack.c.l.b16 %v11737
  %v12017 = vunpack.c.h.b16 %v11737
  %v12018 = vunpack.c.l.b16 %v11738
  %v12019 = vunpack.c.h.b16 %v11738
  %v12020 = vunpack.c.l.b16 %v11739
  %v12021 = vunpack.c.h.b16 %v11739
  %v12022 = vunpack.c.l.b16 %v11740
  %v12023 = vunpack.c.h.b16 %v11740
  %v12024 = vunpack.c.l.b16 %v11741
  %v12025 = vunpack.c.h.b16 %v11741
  %v12026 = vunpack.c.l.b16 %v11742
  %v12027 = vunpack.c.h.b16 %v11742
  %v12028 = vunpack.c.l.b16 %v11743
  %v12029 = vunpack.c.h.b16 %v11743
  %v12030 = vunpack.c.l.b16 %v11744
  %v12031 = vunpack.c.h.b16 %v11744
  %v12032 = vunpack.c.l.b16 %v11745
  %v12033 = vunpack.c.h.b16 %v11745
  %v12034 = vpack.c.b16 %v11848, %v11842
  %v12035 = vpack.c.b16 %v11849, %v11843
  %v12036 = vpack.c.b16 %v11850, %v11844
  %v12037 = vpack.c.b16 %v11851, %v11845
  %v12038 = vpack.c.b16 %v11852, %v11846
  %v12039 = vpack.c.b16 %v11853, %v11847
  %v12040 = vpack.c.b16 %v11860, %v11854
  %v12041 = vpack.c.b16 %v11861, %v11855
  %v12042 = vpack.c.b16 %v11862, %v11856
  %v12043 = vpack.c.b16 %v11863, %v11857
  %v12044 = vpack.c.b16 %v11864, %v11858
  %v12045 = vpack.c.b16 %v11865, %v11859
  %v12046 = vpack.c.b16 %v11872, %v11866
  %v12047 = vpack.c.b16 %v11873, %v11867
  %v12048 = vpack.c.b16 %v11874, %v11868
  %v12049 = vpack.c.b16 %v11875, %v11869
  %v12050 = vpack.c.b16 %v11876, %v11870
  %v12051 = vpack.c.b16 %v11877, %v11871
  %v12052 = vpack.c.b16 %v11884, %v11878
  %v12053 = vpack.c.b16 %v11885, %v11879
  %v12054 = vpack.c.b16 %v11886, %v11880
  %v12055 = vpack.c.b16 %v11887, %v11881
  %v12056 = vpack.c.b16 %v11888, %v11882
  %v12057 = vpack.c.b16 %v11889, %v11883
  %v12058 = vpack.c.b16 %v11896, %v11890
  %v12059 = vpack.c.b16 %v11897, %v11891
  %v12060 = vpack.c.b16 %v11898, %v11892
  %v12061 = vpack.c.b16 %v11899, %v11893
  %v12062 = vpack.c.b16 %v11900, %v11894
  %v12063 = vpack.c.b16 %v11901, %v11895
  %v12064 = vpack.c.b16 %v11908, %v11902
  %v12065 = vpack.c.b16 %v11909, %v11903
  %v12066 = vpack.c.b16 %v11910, %v11904
  %v12067 = vpack.c.b16 %v11911, %v11905
  %v12068 = vpack.c.b16 %v11912, %v11906
  %v12069 = vpack.c.b16 %v11913, %v11907
  %v12070 = vpack.c.b16 %v11920, %v11914
  %v12071 = vpack.c.b16 %v11921, %v11915
  %v12072 = vpack.c.b16 %v11922, %v11916
  %v12073 = vpack.c.b16 %v11923, %v11917
  %v12074 = vpack.c.b16 %v11924, %v11918
  %v12075 = vpack.c.b16 %v11925, %v11919
  %v12076 = vpack.c.b16 %v11932, %v11926
  %v12077 = vpack.c.b16 %v11933, %v11927
  %v12078 = vpack.c.b16 %v11934, %v11928
  %v12079 = vpack.c.b16 %v11935, %v11929
  %v12080 = vpack.c.b16 %v11936, %v11930
  %v12081 = vpack.c.b16 %v11937, %v11931
  %v12082 = vpack.c.b16 %v11944, %v11938
  %v12083 = vpack.c.b16 %v11945, %v11939
  %v12084 = vpack.c.b16 %v11946, %v11940
  %v12085 = vpack.c.b16 %v11947, %v11941
  %v12086 = vpack.c.b16 %v11948, %v11942
  %v12087 = vpack.c.b16 %v11949, %v11943
  %v12088 = vpack.c.b16 %v11956, %v11950
  %v12089 = vpack.c.b16 %v11957, %v11951
  %v12090 = vpack.c.b16 %v11958, %v11952
  %v12091 = vpack.c.b16 %v11959, %v11953
  %v12092 = vpack.c.b16 %v11960, %v11954
  %v12093 = vpack.c.b16 %v11961, %v11955
  %v12094 = vpack.c.b16 %v11968, %v11962
  %v12095 = vpack.c.b16 %v11969, %v11963
  %v12096 = vpack.c.b16 %v11970, %v11964
  %v12097 = vpack.c.b16 %v11971, %v11965
  %v12098 = vpack.c.b16 %v11972, %v11966
  %v12099 = vpack.c.b16 %v11973, %v11967
  %v12100 = vpack.c.b16 %v11980, %v11974
  %v12101 = vpack.c.b16 %v11981, %v11975
  %v12102 = vpack.c.b16 %v11982, %v11976
  %v12103 = vpack.c.b16 %v11983, %v11977
  %v12104 = vpack.c.b16 %v11984, %v11978
  %v12105 = vpack.c.b16 %v11985, %v11979
  %v12106 = vpack.c.b16 %v11992, %v11986
  %v12107 = vpack.c.b16 %v11993, %v11987
  %v12108 = vpack.c.b16 %v11994, %v11988
  %v12109 = vpack.c.b16 %v11995, %v11989
  %v12110 = vpack.c.b16 %v11996, %v11990
  %v12111 = vpack.c.b16 %v11997, %v11991
  %v12112 = vpack.c.b16 %v12004, %v11998
  %v12113 = vpack.c.b16 %v12005, %v11999
  %v12114 = vpack.c.b16 %v12006, %v12000
  %v12115 = vpack.c.b16 %v12007, %v12001
  %v12116 = vpack.c.b16 %v12008, %v12002
  %v12117 = vpack.c.b16 %v12009, %v12003
  %v12118 = vpack.c.b16 %v12016, %v12010
  %v12119 = vpack.c.b16 %v12017, %v12011
  %v12120 = vpack.c.b16 %v12018, %v12012
  %v12121 = vpack.c.b16 %v12019, %v12013
  %v12122 = vpack.c.b16 %v12020, %v12014
  %v12123 = vpack.c.b16 %v12021, %v12015
  %v12124 = vpack.c.b16 %v12028, %v12022
  %v12125 = vpack.c.b16 %v12029, %v12023
  %v12126 = vpack.c.b16 %v12030, %v12024
  %v12127 = vpack.c.b16 %v12031, %v12025
  %v12128 = vpack.c.b16 %v12032, %v12026
  %v12129 = vpack.c.b16 %v12033, %v12027
  %v12211 = vsel %vm8868, %v12039, 0
  %v12214 = vsel %vm8868, %v12045, 0
  %v12217 = vsel %vm8868, %v12051, 0
  %v12220 = vsel %vm8868, %v12057, 0
  %v12223 = vsel %vm8868, %v12063, 0
  %v12226 = vsel %vm8868, %v12069, 0
  %v12229 = vsel %vm8868, %v12075, 0
  %v12232 = vsel %vm8868, %v12081, 0
  %v12235 = vsel %vm8868, %v12087, 0
  %v12238 = vsel %vm8868, %v12093, 0
  %v12241 = vsel %vm8868, %v12099, 0
  %v12244 = vsel %vm8868, %v12105, 0
  %v12247 = vsel %vm8868, %v12111, 0
  %v12250 = vsel %vm8868, %v12117, 0
  %v12253 = vsel %vm8868, %v12123, 0
  %v12256 = vsel %vm8868, %v12129, 0
  %12258 = vmatprep.subr.bf16.mxu0 0
  %12259 = vmatpush1.bf16.msra.mxu0 %v8274
  %12260 = vmatprep.subr.bf16.mxu0 0
  %12261 = vmatpush1.bf16.msra.mxu0 %v8273
  %12262 = vmatprep.subr.bf16.mxu0 0
  %12263 = vmatpush1.bf16.msra.mxu0 %v8272
  %12264 = vmatprep.subr.bf16.mxu0 0
  %12265 = vmatpush1.bf16.msra.mxu0 %v8271
  %12266 = vmatprep.subr.bf16.mxu0 0
  %12267 = vmatpush1.bf16.msra.mxu0 %v8270
  %12268 = vmatprep.subr.bf16.mxu0 0
  %12269 = vmatpush1.bf16.msra.mxu0 %v8269
  %12270 = vmatprep.subr.bf16.mxu0 0
  %12271 = vmatpush1.bf16.msra.mxu0 %v8268
  %12272 = vmatprep.subr.bf16.mxu0 0
  %12273 = vmatpush1.bf16.msra.mxu0 %v8267
  %12274 = vmatprep.subr.bf16.mxu0 0
  %12275 = vmatpush2.bf16.msra.mxu0 %v8282
  %12276 = vmatprep.subr.bf16.mxu0 0
  %12277 = vmatpush2.bf16.msra.mxu0 %v8281
  %12278 = vmatprep.subr.bf16.mxu0 0
  %12279 = vmatpush2.bf16.msra.mxu0 %v8280
  %12280 = vmatprep.subr.bf16.mxu0 0
  %12281 = vmatpush2.bf16.msra.mxu0 %v8279
  %12282 = vmatprep.subr.bf16.mxu0 0
  %12283 = vmatpush2.bf16.msra.mxu0 %v8278
  %12284 = vmatprep.subr.bf16.mxu0 0
  %12285 = vmatpush2.bf16.msra.mxu0 %v8277
  %12286 = vmatprep.subr.bf16.mxu0 0
  %12287 = vmatpush2.bf16.msra.mxu0 %v8276
  %12288 = vmatprep.subr.bf16.mxu0 0
  %12289 = vmatpush2.bf16.msra.mxu0 %v8275
  %12290 = vmatprep.mubr.bf16.mxu0 %v12035
  %12291 = vmatmul.mubr.bf16.gmra.mxu0 %v12034
  %v12292 = vpop.f32.mrf.mxu0
  %v12293 = vadd.f32 0.0, %v12292
  %v12294 = vpop.f32.mrf.mxu0
  %v12295 = vpop.f32.mrf.mxu0
  %v12296 = vadd.f32 0.0, %v12295
  %v12297 = vpop.f32.mrf.mxu0
  %12298 = vmatprep.mubr.bf16.mxu0 %v12041
  %12299 = vmatmul.mubr.bf16.gmra.mxu0 %v12040
  %v12300 = vpop.f32.mrf.mxu0
  %v12301 = vadd.f32 0.0, %v12300
  %v12302 = vpop.f32.mrf.mxu0
  %v12303 = vpop.f32.mrf.mxu0
  %v12304 = vadd.f32 0.0, %v12303
  %v12305 = vpop.f32.mrf.mxu0
  %12306 = vmatprep.mubr.bf16.mxu0 %v12047
  %12307 = vmatmul.mubr.bf16.gmra.mxu0 %v12046
  %v12308 = vpop.f32.mrf.mxu0
  %v12309 = vadd.f32 0.0, %v12308
  %v12310 = vpop.f32.mrf.mxu0
  %v12311 = vpop.f32.mrf.mxu0
  %v12312 = vadd.f32 0.0, %v12311
  %v12313 = vpop.f32.mrf.mxu0
  %12314 = vmatprep.mubr.bf16.mxu0 %v12053
  %12315 = vmatmul.mubr.bf16.gmra.mxu0 %v12052
  %v12316 = vpop.f32.mrf.mxu0
  %v12317 = vadd.f32 0.0, %v12316
  %v12318 = vpop.f32.mrf.mxu0
  %v12319 = vpop.f32.mrf.mxu0
  %v12320 = vadd.f32 0.0, %v12319
  %v12321 = vpop.f32.mrf.mxu0
  %12322 = vmatprep.mubr.bf16.mxu0 %v12059
  %12323 = vmatmul.mubr.bf16.gmra.mxu0 %v12058
  %v12324 = vpop.f32.mrf.mxu0
  %v12325 = vadd.f32 0.0, %v12324
  %v12326 = vpop.f32.mrf.mxu0
  %v12327 = vpop.f32.mrf.mxu0
  %v12328 = vadd.f32 0.0, %v12327
  %v12329 = vpop.f32.mrf.mxu0
  %12330 = vmatprep.mubr.bf16.mxu0 %v12065
  %12331 = vmatmul.mubr.bf16.gmra.mxu0 %v12064
  %v12332 = vpop.f32.mrf.mxu0
  %v12333 = vadd.f32 0.0, %v12332
  %v12334 = vpop.f32.mrf.mxu0
  %v12335 = vpop.f32.mrf.mxu0
  %v12336 = vadd.f32 0.0, %v12335
  %v12337 = vpop.f32.mrf.mxu0
  %12338 = vmatprep.mubr.bf16.mxu0 %v12071
  %12339 = vmatmul.mubr.bf16.gmra.mxu0 %v12070
  %v12340 = vpop.f32.mrf.mxu0
  %v12341 = vadd.f32 0.0, %v12340
  %v12342 = vpop.f32.mrf.mxu0
  %v12343 = vpop.f32.mrf.mxu0
  %v12344 = vadd.f32 0.0, %v12343
  %v12345 = vpop.f32.mrf.mxu0
  %12346 = vmatprep.mubr.bf16.mxu0 %v12077
  %12347 = vmatmul.mubr.bf16.gmra.mxu0 %v12076
  %v12348 = vpop.f32.mrf.mxu0
  %v12349 = vadd.f32 0.0, %v12348
  %v12350 = vpop.f32.mrf.mxu0
  %v12351 = vpop.f32.mrf.mxu0
  %v12352 = vadd.f32 0.0, %v12351
  %v12353 = vpop.f32.mrf.mxu0
  %12354 = vmatprep.mubr.bf16.mxu0 %v12083
  %12355 = vmatmul.mubr.bf16.gmra.mxu0 %v12082
  %v12356 = vpop.f32.mrf.mxu0
  %v12357 = vadd.f32 0.0, %v12356
  %v12358 = vpop.f32.mrf.mxu0
  %v12359 = vpop.f32.mrf.mxu0
  %v12360 = vadd.f32 0.0, %v12359
  %v12361 = vpop.f32.mrf.mxu0
  %12362 = vmatprep.mubr.bf16.mxu0 %v12089
  %12363 = vmatmul.mubr.bf16.gmra.mxu0 %v12088
  %v12364 = vpop.f32.mrf.mxu0
  %v12365 = vadd.f32 0.0, %v12364
  %v12366 = vpop.f32.mrf.mxu0
  %v12367 = vpop.f32.mrf.mxu0
  %v12368 = vadd.f32 0.0, %v12367
  %v12369 = vpop.f32.mrf.mxu0
  %12370 = vmatprep.mubr.bf16.mxu0 %v12095
  %12371 = vmatmul.mubr.bf16.gmra.mxu0 %v12094
  %v12372 = vpop.f32.mrf.mxu0
  %v12373 = vadd.f32 0.0, %v12372
  %v12374 = vpop.f32.mrf.mxu0
  %v12375 = vpop.f32.mrf.mxu0
  %v12376 = vadd.f32 0.0, %v12375
  %v12377 = vpop.f32.mrf.mxu0
  %12378 = vmatprep.mubr.bf16.mxu0 %v12101
  %12379 = vmatmul.mubr.bf16.gmra.mxu0 %v12100
  %v12380 = vpop.f32.mrf.mxu0
  %v12381 = vadd.f32 0.0, %v12380
  %v12382 = vpop.f32.mrf.mxu0
  %v12383 = vpop.f32.mrf.mxu0
  %v12384 = vadd.f32 0.0, %v12383
  %v12385 = vpop.f32.mrf.mxu0
  %12386 = vmatprep.mubr.bf16.mxu0 %v12107
  %12387 = vmatmul.mubr.bf16.gmra.mxu0 %v12106
  %v12388 = vpop.f32.mrf.mxu0
  %v12389 = vadd.f32 0.0, %v12388
  %v12390 = vpop.f32.mrf.mxu0
  %v12391 = vpop.f32.mrf.mxu0
  %v12392 = vadd.f32 0.0, %v12391
  %v12393 = vpop.f32.mrf.mxu0
  %12394 = vmatprep.mubr.bf16.mxu0 %v12113
  %12395 = vmatmul.mubr.bf16.gmra.mxu0 %v12112
  %v12396 = vpop.f32.mrf.mxu0
  %v12397 = vadd.f32 0.0, %v12396
  %v12398 = vpop.f32.mrf.mxu0
  %v12399 = vpop.f32.mrf.mxu0
  %v12400 = vadd.f32 0.0, %v12399
  %v12401 = vpop.f32.mrf.mxu0
  %12402 = vmatprep.mubr.bf16.mxu0 %v12119
  %12403 = vmatmul.mubr.bf16.gmra.mxu0 %v12118
  %v12404 = vpop.f32.mrf.mxu0
  %v12405 = vadd.f32 0.0, %v12404
  %v12406 = vpop.f32.mrf.mxu0
  %v12407 = vpop.f32.mrf.mxu0
  %v12408 = vadd.f32 0.0, %v12407
  %v12409 = vpop.f32.mrf.mxu0
  %12410 = vmatprep.mubr.bf16.mxu0 %v12125
  %12411 = vmatmul.mubr.bf16.gmra.mxu0 %v12124
  %v12412 = vpop.f32.mrf.mxu0
  %v12413 = vadd.f32 0.0, %v12412
  %v12414 = vpop.f32.mrf.mxu0
  %v12415 = vpop.f32.mrf.mxu0
  %v12416 = vadd.f32 0.0, %v12415
  %v12417 = vpop.f32.mrf.mxu0
  %12418 = vdwg.mxu0
  %12419 = vmatprep.subr.bf16.mxu0 0
  %12420 = vmatpush1.bf16.msra.mxu0 %v8290
  %12421 = vmatprep.subr.bf16.mxu0 0
  %12422 = vmatpush1.bf16.msra.mxu0 %v8289
  %12423 = vmatprep.subr.bf16.mxu0 0
  %12424 = vmatpush1.bf16.msra.mxu0 %v8288
  %12425 = vmatprep.subr.bf16.mxu0 0
  %12426 = vmatpush1.bf16.msra.mxu0 %v8287
  %12427 = vmatprep.subr.bf16.mxu0 0
  %12428 = vmatpush1.bf16.msra.mxu0 %v8286
  %12429 = vmatprep.subr.bf16.mxu0 0
  %12430 = vmatpush1.bf16.msra.mxu0 %v8285
  %12431 = vmatprep.subr.bf16.mxu0 0
  %12432 = vmatpush1.bf16.msra.mxu0 %v8284
  %12433 = vmatprep.subr.bf16.mxu0 0
  %12434 = vmatpush1.bf16.msra.mxu0 %v8283
  %12435 = vmatprep.subr.bf16.mxu0 0
  %12436 = vmatpush2.bf16.msra.mxu0 %v8298
  %12437 = vmatprep.subr.bf16.mxu0 0
  %12438 = vmatpush2.bf16.msra.mxu0 %v8297
  %12439 = vmatprep.subr.bf16.mxu0 0
  %12440 = vmatpush2.bf16.msra.mxu0 %v8296
  %12441 = vmatprep.subr.bf16.mxu0 0
  %12442 = vmatpush2.bf16.msra.mxu0 %v8295
  %12443 = vmatprep.subr.bf16.mxu0 0
  %12444 = vmatpush2.bf16.msra.mxu0 %v8294
  %12445 = vmatprep.subr.bf16.mxu0 0
  %12446 = vmatpush2.bf16.msra.mxu0 %v8293
  %12447 = vmatprep.subr.bf16.mxu0 0
  %12448 = vmatpush2.bf16.msra.mxu0 %v8292
  %12449 = vmatprep.subr.bf16.mxu0 0
  %12450 = vmatpush2.bf16.msra.mxu0 %v8291
  %12451 = vmatprep.mubr.bf16.mxu0 %v12037
  %12452 = vmatmul.mubr.bf16.gmra.mxu0 %v12036
  %v12453 = vpop.f32.mrf.mxu0
  %v12454 = vadd.f32 %v12293, %v12453
  %v12455 = vpop.f32.mrf.mxu0
  %v12456 = vpop.f32.mrf.mxu0
  %v12457 = vadd.f32 %v12296, %v12456
  %v12458 = vpop.f32.mrf.mxu0
  %12459 = vmatprep.mubr.bf16.mxu0 %v12043
  %12460 = vmatmul.mubr.bf16.gmra.mxu0 %v12042
  %v12461 = vpop.f32.mrf.mxu0
  %v12462 = vadd.f32 %v12301, %v12461
  %v12463 = vpop.f32.mrf.mxu0
  %v12464 = vpop.f32.mrf.mxu0
  %v12465 = vadd.f32 %v12304, %v12464
  %v12466 = vpop.f32.mrf.mxu0
  %12467 = vmatprep.mubr.bf16.mxu0 %v12049
  %12468 = vmatmul.mubr.bf16.gmra.mxu0 %v12048
  %v12469 = vpop.f32.mrf.mxu0
  %v12470 = vadd.f32 %v12309, %v12469
  %v12471 = vpop.f32.mrf.mxu0
  %v12472 = vpop.f32.mrf.mxu0
  %v12473 = vadd.f32 %v12312, %v12472
  %v12474 = vpop.f32.mrf.mxu0
  %12475 = vmatprep.mubr.bf16.mxu0 %v12055
  %12476 = vmatmul.mubr.bf16.gmra.mxu0 %v12054
  %v12477 = vpop.f32.mrf.mxu0
  %v12478 = vadd.f32 %v12317, %v12477
  %v12479 = vpop.f32.mrf.mxu0
  %v12480 = vpop.f32.mrf.mxu0
  %v12481 = vadd.f32 %v12320, %v12480
  %v12482 = vpop.f32.mrf.mxu0
  %12483 = vmatprep.mubr.bf16.mxu0 %v12061
  %12484 = vmatmul.mubr.bf16.gmra.mxu0 %v12060
  %v12485 = vpop.f32.mrf.mxu0
  %v12486 = vadd.f32 %v12325, %v12485
  %v12487 = vpop.f32.mrf.mxu0
  %v12488 = vpop.f32.mrf.mxu0
  %v12489 = vadd.f32 %v12328, %v12488
  %v12490 = vpop.f32.mrf.mxu0
  %12491 = vmatprep.mubr.bf16.mxu0 %v12067
  %12492 = vmatmul.mubr.bf16.gmra.mxu0 %v12066
  %v12493 = vpop.f32.mrf.mxu0
  %v12494 = vadd.f32 %v12333, %v12493
  %v12495 = vpop.f32.mrf.mxu0
  %v12496 = vpop.f32.mrf.mxu0
  %v12497 = vadd.f32 %v12336, %v12496
  %v12498 = vpop.f32.mrf.mxu0
  %12499 = vmatprep.mubr.bf16.mxu0 %v12073
  %12500 = vmatmul.mubr.bf16.gmra.mxu0 %v12072
  %v12501 = vpop.f32.mrf.mxu0
  %v12502 = vadd.f32 %v12341, %v12501
  %v12503 = vpop.f32.mrf.mxu0
  %v12504 = vpop.f32.mrf.mxu0
  %v12505 = vadd.f32 %v12344, %v12504
  %v12506 = vpop.f32.mrf.mxu0
  %12507 = vmatprep.mubr.bf16.mxu0 %v12079
  %12508 = vmatmul.mubr.bf16.gmra.mxu0 %v12078
  %v12509 = vpop.f32.mrf.mxu0
  %v12510 = vadd.f32 %v12349, %v12509
  %v12511 = vpop.f32.mrf.mxu0
  %v12512 = vpop.f32.mrf.mxu0
  %v12513 = vadd.f32 %v12352, %v12512
  %v12514 = vpop.f32.mrf.mxu0
  %12515 = vmatprep.mubr.bf16.mxu0 %v12085
  %12516 = vmatmul.mubr.bf16.gmra.mxu0 %v12084
  %v12517 = vpop.f32.mrf.mxu0
  %v12518 = vadd.f32 %v12357, %v12517
  %v12519 = vpop.f32.mrf.mxu0
  %v12520 = vpop.f32.mrf.mxu0
  %v12521 = vadd.f32 %v12360, %v12520
  %v12522 = vpop.f32.mrf.mxu0
  %12523 = vmatprep.mubr.bf16.mxu0 %v12091
  %12524 = vmatmul.mubr.bf16.gmra.mxu0 %v12090
  %v12525 = vpop.f32.mrf.mxu0
  %v12526 = vadd.f32 %v12365, %v12525
  %v12527 = vpop.f32.mrf.mxu0
  %v12528 = vpop.f32.mrf.mxu0
  %v12529 = vadd.f32 %v12368, %v12528
  %v12530 = vpop.f32.mrf.mxu0
  %12531 = vmatprep.mubr.bf16.mxu0 %v12097
  %12532 = vmatmul.mubr.bf16.gmra.mxu0 %v12096
  %v12533 = vpop.f32.mrf.mxu0
  %v12534 = vadd.f32 %v12373, %v12533
  %v12535 = vpop.f32.mrf.mxu0
  %v12536 = vpop.f32.mrf.mxu0
  %v12537 = vadd.f32 %v12376, %v12536
  %v12538 = vpop.f32.mrf.mxu0
  %12539 = vmatprep.mubr.bf16.mxu0 %v12103
  %12540 = vmatmul.mubr.bf16.gmra.mxu0 %v12102
  %v12541 = vpop.f32.mrf.mxu0
  %v12542 = vadd.f32 %v12381, %v12541
  %v12543 = vpop.f32.mrf.mxu0
  %v12544 = vpop.f32.mrf.mxu0
  %v12545 = vadd.f32 %v12384, %v12544
  %v12546 = vpop.f32.mrf.mxu0
  %12547 = vmatprep.mubr.bf16.mxu0 %v12109
  %12548 = vmatmul.mubr.bf16.gmra.mxu0 %v12108
  %v12549 = vpop.f32.mrf.mxu0
  %v12550 = vadd.f32 %v12389, %v12549
  %v12551 = vpop.f32.mrf.mxu0
  %v12552 = vpop.f32.mrf.mxu0
  %v12553 = vadd.f32 %v12392, %v12552
  %v12554 = vpop.f32.mrf.mxu0
  %12555 = vmatprep.mubr.bf16.mxu0 %v12115
  %12556 = vmatmul.mubr.bf16.gmra.mxu0 %v12114
  %v12557 = vpop.f32.mrf.mxu0
  %v12558 = vadd.f32 %v12397, %v12557
  %v12559 = vpop.f32.mrf.mxu0
  %v12560 = vpop.f32.mrf.mxu0
  %v12561 = vadd.f32 %v12400, %v12560
  %v12562 = vpop.f32.mrf.mxu0
  %12563 = vmatprep.mubr.bf16.mxu0 %v12121
  %12564 = vmatmul.mubr.bf16.gmra.mxu0 %v12120
  %v12565 = vpop.f32.mrf.mxu0
  %v12566 = vadd.f32 %v12405, %v12565
  %v12567 = vpop.f32.mrf.mxu0
  %v12568 = vpop.f32.mrf.mxu0
  %v12569 = vadd.f32 %v12408, %v12568
  %v12570 = vpop.f32.mrf.mxu0
  %12571 = vmatprep.mubr.bf16.mxu0 %v12127
  %12572 = vmatmul.mubr.bf16.gmra.mxu0 %v12126
  %v12573 = vpop.f32.mrf.mxu0
  %v12574 = vadd.f32 %v12413, %v12573
  %v12575 = vpop.f32.mrf.mxu0
  %v12576 = vpop.f32.mrf.mxu0
  %v12577 = vadd.f32 %v12416, %v12576
  %v12578 = vpop.f32.mrf.mxu0
  %12579 = vdwg.mxu0
  %12580 = vmatprep.subr.bf16.mxu0 0
  %12581 = vmatpush1.bf16.msra.mxu0 %v8306
  %12582 = vmatprep.subr.bf16.mxu0 0
  %12583 = vmatpush1.bf16.msra.mxu0 %v8305
  %12584 = vmatprep.subr.bf16.mxu0 0
  %12585 = vmatpush1.bf16.msra.mxu0 %v8304
  %12586 = vmatprep.subr.bf16.mxu0 0
  %12587 = vmatpush1.bf16.msra.mxu0 %v8303
  %12588 = vmatprep.subr.bf16.mxu0 0
  %12589 = vmatpush1.bf16.msra.mxu0 %v8302
  %12590 = vmatprep.subr.bf16.mxu0 0
  %12591 = vmatpush1.bf16.msra.mxu0 %v8301
  %12592 = vmatprep.subr.bf16.mxu0 0
  %12593 = vmatpush1.bf16.msra.mxu0 %v8300
  %12594 = vmatprep.subr.bf16.mxu0 0
  %12595 = vmatpush1.bf16.msra.mxu0 %v8299
  %12596 = vmatprep.subr.bf16.mxu0 0
  %12597 = vmatpush2.bf16.msra.mxu0 0
  %12598 = vmatprep.subr.bf16.mxu0 0
  %12599 = vmatpush2.bf16.msra.mxu0 0
  %12600 = vmatprep.subr.bf16.mxu0 0
  %12601 = vmatpush2.bf16.msra.mxu0 0
  %12602 = vmatprep.subr.bf16.mxu0 0
  %12603 = vmatpush2.bf16.msra.mxu0 0
  %12604 = vmatprep.subr.bf16.mxu0 0
  %12605 = vmatpush2.bf16.msra.mxu0 0
  %12606 = vmatprep.subr.bf16.mxu0 0
  %12607 = vmatpush2.bf16.msra.mxu0 0
  %12608 = vmatprep.subr.bf16.mxu0 0
  %12609 = vmatpush2.bf16.msra.mxu0 0
  %12610 = vmatprep.subr.bf16.mxu0 0
  %12611 = vmatpush2.bf16.msra.mxu0 %v8919
  %12612 = vmatprep.mubr.bf16.mxu0 %v12211
  %12613 = vmatmul.mubr.bf16.gmra.mxu0 %v12038
  %v12614 = vpop.f32.mrf.mxu0
  %v12615 = vadd.f32 %v12454, %v12614
  %v12616 = vpop.f32.mrf.mxu0
  %v12617 = vpop.f32.mrf.mxu0
  %v12618 = vadd.f32 %v12457, %v12617
  %v12619 = vpop.f32.mrf.mxu0
  %12620 = vmatprep.mubr.bf16.mxu0 %v12214
  %12621 = vmatmul.mubr.bf16.gmra.mxu0 %v12044
  %v12622 = vpop.f32.mrf.mxu0
  %v12623 = vadd.f32 %v12462, %v12622
  %v12624 = vpop.f32.mrf.mxu0
  %v12625 = vpop.f32.mrf.mxu0
  %v12626 = vadd.f32 %v12465, %v12625
  %v12627 = vpop.f32.mrf.mxu0
  %12628 = vmatprep.mubr.bf16.mxu0 %v12217
  %12629 = vmatmul.mubr.bf16.gmra.mxu0 %v12050
  %v12630 = vpop.f32.mrf.mxu0
  %v12631 = vadd.f32 %v12470, %v12630
  %v12632 = vpop.f32.mrf.mxu0
  %v12633 = vpop.f32.mrf.mxu0
  %v12634 = vadd.f32 %v12473, %v12633
  %v12635 = vpop.f32.mrf.mxu0
  %12636 = vmatprep.mubr.bf16.mxu0 %v12220
  %12637 = vmatmul.mubr.bf16.gmra.mxu0 %v12056
  %v12638 = vpop.f32.mrf.mxu0
  %v12639 = vadd.f32 %v12478, %v12638
  %v12640 = vpop.f32.mrf.mxu0
  %v12641 = vpop.f32.mrf.mxu0
  %v12642 = vadd.f32 %v12481, %v12641
  %v12643 = vpop.f32.mrf.mxu0
  %12644 = vmatprep.mubr.bf16.mxu0 %v12223
  %12645 = vmatmul.mubr.bf16.gmra.mxu0 %v12062
  %v12646 = vpop.f32.mrf.mxu0
  %v12647 = vadd.f32 %v12486, %v12646
  %v12648 = vpop.f32.mrf.mxu0
  %v12649 = vpop.f32.mrf.mxu0
  %v12650 = vadd.f32 %v12489, %v12649
  %v12651 = vpop.f32.mrf.mxu0
  %12652 = vmatprep.mubr.bf16.mxu0 %v12226
  %12653 = vmatmul.mubr.bf16.gmra.mxu0 %v12068
  %v12654 = vpop.f32.mrf.mxu0
  %v12655 = vadd.f32 %v12494, %v12654
  %v12656 = vpop.f32.mrf.mxu0
  %v12657 = vpop.f32.mrf.mxu0
  %v12658 = vadd.f32 %v12497, %v12657
  %v12659 = vpop.f32.mrf.mxu0
  %12660 = vmatprep.mubr.bf16.mxu0 %v12229
  %12661 = vmatmul.mubr.bf16.gmra.mxu0 %v12074
  %v12662 = vpop.f32.mrf.mxu0
  %v12663 = vadd.f32 %v12502, %v12662
  %v12664 = vpop.f32.mrf.mxu0
  %v12665 = vpop.f32.mrf.mxu0
  %v12666 = vadd.f32 %v12505, %v12665
  %v12667 = vpop.f32.mrf.mxu0
  %12668 = vmatprep.mubr.bf16.mxu0 %v12232
  %12669 = vmatmul.mubr.bf16.gmra.mxu0 %v12080
  %v12670 = vpop.f32.mrf.mxu0
  %v12671 = vadd.f32 %v12510, %v12670
  %v12672 = vpop.f32.mrf.mxu0
  %v12673 = vpop.f32.mrf.mxu0
  %v12674 = vadd.f32 %v12513, %v12673
  %v12675 = vpop.f32.mrf.mxu0
  %12676 = vmatprep.mubr.bf16.mxu0 %v12235
  %12677 = vmatmul.mubr.bf16.gmra.mxu0 %v12086
  %v12678 = vpop.f32.mrf.mxu0
  %v12679 = vadd.f32 %v12518, %v12678
  %v12680 = vpop.f32.mrf.mxu0
  %v12681 = vpop.f32.mrf.mxu0
  %v12682 = vadd.f32 %v12521, %v12681
  %v12683 = vpop.f32.mrf.mxu0
  %12684 = vmatprep.mubr.bf16.mxu0 %v12238
  %12685 = vmatmul.mubr.bf16.gmra.mxu0 %v12092
  %v12686 = vpop.f32.mrf.mxu0
  %v12687 = vadd.f32 %v12526, %v12686
  %v12688 = vpop.f32.mrf.mxu0
  %v12689 = vpop.f32.mrf.mxu0
  %v12690 = vadd.f32 %v12529, %v12689
  %v12691 = vpop.f32.mrf.mxu0
  %12692 = vmatprep.mubr.bf16.mxu0 %v12241
  %12693 = vmatmul.mubr.bf16.gmra.mxu0 %v12098
  %v12694 = vpop.f32.mrf.mxu0
  %v12695 = vadd.f32 %v12534, %v12694
  %v12696 = vpop.f32.mrf.mxu0
  %v12697 = vpop.f32.mrf.mxu0
  %v12698 = vadd.f32 %v12537, %v12697
  %v12699 = vpop.f32.mrf.mxu0
  %12700 = vmatprep.mubr.bf16.mxu0 %v12244
  %12701 = vmatmul.mubr.bf16.gmra.mxu0 %v12104
  %v12702 = vpop.f32.mrf.mxu0
  %v12703 = vadd.f32 %v12542, %v12702
  %v12704 = vpop.f32.mrf.mxu0
  %v12705 = vpop.f32.mrf.mxu0
  %v12706 = vadd.f32 %v12545, %v12705
  %v12707 = vpop.f32.mrf.mxu0
  %12708 = vmatprep.mubr.bf16.mxu0 %v12247
  %12709 = vmatmul.mubr.bf16.gmra.mxu0 %v12110
  %v12710 = vpop.f32.mrf.mxu0
  %v12711 = vadd.f32 %v12550, %v12710
  %v12712 = vpop.f32.mrf.mxu0
  %v12713 = vpop.f32.mrf.mxu0
  %v12714 = vadd.f32 %v12553, %v12713
  %v12715 = vpop.f32.mrf.mxu0
  %12716 = vmatprep.mubr.bf16.mxu0 %v12250
  %12717 = vmatmul.mubr.bf16.gmra.mxu0 %v12116
  %v12718 = vpop.f32.mrf.mxu0
  %v12719 = vadd.f32 %v12558, %v12718
  %v12720 = vpop.f32.mrf.mxu0
  %v12721 = vpop.f32.mrf.mxu0
  %v12722 = vadd.f32 %v12561, %v12721
  %v12723 = vpop.f32.mrf.mxu0
  %12724 = vmatprep.mubr.bf16.mxu0 %v12253
  %12725 = vmatmul.mubr.bf16.gmra.mxu0 %v12122
  %v12726 = vpop.f32.mrf.mxu0
  %v12727 = vadd.f32 %v12566, %v12726
  %v12728 = vpop.f32.mrf.mxu0
  %v12729 = vpop.f32.mrf.mxu0
  %v12730 = vadd.f32 %v12569, %v12729
  %v12731 = vpop.f32.mrf.mxu0
  %12732 = vmatprep.mubr.bf16.mxu0 %v12256
  %12733 = vmatmul.mubr.bf16.gmra.mxu0 %v12128
  %v12734 = vpop.f32.mrf.mxu0
  %v12735 = vadd.f32 %v12574, %v12734
  %v12736 = vpop.f32.mrf.mxu0
  %v12737 = vpop.f32.mrf.mxu0
  %v12738 = vadd.f32 %v12577, %v12737
  %v12739 = vpop.f32.mrf.mxu0
  %12740 = vdwg.mxu0
  %v12741 = vmax.f32 %v11618, %v12615
  %v12742 = vmax.f32 %v11619, %v12618
  %v12743 = vmax.f32 %v11620, %v12623
  %v12744 = vmax.f32 %v11621, %v12626
  %v12745 = vmax.f32 %v11622, %v12631
  %v12746 = vmax.f32 %v11623, %v12634
  %v12747 = vmax.f32 %v11624, %v12639
  %v12748 = vmax.f32 %v11625, %v12642
  %v12749 = vmax.f32 %v11626, %v12647
  %v12750 = vmax.f32 %v11627, %v12650
  %v12751 = vmax.f32 %v11628, %v12655
  %v12752 = vmax.f32 %v11629, %v12658
  %v12753 = vmax.f32 %v11630, %v12663
  %v12754 = vmax.f32 %v11631, %v12666
  %v12755 = vmax.f32 %v11632, %v12671
  %v12756 = vmax.f32 %v11633, %v12674
  %v12757 = vmax.f32 %v11634, %v12679
  %v12758 = vmax.f32 %v11635, %v12682
  %v12759 = vmax.f32 %v11636, %v12687
  %v12760 = vmax.f32 %v11637, %v12690
  %v12761 = vmax.f32 %v11638, %v12695
  %v12762 = vmax.f32 %v11639, %v12698
  %v12763 = vmax.f32 %v11640, %v12703
  %v12764 = vmax.f32 %v11641, %v12706
  %v12765 = vmax.f32 %v11642, %v12711
  %v12766 = vmax.f32 %v11643, %v12714
  %v12767 = vmax.f32 %v11644, %v12719
  %v12768 = vmax.f32 %v11645, %v12722
  %v12769 = vmax.f32 %v11646, %v12727
  %v12770 = vmax.f32 %v11647, %v12730
  %v12771 = vmax.f32 %v11648, %v12735
  %v12772 = vmax.f32 %v11649, %v12738
  %v12773 = vld [vmem:[%s10] sm:$0xff]
  %v12774 = vld [vmem:[%s10 + $0x8] sm:$0xff]
  %v12775 = vld [vmem:[%s10 + $0x10] sm:$0xff]
  %v12776 = vld [vmem:[%s10 + $0x18] sm:$0xff]
  %v12777 = vld [vmem:[%s10 + $0x20] sm:$0xff]
  %v12778 = vld [vmem:[%s10 + $0x28] sm:$0xff]
  %v12779 = vld [vmem:[%s10 + $0x30] sm:$0xff]
  %v12780 = vld [vmem:[%s10 + $0x38] sm:$0xff]
  %v12781 = vld [vmem:[%s10 + $0x40] sm:$0xff]
  %v12782 = vld [vmem:[%s10 + $0x48] sm:$0xff]
  %v12783 = vld [vmem:[%s10 + $0x50] sm:$0xff]
  %v12784 = vld [vmem:[%s10 + $0x58] sm:$0xff]
  %v12785 = vld [vmem:[%s10 + $0x60] sm:$0xff]
  %v12786 = vld [vmem:[%s10 + $0x68] sm:$0xff]
  %v12787 = vld [vmem:[%s10 + $0x70] sm:$0xff]
  %v12788 = vld [vmem:[%s10 + $0x78] sm:$0xff]
  %v12789 = vld [vmem:[%s10 + $0x80] sm:$0xff]
  %v12790 = vld [vmem:[%s10 + $0x88] sm:$0xff]
  %v12791 = vld [vmem:[%s10 + $0x90] sm:$0xff]
  %v12792 = vld [vmem:[%s10 + $0x98] sm:$0xff]
  %v12793 = vld [vmem:[%s10 + $0xa0] sm:$0xff]
  %v12794 = vld [vmem:[%s10 + $0xa8] sm:$0xff]
  %v12795 = vld [vmem:[%s10 + $0xb0] sm:$0xff]
  %v12796 = vld [vmem:[%s10 + $0xb8] sm:$0xff]
  %v12797 = vld [vmem:[%s10 + $0xc0] sm:$0xff]
  %v12798 = vld [vmem:[%s10 + $0xc8] sm:$0xff]
  %v12799 = vld [vmem:[%s10 + $0xd0] sm:$0xff]
  %v12800 = vld [vmem:[%s10 + $0xd8] sm:$0xff]
  %v12801 = vld [vmem:[%s10 + $0xe0] sm:$0xff]
  %v12802 = vld [vmem:[%s10 + $0xe8] sm:$0xff]
  %v12803 = vld [vmem:[%s10 + $0xf0] sm:$0xff]
  %v12804 = vld [vmem:[%s10 + $0xf8] sm:$0xff]
  %12806 = vset.pattern.permute.xlu0 0
  %12807 = vperm.xlu0 %12806, %v12773
  %v12808 = vpop.permute.xlu0 %12807
  %12811 = vset.pattern.permute.xlu0 0
  %12812 = vperm.xlu0 %12811, %v12774
  %v12813 = vpop.permute.xlu0 %12812
  %12816 = vset.pattern.permute.xlu0 0
  %12817 = vperm.xlu0 %12816, %v12775
  %v12818 = vpop.permute.xlu0 %12817
  %12821 = vset.pattern.permute.xlu0 0
  %12822 = vperm.xlu0 %12821, %v12776
  %v12823 = vpop.permute.xlu0 %12822
  %12826 = vset.pattern.permute.xlu0 0
  %12827 = vperm.xlu0 %12826, %v12777
  %v12828 = vpop.permute.xlu0 %12827
  %12831 = vset.pattern.permute.xlu0 0
  %12832 = vperm.xlu0 %12831, %v12778
  %v12833 = vpop.permute.xlu0 %12832
  %12836 = vset.pattern.permute.xlu0 0
  %12837 = vperm.xlu0 %12836, %v12779
  %v12838 = vpop.permute.xlu0 %12837
  %12841 = vset.pattern.permute.xlu0 0
  %12842 = vperm.xlu0 %12841, %v12780
  %v12843 = vpop.permute.xlu0 %12842
  %12846 = vset.pattern.permute.xlu0 0
  %12847 = vperm.xlu0 %12846, %v12781
  %v12848 = vpop.permute.xlu0 %12847
  %12851 = vset.pattern.permute.xlu0 0
  %12852 = vperm.xlu0 %12851, %v12782
  %v12853 = vpop.permute.xlu0 %12852
  %12856 = vset.pattern.permute.xlu0 0
  %12857 = vperm.xlu0 %12856, %v12783
  %v12858 = vpop.permute.xlu0 %12857
  %12861 = vset.pattern.permute.xlu0 0
  %12862 = vperm.xlu0 %12861, %v12784
  %v12863 = vpop.permute.xlu0 %12862
  %12866 = vset.pattern.permute.xlu0 0
  %12867 = vperm.xlu0 %12866, %v12785
  %v12868 = vpop.permute.xlu0 %12867
  %12871 = vset.pattern.permute.xlu0 0
  %12872 = vperm.xlu0 %12871, %v12786
  %v12873 = vpop.permute.xlu0 %12872
  %12876 = vset.pattern.permute.xlu0 0
  %12877 = vperm.xlu0 %12876, %v12787
  %v12878 = vpop.permute.xlu0 %12877
  %12881 = vset.pattern.permute.xlu0 0
  %12882 = vperm.xlu0 %12881, %v12788
  %v12883 = vpop.permute.xlu0 %12882
  %12886 = vset.pattern.permute.xlu0 0
  %12887 = vperm.xlu0 %12886, %v12789
  %v12888 = vpop.permute.xlu0 %12887
  %12891 = vset.pattern.permute.xlu0 0
  %12892 = vperm.xlu0 %12891, %v12790
  %v12893 = vpop.permute.xlu0 %12892
  %12896 = vset.pattern.permute.xlu0 0
  %12897 = vperm.xlu0 %12896, %v12791
  %v12898 = vpop.permute.xlu0 %12897
  %12901 = vset.pattern.permute.xlu0 0
  %12902 = vperm.xlu0 %12901, %v12792
  %v12903 = vpop.permute.xlu0 %12902
  %12906 = vset.pattern.permute.xlu0 0
  %12907 = vperm.xlu0 %12906, %v12793
  %v12908 = vpop.permute.xlu0 %12907
  %12911 = vset.pattern.permute.xlu0 0
  %12912 = vperm.xlu0 %12911, %v12794
  %v12913 = vpop.permute.xlu0 %12912
  %12916 = vset.pattern.permute.xlu0 0
  %12917 = vperm.xlu0 %12916, %v12795
  %v12918 = vpop.permute.xlu0 %12917
  %12921 = vset.pattern.permute.xlu0 0
  %12922 = vperm.xlu0 %12921, %v12796
  %v12923 = vpop.permute.xlu0 %12922
  %12926 = vset.pattern.permute.xlu0 0
  %12927 = vperm.xlu0 %12926, %v12797
  %v12928 = vpop.permute.xlu0 %12927
  %12931 = vset.pattern.permute.xlu0 0
  %12932 = vperm.xlu0 %12931, %v12798
  %v12933 = vpop.permute.xlu0 %12932
  %12936 = vset.pattern.permute.xlu0 0
  %12937 = vperm.xlu0 %12936, %v12799
  %v12938 = vpop.permute.xlu0 %12937
  %12941 = vset.pattern.permute.xlu0 0
  %12942 = vperm.xlu0 %12941, %v12800
  %v12943 = vpop.permute.xlu0 %12942
  %12946 = vset.pattern.permute.xlu0 0
  %12947 = vperm.xlu0 %12946, %v12801
  %v12948 = vpop.permute.xlu0 %12947
  %12951 = vset.pattern.permute.xlu0 0
  %12952 = vperm.xlu0 %12951, %v12802
  %v12953 = vpop.permute.xlu0 %12952
  %12956 = vset.pattern.permute.xlu0 0
  %12957 = vperm.xlu0 %12956, %v12803
  %v12958 = vpop.permute.xlu0 %12957
  %12961 = vset.pattern.permute.xlu0 0
  %12962 = vperm.xlu0 %12961, %v12804
  %v12963 = vpop.permute.xlu0 %12962
  %v12965 = vadd.f32 %v12741, %v12808
  %v12966 = vadd.f32 %v12742, %v12813
  %v12967 = vadd.f32 %v12743, %v12818
  %v12968 = vadd.f32 %v12744, %v12823
  %v12969 = vadd.f32 %v12745, %v12828
  %v12970 = vadd.f32 %v12746, %v12833
  %v12971 = vadd.f32 %v12747, %v12838
  %v12972 = vadd.f32 %v12748, %v12843
  %v12973 = vadd.f32 %v12749, %v12848
  %v12974 = vadd.f32 %v12750, %v12853
  %v12975 = vadd.f32 %v12751, %v12858
  %v12976 = vadd.f32 %v12752, %v12863
  %v12977 = vadd.f32 %v12753, %v12868
  %v12978 = vadd.f32 %v12754, %v12873
  %v12979 = vadd.f32 %v12755, %v12878
  %v12980 = vadd.f32 %v12756, %v12883
  %v12981 = vadd.f32 %v12757, %v12888
  %v12982 = vadd.f32 %v12758, %v12893
  %v12983 = vadd.f32 %v12759, %v12898
  %v12984 = vadd.f32 %v12760, %v12903
  %v12985 = vadd.f32 %v12761, %v12908
  %v12986 = vadd.f32 %v12762, %v12913
  %v12987 = vadd.f32 %v12763, %v12918
  %v12988 = vadd.f32 %v12764, %v12923
  %v12989 = vadd.f32 %v12765, %v12928
  %v12990 = vadd.f32 %v12766, %v12933
  %v12991 = vadd.f32 %v12767, %v12938
  %v12992 = vadd.f32 %v12768, %v12943
  %v12993 = vadd.f32 %v12769, %v12948
  %v12994 = vadd.f32 %v12770, %v12953
  %v12995 = vadd.f32 %v12771, %v12958
  %v12996 = vadd.f32 %v12772, %v12963
  %v12997 = vmax.f32 %v12965, 0.0
  %v12998 = vmax.f32 %v12966, 0.0
  %v12999 = vmax.f32 %v12967, 0.0
  %v13000 = vmax.f32 %v12968, 0.0
  %v13001 = vmax.f32 %v12969, 0.0
  %v13002 = vmax.f32 %v12970, 0.0
  %v13003 = vmax.f32 %v12971, 0.0
  %v13004 = vmax.f32 %v12972, 0.0
  %v13005 = vmax.f32 %v12973, 0.0
  %v13006 = vmax.f32 %v12974, 0.0
  %v13007 = vmax.f32 %v12975, 0.0
  %v13008 = vmax.f32 %v12976, 0.0
  %v13009 = vmax.f32 %v12977, 0.0
  %v13010 = vmax.f32 %v12978, 0.0
  %v13011 = vmax.f32 %v12979, 0.0
  %v13012 = vmax.f32 %v12980, 0.0
  %v13013 = vmax.f32 %v12981, 0.0
  %v13014 = vmax.f32 %v12982, 0.0
  %v13015 = vmax.f32 %v12983, 0.0
  %v13016 = vmax.f32 %v12984, 0.0
  %v13017 = vmax.f32 %v12985, 0.0
  %v13018 = vmax.f32 %v12986, 0.0
  %v13019 = vmax.f32 %v12987, 0.0
  %v13020 = vmax.f32 %v12988, 0.0
  %v13021 = vmax.f32 %v12989, 0.0
  %v13022 = vmax.f32 %v12990, 0.0
  %v13023 = vmax.f32 %v12991, 0.0
  %v13024 = vmax.f32 %v12992, 0.0
  %v13025 = vmax.f32 %v12993, 0.0
  %v13026 = vmax.f32 %v12994, 0.0
  %v13027 = vmax.f32 %v12995, 0.0
  %v13028 = vmax.f32 %v12996, 0.0
  %v13029 = vpack.c.bf16 %v12998, %v12997
  %v13030 = vpack.c.bf16 %v13000, %v12999
  %v13031 = vpack.c.bf16 %v13002, %v13001
  %v13032 = vpack.c.bf16 %v13004, %v13003
  %v13033 = vpack.c.bf16 %v13006, %v13005
  %v13034 = vpack.c.bf16 %v13008, %v13007
  %v13035 = vpack.c.bf16 %v13010, %v13009
  %v13036 = vpack.c.bf16 %v13012, %v13011
  %v13037 = vpack.c.bf16 %v13014, %v13013
  %v13038 = vpack.c.bf16 %v13016, %v13015
  %v13039 = vpack.c.bf16 %v13018, %v13017
  %v13040 = vpack.c.bf16 %v13020, %v13019
  %v13041 = vpack.c.bf16 %v13022, %v13021
  %v13042 = vpack.c.bf16 %v13024, %v13023
  %v13043 = vpack.c.bf16 %v13026, %v13025
  %v13044 = vpack.c.bf16 %v13028, %v13027
  %v13045 = vld [vmem:[%s11] sm:$0xff]
  %v13046 = vld [vmem:[%s11 + $0x8] sm:$0xff]
  %v13047 = vld [vmem:[%s11 + $0x10] sm:$0xff]
  %v13048 = vld [vmem:[%s11 + $0x18] sm:$0xff]
  %v13049 = vld [vmem:[%s11 + $0x20] sm:$0xff]
  %v13050 = vld [vmem:[%s11 + $0x28] sm:$0xff]
  %v13051 = vld [vmem:[%s11 + $0x30] sm:$0xff]
  %v13052 = vld [vmem:[%s11 + $0x38] sm:$0xff]
  %v13053 = vld [vmem:[%s11 + $0x40] sm:$0xff]
  %v13054 = vld [vmem:[%s11 + $0x48] sm:$0xff]
  %v13055 = vld [vmem:[%s11 + $0x50] sm:$0xff]
  %v13056 = vld [vmem:[%s11 + $0x58] sm:$0xff]
  %v13057 = vld [vmem:[%s11 + $0x60] sm:$0xff]
  %v13058 = vld [vmem:[%s11 + $0x68] sm:$0x77]
  %v13059 = vld [vmem:[%s12] sm:$0xff]
  %v13060 = vld [vmem:[%s12 + $0x8] sm:$0xff]
  %v13061 = vld [vmem:[%s12 + $0x10] sm:$0xff]
  %v13062 = vld [vmem:[%s12 + $0x18] sm:$0xff]
  %v13063 = vld [vmem:[%s12 + $0x20] sm:$0xff]
  %v13064 = vld [vmem:[%s12 + $0x28] sm:$0xff]
  %v13065 = vld [vmem:[%s12 + $0x30] sm:$0xff]
  %v13066 = vld [vmem:[%s12 + $0x38] sm:$0xff]
  %v13067 = vld [vmem:[%s12 + $0x40] sm:$0xff]
  %v13068 = vld [vmem:[%s12 + $0x48] sm:$0xff]
  %v13069 = vld [vmem:[%s12 + $0x50] sm:$0xff]
  %v13070 = vld [vmem:[%s12 + $0x58] sm:$0xff]
  %v13071 = vld [vmem:[%s12 + $0x60] sm:$0xff]
  %v13072 = vld [vmem:[%s12 + $0x68] sm:$0x3f]
  %13074 = vset.pattern.permute.xlu0 0
  %13075 = vperm.xlu0 %13074, %v13059
  %v13076 = vpop.permute.xlu0 %13075
  %13079 = vset.pattern.permute.xlu0 0
  %13080 = vperm.xlu0 %13079, %v13060
  %v13081 = vpop.permute.xlu0 %13080
  %13084 = vset.pattern.permute.xlu0 0
  %13085 = vperm.xlu0 %13084, %v13061
  %v13086 = vpop.permute.xlu0 %13085
  %13089 = vset.pattern.permute.xlu0 0
  %13090 = vperm.xlu0 %13089, %v13062
  %v13091 = vpop.permute.xlu0 %13090
  %13094 = vset.pattern.permute.xlu0 0
  %13095 = vperm.xlu0 %13094, %v13063
  %v13096 = vpop.permute.xlu0 %13095
  %13099 = vset.pattern.permute.xlu0 0
  %13100 = vperm.xlu0 %13099, %v13064
  %v13101 = vpop.permute.xlu0 %13100
  %13104 = vset.pattern.permute.xlu0 0
  %13105 = vperm.xlu0 %13104, %v13065
  %v13106 = vpop.permute.xlu0 %13105
  %13109 = vset.pattern.permute.xlu0 0
  %13110 = vperm.xlu0 %13109, %v13066
  %v13111 = vpop.permute.xlu0 %13110
  %13114 = vset.pattern.permute.xlu0 0
  %13115 = vperm.xlu0 %13114, %v13067
  %v13116 = vpop.permute.xlu0 %13115
  %13119 = vset.pattern.permute.xlu0 0
  %13120 = vperm.xlu0 %13119, %v13068
  %v13121 = vpop.permute.xlu0 %13120
  %13124 = vset.pattern.permute.xlu0 0
  %13125 = vperm.xlu0 %13124, %v13069
  %v13126 = vpop.permute.xlu0 %13125
  %13129 = vset.pattern.permute.xlu0 0
  %13130 = vperm.xlu0 %13129, %v13070
  %v13131 = vpop.permute.xlu0 %13130
  %13134 = vset.pattern.permute.xlu0 0
  %13135 = vperm.xlu0 %13134, %v13071
  %v13136 = vpop.permute.xlu0 %13135
  %13139 = vset.pattern.permute.xlu0 0
  %13140 = vperm.xlu0 %13139, %v13072
  %v13141 = vpop.permute.xlu0 %13140
  %v13157 = vunpack.c.l.b16 %v13045
  %v13158 = vunpack.c.h.b16 %v13045
  %v13159 = vunpack.c.l.b16 %v13046
  %v13160 = vunpack.c.h.b16 %v13046
  %v13161 = vunpack.c.l.b16 %v13047
  %v13162 = vunpack.c.h.b16 %v13047
  %v13163 = vunpack.c.l.b16 %v13048
  %v13164 = vunpack.c.h.b16 %v13048
  %v13165 = vunpack.c.l.b16 %v13049
  %v13166 = vunpack.c.h.b16 %v13049
  %v13167 = vunpack.c.l.b16 %v13050
  %v13168 = vunpack.c.h.b16 %v13050
  %v13169 = vunpack.c.l.b16 %v13051
  %v13170 = vunpack.c.h.b16 %v13051
  %v13171 = vunpack.c.l.b16 %v13052
  %v13172 = vunpack.c.h.b16 %v13052
  %v13173 = vunpack.c.l.b16 %v13053
  %v13174 = vunpack.c.h.b16 %v13053
  %v13175 = vunpack.c.l.b16 %v13054
  %v13176 = vunpack.c.h.b16 %v13054
  %v13177 = vunpack.c.l.b16 %v13055
  %v13178 = vunpack.c.h.b16 %v13055
  %v13179 = vunpack.c.l.b16 %v13056
  %v13180 = vunpack.c.h.b16 %v13056
  %v13181 = vunpack.c.l.b16 %v13057
  %v13182 = vunpack.c.h.b16 %v13057
  %v13183 = vunpack.c.l.b16 %v13058
  %v13184 = vunpack.c.h.b16 %v13058
  %v13185 = vpack.c.b16 %v13159, %v13157
  %v13186 = vpack.c.b16 %v13160, %v13158
  %v13187 = vpack.c.b16 %v13163, %v13161
  %v13188 = vpack.c.b16 %v13164, %v13162
  %v13189 = vpack.c.b16 %v13167, %v13165
  %v13190 = vpack.c.b16 %v13168, %v13166
  %v13191 = vpack.c.b16 %v13171, %v13169
  %v13192 = vpack.c.b16 %v13172, %v13170
  %v13193 = vpack.c.b16 %v13175, %v13173
  %v13194 = vpack.c.b16 %v13176, %v13174
  %v13195 = vpack.c.b16 %v13179, %v13177
  %v13196 = vpack.c.b16 %v13180, %v13178
  %v13197 = vpack.c.b16 %v13183, %v13181
  %v13198 = vpack.c.b16 %v13184, %v13182
  %13213 = vmatprep.subr.bf16.mxu0 0
  %13214 = vmatpush1.bf16.msra.mxu0 %v13036
  %13215 = vmatprep.subr.bf16.mxu0 0
  %13216 = vmatpush1.bf16.msra.mxu0 %v13035
  %13217 = vmatprep.subr.bf16.mxu0 0
  %13218 = vmatpush1.bf16.msra.mxu0 %v13034
  %13219 = vmatprep.subr.bf16.mxu0 0
  %13220 = vmatpush1.bf16.msra.mxu0 %v13033
  %13221 = vmatprep.subr.bf16.mxu0 0
  %13222 = vmatpush1.bf16.msra.mxu0 %v13032
  %13223 = vmatprep.subr.bf16.mxu0 0
  %13224 = vmatpush1.bf16.msra.mxu0 %v13031
  %13225 = vmatprep.subr.bf16.mxu0 0
  %13226 = vmatpush1.bf16.msra.mxu0 %v13030
  %13227 = vmatprep.subr.bf16.mxu0 0
  %13228 = vmatpush1.bf16.msra.mxu0 %v13029
  %13229 = vmatprep.subr.bf16.mxu0 0
  %13230 = vmatpush2.bf16.msra.mxu0 %v13044
  %13231 = vmatprep.subr.bf16.mxu0 0
  %13232 = vmatpush2.bf16.msra.mxu0 %v13043
  %13233 = vmatprep.subr.bf16.mxu0 0
  %13234 = vmatpush2.bf16.msra.mxu0 %v13042
  %13235 = vmatprep.subr.bf16.mxu0 0
  %13236 = vmatpush2.bf16.msra.mxu0 %v13041
  %13237 = vmatprep.subr.bf16.mxu0 0
  %13238 = vmatpush2.bf16.msra.mxu0 %v13040
  %13239 = vmatprep.subr.bf16.mxu0 0
  %13240 = vmatpush2.bf16.msra.mxu0 %v13039
  %13241 = vmatprep.subr.bf16.mxu0 0
  %13242 = vmatpush2.bf16.msra.mxu0 %v13038
  %13243 = vmatprep.subr.bf16.mxu0 0
  %13244 = vmatpush2.bf16.msra.mxu0 %v13037
  %13245 = vmatprep.mubr.bf16.mxu0 %v13186
  %13246 = vmatmul.mubr.bf16.gmra.mxu0 %v13185
  %v13247 = vpop.f32.mrf.mxu0
  %v13248 = vadd.f32 %v13076, %v13247
  %v13249 = vpop.f32.mrf.mxu0
  %v13250 = vpop.f32.mrf.mxu0
  %v13251 = vadd.f32 %v13081, %v13250
  %v13252 = vpop.f32.mrf.mxu0
  %13253 = vmatprep.mubr.bf16.mxu0 %v13188
  %13254 = vmatmul.mubr.bf16.gmra.mxu0 %v13187
  %v13255 = vpop.f32.mrf.mxu0
  %v13256 = vadd.f32 %v13086, %v13255
  %v13257 = vpop.f32.mrf.mxu0
  %v13258 = vpop.f32.mrf.mxu0
  %v13259 = vadd.f32 %v13091, %v13258
  %v13260 = vpop.f32.mrf.mxu0
  %13261 = vmatprep.mubr.bf16.mxu0 %v13190
  %13262 = vmatmul.mubr.bf16.gmra.mxu0 %v13189
  %v13263 = vpop.f32.mrf.mxu0
  %v13264 = vadd.f32 %v13096, %v13263
  %v13265 = vpop.f32.mrf.mxu0
  %v13266 = vpop.f32.mrf.mxu0
  %v13267 = vadd.f32 %v13101, %v13266
  %v13268 = vpop.f32.mrf.mxu0
  %13269 = vmatprep.mubr.bf16.mxu0 %v13192
  %13270 = vmatmul.mubr.bf16.gmra.mxu0 %v13191
  %v13271 = vpop.f32.mrf.mxu0
  %v13272 = vadd.f32 %v13106, %v13271
  %v13273 = vpop.f32.mrf.mxu0
  %v13274 = vpop.f32.mrf.mxu0
  %v13275 = vadd.f32 %v13111, %v13274
  %v13276 = vpop.f32.mrf.mxu0
  %13277 = vmatprep.mubr.bf16.mxu0 %v13194
  %13278 = vmatmul.mubr.bf16.gmra.mxu0 %v13193
  %v13279 = vpop.f32.mrf.mxu0
  %v13280 = vadd.f32 %v13116, %v13279
  %v13281 = vpop.f32.mrf.mxu0
  %v13282 = vpop.f32.mrf.mxu0
  %v13283 = vadd.f32 %v13121, %v13282
  %v13284 = vpop.f32.mrf.mxu0
  %13285 = vmatprep.mubr.bf16.mxu0 %v13196
  %13286 = vmatmul.mubr.bf16.gmra.mxu0 %v13195
  %v13287 = vpop.f32.mrf.mxu0
  %v13288 = vadd.f32 %v13126, %v13287
  %v13289 = vpop.f32.mrf.mxu0
  %v13290 = vpop.f32.mrf.mxu0
  %v13291 = vadd.f32 %v13131, %v13290
  %v13292 = vpop.f32.mrf.mxu0
  %13293 = vmatprep.mubr.bf16.mxu0 %v13198
  %13294 = vmatmul.mubr.bf16.gmra.mxu0 %v13197
  %v13295 = vpop.f32.mrf.mxu0
  %v13296 = vadd.f32 %v13136, %v13295
  %v13297 = vpop.f32.mrf.mxu0
  %v13298 = vpop.f32.mrf.mxu0
  %v13299 = vadd.f32 %v13141, %v13298
  %v13300 = vpop.f32.mrf.mxu0
  %13301 = vdwg.mxu0
  %v13302 = vmax.f32 %v13248, 0.0
  %v13303 = vmax.f32 %v13251, 0.0
  %v13304 = vmax.f32 %v13256, 0.0
  %v13305 = vmax.f32 %v13259, 0.0
  %v13306 = vmax.f32 %v13264, 0.0
  %v13307 = vmax.f32 %v13267, 0.0
  %v13308 = vmax.f32 %v13272, 0.0
  %v13309 = vmax.f32 %v13275, 0.0
  %v13310 = vmax.f32 %v13280, 0.0
  %v13311 = vmax.f32 %v13283, 0.0
  %v13312 = vmax.f32 %v13288, 0.0
  %v13313 = vmax.f32 %v13291, 0.0
  %v13314 = vmax.f32 %v13296, 0.0
  %v13315 = vmax.f32 %v13299, 0.0
  %v13316 = vld [vmem:[%s13] sm:$0xf]
  %v13317 = vld [vmem:[%s13 + $0x4] sm:$0xf]
  %v13318 = vld [vmem:[%s13 + $0x8] sm:$0xf]
  %v13319 = vld [vmem:[%s13 + $0xc] sm:$0xf]
  %v13320 = vld [vmem:[%s13 + $0x10] sm:$0xf]
  %v13321 = vld [vmem:[%s13 + $0x14] sm:$0xf]
  %v13322 = vld [vmem:[%s13 + $0x18] sm:$0xf]
  %v13323 = vld [vmem:[%s13 + $0x1c] sm:$0xf]
  %v13324 = vld [vmem:[%s13 + $0x20] sm:$0xf]
  %v13325 = vld [vmem:[%s13 + $0x24] sm:$0xf]
  %v13326 = vld [vmem:[%s13 + $0x28] sm:$0xf]
  %v13327 = vld [vmem:[%s13 + $0x2c] sm:$0xf]
  %v13328 = vld [vmem:[%s13 + $0x30] sm:$0xf]
  %v13329 = vld [vmem:[%s13 + $0x34] sm:$0xf]
  %v13330 = vld [vmem:[%s13 + $0x38] sm:$0xf]
  %v13331 = vld [vmem:[%s13 + $0x3c] sm:$0xf]
  %v13332 = vld [vmem:[%s13 + $0x40] sm:$0xf]
  %v13333 = vld [vmem:[%s13 + $0x44] sm:$0xf]
  %v13334 = vld [vmem:[%s13 + $0x48] sm:$0x7]
  %v13335 = vpack.c.bf16 %v13303, %v13302
  %v13336 = vpack.c.bf16 %v13305, %v13304
  %v13337 = vpack.c.bf16 %v13307, %v13306
  %v13338 = vpack.c.bf16 %v13309, %v13308
  %v13339 = vpack.c.bf16 %v13311, %v13310
  %v13340 = vpack.c.bf16 %v13313, %v13312
  %v13341 = vpack.c.bf16 %v13315, %v13314
  %v13342 = vld [vmem:[%s14] sm:$0xff]
  %v13343 = vld [vmem:[%s14 + $0x8] sm:$0xff]
  %v13344 = vld [vmem:[%s14 + $0x10] sm:$0xff]
  %v13345 = vld [vmem:[%s14 + $0x18] sm:$0xff]
  %v13346 = vld [vmem:[%s14 + $0x20] sm:$0xff]
  %v13347 = vld [vmem:[%s14 + $0x28] sm:$0xff]
  %v13348 = vld [vmem:[%s14 + $0x30] sm:$0xff]
  %v13349 = vld [vmem:[%s14 + $0x38] sm:$0xff]
  %v13350 = vld [vmem:[%s14 + $0x40] sm:$0xff]
  %v13351 = vld [vmem:[%s14 + $0x48] sm:$0xff]
  %v13352 = vld [vmem:[%s14 + $0x50] sm:$0xff]
  %v13353 = vld [vmem:[%s14 + $0x58] sm:$0xff]
  %v13354 = vld [vmem:[%s14 + $0x60] sm:$0xff]
  %v13355 = vld [vmem:[%s14 + $0x68] sm:$0xff]
  %v13356 = vld [vmem:[%s14 + $0x70] sm:$0xff]
  %v13357 = vld [vmem:[%s14 + $0x78] sm:$0xff]
  %v13358 = vld [vmem:[%s14 + $0x80] sm:$0xff]
  %v13359 = vld [vmem:[%s14 + $0x88] sm:$0xff]
  %v13360 = vld [vmem:[%s14 + $0x90] sm:$0x3f]
  %13362 = vset.pattern.permute.xlu0 0
  %13363 = vperm.xlu0 %13362, %v13342
  %v13364 = vpop.permute.xlu0 %13363
  %13367 = vset.pattern.permute.xlu0 0
  %13368 = vperm.xlu0 %13367, %v13343
  %v13369 = vpop.permute.xlu0 %13368
  %13372 = vset.pattern.permute.xlu0 0
  %13373 = vperm.xlu0 %13372, %v13344
  %v13374 = vpop.permute.xlu0 %13373
  %13377 = vset.pattern.permute.xlu0 0
  %13378 = vperm.xlu0 %13377, %v13345
  %v13379 = vpop.permute.xlu0 %13378
  %13382 = vset.pattern.permute.xlu0 0
  %13383 = vperm.xlu0 %13382, %v13346
  %v13384 = vpop.permute.xlu0 %13383
  %13387 = vset.pattern.permute.xlu0 0
  %13388 = vperm.xlu0 %13387, %v13347
  %v13389 = vpop.permute.xlu0 %13388
  %13392 = vset.pattern.permute.xlu0 0
  %13393 = vperm.xlu0 %13392, %v13348
  %v13394 = vpop.permute.xlu0 %13393
  %13397 = vset.pattern.permute.xlu0 0
  %13398 = vperm.xlu0 %13397, %v13349
  %v13399 = vpop.permute.xlu0 %13398
  %13402 = vset.pattern.permute.xlu0 0
  %13403 = vperm.xlu0 %13402, %v13350
  %v13404 = vpop.permute.xlu0 %13403
  %13407 = vset.pattern.permute.xlu0 0
  %13408 = vperm.xlu0 %13407, %v13351
  %v13409 = vpop.permute.xlu0 %13408
  %13412 = vset.pattern.permute.xlu0 0
  %13413 = vperm.xlu0 %13412, %v13352
  %v13414 = vpop.permute.xlu0 %13413
  %13417 = vset.pattern.permute.xlu0 0
  %13418 = vperm.xlu0 %13417, %v13353
  %v13419 = vpop.permute.xlu0 %13418
  %13422 = vset.pattern.permute.xlu0 0
  %13423 = vperm.xlu0 %13422, %v13354
  %v13424 = vpop.permute.xlu0 %13423
  %13427 = vset.pattern.permute.xlu0 0
  %13428 = vperm.xlu0 %13427, %v13355
  %v13429 = vpop.permute.xlu0 %13428
  %13432 = vset.pattern.permute.xlu0 0
  %13433 = vperm.xlu0 %13432, %v13356
  %v13434 = vpop.permute.xlu0 %13433
  %13437 = vset.pattern.permute.xlu0 0
  %13438 = vperm.xlu0 %13437, %v13357
  %v13439 = vpop.permute.xlu0 %13438
  %13442 = vset.pattern.permute.xlu0 0
  %13443 = vperm.xlu0 %13442, %v13358
  %v13444 = vpop.permute.xlu0 %13443
  %13447 = vset.pattern.permute.xlu0 0
  %13448 = vperm.xlu0 %13447, %v13359
  %v13449 = vpop.permute.xlu0 %13448
  %13452 = vset.pattern.permute.xlu0 0
  %13453 = vperm.xlu0 %13452, %v13360
  %v13454 = vpop.permute.xlu0 %13453
  %v13475 = vunpack.c.l.b16 %v13316
  %v13476 = vunpack.c.l.b16 %v13317
  %v13477 = vunpack.c.l.b16 %v13318
  %v13478 = vunpack.c.l.b16 %v13319
  %v13479 = vunpack.c.l.b16 %v13320
  %v13480 = vunpack.c.l.b16 %v13321
  %v13481 = vunpack.c.l.b16 %v13322
  %v13482 = vunpack.c.l.b16 %v13323
  %v13483 = vunpack.c.l.b16 %v13324
  %v13484 = vunpack.c.l.b16 %v13325
  %v13485 = vunpack.c.l.b16 %v13326
  %v13486 = vunpack.c.l.b16 %v13327
  %v13487 = vunpack.c.l.b16 %v13328
  %v13488 = vunpack.c.l.b16 %v13329
  %v13489 = vunpack.c.l.b16 %v13330
  %v13490 = vunpack.c.l.b16 %v13331
  %v13491 = vunpack.c.l.b16 %v13332
  %v13492 = vunpack.c.l.b16 %v13333
  %v13493 = vunpack.c.l.b16 %v13334
  %v13494 = vpack.c.b16 %v13476, %v13475
  %v13495 = vpack.c.b16 %v13478, %v13477
  %v13496 = vpack.c.b16 %v13480, %v13479
  %v13497 = vpack.c.b16 %v13482, %v13481
  %v13498 = vpack.c.b16 %v13484, %v13483
  %v13499 = vpack.c.b16 %v13486, %v13485
  %v13500 = vpack.c.b16 %v13488, %v13487
  %v13501 = vpack.c.b16 %v13490, %v13489
  %v13502 = vpack.c.b16 %v13492, %v13491
  %v13503 = vpack.c.b16 %v13493, %v13493
  %vm13504 = vcmask 900096
  %v13506 = vsel %vm13504, %v13494, 0
  %v13509 = vsel %vm13504, %v13495, 0
  %v13512 = vsel %vm13504, %v13496, 0
  %v13515 = vsel %vm13504, %v13497, 0
  %v13518 = vsel %vm13504, %v13498, 0
  %v13521 = vsel %vm13504, %v13499, 0
  %v13524 = vsel %vm13504, %v13500, 0
  %v13527 = vsel %vm13504, %v13501, 0
  %v13530 = vsel %vm13504, %v13502, 0
  %v13533 = vsel %vm13504, %v13503, 0
  %vm13535 = vcmask 1046528
  %v13537 = vsel %vm13535, %v13341, 0
  %13539 = vmatprep.subr.bf16.mxu0 0
  %13540 = vmatpush1.bf16.msra.mxu0 0
  %13541 = vmatprep.subr.bf16.mxu0 0
  %13542 = vmatpush1.bf16.msra.mxu0 %v13537
  %13543 = vmatprep.subr.bf16.mxu0 0
  %13544 = vmatpush1.bf16.msra.mxu0 %v13340
  %13545 = vmatprep.subr.bf16.mxu0 0
  %13546 = vmatpush1.bf16.msra.mxu0 %v13339
  %13547 = vmatprep.subr.bf16.mxu0 0
  %13548 = vmatpush1.bf16.msra.mxu0 %v13338
  %13549 = vmatprep.subr.bf16.mxu0 0
  %13550 = vmatpush1.bf16.msra.mxu0 %v13337
  %13551 = vmatprep.subr.bf16.mxu0 0
  %13552 = vmatpush1.bf16.msra.mxu0 %v13336
  %13553 = vmatprep.subr.bf16.mxu0 0
  %13554 = vmatpush1.bf16.msra.mxu0 %v13335
  %13555 = vmatprep.subr.bf16.mxu0 0
  %13556 = vmatpush2.bf16.msra.mxu0 0
  %13557 = vmatprep.subr.bf16.mxu0 0
  %13558 = vmatpush2.bf16.msra.mxu0 0
  %13559 = vmatprep.subr.bf16.mxu0 0
  %13560 = vmatpush2.bf16.msra.mxu0 0
  %13561 = vmatprep.subr.bf16.mxu0 0
  %13562 = vmatpush2.bf16.msra.mxu0 0
  %13563 = vmatprep.subr.bf16.mxu0 0
  %13564 = vmatpush2.bf16.msra.mxu0 0
  %13565 = vmatprep.subr.bf16.mxu0 0
  %13566 = vmatpush2.bf16.msra.mxu0 0
  %13567 = vmatprep.subr.bf16.mxu0 0
  %13568 = vmatpush2.bf16.msra.mxu0 0
  %13569 = vmatprep.subr.bf16.mxu0 0
  %13570 = vmatpush2.bf16.msra.mxu0 0
  %13571 = vmatprep.mubr.bf16.mxu0 0
  %13572 = vmatmul.mubr.bf16.gmra.mxu0 %v13506
  %v13573 = vpop.f32.mrf.mxu0
  %v13574 = vadd.f32 %v13364, %v13573
  %v13575 = vpop.f32.mrf.mxu0
  %v13576 = vpop.f32.mrf.mxu0
  %v13577 = vadd.f32 %v13369, %v13576
  %v13578 = vpop.f32.mrf.mxu0
  %13579 = vmatprep.mubr.bf16.mxu0 0
  %13580 = vmatmul.mubr.bf16.gmra.mxu0 %v13509
  %v13581 = vpop.f32.mrf.mxu0
  %v13582 = vadd.f32 %v13374, %v13581
  %v13583 = vpop.f32.mrf.mxu0
  %v13584 = vpop.f32.mrf.mxu0
  %v13585 = vadd.f32 %v13379, %v13584
  %v13586 = vpop.f32.mrf.mxu0
  %13587 = vmatprep.mubr.bf16.mxu0 0
  %13588 = vmatmul.mubr.bf16.gmra.mxu0 %v13512
  %v13589 = vpop.f32.mrf.mxu0
  %v13590 = vadd.f32 %v13384, %v13589
  %v13591 = vpop.f32.mrf.mxu0
  %v13592 = vpop.f32.mrf.mxu0
  %v13593 = vadd.f32 %v13389, %v13592
  %v13594 = vpop.f32.mrf.mxu0
  %13595 = vmatprep.mubr.bf16.mxu0 0
  %13596 = vmatmul.mubr.bf16.gmra.mxu0 %v13515
  %v13597 = vpop.f32.mrf.mxu0
  %v13598 = vadd.f32 %v13394, %v13597
  %v13599 = vpop.f32.mrf.mxu0
  %v13600 = vpop.f32.mrf.mxu0
  %v13601 = vadd.f32 %v13399, %v13600
  %v13602 = vpop.f32.mrf.mxu0
  %13603 = vmatprep.mubr.bf16.mxu0 0
  %13604 = vmatmul.mubr.bf16.gmra.mxu0 %v13518
  %v13605 = vpop.f32.mrf.mxu0
  %v13606 = vadd.f32 %v13404, %v13605
  %v13607 = vpop.f32.mrf.mxu0
  %v13608 = vpop.f32.mrf.mxu0
  %v13609 = vadd.f32 %v13409, %v13608
  %v13610 = vpop.f32.mrf.mxu0
  %13611 = vmatprep.mubr.bf16.mxu0 0
  %13612 = vmatmul.mubr.bf16.gmra.mxu0 %v13521
  %v13613 = vpop.f32.mrf.mxu0
  %v13614 = vadd.f32 %v13414, %v13613
  %v13615 = vpop.f32.mrf.mxu0
  %v13616 = vpop.f32.mrf.mxu0
  %v13617 = vadd.f32 %v13419, %v13616
  %v13618 = vpop.f32.mrf.mxu0
  %13619 = vmatprep.mubr.bf16.mxu0 0
  %13620 = vmatmul.mubr.bf16.gmra.mxu0 %v13524
  %v13621 = vpop.f32.mrf.mxu0
  %v13622 = vadd.f32 %v13424, %v13621
  %v13623 = vpop.f32.mrf.mxu0
  %v13624 = vpop.f32.mrf.mxu0
  %v13625 = vadd.f32 %v13429, %v13624
  %v13626 = vpop.f32.mrf.mxu0
  %13627 = vmatprep.mubr.bf16.mxu0 0
  %13628 = vmatmul.mubr.bf16.gmra.mxu0 %v13527
  %v13629 = vpop.f32.mrf.mxu0
  %v13630 = vadd.f32 %v13434, %v13629
  %v13631 = vpop.f32.mrf.mxu0
  %v13632 = vpop.f32.mrf.mxu0
  %v13633 = vadd.f32 %v13439, %v13632
  %v13634 = vpop.f32.mrf.mxu0
  %13635 = vmatprep.mubr.bf16.mxu0 0
  %13636 = vmatmul.mubr.bf16.gmra.mxu0 %v13530
  %v13637 = vpop.f32.mrf.mxu0
  %v13638 = vadd.f32 %v13444, %v13637
  %v13639 = vpop.f32.mrf.mxu0
  %v13640 = vpop.f32.mrf.mxu0
  %v13641 = vadd.f32 %v13449, %v13640
  %v13642 = vpop.f32.mrf.mxu0
  %13643 = vmatprep.mubr.bf16.mxu0 0
  %13644 = vmatmul.mubr.bf16.gmra.mxu0 %v13533
  %v13645 = vpop.f32.mrf.mxu0
  %v13646 = vadd.f32 %v13454, %v13645
  %v13647 = vpop.f32.mrf.mxu0
  %v13648 = vpop.f32.mrf.mxu0
  %v13649 = vpop.f32.mrf.mxu0
  %13650 = vdwg.mxu0
  %v13651 = vmax.f32 %v13574, 0.0
  %v13652 = vmax.f32 %v13577, 0.0
  %v13653 = vmax.f32 %v13582, 0.0
  %v13654 = vmax.f32 %v13585, 0.0
  %v13655 = vmax.f32 %v13590, 0.0
  %v13656 = vmax.f32 %v13593, 0.0
  %v13657 = vmax.f32 %v13598, 0.0
  %v13658 = vmax.f32 %v13601, 0.0
  %v13659 = vmax.f32 %v13606, 0.0
  %v13660 = vmax.f32 %v13609, 0.0
  %v13661 = vmax.f32 %v13614, 0.0
  %v13662 = vmax.f32 %v13617, 0.0
  %v13663 = vmax.f32 %v13622, 0.0
  %v13664 = vmax.f32 %v13625, 0.0
  %v13665 = vmax.f32 %v13630, 0.0
  %v13666 = vmax.f32 %v13633, 0.0
  %v13667 = vmax.f32 %v13638, 0.0
  %v13668 = vmax.f32 %v13641, 0.0
  %v13669 = vmax.f32 %v13646, 0.0
  %v13670 = vld [vmem:[%s15] sm:$0xff]
  %v13671 = vld [vmem:[%s15 + $0x8] sm:$0xff]
  %v13672 = vld [vmem:[%s15 + $0x10] sm:$0xff]
  %v13673 = vld [vmem:[%s15 + $0x18] sm:$0xff]
  %v13674 = vld [vmem:[%s15 + $0x20] sm:$0xff]
  %v13675 = vld [vmem:[%s15 + $0x28] sm:$0xff]
  %v13676 = vld [vmem:[%s15 + $0x30] sm:$0xff]
  %v13677 = vld [vmem:[%s15 + $0x38] sm:$0xff]
  %v13678 = vld [vmem:[%s15 + $0x40] sm:$0xff]
  %v13679 = vld [vmem:[%s15 + $0x48] sm:$0xff]
  %v13680 = vld [vmem:[%s15 + $0x50] sm:$0xff]
  %v13681 = vld [vmem:[%s15 + $0x58] sm:$0xff]
  %v13682 = vld [vmem:[%s15 + $0x60] sm:$0xff]
  %v13683 = vld [vmem:[%s15 + $0x68] sm:$0xff]
  %v13684 = vld [vmem:[%s15 + $0x70] sm:$0xff]
  %v13685 = vld [vmem:[%s15 + $0x78] sm:$0xff]
  %v13686 = vld [vmem:[%s15 + $0x80] sm:$0x11]
  %v13687 = vpack.c.bf16 %v13652, %v13651
  %v13688 = vpack.c.bf16 %v13654, %v13653
  %v13689 = vpack.c.bf16 %v13656, %v13655
  %v13690 = vpack.c.bf16 %v13658, %v13657
  %v13691 = vpack.c.bf16 %v13660, %v13659
  %v13692 = vpack.c.bf16 %v13662, %v13661
  %v13693 = vpack.c.bf16 %v13664, %v13663
  %v13694 = vpack.c.bf16 %v13666, %v13665
  %v13695 = vpack.c.bf16 %v13668, %v13667
  %v13696 = vpack.c.bf16 %v13669, %v13669
  %v13697 = vld [vmem:[%s16] sm:$0xff]
  %v13698 = vld [vmem:[%s16 + $0x8] sm:$0xff]
  %v13699 = vld [vmem:[%s16 + $0x10] sm:$0xff]
  %v13700 = vld [vmem:[%s16 + $0x18] sm:$0xff]
  %v13701 = vld [vmem:[%s16 + $0x20] sm:$0xff]
  %v13702 = vld [vmem:[%s16 + $0x28] sm:$0xff]
  %v13703 = vld [vmem:[%s16 + $0x30] sm:$0xff]
  %v13704 = vld [vmem:[%s16 + $0x38] sm:$0xff]
  %v13705 = vld [vmem:[%s16 + $0x40] sm:$0xff]
  %v13706 = vld [vmem:[%s16 + $0x48] sm:$0xff]
  %v13707 = vld [vmem:[%s16 + $0x50] sm:$0xff]
  %v13708 = vld [vmem:[%s16 + $0x58] sm:$0xff]
  %v13709 = vld [vmem:[%s16 + $0x60] sm:$0xff]
  %v13710 = vld [vmem:[%s16 + $0x68] sm:$0xff]
  %v13711 = vld [vmem:[%s16 + $0x70] sm:$0xff]
  %v13712 = vld [vmem:[%s16 + $0x78] sm:$0xff]
  %v13713 = vld [vmem:[%s16 + $0x80] sm:$0x3]
  %13715 = vset.pattern.permute.xlu0 0
  %13716 = vperm.xlu0 %13715, %v13697
  %v13717 = vpop.permute.xlu0 %13716
  %13720 = vset.pattern.permute.xlu0 0
  %13721 = vperm.xlu0 %13720, %v13698
  %v13722 = vpop.permute.xlu0 %13721
  %13725 = vset.pattern.permute.xlu0 0
  %13726 = vperm.xlu0 %13725, %v13699
  %v13727 = vpop.permute.xlu0 %13726
  %13730 = vset.pattern.permute.xlu0 0
  %13731 = vperm.xlu0 %13730, %v13700
  %v13732 = vpop.permute.xlu0 %13731
  %13735 = vset.pattern.permute.xlu0 0
  %13736 = vperm.xlu0 %13735, %v13701
  %v13737 = vpop.permute.xlu0 %13736
  %13740 = vset.pattern.permute.xlu0 0
  %13741 = vperm.xlu0 %13740, %v13702
  %v13742 = vpop.permute.xlu0 %13741
  %13745 = vset.pattern.permute.xlu0 0
  %13746 = vperm.xlu0 %13745, %v13703
  %v13747 = vpop.permute.xlu0 %13746
  %13750 = vset.pattern.permute.xlu0 0
  %13751 = vperm.xlu0 %13750, %v13704
  %v13752 = vpop.permute.xlu0 %13751
  %13755 = vset.pattern.permute.xlu0 0
  %13756 = vperm.xlu0 %13755, %v13705
  %v13757 = vpop.permute.xlu0 %13756
  %13760 = vset.pattern.permute.xlu0 0
  %13761 = vperm.xlu0 %13760, %v13706
  %v13762 = vpop.permute.xlu0 %13761
  %13765 = vset.pattern.permute.xlu0 0
  %13766 = vperm.xlu0 %13765, %v13707
  %v13767 = vpop.permute.xlu0 %13766
  %13770 = vset.pattern.permute.xlu0 0
  %13771 = vperm.xlu0 %13770, %v13708
  %v13772 = vpop.permute.xlu0 %13771
  %13775 = vset.pattern.permute.xlu0 0
  %13776 = vperm.xlu0 %13775, %v13709
  %v13777 = vpop.permute.xlu0 %13776
  %13780 = vset.pattern.permute.xlu0 0
  %13781 = vperm.xlu0 %13780, %v13710
  %v13782 = vpop.permute.xlu0 %13781
  %13785 = vset.pattern.permute.xlu0 0
  %13786 = vperm.xlu0 %13785, %v13711
  %v13787 = vpop.permute.xlu0 %13786
  %13790 = vset.pattern.permute.xlu0 0
  %13791 = vperm.xlu0 %13790, %v13712
  %v13792 = vpop.permute.xlu0 %13791
  %13795 = vset.pattern.permute.xlu0 0
  %13796 = vperm.xlu0 %13795, %v13713
  %v13797 = vpop.permute.xlu0 %13796
  %v13816 = vunpack.c.l.b16 %v13670
  %v13817 = vunpack.c.h.b16 %v13670
  %v13818 = vunpack.c.l.b16 %v13671
  %v13819 = vunpack.c.h.b16 %v13671
  %v13820 = vunpack.c.l.b16 %v13672
  %v13821 = vunpack.c.h.b16 %v13672
  %v13822 = vunpack.c.l.b16 %v13673
  %v13823 = vunpack.c.h.b16 %v13673
  %v13824 = vunpack.c.l.b16 %v13674
  %v13825 = vunpack.c.h.b16 %v13674
  %v13826 = vunpack.c.l.b16 %v13675
  %v13827 = vunpack.c.h.b16 %v13675
  %v13828 = vunpack.c.l.b16 %v13676
  %v13829 = vunpack.c.h.b16 %v13676
  %v13830 = vunpack.c.l.b16 %v13677
  %v13831 = vunpack.c.h.b16 %v13677
  %v13832 = vunpack.c.l.b16 %v13678
  %v13833 = vunpack.c.h.b16 %v13678
  %v13834 = vunpack.c.l.b16 %v13679
  %v13835 = vunpack.c.h.b16 %v13679
  %v13836 = vunpack.c.l.b16 %v13680
  %v13837 = vunpack.c.h.b16 %v13680
  %v13838 = vunpack.c.l.b16 %v13681
  %v13839 = vunpack.c.h.b16 %v13681
  %v13840 = vunpack.c.l.b16 %v13682
  %v13841 = vunpack.c.h.b16 %v13682
  %v13842 = vunpack.c.l.b16 %v13683
  %v13843 = vunpack.c.h.b16 %v13683
  %v13844 = vunpack.c.l.b16 %v13684
  %v13845 = vunpack.c.h.b16 %v13684
  %v13846 = vunpack.c.l.b16 %v13685
  %v13847 = vunpack.c.h.b16 %v13685
  %v13848 = vunpack.c.l.b16 %v13686
  %v13849 = vunpack.c.h.b16 %v13686
  %v13850 = vpack.c.b16 %v13818, %v13816
  %v13851 = vpack.c.b16 %v13819, %v13817
  %v13852 = vpack.c.b16 %v13822, %v13820
  %v13853 = vpack.c.b16 %v13823, %v13821
  %v13854 = vpack.c.b16 %v13826, %v13824
  %v13855 = vpack.c.b16 %v13827, %v13825
  %v13856 = vpack.c.b16 %v13830, %v13828
  %v13857 = vpack.c.b16 %v13831, %v13829
  %v13858 = vpack.c.b16 %v13834, %v13832
  %v13859 = vpack.c.b16 %v13835, %v13833
  %v13860 = vpack.c.b16 %v13838, %v13836
  %v13861 = vpack.c.b16 %v13839, %v13837
  %v13862 = vpack.c.b16 %v13842, %v13840
  %v13863 = vpack.c.b16 %v13843, %v13841
  %v13864 = vpack.c.b16 %v13846, %v13844
  %v13865 = vpack.c.b16 %v13847, %v13845
  %v13866 = vpack.c.b16 %v13848, %v13848
  %v13867 = vpack.c.b16 %v13849, %v13849
  %vm13877 = vcmask 179200
  %v13879 = vsel %vm13877, %v13851, 0
  %v13882 = vsel %vm13877, %v13853, 0
  %v13885 = vsel %vm13877, %v13855, 0
  %v13888 = vsel %vm13877, %v13857, 0
  %v13891 = vsel %vm13877, %v13859, 0
  %v13894 = vsel %vm13877, %v13861, 0
  %v13897 = vsel %vm13877, %v13863, 0
  %v13900 = vsel %vm13877, %v13865, 0
  %v13903 = vsel %vm13877, %v13867, 0
  %vm13905 = vcmask 1042432
  %v13907 = vsel %vm13905, %v13696, 0
  %13909 = vmatprep.subr.bf16.mxu0 0
  %13910 = vmatpush1.bf16.msra.mxu0 %v13694
  %13911 = vmatprep.subr.bf16.mxu0 0
  %13912 = vmatpush1.bf16.msra.mxu0 %v13693
  %13913 = vmatprep.subr.bf16.mxu0 0
  %13914 = vmatpush1.bf16.msra.mxu0 %v13692
  %13915 = vmatprep.subr.bf16.mxu0 0
  %13916 = vmatpush1.bf16.msra.mxu0 %v13691
  %13917 = vmatprep.subr.bf16.mxu0 0
  %13918 = vmatpush1.bf16.msra.mxu0 %v13690
  %13919 = vmatprep.subr.bf16.mxu0 0
  %13920 = vmatpush1.bf16.msra.mxu0 %v13689
  %13921 = vmatprep.subr.bf16.mxu0 0
  %13922 = vmatpush1.bf16.msra.mxu0 %v13688
  %13923 = vmatprep.subr.bf16.mxu0 0
  %13924 = vmatpush1.bf16.msra.mxu0 %v13687
  %13925 = vmatprep.subr.bf16.mxu0 0
  %13926 = vmatpush2.bf16.msra.mxu0 0
  %13927 = vmatprep.subr.bf16.mxu0 0
  %13928 = vmatpush2.bf16.msra.mxu0 0
  %13929 = vmatprep.subr.bf16.mxu0 0
  %13930 = vmatpush2.bf16.msra.mxu0 0
  %13931 = vmatprep.subr.bf16.mxu0 0
  %13932 = vmatpush2.bf16.msra.mxu0 0
  %13933 = vmatprep.subr.bf16.mxu0 0
  %13934 = vmatpush2.bf16.msra.mxu0 0
  %13935 = vmatprep.subr.bf16.mxu0 0
  %13936 = vmatpush2.bf16.msra.mxu0 0
  %13937 = vmatprep.subr.bf16.mxu0 0
  %13938 = vmatpush2.bf16.msra.mxu0 %v13907
  %13939 = vmatprep.subr.bf16.mxu0 0
  %13940 = vmatpush2.bf16.msra.mxu0 %v13695
  %13941 = vmatprep.mubr.bf16.mxu0 %v13879
  %13942 = vmatmul.mubr.bf16.gmra.mxu0 %v13850
  %v13943 = vpop.f32.mrf.mxu0
  %v13944 = vadd.f32 %v13717, %v13943
  %v13945 = vpop.f32.mrf.mxu0
  %v13946 = vpop.f32.mrf.mxu0
  %v13947 = vadd.f32 %v13722, %v13946
  %v13948 = vpop.f32.mrf.mxu0
  %13949 = vmatprep.mubr.bf16.mxu0 %v13882
  %13950 = vmatmul.mubr.bf16.gmra.mxu0 %v13852
  %v13951 = vpop.f32.mrf.mxu0
  %v13952 = vadd.f32 %v13727, %v13951
  %v13953 = vpop.f32.mrf.mxu0
  %v13954 = vpop.f32.mrf.mxu0
  %v13955 = vadd.f32 %v13732, %v13954
  %v13956 = vpop.f32.mrf.mxu0
  %13957 = vmatprep.mubr.bf16.mxu0 %v13885
  %13958 = vmatmul.mubr.bf16.gmra.mxu0 %v13854
  %v13959 = vpop.f32.mrf.mxu0
  %v13960 = vadd.f32 %v13737, %v13959
  %v13961 = vpop.f32.mrf.mxu0
  %v13962 = vpop.f32.mrf.mxu0
  %v13963 = vadd.f32 %v13742, %v13962
  %v13964 = vpop.f32.mrf.mxu0
  %13965 = vmatprep.mubr.bf16.mxu0 %v13888
  %13966 = vmatmul.mubr.bf16.gmra.mxu0 %v13856
  %v13967 = vpop.f32.mrf.mxu0
  %v13968 = vadd.f32 %v13747, %v13967
  %v13969 = vpop.f32.mrf.mxu0
  %v13970 = vpop.f32.mrf.mxu0
  %v13971 = vadd.f32 %v13752, %v13970
  %v13972 = vpop.f32.mrf.mxu0
  %13973 = vmatprep.mubr.bf16.mxu0 %v13891
  %13974 = vmatmul.mubr.bf16.gmra.mxu0 %v13858
  %v13975 = vpop.f32.mrf.mxu0
  %v13976 = vadd.f32 %v13757, %v13975
  %v13977 = vpop.f32.mrf.mxu0
  %v13978 = vpop.f32.mrf.mxu0
  %v13979 = vadd.f32 %v13762, %v13978
  %v13980 = vpop.f32.mrf.mxu0
  %13981 = vmatprep.mubr.bf16.mxu0 %v13894
  %13982 = vmatmul.mubr.bf16.gmra.mxu0 %v13860
  %v13983 = vpop.f32.mrf.mxu0
  %v13984 = vadd.f32 %v13767, %v13983
  %v13985 = vpop.f32.mrf.mxu0
  %v13986 = vpop.f32.mrf.mxu0
  %v13987 = vadd.f32 %v13772, %v13986
  %v13988 = vpop.f32.mrf.mxu0
  %13989 = vmatprep.mubr.bf16.mxu0 %v13897
  %13990 = vmatmul.mubr.bf16.gmra.mxu0 %v13862
  %v13991 = vpop.f32.mrf.mxu0
  %v13992 = vadd.f32 %v13777, %v13991
  %v13993 = vpop.f32.mrf.mxu0
  %v13994 = vpop.f32.mrf.mxu0
  %v13995 = vadd.f32 %v13782, %v13994
  %v13996 = vpop.f32.mrf.mxu0
  %13997 = vmatprep.mubr.bf16.mxu0 %v13900
  %13998 = vmatmul.mubr.bf16.gmra.mxu0 %v13864
  %v13999 = vpop.f32.mrf.mxu0
  %v14000 = vadd.f32 %v13787, %v13999
  %v14001 = vpop.f32.mrf.mxu0
  %v14002 = vpop.f32.mrf.mxu0
  %v14003 = vadd.f32 %v13792, %v14002
  %v14004 = vpop.f32.mrf.mxu0
  %14005 = vmatprep.mubr.bf16.mxu0 %v13903
  %14006 = vmatmul.mubr.bf16.gmra.mxu0 %v13866
  %v14007 = vpop.f32.mrf.mxu0
  %v14008 = vadd.f32 %v13797, %v14007
  %v14009 = vpop.f32.mrf.mxu0
  %v14010 = vpop.f32.mrf.mxu0
  %v14011 = vpop.f32.mrf.mxu0
  %14012 = vdwg.mxu0
  %v14013 = vmax.f32 %v13944, 0.0
  %v14014 = vmax.f32 %v13947, 0.0
  %v14015 = vmax.f32 %v13952, 0.0
  %v14016 = vmax.f32 %v13955, 0.0
  %v14017 = vmax.f32 %v13960, 0.0
  %v14018 = vmax.f32 %v13963, 0.0
  %v14019 = vmax.f32 %v13968, 0.0
  %v14020 = vmax.f32 %v13971, 0.0
  %v14021 = vmax.f32 %v13976, 0.0
  %v14022 = vmax.f32 %v13979, 0.0
  %v14023 = vmax.f32 %v13984, 0.0
  %v14024 = vmax.f32 %v13987, 0.0
  %v14025 = vmax.f32 %v13992, 0.0
  %v14026 = vmax.f32 %v13995, 0.0
  %v14027 = vmax.f32 %v14000, 0.0
  %v14028 = vmax.f32 %v14003, 0.0
  %v14029 = vmax.f32 %v14008, 0.0
  %v14030 = vld [vmem:[%s17] sm:$0xff]
  %v14031 = vld [vmem:[%s17 + $0x8] sm:$0xff]
  %v14032 = vld [vmem:[%s17 + $0x10] sm:$0xff]
  %v14033 = vld [vmem:[%s17 + $0x18] sm:$0xff]
  %v14034 = vld [vmem:[%s17 + $0x20] sm:$0x33]
  %v14035 = vpack.c.bf16 %v14014, %v14013
  %v14036 = vpack.c.bf16 %v14016, %v14015
  %v14037 = vpack.c.bf16 %v14018, %v14017
  %v14038 = vpack.c.bf16 %v14020, %v14019
  %v14039 = vpack.c.bf16 %v14022, %v14021
  %v14040 = vpack.c.bf16 %v14024, %v14023
  %v14041 = vpack.c.bf16 %v14026, %v14025
  %v14042 = vpack.c.bf16 %v14028, %v14027
  %v14043 = vpack.c.bf16 %v14029, %v14029
  %v14044 = vld [vmem:[%s18] sm:$0xff]
  %v14045 = vld [vmem:[%s18 + $0x8] sm:$0xff]
  %v14046 = vld [vmem:[%s18 + $0x10] sm:$0xff]
  %v14047 = vld [vmem:[%s18 + $0x18] sm:$0xff]
  %v14048 = vld [vmem:[%s18 + $0x20] sm:$0x7]
  %14050 = vset.pattern.permute.xlu0 0
  %14051 = vperm.xlu0 %14050, %v14044
  %v14052 = vpop.permute.xlu0 %14051
  %14055 = vset.pattern.permute.xlu0 0
  %14056 = vperm.xlu0 %14055, %v14045
  %v14057 = vpop.permute.xlu0 %14056
  %14060 = vset.pattern.permute.xlu0 0
  %14061 = vperm.xlu0 %14060, %v14046
  %v14062 = vpop.permute.xlu0 %14061
  %14065 = vset.pattern.permute.xlu0 0
  %14066 = vperm.xlu0 %14065, %v14047
  %v14067 = vpop.permute.xlu0 %14066
  %14070 = vset.pattern.permute.xlu0 0
  %14071 = vperm.xlu0 %14070, %v14048
  %v14072 = vpop.permute.xlu0 %14071
  %v14079 = vunpack.c.l.b16 %v14030
  %v14080 = vunpack.c.h.b16 %v14030
  %v14081 = vunpack.c.l.b16 %v14031
  %v14082 = vunpack.c.h.b16 %v14031
  %v14083 = vunpack.c.l.b16 %v14032
  %v14084 = vunpack.c.h.b16 %v14032
  %v14085 = vunpack.c.l.b16 %v14033
  %v14086 = vunpack.c.h.b16 %v14033
  %v14087 = vunpack.c.l.b16 %v14034
  %v14088 = vunpack.c.h.b16 %v14034
  %v14089 = vpack.c.b16 %v14081, %v14079
  %v14090 = vpack.c.b16 %v14082, %v14080
  %v14091 = vpack.c.b16 %v14085, %v14083
  %v14092 = vpack.c.b16 %v14086, %v14084
  %v14093 = vpack.c.b16 %v14087, %v14087
  %v14094 = vpack.c.b16 %v14088, %v14088
  %vm14098 = vcmask 15360
  %v14100 = vsel %vm14098, %v14090, 0
  %v14103 = vsel %vm14098, %v14092, 0
  %v14106 = vsel %vm14098, %v14094, 0
  %vm14108 = vcmask 1040384
  %v14110 = vsel %vm14108, %v14043, 0
  %14112 = vmatprep.subr.bf16.mxu0 0
  %14113 = vmatpush1.bf16.msra.mxu0 %v14042
  %14114 = vmatprep.subr.bf16.mxu0 0
  %14115 = vmatpush1.bf16.msra.mxu0 %v14041
  %14116 = vmatprep.subr.bf16.mxu0 0
  %14117 = vmatpush1.bf16.msra.mxu0 %v14040
  %14118 = vmatprep.subr.bf16.mxu0 0
  %14119 = vmatpush1.bf16.msra.mxu0 %v14039
  %14120 = vmatprep.subr.bf16.mxu0 0
  %14121 = vmatpush1.bf16.msra.mxu0 %v14038
  %14122 = vmatprep.subr.bf16.mxu0 0
  %14123 = vmatpush1.bf16.msra.mxu0 %v14037
  %14124 = vmatprep.subr.bf16.mxu0 0
  %14125 = vmatpush1.bf16.msra.mxu0 %v14036
  %14126 = vmatprep.subr.bf16.mxu0 0
  %14127 = vmatpush1.bf16.msra.mxu0 %v14035
  %14128 = vmatprep.subr.bf16.mxu0 0
  %14129 = vmatpush2.bf16.msra.mxu0 0
  %14130 = vmatprep.subr.bf16.mxu0 0
  %14131 = vmatpush2.bf16.msra.mxu0 0
  %14132 = vmatprep.subr.bf16.mxu0 0
  %14133 = vmatpush2.bf16.msra.mxu0 0
  %14134 = vmatprep.subr.bf16.mxu0 0
  %14135 = vmatpush2.bf16.msra.mxu0 0
  %14136 = vmatprep.subr.bf16.mxu0 0
  %14137 = vmatpush2.bf16.msra.mxu0 0
  %14138 = vmatprep.subr.bf16.mxu0 0
  %14139 = vmatpush2.bf16.msra.mxu0 0
  %14140 = vmatprep.subr.bf16.mxu0 0
  %14141 = vmatpush2.bf16.msra.mxu0 0
  %14142 = vmatprep.subr.bf16.mxu0 0
  %14143 = vmatpush2.bf16.msra.mxu0 %v14110
  %14144 = vmatprep.mubr.bf16.mxu0 %v14100
  %14145 = vmatmul.mubr.bf16.gmra.mxu0 %v14089
  %v14146 = vpop.f32.mrf.mxu0
  %v14147 = vadd.f32 %v14052, %v14146
  %v14148 = vpop.f32.mrf.mxu0
  %v14149 = vpop.f32.mrf.mxu0
  %v14150 = vadd.f32 %v14057, %v14149
  %v14151 = vpop.f32.mrf.mxu0
  %14152 = vmatprep.mubr.bf16.mxu0 %v14103
  %14153 = vmatmul.mubr.bf16.gmra.mxu0 %v14091
  %v14154 = vpop.f32.mrf.mxu0
  %v14155 = vadd.f32 %v14062, %v14154
  %v14156 = vpop.f32.mrf.mxu0
  %v14157 = vpop.f32.mrf.mxu0
  %v14158 = vadd.f32 %v14067, %v14157
  %v14159 = vpop.f32.mrf.mxu0
  %14160 = vmatprep.mubr.bf16.mxu0 %v14106
  %14161 = vmatmul.mubr.bf16.gmra.mxu0 %v14093
  %v14162 = vpop.f32.mrf.mxu0
  %v14163 = vadd.f32 %v14072, %v14162
  %v14164 = vpop.f32.mrf.mxu0
  %v14165 = vpop.f32.mrf.mxu0
  %v14166 = vpop.f32.mrf.mxu0
  %14167 = vdwg.mxu0
  %14168 = vst [vmem:[%s19] sm:$0xff] %v14147
  %14169 = vst [vmem:[%s19 + $0x8] sm:$0xff] %v14150
  %14170 = vst [vmem:[%s19 + $0x10] sm:$0xff] %v14155
  %14171 = vst [vmem:[%s19 + $0x18] sm:$0xff] %v14158
  %14172 = vst [vmem:[%s19 + $0x20] sm:$0x7] %v14163
  // Predicated region
  $region78: #{charcnn_forward.1} parent=0 // pred_check
    _
  $region79: #{charcnn_forward.1} parent=0 // pred_check_branch
    %14174 = sbr.rel (0) target = $region81
  $region80: #{charcnn_forward.1} parent=0 // pred_region
    _
  $region81: #{charcnn_forward.1} parent=0 // pred_fallthru
    _
  // Predicated region
  $region82: #{charcnn_forward.1} parent=0 // pred_check
    _
  $region83: #{charcnn_forward.1} parent=0 // pred_check_branch
    %14176 = sbr.rel (0) target = $region85
  $region84: #{charcnn_forward.1} parent=0 // pred_region
    _
  $region85: #{charcnn_forward.1} parent=0 // pred_fallthru
    _

</llo_original>
